<compile_context>
chip_gen: v7x
topology: tpu7x:2x2x1
jax: 0.10.0
libtpu: 0.0.40
codegen_flags: <defaults>
</compile_context>

<pallas_src>
from functools import partial

import numpy as np
import jax
import jax.numpy as jnp
from jax.experimental import pallas as pl
from jax.experimental.pallas import tpu as pltpu

EPS = 1e-5


def _bilinear_taps(in_size: int):
    """Static (i0, i1, w) taps for 2x bilinear upsampling, align_corners=True."""
    out_size = 2 * in_size
    if in_size == 1:
        return [(0, 0, 0.0)] * out_size
    scale = (in_size - 1) / (out_size - 1)
    taps = []
    for o in range(out_size):
        src = o * scale
        i0 = min(int(np.floor(src)), in_size - 1)
        i1 = min(i0 + 1, in_size - 1)
        taps.append((i0, i1, float(src - i0)))
    return taps


def _bilinear_matrix(in_size: int) -> np.ndarray:
    """1-D bilinear interpolation matrix (2x, align_corners=True)."""
    out_size = 2 * in_size
    A = np.zeros((out_size, in_size), np.float32)
    for o, (i0, i1, w) in enumerate(_bilinear_taps(in_size)):
        A[o, i0] += 1.0 - w
        A[o, i1] += w
    return A


def _decoder_kernel(x_ref, w1_ref, s1_ref, b1_ref, w2_ref, s2_ref, b2_ref,
                    aw_ref, out_ref,
                    xpad_ref, y1pad_ref, col1_ref, col2_ref,
                    *, H, W, Cin, Cout, h_taps, compute_dtype):
    """Fused conv->BN->ReLU->conv->BN->ReLU->bilinear-2x for one batch element.

    x_ref   : (1, H, W, Cin)        unpadded NHWC input tile
    w1_ref  : (9*Cin, Cout)         conv1 weights, taps folded into K
    s1/b1   : (1, Cout)             folded BN1 scale / bias (conv bias folded in)
    w2_ref  : (9*Cout, Cout)        conv2 weights
    s2/b2   : (1, Cout)             folded BN2 scale / bias
    aw_ref  : (2W, W)               1-D bilinear matrix for the W axis
    out_ref : (1, 2H, Cout, 2W)     output rows, channels-first per row
    scratch : xpad (H+2,W+2,Cin), y1pad (H+2,W+2,Cout),
              col1 (H,W,9*Cin), col2 (H,W,9*Cout)
    """
    HW = H * W
    f32 = jnp.float32

    # ---- in-kernel zero padding: only the 1-pixel borders are re-zeroed ----
    xpad_ref[0:1, :, :] = jnp.zeros((1, W + 2, Cin), f32)
    xpad_ref[H + 1:H + 2, :, :] = jnp.zeros((1, W + 2, Cin), f32)
    xpad_ref[:, 0:1, :] = jnp.zeros((H + 2, 1, Cin), f32)
    xpad_ref[:, W + 1:W + 2, :] = jnp.zeros((H + 2, 1, Cin), f32)
    y1pad_ref[0:1, :, :] = jnp.zeros((1, W + 2, Cout), f32)
    y1pad_ref[H + 1:H + 2, :, :] = jnp.zeros((1, W + 2, Cout), f32)
    y1pad_ref[:, 0:1, :] = jnp.zeros((H + 2, 1, Cout), f32)
    y1pad_ref[:, W + 1:W + 2, :] = jnp.zeros((H + 2, 1, Cout), f32)

    xpad_ref[1:H + 1, 1:W + 1, :] = x_ref[0]

    # ---- conv1: im2col + single MXU matmul + folded BN + ReLU --------------
    for t in range(9):
        dy, dx = t // 3, t % 3
        col1_ref[:, :, t * Cin:(t + 1) * Cin] = xpad_ref[dy:dy + H, dx:dx + W, :]
    a1 = col1_ref[...].reshape(HW, 9 * Cin).astype(compute_dtype)
    y1 = jnp.dot(a1, w1_ref[...].astype(compute_dtype),
                 preferred_element_type=jnp.float32)
    y1 = jnp.maximum(y1 * s1_ref[...] + b1_ref[...], 0.0)           # (HW, Cout)
    y1pad_ref[1:H + 1, 1:W + 1, :] = y1.reshape(H, W, Cout)

    # ---- conv2: im2col + single MXU matmul + folded BN + ReLU --------------
    for t in range(9):
        dy, dx = t // 3, t % 3
        col2_ref[:, :, t * Cout:(t + 1) * Cout] = y1pad_ref[dy:dy + H, dx:dx + W, :]
    a2 = col2_ref[...].reshape(HW, 9 * Cout).astype(compute_dtype)
    y2 = jnp.dot(a2, w2_ref[...].astype(compute_dtype),
                 preferred_element_type=jnp.float32)
    y2 = jnp.maximum(y2 * s2_ref[...] + b2_ref[...], 0.0)           # (HW, Cout)

    # ---- separable bilinear 2x upsample (align_corners=True) ---------------
    # W-stage: batched matmul over the H rows.
    y2_3d = y2.reshape(H, W, Cout)
    aw_b = jnp.broadcast_to(aw_ref[...].astype(compute_dtype), (H, 2 * W, W))
    v = jnp.einsum('hvw,hwc->hvc', aw_b, y2_3d.astype(compute_dtype),
                   preferred_element_type=jnp.float32)              # (H, 2W, Cout)

    # H-stage: <=2 static taps per output row -> unrolled lerp on the VPU.
    # Each output row is stored channels-first as a (Cout, 2W) slab.
    for g in range(2 * H):
        i0, i1, wt = h_taps[g]
        r = v[i0]
        if i1 != i0 and wt != 0.0:
            r = (1.0 - wt) * r + wt * v[i1]                         # (2W, Cout)
        out_ref[0, g] = r.T                                         # (Cout, 2W)


def unet_decoder_block(x_nchw, params, *, compute_dtype=jnp.float32):
    """Pallas implementation of UNetDecoderBlock.forward (eval-mode BN).

    compute_dtype=jnp.bfloat16 is recommended on v6e / v7x (f32 accumulation is
    kept via preferred_element_type); default stays f32 for tight verification.
    """
    N, Cin, H, W = x_nchw.shape
    Cout = params["w1"].shape[-1]

    # fold BN (+ conv bias) into per-channel scale / bias
    s1 = params["bn1_gamma"] / jnp.sqrt(params["bn1_var"] + EPS)
    b1 = params["bn1_beta"] + (params["conv1_bias"] - params["bn1_mean"]) * s1
    s2 = params["bn2_gamma"] / jnp.sqrt(params["bn2_var"] + EPS)
    b2 = params["bn2_beta"] + (params["conv2_bias"] - params["bn2_mean"]) * s2
    s1 = s1.reshape(1, Cout).astype(jnp.float32)
    b1 = b1.reshape(1, Cout).astype(jnp.float32)
    s2 = s2.reshape(1, Cout).astype(jnp.float32)
    b2 = b2.reshape(1, Cout).astype(jnp.float32)

    w1r = params["w1"].reshape(9 * Cin, Cout).astype(jnp.float32)    # HWIO -> (9Cin, Cout)
    w2r = params["w2"].reshape(9 * Cout, Cout).astype(jnp.float32)

    # NCHW -> NHWC; no host/XLA padding (padding is done inside the kernel).
    x = jnp.transpose(x_nchw, (0, 2, 3, 1)).astype(jnp.float32)

    A_w = jnp.asarray(_bilinear_matrix(W))                           # (2W, W)
    h_taps = tuple(_bilinear_taps(H))                                # static taps

    kernel = partial(_decoder_kernel, H=H, W=W, Cin=Cin, Cout=Cout,
                     h_taps=h_taps, compute_dtype=compute_dtype)

    grid_spec = pltpu.PrefetchScalarGridSpec(
        num_scalar_prefetch=0,
        grid=(N,),
        in_specs=[
            pl.BlockSpec((1, H, W, Cin), lambda n: (n, 0, 0, 0)),
            pl.BlockSpec((9 * Cin, Cout), lambda n: (0, 0)),
            pl.BlockSpec((1, Cout), lambda n: (0, 0)),
            pl.BlockSpec((1, Cout), lambda n: (0, 0)),
            pl.BlockSpec((9 * Cout, Cout), lambda n: (0, 0)),
            pl.BlockSpec((1, Cout), lambda n: (0, 0)),
            pl.BlockSpec((1, Cout), lambda n: (0, 0)),
            pl.BlockSpec((2 * W, W), lambda n: (0, 0)),
        ],
        out_specs=pl.BlockSpec((1, 2 * H, Cout, 2 * W), lambda n: (n, 0, 0, 0)),
        scratch_shapes=[
            pltpu.VMEM((H + 2, W + 2, Cin), jnp.float32),
            pltpu.VMEM((H + 2, W + 2, Cout), jnp.float32),
            pltpu.VMEM((H, W, 9 * Cin), jnp.float32),
            pltpu.VMEM((H, W, 9 * Cout), jnp.float32),
        ],
    )

    out = pl.pallas_call(
        kernel,
        out_shape=jax.ShapeDtypeStruct((N, 2 * H, Cout, 2 * W), jnp.float32),
        grid_spec=grid_spec,
        compiler_params=pltpu.CompilerParams(
            dimension_semantics=("parallel",)),
    )(x, w1r, s1, b1, w2r, s2, b2, A_w)

    # (N, 2H, Cout, 2W) -> NCHW; channels already lead within each row slab,
    # so this is a cheap permute of small leading dims.
    return jnp.transpose(out, (0, 2, 1, 3))


def reference(x_nchw, params):
    """Plain-JAX reference mirroring the PyTorch module (eval-mode BN)."""
    prec = jax.lax.Precision.HIGHEST

    def conv_bn_relu(x, w_hwio, cb, gamma, beta, mean, var):
        w_oihw = jnp.transpose(w_hwio, (3, 2, 0, 1))
        y = jax.lax.conv_general_dilated(
            x, w_oihw, (1, 1), ((1, 1), (1, 1)),
            dimension_numbers=("NCHW", "OIHW", "NCHW"), precision=prec)
        y = y + cb[None, :, None, None]
        y = (y - mean[None, :, None, None]) / jnp.sqrt(var[None, :, None, None] + EPS)
        y = y * gamma[None, :, None, None] + beta[None, :, None, None]
        return jnp.maximum(y, 0.0)

    y = conv_bn_relu(x_nchw, params["w1"], params["conv1_bias"],
                     params["bn1_gamma"], params["bn1_beta"],
                     params["bn1_mean"], params["bn1_var"])
    y = conv_bn_relu(y, params["w2"], params["conv2_bias"],
                     params["bn2_gamma"], params["bn2_beta"],
                     params["bn2_mean"], params["bn2_var"])
    H, W = y.shape[2], y.shape[3]
    A_h = jnp.asarray(_bilinear_matrix(H))
    A_w = jnp.asarray(_bilinear_matrix(W))
    return jnp.einsum("nchw,ah,bw->ncab", y, A_h, A_w, precision=prec)


if __name__ == "__main__":
    N, Cin, Cout, H, W = 2, 4, 8, 16, 16

    key = jax.random.PRNGKey(0)
    ks = jax.random.split(key, 13)
    x = jax.random.normal(ks[0], (N, Cin, H, W), jnp.float32)

    params = {
        "w1": 0.1 * jax.random.normal(ks[1], (3, 3, Cin, Cout), jnp.float32),
        "conv1_bias": 0.1 * jax.random.normal(ks[2], (Cout,), jnp.float32),
        "bn1_gamma": 1.0 + 0.1 * jax.random.normal(ks[3], (Cout,), jnp.float32),
        "bn1_beta": 0.1 * jax.random.normal(ks[4], (Cout,), jnp.float32),
        "bn1_mean": 0.1 * jax.random.normal(ks[5], (Cout,), jnp.float32),
        "bn1_var": 1.0 + 0.1 * jnp.abs(jax.random.normal(ks[6], (Cout,), jnp.float32)),
        "w2": 0.1 * jax.random.normal(ks[7], (3, 3, Cout, Cout), jnp.float32),
        "conv2_bias": 0.1 * jax.random.normal(ks[8], (Cout,), jnp.float32),
        "bn2_gamma": 1.0 + 0.1 * jax.random.normal(ks[9], (Cout,), jnp.float32),
        "bn2_beta": 0.1 * jax.random.normal(ks[10], (Cout,), jnp.float32),
        "bn2_mean": 0.1 * jax.random.normal(ks[11], (Cout,), jnp.float32),
        "bn2_var": 1.0 + 0.1 * jnp.abs(jax.random.normal(ks[12], (Cout,), jnp.float32)),
    }

    out = jax.block_until_ready(unet_decoder_block(x, params))
    ref = jax.block_until_ready(reference(x, params))

    assert out.shape == (N, Cout, 2 * H, 2 * W), out.shape
    # Tolerance tightened 6x vs. the previous version; kept at 5e-3 because TPU
    # DEFAULT matmul precision may use bf16 passes for f32 operands on the MXU.
    assert jnp.allclose(out, ref, atol=5e-3, rtol=5e-3), (
        "max abs diff = %g" % float(jnp.max(jnp.abs(out - ref))))

    print("KERNEL_OK")
</pallas_src>

<mosaic_0001>
module attributes {stable_mosaic.version = 11 : i64} {
  func.func @_decoder_kernel(%arg0: i32, %arg1: memref<1x16x16x4xf32, #tpu.memory_space<vmem>>, %arg2: memref<36x8xf32, #tpu.memory_space<vmem>>, %arg3: memref<1x8xf32, #tpu.memory_space<vmem>>, %arg4: memref<1x8xf32, #tpu.memory_space<vmem>>, %arg5: memref<72x8xf32, #tpu.memory_space<vmem>>, %arg6: memref<1x8xf32, #tpu.memory_space<vmem>>, %arg7: memref<1x8xf32, #tpu.memory_space<vmem>>, %arg8: memref<32x16xf32, #tpu.memory_space<vmem>>, %arg9: memref<1x32x8x32xf32, #tpu.memory_space<vmem>>, %arg10: memref<18x18x4xf32, #tpu.memory_space<vmem>>, %arg11: memref<18x18x8xf32, #tpu.memory_space<vmem>>, %arg12: memref<16x16x36xf32, #tpu.memory_space<vmem>>, %arg13: memref<16x16x72xf32, #tpu.memory_space<vmem>>) attributes {dimension_semantics = [#tpu.dimension_semantics<parallel>], iteration_bounds = array<i64: 2>, scalar_prefetch = 0 : i64, scratch_operands = 4 : i64, tpu.core_type = #tpu.core_type<tc>, window_params = [{transform_indices = @transform_0, window_bounds = array<i64: 1, 16, 16, 4>}, {pipeline_mode = #tpu.pipeline_mode<synchronous>, transform_indices = @transform_1, window_bounds = array<i64: 36, 8>}, {pipeline_mode = #tpu.pipeline_mode<synchronous>, transform_indices = @transform_2, window_bounds = array<i64: 1, 8>}, {pipeline_mode = #tpu.pipeline_mode<synchronous>, transform_indices = @transform_3, window_bounds = array<i64: 1, 8>}, {pipeline_mode = #tpu.pipeline_mode<synchronous>, transform_indices = @transform_4, window_bounds = array<i64: 72, 8>}, {pipeline_mode = #tpu.pipeline_mode<synchronous>, transform_indices = @transform_5, window_bounds = array<i64: 1, 8>}, {pipeline_mode = #tpu.pipeline_mode<synchronous>, transform_indices = @transform_6, window_bounds = array<i64: 1, 8>}, {pipeline_mode = #tpu.pipeline_mode<synchronous>, transform_indices = @transform_7, window_bounds = array<i64: 32, 16>}, {transform_indices = @transform_8, window_bounds = array<i64: 1, 32, 8, 32>}]} {
    %cst = arith.constant 0.000000e+00 : f32
    %0 = vector.broadcast %cst : f32 to vector<1x18x4xf32>
    %c0 = arith.constant 0 : index
    %c0_0 = arith.constant 0 : index
    %c0_1 = arith.constant 0 : index
    %1 = vector.load %arg10[%c0, %c0_0, %c0_1] : memref<18x18x4xf32, #tpu.memory_space<vmem>>, vector<1x18x4xf32>
    tpu.vector_store %arg10[%c0, %c0_0, %c0_1], %0 {strides = array<i32>} : memref<18x18x4xf32, #tpu.memory_space<vmem>>, vector<1x18x4xf32>,
    %cst_2 = arith.constant 0.000000e+00 : f32
    %2 = vector.broadcast %cst_2 : f32 to vector<1x18x4xf32>
    %c17 = arith.constant 17 : index
    %c0_3 = arith.constant 0 : index
    %c0_4 = arith.constant 0 : index
    %3 = vector.load %arg10[%c17, %c0_3, %c0_4] : memref<18x18x4xf32, #tpu.memory_space<vmem>>, vector<1x18x4xf32>
    tpu.vector_store %arg10[%c17, %c0_3, %c0_4], %2 {strides = array<i32>} : memref<18x18x4xf32, #tpu.memory_space<vmem>>, vector<1x18x4xf32>,
    %cst_5 = arith.constant 0.000000e+00 : f32
    %4 = vector.broadcast %cst_5 : f32 to vector<18x1x4xf32>
    %c0_6 = arith.constant 0 : index
    %c0_7 = arith.constant 0 : index
    %c0_8 = arith.constant 0 : index
    %5 = vector.load %arg10[%c0_6, %c0_7, %c0_8] : memref<18x18x4xf32, #tpu.memory_space<vmem>>, vector<18x1x4xf32>
    tpu.vector_store %arg10[%c0_6, %c0_7, %c0_8], %4 {strides = array<i32>} : memref<18x18x4xf32, #tpu.memory_space<vmem>>, vector<18x1x4xf32>,
    %cst_9 = arith.constant 0.000000e+00 : f32
    %6 = vector.broadcast %cst_9 : f32 to vector<18x1x4xf32>
    %c0_10 = arith.constant 0 : index
    %c17_11 = arith.constant 17 : index
    %c0_12 = arith.constant 0 : index
    %7 = vector.load %arg10[%c0_10, %c17_11, %c0_12] : memref<18x18x4xf32, #tpu.memory_space<vmem>>, vector<18x1x4xf32>
    tpu.vector_store %arg10[%c0_10, %c17_11, %c0_12], %6 {strides = array<i32>} : memref<18x18x4xf32, #tpu.memory_space<vmem>>, vector<18x1x4xf32>,
    %cst_13 = arith.constant 0.000000e+00 : f32
    %8 = vector.broadcast %cst_13 : f32 to vector<1x18x8xf32>
    %c0_14 = arith.constant 0 : index
    %c0_15 = arith.constant 0 : index
    %c0_16 = arith.constant 0 : index
    %9 = vector.load %arg11[%c0_14, %c0_15, %c0_16] : memref<18x18x8xf32, #tpu.memory_space<vmem>>, vector<1x18x8xf32>
    tpu.vector_store %arg11[%c0_14, %c0_15, %c0_16], %8 {strides = array<i32>} : memref<18x18x8xf32, #tpu.memory_space<vmem>>, vector<1x18x8xf32>,
    %cst_17 = arith.constant 0.000000e+00 : f32
    %10 = vector.broadcast %cst_17 : f32 to vector<1x18x8xf32>
    %c17_18 = arith.constant 17 : index
    %c0_19 = arith.constant 0 : index
    %c0_20 = arith.constant 0 : index
    %11 = vector.load %arg11[%c17_18, %c0_19, %c0_20] : memref<18x18x8xf32, #tpu.memory_space<vmem>>, vector<1x18x8xf32>
    tpu.vector_store %arg11[%c17_18, %c0_19, %c0_20], %10 {strides = array<i32>} : memref<18x18x8xf32, #tpu.memory_space<vmem>>, vector<1x18x8xf32>,
    %cst_21 = arith.constant 0.000000e+00 : f32
    %12 = vector.broadcast %cst_21 : f32 to vector<18x1x8xf32>
    %c0_22 = arith.constant 0 : index
    %c0_23 = arith.constant 0 : index
    %c0_24 = arith.constant 0 : index
    %13 = vector.load %arg11[%c0_22, %c0_23, %c0_24] : memref<18x18x8xf32, #tpu.memory_space<vmem>>, vector<18x1x8xf32>
    tpu.vector_store %arg11[%c0_22, %c0_23, %c0_24], %12 {strides = array<i32>} : memref<18x18x8xf32, #tpu.memory_space<vmem>>, vector<18x1x8xf32>,
    %cst_25 = arith.constant 0.000000e+00 : f32
    %14 = vector.broadcast %cst_25 : f32 to vector<18x1x8xf32>
    %c0_26 = arith.constant 0 : index
    %c17_27 = arith.constant 17 : index
    %c0_28 = arith.constant 0 : index
    %15 = vector.load %arg11[%c0_26, %c17_27, %c0_28] : memref<18x18x8xf32, #tpu.memory_space<vmem>>, vector<18x1x8xf32>
    tpu.vector_store %arg11[%c0_26, %c17_27, %c0_28], %14 {strides = array<i32>} : memref<18x18x8xf32, #tpu.memory_space<vmem>>, vector<18x1x8xf32>,
    %c0_29 = arith.constant 0 : index
    %c0_30 = arith.constant 0 : index
    %c0_31 = arith.constant 0 : index
    %c0_32 = arith.constant 0 : index
    %16 = vector.load %arg1[%c0_29, %c0_30, %c0_31, %c0_32] : memref<1x16x16x4xf32, #tpu.memory_space<vmem>>, vector<1x16x16x4xf32>
    %17 = vector.shape_cast %16 : vector<1x16x16x4xf32> to vector<16x16x4xf32>
    %c1 = arith.constant 1 : index
    %c1_33 = arith.constant 1 : index
    %c0_34 = arith.constant 0 : index
    %18 = vector.load %arg10[%c1, %c1_33, %c0_34] : memref<18x18x4xf32, #tpu.memory_space<vmem>>, vector<16x16x4xf32>
    tpu.vector_store %arg10[%c1, %c1_33, %c0_34], %17 {strides = array<i32>} : memref<18x18x4xf32, #tpu.memory_space<vmem>>, vector<16x16x4xf32>,
    %c0_35 = arith.constant 0 : index
    %c0_36 = arith.constant 0 : index
    %c0_37 = arith.constant 0 : index
    %19 = vector.load %arg10[%c0_35, %c0_36, %c0_37] : memref<18x18x4xf32, #tpu.memory_space<vmem>>, vector<16x16x4xf32>
    %c0_38 = arith.constant 0 : index
    %c0_39 = arith.constant 0 : index
    %c0_40 = arith.constant 0 : index
    %20 = vector.load %arg12[%c0_38, %c0_39, %c0_40] : memref<16x16x36xf32, #tpu.memory_space<vmem>>, vector<16x16x4xf32>
    tpu.vector_store %arg12[%c0_38, %c0_39, %c0_40], %19 {strides = array<i32>} : memref<16x16x36xf32, #tpu.memory_space<vmem>>, vector<16x16x4xf32>,
    %c0_41 = arith.constant 0 : index
    %c1_42 = arith.constant 1 : index
    %c0_43 = arith.constant 0 : index
    %21 = vector.load %arg10[%c0_41, %c1_42, %c0_43] : memref<18x18x4xf32, #tpu.memory_space<vmem>>, vector<16x16x4xf32>
    %c0_44 = arith.constant 0 : index
    %c0_45 = arith.constant 0 : index
    %c4 = arith.constant 4 : index
    %22 = vector.load %arg12[%c0_44, %c0_45, %c4] : memref<16x16x36xf32, #tpu.memory_space<vmem>>, vector<16x16x4xf32>
    tpu.vector_store %arg12[%c0_44, %c0_45, %c4], %21 {strides = array<i32>} : memref<16x16x36xf32, #tpu.memory_space<vmem>>, vector<16x16x4xf32>,
    %c0_46 = arith.constant 0 : index
    %c2 = arith.constant 2 : index
    %c0_47 = arith.constant 0 : index
    %23 = vector.load %arg10[%c0_46, %c2, %c0_47] : memref<18x18x4xf32, #tpu.memory_space<vmem>>, vector<16x16x4xf32>
    %c0_48 = arith.constant 0 : index
    %c0_49 = arith.constant 0 : index
    %c8 = arith.constant 8 : index
    %24 = vector.load %arg12[%c0_48, %c0_49, %c8] : memref<16x16x36xf32, #tpu.memory_space<vmem>>, vector<16x16x4xf32>
    tpu.vector_store %arg12[%c0_48, %c0_49, %c8], %23 {strides = array<i32>} : memref<16x16x36xf32, #tpu.memory_space<vmem>>, vector<16x16x4xf32>,
    %c1_50 = arith.constant 1 : index
    %c0_51 = arith.constant 0 : index
    %c0_52 = arith.constant 0 : index
    %25 = vector.load %arg10[%c1_50, %c0_51, %c0_52] : memref<18x18x4xf32, #tpu.memory_space<vmem>>, vector<16x16x4xf32>
    %c0_53 = arith.constant 0 : index
    %c0_54 = arith.constant 0 : index
    %c12 = arith.constant 12 : index
    %26 = vector.load %arg12[%c0_53, %c0_54, %c12] : memref<16x16x36xf32, #tpu.memory_space<vmem>>, vector<16x16x4xf32>
    tpu.vector_store %arg12[%c0_53, %c0_54, %c12], %25 {strides = array<i32>} : memref<16x16x36xf32, #tpu.memory_space<vmem>>, vector<16x16x4xf32>,
    %c1_55 = arith.constant 1 : index
    %c1_56 = arith.constant 1 : index
    %c0_57 = arith.constant 0 : index
    %27 = vector.load %arg10[%c1_55, %c1_56, %c0_57] : memref<18x18x4xf32, #tpu.memory_space<vmem>>, vector<16x16x4xf32>
    %c0_58 = arith.constant 0 : index
    %c0_59 = arith.constant 0 : index
    %c16 = arith.constant 16 : index
    %28 = vector.load %arg12[%c0_58, %c0_59, %c16] : memref<16x16x36xf32, #tpu.memory_space<vmem>>, vector<16x16x4xf32>
    tpu.vector_store %arg12[%c0_58, %c0_59, %c16], %27 {strides = array<i32>} : memref<16x16x36xf32, #tpu.memory_space<vmem>>, vector<16x16x4xf32>,
    %c1_60 = arith.constant 1 : index
    %c2_61 = arith.constant 2 : index
    %c0_62 = arith.constant 0 : index
    %29 = vector.load %arg10[%c1_60, %c2_61, %c0_62] : memref<18x18x4xf32, #tpu.memory_space<vmem>>, vector<16x16x4xf32>
    %c0_63 = arith.constant 0 : index
    %c0_64 = arith.constant 0 : index
    %c20 = arith.constant 20 : index
    %30 = vector.load %arg12[%c0_63, %c0_64, %c20] : memref<16x16x36xf32, #tpu.memory_space<vmem>>, vector<16x16x4xf32>
    tpu.vector_store %arg12[%c0_63, %c0_64, %c20], %29 {strides = array<i32>} : memref<16x16x36xf32, #tpu.memory_space<vmem>>, vector<16x16x4xf32>,
    %c2_65 = arith.constant 2 : index
    %c0_66 = arith.constant 0 : index
    %c0_67 = arith.constant 0 : index
    %31 = vector.load %arg10[%c2_65, %c0_66, %c0_67] : memref<18x18x4xf32, #tpu.memory_space<vmem>>, vector<16x16x4xf32>
    %c0_68 = arith.constant 0 : index
    %c0_69 = arith.constant 0 : index
    %c24 = arith.constant 24 : index
    %32 = vector.load %arg12[%c0_68, %c0_69, %c24] : memref<16x16x36xf32, #tpu.memory_space<vmem>>, vector<16x16x4xf32>
    tpu.vector_store %arg12[%c0_68, %c0_69, %c24], %31 {strides = array<i32>} : memref<16x16x36xf32, #tpu.memory_space<vmem>>, vector<16x16x4xf32>,
    %c2_70 = arith.constant 2 : index
    %c1_71 = arith.constant 1 : index
    %c0_72 = arith.constant 0 : index
    %33 = vector.load %arg10[%c2_70, %c1_71, %c0_72] : memref<18x18x4xf32, #tpu.memory_space<vmem>>, vector<16x16x4xf32>
    %c0_73 = arith.constant 0 : index
    %c0_74 = arith.constant 0 : index
    %c28 = arith.constant 28 : index
    %34 = vector.load %arg12[%c0_73, %c0_74, %c28] : memref<16x16x36xf32, #tpu.memory_space<vmem>>, vector<16x16x4xf32>
    tpu.vector_store %arg12[%c0_73, %c0_74, %c28], %33 {strides = array<i32>} : memref<16x16x36xf32, #tpu.memory_space<vmem>>, vector<16x16x4xf32>,
    %c2_75 = arith.constant 2 : index
    %c2_76 = arith.constant 2 : index
    %c0_77 = arith.constant 0 : index
    %35 = vector.load %arg10[%c2_75, %c2_76, %c0_77] : memref<18x18x4xf32, #tpu.memory_space<vmem>>, vector<16x16x4xf32>
    %c0_78 = arith.constant 0 : index
    %c0_79 = arith.constant 0 : index
    %c32 = arith.constant 32 : index
    %36 = vector.load %arg12[%c0_78, %c0_79, %c32] : memref<16x16x36xf32, #tpu.memory_space<vmem>>, vector<16x16x4xf32>
    tpu.vector_store %arg12[%c0_78, %c0_79, %c32], %35 {strides = array<i32>} : memref<16x16x36xf32, #tpu.memory_space<vmem>>, vector<16x16x4xf32>,
    %c0_80 = arith.constant 0 : index
    %c0_81 = arith.constant 0 : index
    %c0_82 = arith.constant 0 : index
    %37 = vector.load %arg12[%c0_80, %c0_81, %c0_82] : memref<16x16x36xf32, #tpu.memory_space<vmem>>, vector<16x16x36xf32>
    %38 = vector.shape_cast %37 : vector<16x16x36xf32> to vector<256x36xf32>
    %c0_83 = arith.constant 0 : index
    %c0_84 = arith.constant 0 : index
    %39 = vector.load %arg2[%c0_83, %c0_84] : memref<36x8xf32, #tpu.memory_space<vmem>>, vector<36x8xf32>
    %cst_85 = arith.constant dense<0.000000e+00> : vector<256x8xf32>
    %40 = tpu.matmul %38, %39, %cst_85 {dimension_numbers = #tpu.dot_dimension_numbers<[1], [0], [0], [1], [0, 0, 1, 1], [], []>} : vector<256x36xf32>, vector<36x8xf32>, vector<256x8xf32> -> vector<256x8xf32>
    %c0_86 = arith.constant 0 : index
    %c0_87 = arith.constant 0 : index
    %41 = vector.load %arg3[%c0_86, %c0_87] : memref<1x8xf32, #tpu.memory_space<vmem>>, vector<1x8xf32>
    %42 = vector.broadcast %41 : vector<1x8xf32> to vector<256x8xf32>
    %43 = arith.mulf %40, %42 : vector<256x8xf32>
    %c0_88 = arith.constant 0 : index
    %c0_89 = arith.constant 0 : index
    %44 = vector.load %arg4[%c0_88, %c0_89] : memref<1x8xf32, #tpu.memory_space<vmem>>, vector<1x8xf32>
    %45 = vector.broadcast %44 : vector<1x8xf32> to vector<256x8xf32>
    %46 = arith.addf %43, %45 : vector<256x8xf32>
    %cst_90 = arith.constant 0.000000e+00 : f32
    %47 = vector.broadcast %cst_90 : f32 to vector<256x8xf32>
    %48 = arith.maximumf %46, %47 : vector<256x8xf32>
    %49 = vector.shape_cast %48 : vector<256x8xf32> to vector<16x16x8xf32>
    %c1_91 = arith.constant 1 : index
    %c1_92 = arith.constant 1 : index
    %c0_93 = arith.constant 0 : index
    %50 = vector.load %arg11[%c1_91, %c1_92, %c0_93] : memref<18x18x8xf32, #tpu.memory_space<vmem>>, vector<16x16x8xf32>
    tpu.vector_store %arg11[%c1_91, %c1_92, %c0_93], %49 {strides = array<i32>} : memref<18x18x8xf32, #tpu.memory_space<vmem>>, vector<16x16x8xf32>,
    %c0_94 = arith.constant 0 : index
    %c0_95 = arith.constant 0 : index
    %c0_96 = arith.constant 0 : index
    %51 = vector.load %arg11[%c0_94, %c0_95, %c0_96] : memref<18x18x8xf32, #tpu.memory_space<vmem>>, vector<16x16x8xf32>
    %c0_97 = arith.constant 0 : index
    %c0_98 = arith.constant 0 : index
    %c0_99 = arith.constant 0 : index
    %52 = vector.load %arg13[%c0_97, %c0_98, %c0_99] : memref<16x16x72xf32, #tpu.memory_space<vmem>>, vector<16x16x8xf32>
    tpu.vector_store %arg13[%c0_97, %c0_98, %c0_99], %51 {strides = array<i32>} : memref<16x16x72xf32, #tpu.memory_space<vmem>>, vector<16x16x8xf32>,
    %c0_100 = arith.constant 0 : index
    %c1_101 = arith.constant 1 : index
    %c0_102 = arith.constant 0 : index
    %53 = vector.load %arg11[%c0_100, %c1_101, %c0_102] : memref<18x18x8xf32, #tpu.memory_space<vmem>>, vector<16x16x8xf32>
    %c0_103 = arith.constant 0 : index
    %c0_104 = arith.constant 0 : index
    %c8_105 = arith.constant 8 : index
    %54 = vector.load %arg13[%c0_103, %c0_104, %c8_105] : memref<16x16x72xf32, #tpu.memory_space<vmem>>, vector<16x16x8xf32>
    tpu.vector_store %arg13[%c0_103, %c0_104, %c8_105], %53 {strides = array<i32>} : memref<16x16x72xf32, #tpu.memory_space<vmem>>, vector<16x16x8xf32>,
    %c0_106 = arith.constant 0 : index
    %c2_107 = arith.constant 2 : index
    %c0_108 = arith.constant 0 : index
    %55 = vector.load %arg11[%c0_106, %c2_107, %c0_108] : memref<18x18x8xf32, #tpu.memory_space<vmem>>, vector<16x16x8xf32>
    %c0_109 = arith.constant 0 : index
    %c0_110 = arith.constant 0 : index
    %c16_111 = arith.constant 16 : index
    %56 = vector.load %arg13[%c0_109, %c0_110, %c16_111] : memref<16x16x72xf32, #tpu.memory_space<vmem>>, vector<16x16x8xf32>
    tpu.vector_store %arg13[%c0_109, %c0_110, %c16_111], %55 {strides = array<i32>} : memref<16x16x72xf32, #tpu.memory_space<vmem>>, vector<16x16x8xf32>,
    %c1_112 = arith.constant 1 : index
    %c0_113 = arith.constant 0 : index
    %c0_114 = arith.constant 0 : index
    %57 = vector.load %arg11[%c1_112, %c0_113, %c0_114] : memref<18x18x8xf32, #tpu.memory_space<vmem>>, vector<16x16x8xf32>
    %c0_115 = arith.constant 0 : index
    %c0_116 = arith.constant 0 : index
    %c24_117 = arith.constant 24 : index
    %58 = vector.load %arg13[%c0_115, %c0_116, %c24_117] : memref<16x16x72xf32, #tpu.memory_space<vmem>>, vector<16x16x8xf32>
    tpu.vector_store %arg13[%c0_115, %c0_116, %c24_117], %57 {strides = array<i32>} : memref<16x16x72xf32, #tpu.memory_space<vmem>>, vector<16x16x8xf32>,
    %c1_118 = arith.constant 1 : index
    %c1_119 = arith.constant 1 : index
    %c0_120 = arith.constant 0 : index
    %59 = vector.load %arg11[%c1_118, %c1_119, %c0_120] : memref<18x18x8xf32, #tpu.memory_space<vmem>>, vector<16x16x8xf32>
    %c0_121 = arith.constant 0 : index
    %c0_122 = arith.constant 0 : index
    %c32_123 = arith.constant 32 : index
    %60 = vector.load %arg13[%c0_121, %c0_122, %c32_123] : memref<16x16x72xf32, #tpu.memory_space<vmem>>, vector<16x16x8xf32>
    tpu.vector_store %arg13[%c0_121, %c0_122, %c32_123], %59 {strides = array<i32>} : memref<16x16x72xf32, #tpu.memory_space<vmem>>, vector<16x16x8xf32>,
    %c1_124 = arith.constant 1 : index
    %c2_125 = arith.constant 2 : index
    %c0_126 = arith.constant 0 : index
    %61 = vector.load %arg11[%c1_124, %c2_125, %c0_126] : memref<18x18x8xf32, #tpu.memory_space<vmem>>, vector<16x16x8xf32>
    %c0_127 = arith.constant 0 : index
    %c0_128 = arith.constant 0 : index
    %c40 = arith.constant 40 : index
    %62 = vector.load %arg13[%c0_127, %c0_128, %c40] : memref<16x16x72xf32, #tpu.memory_space<vmem>>, vector<16x16x8xf32>
    tpu.vector_store %arg13[%c0_127, %c0_128, %c40], %61 {strides = array<i32>} : memref<16x16x72xf32, #tpu.memory_space<vmem>>, vector<16x16x8xf32>,
    %c2_129 = arith.constant 2 : index
    %c0_130 = arith.constant 0 : index
    %c0_131 = arith.constant 0 : index
    %63 = vector.load %arg11[%c2_129, %c0_130, %c0_131] : memref<18x18x8xf32, #tpu.memory_space<vmem>>, vector<16x16x8xf32>
    %c0_132 = arith.constant 0 : index
    %c0_133 = arith.constant 0 : index
    %c48 = arith.constant 48 : index
    %64 = vector.load %arg13[%c0_132, %c0_133, %c48] : memref<16x16x72xf32, #tpu.memory_space<vmem>>, vector<16x16x8xf32>
    tpu.vector_store %arg13[%c0_132, %c0_133, %c48], %63 {strides = array<i32>} : memref<16x16x72xf32, #tpu.memory_space<vmem>>, vector<16x16x8xf32>,
    %c2_134 = arith.constant 2 : index
    %c1_135 = arith.constant 1 : index
    %c0_136 = arith.constant 0 : index
    %65 = vector.load %arg11[%c2_134, %c1_135, %c0_136] : memref<18x18x8xf32, #tpu.memory_space<vmem>>, vector<16x16x8xf32>
    %c0_137 = arith.constant 0 : index
    %c0_138 = arith.constant 0 : index
    %c56 = arith.constant 56 : index
    %66 = vector.load %arg13[%c0_137, %c0_138, %c56] : memref<16x16x72xf32, #tpu.memory_space<vmem>>, vector<16x16x8xf32>
    tpu.vector_store %arg13[%c0_137, %c0_138, %c56], %65 {strides = array<i32>} : memref<16x16x72xf32, #tpu.memory_space<vmem>>, vector<16x16x8xf32>,
    %c2_139 = arith.constant 2 : index
    %c2_140 = arith.constant 2 : index
    %c0_141 = arith.constant 0 : index
    %67 = vector.load %arg11[%c2_139, %c2_140, %c0_141] : memref<18x18x8xf32, #tpu.memory_space<vmem>>, vector<16x16x8xf32>
    %c0_142 = arith.constant 0 : index
    %c0_143 = arith.constant 0 : index
    %c64 = arith.constant 64 : index
    %68 = vector.load %arg13[%c0_142, %c0_143, %c64] : memref<16x16x72xf32, #tpu.memory_space<vmem>>, vector<16x16x8xf32>
    tpu.vector_store %arg13[%c0_142, %c0_143, %c64], %67 {strides = array<i32>} : memref<16x16x72xf32, #tpu.memory_space<vmem>>, vector<16x16x8xf32>,
    %c0_144 = arith.constant 0 : index
    %c0_145 = arith.constant 0 : index
    %c0_146 = arith.constant 0 : index
    %69 = vector.load %arg13[%c0_144, %c0_145, %c0_146] : memref<16x16x72xf32, #tpu.memory_space<vmem>>, vector<16x16x72xf32>
    %70 = vector.shape_cast %69 : vector<16x16x72xf32> to vector<256x72xf32>
    %c0_147 = arith.constant 0 : index
    %c0_148 = arith.constant 0 : index
    %71 = vector.load %arg5[%c0_147, %c0_148] : memref<72x8xf32, #tpu.memory_space<vmem>>, vector<72x8xf32>
    %cst_149 = arith.constant dense<0.000000e+00> : vector<256x8xf32>
    %72 = tpu.matmul %70, %71, %cst_149 {dimension_numbers = #tpu.dot_dimension_numbers<[1], [0], [0], [1], [0, 0, 1, 1], [], []>} : vector<256x72xf32>, vector<72x8xf32>, vector<256x8xf32> -> vector<256x8xf32>
    %c0_150 = arith.constant 0 : index
    %c0_151 = arith.constant 0 : index
    %73 = vector.load %arg6[%c0_150, %c0_151] : memref<1x8xf32, #tpu.memory_space<vmem>>, vector<1x8xf32>
    %74 = vector.broadcast %73 : vector<1x8xf32> to vector<256x8xf32>
    %75 = arith.mulf %72, %74 : vector<256x8xf32>
    %c0_152 = arith.constant 0 : index
    %c0_153 = arith.constant 0 : index
    %76 = vector.load %arg7[%c0_152, %c0_153] : memref<1x8xf32, #tpu.memory_space<vmem>>, vector<1x8xf32>
    %77 = vector.broadcast %76 : vector<1x8xf32> to vector<256x8xf32>
    %78 = arith.addf %75, %77 : vector<256x8xf32>
    %cst_154 = arith.constant 0.000000e+00 : f32
    %79 = vector.broadcast %cst_154 : f32 to vector<256x8xf32>
    %80 = arith.maximumf %78, %79 : vector<256x8xf32>
    %81 = vector.shape_cast %80 : vector<256x8xf32> to vector<16x16x8xf32>
    %c0_155 = arith.constant 0 : index
    %c0_156 = arith.constant 0 : index
    %82 = vector.load %arg8[%c0_155, %c0_156] : memref<32x16xf32, #tpu.memory_space<vmem>>, vector<32x16xf32>
    %83 = vector.shape_cast %82 : vector<32x16xf32> to vector<1x32x16xf32>
    %84 = vector.broadcast %83 : vector<1x32x16xf32> to vector<16x32x16xf32>
    "tpu.trace_start"() <{level = 10 : i32, message = "hvw,hwc->hvc"}> : () -> ()
    %cst_157 = arith.constant dense<0.000000e+00> : vector<16x32x8xf32>
    %85 = tpu.matmul %84, %81, %cst_157 {dimension_numbers = #tpu.dot_dimension_numbers<[2], [1], [1], [2], [0, 0, 0, 1, 1, 2], [0], [0]>} : vector<16x32x16xf32>, vector<16x16x8xf32>, vector<16x32x8xf32> -> vector<16x32x8xf32>
    "tpu.trace_stop"() : () -> ()
    %86 = vector.extract_strided_slice %85 {offsets = [0, 0, 0], sizes = [1, 32, 8], strides = [1, 1, 1]} : vector<16x32x8xf32> to vector<1x32x8xf32>
    %87 = vector.shape_cast %86 : vector<1x32x8xf32> to vector<32x8xf32>
    %88 = tpu.transpose %87, [1, 0] : vector<32x8xf32> -> vector<8x32xf32>
    %c0_158 = arith.constant 0 : index
    %c0_159 = arith.constant 0 : index
    %c0_160 = arith.constant 0 : index
    %c0_161 = arith.constant 0 : index
    %89 = vector.load %arg9[%c0_158, %c0_159, %c0_160, %c0_161] : memref<1x32x8x32xf32, #tpu.memory_space<vmem>>, vector<1x1x8x32xf32>
    %90 = vector.shape_cast %89 : vector<1x1x8x32xf32> to vector<8x32xf32>
    %91 = vector.shape_cast %88 : vector<8x32xf32> to vector<1x1x8x32xf32>
    tpu.vector_store %arg9[%c0_158, %c0_159, %c0_160, %c0_161], %91 {strides = array<i32>} : memref<1x32x8x32xf32, #tpu.memory_space<vmem>>, vector<1x1x8x32xf32>,
    %92 = vector.extract_strided_slice %85 {offsets = [0, 0, 0], sizes = [1, 32, 8], strides = [1, 1, 1]} : vector<16x32x8xf32> to vector<1x32x8xf32>
    %93 = vector.shape_cast %92 : vector<1x32x8xf32> to vector<32x8xf32>
    %cst_162 = arith.constant 5.161290e-01 : f32
    %94 = vector.broadcast %cst_162 : f32 to vector<32x8xf32>
    %95 = arith.mulf %94, %93 : vector<32x8xf32>
    %96 = vector.extract_strided_slice %85 {offsets = [1, 0, 0], sizes = [1, 32, 8], strides = [1, 1, 1]} : vector<16x32x8xf32> to vector<1x32x8xf32>
    %97 = vector.shape_cast %96 : vector<1x32x8xf32> to vector<32x8xf32>
    %cst_163 = arith.constant 0.483870953 : f32
    %98 = vector.broadcast %cst_163 : f32 to vector<32x8xf32>
    %99 = arith.mulf %98, %97 : vector<32x8xf32>
    %100 = arith.addf %95, %99 : vector<32x8xf32>
    %101 = tpu.transpose %100, [1, 0] : vector<32x8xf32> -> vector<8x32xf32>
    %c0_164 = arith.constant 0 : index
    %c1_165 = arith.constant 1 : index
    %c0_166 = arith.constant 0 : index
    %c0_167 = arith.constant 0 : index
    %102 = vector.load %arg9[%c0_164, %c1_165, %c0_166, %c0_167] : memref<1x32x8x32xf32, #tpu.memory_space<vmem>>, vector<1x1x8x32xf32>
    %103 = vector.shape_cast %102 : vector<1x1x8x32xf32> to vector<8x32xf32>
    %104 = vector.shape_cast %101 : vector<8x32xf32> to vector<1x1x8x32xf32>
    tpu.vector_store %arg9[%c0_164, %c1_165, %c0_166, %c0_167], %104 {strides = array<i32>} : memref<1x32x8x32xf32, #tpu.memory_space<vmem>>, vector<1x1x8x32xf32>,
    %105 = vector.extract_strided_slice %85 {offsets = [0, 0, 0], sizes = [1, 32, 8], strides = [1, 1, 1]} : vector<16x32x8xf32> to vector<1x32x8xf32>
    %106 = vector.shape_cast %105 : vector<1x32x8xf32> to vector<32x8xf32>
    %cst_168 = arith.constant 0.0322580636 : f32
    %107 = vector.broadcast %cst_168 : f32 to vector<32x8xf32>
    %108 = arith.mulf %107, %106 : vector<32x8xf32>
    %109 = vector.extract_strided_slice %85 {offsets = [1, 0, 0], sizes = [1, 32, 8], strides = [1, 1, 1]} : vector<16x32x8xf32> to vector<1x32x8xf32>
    %110 = vector.shape_cast %109 : vector<1x32x8xf32> to vector<32x8xf32>
    %cst_169 = arith.constant 0.967741906 : f32
    %111 = vector.broadcast %cst_169 : f32 to vector<32x8xf32>
    %112 = arith.mulf %111, %110 : vector<32x8xf32>
    %113 = arith.addf %108, %112 : vector<32x8xf32>
    %114 = tpu.transpose %113, [1, 0] : vector<32x8xf32> -> vector<8x32xf32>
    %c0_170 = arith.constant 0 : index
    %c2_171 = arith.constant 2 : index
    %c0_172 = arith.constant 0 : index
    %c0_173 = arith.constant 0 : index
    %115 = vector.load %arg9[%c0_170, %c2_171, %c0_172, %c0_173] : memref<1x32x8x32xf32, #tpu.memory_space<vmem>>, vector<1x1x8x32xf32>
    %116 = vector.shape_cast %115 : vector<1x1x8x32xf32> to vector<8x32xf32>
    %117 = vector.shape_cast %114 : vector<8x32xf32> to vector<1x1x8x32xf32>
    tpu.vector_store %arg9[%c0_170, %c2_171, %c0_172, %c0_173], %117 {strides = array<i32>} : memref<1x32x8x32xf32, #tpu.memory_space<vmem>>, vector<1x1x8x32xf32>,
    %118 = vector.extract_strided_slice %85 {offsets = [1, 0, 0], sizes = [1, 32, 8], strides = [1, 1, 1]} : vector<16x32x8xf32> to vector<1x32x8xf32>
    %119 = vector.shape_cast %118 : vector<1x32x8xf32> to vector<32x8xf32>
    %cst_174 = arith.constant 0.54838711 : f32
    %120 = vector.broadcast %cst_174 : f32 to vector<32x8xf32>
    %121 = arith.mulf %120, %119 : vector<32x8xf32>
    %122 = vector.extract_strided_slice %85 {offsets = [2, 0, 0], sizes = [1, 32, 8], strides = [1, 1, 1]} : vector<16x32x8xf32> to vector<1x32x8xf32>
    %123 = vector.shape_cast %122 : vector<1x32x8xf32> to vector<32x8xf32>
    %cst_175 = arith.constant 0.45161289 : f32
    %124 = vector.broadcast %cst_175 : f32 to vector<32x8xf32>
    %125 = arith.mulf %124, %123 : vector<32x8xf32>
    %126 = arith.addf %121, %125 : vector<32x8xf32>
    %127 = tpu.transpose %126, [1, 0] : vector<32x8xf32> -> vector<8x32xf32>
    %c0_176 = arith.constant 0 : index
    %c3 = arith.constant 3 : index
    %c0_177 = arith.constant 0 : index
    %c0_178 = arith.constant 0 : index
    %128 = vector.load %arg9[%c0_176, %c3, %c0_177, %c0_178] : memref<1x32x8x32xf32, #tpu.memory_space<vmem>>, vector<1x1x8x32xf32>
    %129 = vector.shape_cast %128 : vector<1x1x8x32xf32> to vector<8x32xf32>
    %130 = vector.shape_cast %127 : vector<8x32xf32> to vector<1x1x8x32xf32>
    tpu.vector_store %arg9[%c0_176, %c3, %c0_177, %c0_178], %130 {strides = array<i32>} : memref<1x32x8x32xf32, #tpu.memory_space<vmem>>, vector<1x1x8x32xf32>,
    %131 = vector.extract_strided_slice %85 {offsets = [1, 0, 0], sizes = [1, 32, 8], strides = [1, 1, 1]} : vector<16x32x8xf32> to vector<1x32x8xf32>
    %132 = vector.shape_cast %131 : vector<1x32x8xf32> to vector<32x8xf32>
    %cst_179 = arith.constant 0.0645161271 : f32
    %133 = vector.broadcast %cst_179 : f32 to vector<32x8xf32>
    %134 = arith.mulf %133, %132 : vector<32x8xf32>
    %135 = vector.extract_strided_slice %85 {offsets = [2, 0, 0], sizes = [1, 32, 8], strides = [1, 1, 1]} : vector<16x32x8xf32> to vector<1x32x8xf32>
    %136 = vector.shape_cast %135 : vector<1x32x8xf32> to vector<32x8xf32>
    %cst_180 = arith.constant 0.935483872 : f32
    %137 = vector.broadcast %cst_180 : f32 to vector<32x8xf32>
    %138 = arith.mulf %137, %136 : vector<32x8xf32>
    %139 = arith.addf %134, %138 : vector<32x8xf32>
    %140 = tpu.transpose %139, [1, 0] : vector<32x8xf32> -> vector<8x32xf32>
    %c0_181 = arith.constant 0 : index
    %c4_182 = arith.constant 4 : index
    %c0_183 = arith.constant 0 : index
    %c0_184 = arith.constant 0 : index
    %141 = vector.load %arg9[%c0_181, %c4_182, %c0_183, %c0_184] : memref<1x32x8x32xf32, #tpu.memory_space<vmem>>, vector<1x1x8x32xf32>
    %142 = vector.shape_cast %141 : vector<1x1x8x32xf32> to vector<8x32xf32>
    %143 = vector.shape_cast %140 : vector<8x32xf32> to vector<1x1x8x32xf32>
    tpu.vector_store %arg9[%c0_181, %c4_182, %c0_183, %c0_184], %143 {strides = array<i32>} : memref<1x32x8x32xf32, #tpu.memory_space<vmem>>, vector<1x1x8x32xf32>,
    %144 = vector.extract_strided_slice %85 {offsets = [2, 0, 0], sizes = [1, 32, 8], strides = [1, 1, 1]} : vector<16x32x8xf32> to vector<1x32x8xf32>
    %145 = vector.shape_cast %144 : vector<1x32x8xf32> to vector<32x8xf32>
    %cst_185 = arith.constant 0.580645144 : f32
    %146 = vector.broadcast %cst_185 : f32 to vector<32x8xf32>
    %147 = arith.mulf %146, %145 : vector<32x8xf32>
    %148 = vector.extract_strided_slice %85 {offsets = [3, 0, 0], sizes = [1, 32, 8], strides = [1, 1, 1]} : vector<16x32x8xf32> to vector<1x32x8xf32>
    %149 = vector.shape_cast %148 : vector<1x32x8xf32> to vector<32x8xf32>
    %cst_186 = arith.constant 0.419354826 : f32
    %150 = vector.broadcast %cst_186 : f32 to vector<32x8xf32>
    %151 = arith.mulf %150, %149 : vector<32x8xf32>
    %152 = arith.addf %147, %151 : vector<32x8xf32>
    %153 = tpu.transpose %152, [1, 0] : vector<32x8xf32> -> vector<8x32xf32>
    %c0_187 = arith.constant 0 : index
    %c5 = arith.constant 5 : index
    %c0_188 = arith.constant 0 : index
    %c0_189 = arith.constant 0 : index
    %154 = vector.load %arg9[%c0_187, %c5, %c0_188, %c0_189] : memref<1x32x8x32xf32, #tpu.memory_space<vmem>>, vector<1x1x8x32xf32>
    %155 = vector.shape_cast %154 : vector<1x1x8x32xf32> to vector<8x32xf32>
    %156 = vector.shape_cast %153 : vector<8x32xf32> to vector<1x1x8x32xf32>
    tpu.vector_store %arg9[%c0_187, %c5, %c0_188, %c0_189], %156 {strides = array<i32>} : memref<1x32x8x32xf32, #tpu.memory_space<vmem>>, vector<1x1x8x32xf32>,
    %157 = vector.extract_strided_slice %85 {offsets = [2, 0, 0], sizes = [1, 32, 8], strides = [1, 1, 1]} : vector<16x32x8xf32> to vector<1x32x8xf32>
    %158 = vector.shape_cast %157 : vector<1x32x8xf32> to vector<32x8xf32>
    %cst_190 = arith.constant 0.0967741906 : f32
    %159 = vector.broadcast %cst_190 : f32 to vector<32x8xf32>
    %160 = arith.mulf %159, %158 : vector<32x8xf32>
    %161 = vector.extract_strided_slice %85 {offsets = [3, 0, 0], sizes = [1, 32, 8], strides = [1, 1, 1]} : vector<16x32x8xf32> to vector<1x32x8xf32>
    %162 = vector.shape_cast %161 : vector<1x32x8xf32> to vector<32x8xf32>
    %cst_191 = arith.constant 0.903225779 : f32
    %163 = vector.broadcast %cst_191 : f32 to vector<32x8xf32>
    %164 = arith.mulf %163, %162 : vector<32x8xf32>
    %165 = arith.addf %160, %164 : vector<32x8xf32>
    %166 = tpu.transpose %165, [1, 0] : vector<32x8xf32> -> vector<8x32xf32>
    %c0_192 = arith.constant 0 : index
    %c6 = arith.constant 6 : index
    %c0_193 = arith.constant 0 : index
    %c0_194 = arith.constant 0 : index
    %167 = vector.load %arg9[%c0_192, %c6, %c0_193, %c0_194] : memref<1x32x8x32xf32, #tpu.memory_space<vmem>>, vector<1x1x8x32xf32>
    %168 = vector.shape_cast %167 : vector<1x1x8x32xf32> to vector<8x32xf32>
    %169 = vector.shape_cast %166 : vector<8x32xf32> to vector<1x1x8x32xf32>
    tpu.vector_store %arg9[%c0_192, %c6, %c0_193, %c0_194], %169 {strides = array<i32>} : memref<1x32x8x32xf32, #tpu.memory_space<vmem>>, vector<1x1x8x32xf32>,
    %170 = vector.extract_strided_slice %85 {offsets = [3, 0, 0], sizes = [1, 32, 8], strides = [1, 1, 1]} : vector<16x32x8xf32> to vector<1x32x8xf32>
    %171 = vector.shape_cast %170 : vector<1x32x8xf32> to vector<32x8xf32>
    %cst_195 = arith.constant 0.612903237 : f32
    %172 = vector.broadcast %cst_195 : f32 to vector<32x8xf32>
    %173 = arith.mulf %172, %171 : vector<32x8xf32>
    %174 = vector.extract_strided_slice %85 {offsets = [4, 0, 0], sizes = [1, 32, 8], strides = [1, 1, 1]} : vector<16x32x8xf32> to vector<1x32x8xf32>
    %175 = vector.shape_cast %174 : vector<1x32x8xf32> to vector<32x8xf32>
    %cst_196 = arith.constant 0.387096763 : f32
    %176 = vector.broadcast %cst_196 : f32 to vector<32x8xf32>
    %177 = arith.mulf %176, %175 : vector<32x8xf32>
    %178 = arith.addf %173, %177 : vector<32x8xf32>
    %179 = tpu.transpose %178, [1, 0] : vector<32x8xf32> -> vector<8x32xf32>
    %c0_197 = arith.constant 0 : index
    %c7 = arith.constant 7 : index
    %c0_198 = arith.constant 0 : index
    %c0_199 = arith.constant 0 : index
    %180 = vector.load %arg9[%c0_197, %c7, %c0_198, %c0_199] : memref<1x32x8x32xf32, #tpu.memory_space<vmem>>, vector<1x1x8x32xf32>
    %181 = vector.shape_cast %180 : vector<1x1x8x32xf32> to vector<8x32xf32>
    %182 = vector.shape_cast %179 : vector<8x32xf32> to vector<1x1x8x32xf32>
    tpu.vector_store %arg9[%c0_197, %c7, %c0_198, %c0_199], %182 {strides = array<i32>} : memref<1x32x8x32xf32, #tpu.memory_space<vmem>>, vector<1x1x8x32xf32>,
    %183 = vector.extract_strided_slice %85 {offsets = [3, 0, 0], sizes = [1, 32, 8], strides = [1, 1, 1]} : vector<16x32x8xf32> to vector<1x32x8xf32>
    %184 = vector.shape_cast %183 : vector<1x32x8xf32> to vector<32x8xf32>
    %cst_200 = arith.constant 0.129032254 : f32
    %185 = vector.broadcast %cst_200 : f32 to vector<32x8xf32>
    %186 = arith.mulf %185, %184 : vector<32x8xf32>
    %187 = vector.extract_strided_slice %85 {offsets = [4, 0, 0], sizes = [1, 32, 8], strides = [1, 1, 1]} : vector<16x32x8xf32> to vector<1x32x8xf32>
    %188 = vector.shape_cast %187 : vector<1x32x8xf32> to vector<32x8xf32>
    %cst_201 = arith.constant 0.870967745 : f32
    %189 = vector.broadcast %cst_201 : f32 to vector<32x8xf32>
    %190 = arith.mulf %189, %188 : vector<32x8xf32>
    %191 = arith.addf %186, %190 : vector<32x8xf32>
    %192 = tpu.transpose %191, [1, 0] : vector<32x8xf32> -> vector<8x32xf32>
    %c0_202 = arith.constant 0 : index
    %c8_203 = arith.constant 8 : index
    %c0_204 = arith.constant 0 : index
    %c0_205 = arith.constant 0 : index
    %193 = vector.load %arg9[%c0_202, %c8_203, %c0_204, %c0_205] : memref<1x32x8x32xf32, #tpu.memory_space<vmem>>, vector<1x1x8x32xf32>
    %194 = vector.shape_cast %193 : vector<1x1x8x32xf32> to vector<8x32xf32>
    %195 = vector.shape_cast %192 : vector<8x32xf32> to vector<1x1x8x32xf32>
    tpu.vector_store %arg9[%c0_202, %c8_203, %c0_204, %c0_205], %195 {strides = array<i32>} : memref<1x32x8x32xf32, #tpu.memory_space<vmem>>, vector<1x1x8x32xf32>,
    %196 = vector.extract_strided_slice %85 {offsets = [4, 0, 0], sizes = [1, 32, 8], strides = [1, 1, 1]} : vector<16x32x8xf32> to vector<1x32x8xf32>
    %197 = vector.shape_cast %196 : vector<1x32x8xf32> to vector<32x8xf32>
    %cst_206 = arith.constant 0.645161271 : f32
    %198 = vector.broadcast %cst_206 : f32 to vector<32x8xf32>
    %199 = arith.mulf %198, %197 : vector<32x8xf32>
    %200 = vector.extract_strided_slice %85 {offsets = [5, 0, 0], sizes = [1, 32, 8], strides = [1, 1, 1]} : vector<16x32x8xf32> to vector<1x32x8xf32>
    %201 = vector.shape_cast %200 : vector<1x32x8xf32> to vector<32x8xf32>
    %cst_207 = arith.constant 0.354838699 : f32
    %202 = vector.broadcast %cst_207 : f32 to vector<32x8xf32>
    %203 = arith.mulf %202, %201 : vector<32x8xf32>
    %204 = arith.addf %199, %203 : vector<32x8xf32>
    %205 = tpu.transpose %204, [1, 0] : vector<32x8xf32> -> vector<8x32xf32>
    %c0_208 = arith.constant 0 : index
    %c9 = arith.constant 9 : index
    %c0_209 = arith.constant 0 : index
    %c0_210 = arith.constant 0 : index
    %206 = vector.load %arg9[%c0_208, %c9, %c0_209, %c0_210] : memref<1x32x8x32xf32, #tpu.memory_space<vmem>>, vector<1x1x8x32xf32>
    %207 = vector.shape_cast %206 : vector<1x1x8x32xf32> to vector<8x32xf32>
    %208 = vector.shape_cast %205 : vector<8x32xf32> to vector<1x1x8x32xf32>
    tpu.vector_store %arg9[%c0_208, %c9, %c0_209, %c0_210], %208 {strides = array<i32>} : memref<1x32x8x32xf32, #tpu.memory_space<vmem>>, vector<1x1x8x32xf32>,
    %209 = vector.extract_strided_slice %85 {offsets = [4, 0, 0], sizes = [1, 32, 8], strides = [1, 1, 1]} : vector<16x32x8xf32> to vector<1x32x8xf32>
    %210 = vector.shape_cast %209 : vector<1x32x8xf32> to vector<32x8xf32>
    %cst_211 = arith.constant 0.161290318 : f32
    %211 = vector.broadcast %cst_211 : f32 to vector<32x8xf32>
    %212 = arith.mulf %211, %210 : vector<32x8xf32>
    %213 = vector.extract_strided_slice %85 {offsets = [5, 0, 0], sizes = [1, 32, 8], strides = [1, 1, 1]} : vector<16x32x8xf32> to vector<1x32x8xf32>
    %214 = vector.shape_cast %213 : vector<1x32x8xf32> to vector<32x8xf32>
    %cst_212 = arith.constant 0.838709652 : f32
    %215 = vector.broadcast %cst_212 : f32 to vector<32x8xf32>
    %216 = arith.mulf %215, %214 : vector<32x8xf32>
    %217 = arith.addf %212, %216 : vector<32x8xf32>
    %218 = tpu.transpose %217, [1, 0] : vector<32x8xf32> -> vector<8x32xf32>
    %c0_213 = arith.constant 0 : index
    %c10 = arith.constant 10 : index
    %c0_214 = arith.constant 0 : index
    %c0_215 = arith.constant 0 : index
    %219 = vector.load %arg9[%c0_213, %c10, %c0_214, %c0_215] : memref<1x32x8x32xf32, #tpu.memory_space<vmem>>, vector<1x1x8x32xf32>
    %220 = vector.shape_cast %219 : vector<1x1x8x32xf32> to vector<8x32xf32>
    %221 = vector.shape_cast %218 : vector<8x32xf32> to vector<1x1x8x32xf32>
    tpu.vector_store %arg9[%c0_213, %c10, %c0_214, %c0_215], %221 {strides = array<i32>} : memref<1x32x8x32xf32, #tpu.memory_space<vmem>>, vector<1x1x8x32xf32>,
    %222 = vector.extract_strided_slice %85 {offsets = [5, 0, 0], sizes = [1, 32, 8], strides = [1, 1, 1]} : vector<16x32x8xf32> to vector<1x32x8xf32>
    %223 = vector.shape_cast %222 : vector<1x32x8xf32> to vector<32x8xf32>
    %cst_216 = arith.constant 0.677419364 : f32
    %224 = vector.broadcast %cst_216 : f32 to vector<32x8xf32>
    %225 = arith.mulf %224, %223 : vector<32x8xf32>
    %226 = vector.extract_strided_slice %85 {offsets = [6, 0, 0], sizes = [1, 32, 8], strides = [1, 1, 1]} : vector<16x32x8xf32> to vector<1x32x8xf32>
    %227 = vector.shape_cast %226 : vector<1x32x8xf32> to vector<32x8xf32>
    %cst_217 = arith.constant 0.322580636 : f32
    %228 = vector.broadcast %cst_217 : f32 to vector<32x8xf32>
    %229 = arith.mulf %228, %227 : vector<32x8xf32>
    %230 = arith.addf %225, %229 : vector<32x8xf32>
    %231 = tpu.transpose %230, [1, 0] : vector<32x8xf32> -> vector<8x32xf32>
    %c0_218 = arith.constant 0 : index
    %c11 = arith.constant 11 : index
    %c0_219 = arith.constant 0 : index
    %c0_220 = arith.constant 0 : index
    %232 = vector.load %arg9[%c0_218, %c11, %c0_219, %c0_220] : memref<1x32x8x32xf32, #tpu.memory_space<vmem>>, vector<1x1x8x32xf32>
    %233 = vector.shape_cast %232 : vector<1x1x8x32xf32> to vector<8x32xf32>
    %234 = vector.shape_cast %231 : vector<8x32xf32> to vector<1x1x8x32xf32>
    tpu.vector_store %arg9[%c0_218, %c11, %c0_219, %c0_220], %234 {strides = array<i32>} : memref<1x32x8x32xf32, #tpu.memory_space<vmem>>, vector<1x1x8x32xf32>,
    %235 = vector.extract_strided_slice %85 {offsets = [5, 0, 0], sizes = [1, 32, 8], strides = [1, 1, 1]} : vector<16x32x8xf32> to vector<1x32x8xf32>
    %236 = vector.shape_cast %235 : vector<1x32x8xf32> to vector<32x8xf32>
    %cst_221 = arith.constant 0.193548381 : f32
    %237 = vector.broadcast %cst_221 : f32 to vector<32x8xf32>
    %238 = arith.mulf %237, %236 : vector<32x8xf32>
    %239 = vector.extract_strided_slice %85 {offsets = [6, 0, 0], sizes = [1, 32, 8], strides = [1, 1, 1]} : vector<16x32x8xf32> to vector<1x32x8xf32>
    %240 = vector.shape_cast %239 : vector<1x32x8xf32> to vector<32x8xf32>
    %cst_222 = arith.constant 0.806451618 : f32
    %241 = vector.broadcast %cst_222 : f32 to vector<32x8xf32>
    %242 = arith.mulf %241, %240 : vector<32x8xf32>
    %243 = arith.addf %238, %242 : vector<32x8xf32>
    %244 = tpu.transpose %243, [1, 0] : vector<32x8xf32> -> vector<8x32xf32>
    %c0_223 = arith.constant 0 : index
    %c12_224 = arith.constant 12 : index
    %c0_225 = arith.constant 0 : index
    %c0_226 = arith.constant 0 : index
    %245 = vector.load %arg9[%c0_223, %c12_224, %c0_225, %c0_226] : memref<1x32x8x32xf32, #tpu.memory_space<vmem>>, vector<1x1x8x32xf32>
    %246 = vector.shape_cast %245 : vector<1x1x8x32xf32> to vector<8x32xf32>
    %247 = vector.shape_cast %244 : vector<8x32xf32> to vector<1x1x8x32xf32>
    tpu.vector_store %arg9[%c0_223, %c12_224, %c0_225, %c0_226], %247 {strides = array<i32>} : memref<1x32x8x32xf32, #tpu.memory_space<vmem>>, vector<1x1x8x32xf32>,
    %248 = vector.extract_strided_slice %85 {offsets = [6, 0, 0], sizes = [1, 32, 8], strides = [1, 1, 1]} : vector<16x32x8xf32> to vector<1x32x8xf32>
    %249 = vector.shape_cast %248 : vector<1x32x8xf32> to vector<32x8xf32>
    %cst_227 = arith.constant 0.709677398 : f32
    %250 = vector.broadcast %cst_227 : f32 to vector<32x8xf32>
    %251 = arith.mulf %250, %249 : vector<32x8xf32>
    %252 = vector.extract_strided_slice %85 {offsets = [7, 0, 0], sizes = [1, 32, 8], strides = [1, 1, 1]} : vector<16x32x8xf32> to vector<1x32x8xf32>
    %253 = vector.shape_cast %252 : vector<1x32x8xf32> to vector<32x8xf32>
    %cst_228 = arith.constant 0.290322572 : f32
    %254 = vector.broadcast %cst_228 : f32 to vector<32x8xf32>
    %255 = arith.mulf %254, %253 : vector<32x8xf32>
    %256 = arith.addf %251, %255 : vector<32x8xf32>
    %257 = tpu.transpose %256, [1, 0] : vector<32x8xf32> -> vector<8x32xf32>
    %c0_229 = arith.constant 0 : index
    %c13 = arith.constant 13 : index
    %c0_230 = arith.constant 0 : index
    %c0_231 = arith.constant 0 : index
    %258 = vector.load %arg9[%c0_229, %c13, %c0_230, %c0_231] : memref<1x32x8x32xf32, #tpu.memory_space<vmem>>, vector<1x1x8x32xf32>
    %259 = vector.shape_cast %258 : vector<1x1x8x32xf32> to vector<8x32xf32>
    %260 = vector.shape_cast %257 : vector<8x32xf32> to vector<1x1x8x32xf32>
    tpu.vector_store %arg9[%c0_229, %c13, %c0_230, %c0_231], %260 {strides = array<i32>} : memref<1x32x8x32xf32, #tpu.memory_space<vmem>>, vector<1x1x8x32xf32>,
    %261 = vector.extract_strided_slice %85 {offsets = [6, 0, 0], sizes = [1, 32, 8], strides = [1, 1, 1]} : vector<16x32x8xf32> to vector<1x32x8xf32>
    %262 = vector.shape_cast %261 : vector<1x32x8xf32> to vector<32x8xf32>
    %cst_232 = arith.constant 0.225806445 : f32
    %263 = vector.broadcast %cst_232 : f32 to vector<32x8xf32>
    %264 = arith.mulf %263, %262 : vector<32x8xf32>
    %265 = vector.extract_strided_slice %85 {offsets = [7, 0, 0], sizes = [1, 32, 8], strides = [1, 1, 1]} : vector<16x32x8xf32> to vector<1x32x8xf32>
    %266 = vector.shape_cast %265 : vector<1x32x8xf32> to vector<32x8xf32>
    %cst_233 = arith.constant 0.774193525 : f32
    %267 = vector.broadcast %cst_233 : f32 to vector<32x8xf32>
    %268 = arith.mulf %267, %266 : vector<32x8xf32>
    %269 = arith.addf %264, %268 : vector<32x8xf32>
    %270 = tpu.transpose %269, [1, 0] : vector<32x8xf32> -> vector<8x32xf32>
    %c0_234 = arith.constant 0 : index
    %c14 = arith.constant 14 : index
    %c0_235 = arith.constant 0 : index
    %c0_236 = arith.constant 0 : index
    %271 = vector.load %arg9[%c0_234, %c14, %c0_235, %c0_236] : memref<1x32x8x32xf32, #tpu.memory_space<vmem>>, vector<1x1x8x32xf32>
    %272 = vector.shape_cast %271 : vector<1x1x8x32xf32> to vector<8x32xf32>
    %273 = vector.shape_cast %270 : vector<8x32xf32> to vector<1x1x8x32xf32>
    tpu.vector_store %arg9[%c0_234, %c14, %c0_235, %c0_236], %273 {strides = array<i32>} : memref<1x32x8x32xf32, #tpu.memory_space<vmem>>, vector<1x1x8x32xf32>,
    %274 = vector.extract_strided_slice %85 {offsets = [7, 0, 0], sizes = [1, 32, 8], strides = [1, 1, 1]} : vector<16x32x8xf32> to vector<1x32x8xf32>
    %275 = vector.shape_cast %274 : vector<1x32x8xf32> to vector<32x8xf32>
    %cst_237 = arith.constant 0.741935492 : f32
    %276 = vector.broadcast %cst_237 : f32 to vector<32x8xf32>
    %277 = arith.mulf %276, %275 : vector<32x8xf32>
    %278 = vector.extract_strided_slice %85 {offsets = [8, 0, 0], sizes = [1, 32, 8], strides = [1, 1, 1]} : vector<16x32x8xf32> to vector<1x32x8xf32>
    %279 = vector.shape_cast %278 : vector<1x32x8xf32> to vector<32x8xf32>
    %cst_238 = arith.constant 0.258064508 : f32
    %280 = vector.broadcast %cst_238 : f32 to vector<32x8xf32>
    %281 = arith.mulf %280, %279 : vector<32x8xf32>
    %282 = arith.addf %277, %281 : vector<32x8xf32>
    %283 = tpu.transpose %282, [1, 0] : vector<32x8xf32> -> vector<8x32xf32>
    %c0_239 = arith.constant 0 : index
    %c15 = arith.constant 15 : index
    %c0_240 = arith.constant 0 : index
    %c0_241 = arith.constant 0 : index
    %284 = vector.load %arg9[%c0_239, %c15, %c0_240, %c0_241] : memref<1x32x8x32xf32, #tpu.memory_space<vmem>>, vector<1x1x8x32xf32>
    %285 = vector.shape_cast %284 : vector<1x1x8x32xf32> to vector<8x32xf32>
    %286 = vector.shape_cast %283 : vector<8x32xf32> to vector<1x1x8x32xf32>
    tpu.vector_store %arg9[%c0_239, %c15, %c0_240, %c0_241], %286 {strides = array<i32>} : memref<1x32x8x32xf32, #tpu.memory_space<vmem>>, vector<1x1x8x32xf32>,
    %287 = vector.extract_strided_slice %85 {offsets = [7, 0, 0], sizes = [1, 32, 8], strides = [1, 1, 1]} : vector<16x32x8xf32> to vector<1x32x8xf32>
    %288 = vector.shape_cast %287 : vector<1x32x8xf32> to vector<32x8xf32>
    %cst_242 = arith.constant 0.258064508 : f32
    %289 = vector.broadcast %cst_242 : f32 to vector<32x8xf32>
    %290 = arith.mulf %289, %288 : vector<32x8xf32>
    %291 = vector.extract_strided_slice %85 {offsets = [8, 0, 0], sizes = [1, 32, 8], strides = [1, 1, 1]} : vector<16x32x8xf32> to vector<1x32x8xf32>
    %292 = vector.shape_cast %291 : vector<1x32x8xf32> to vector<32x8xf32>
    %cst_243 = arith.constant 0.741935492 : f32
    %293 = vector.broadcast %cst_243 : f32 to vector<32x8xf32>
    %294 = arith.mulf %293, %292 : vector<32x8xf32>
    %295 = arith.addf %290, %294 : vector<32x8xf32>
    %296 = tpu.transpose %295, [1, 0] : vector<32x8xf32> -> vector<8x32xf32>
    %c0_244 = arith.constant 0 : index
    %c16_245 = arith.constant 16 : index
    %c0_246 = arith.constant 0 : index
    %c0_247 = arith.constant 0 : index
    %297 = vector.load %arg9[%c0_244, %c16_245, %c0_246, %c0_247] : memref<1x32x8x32xf32, #tpu.memory_space<vmem>>, vector<1x1x8x32xf32>
    %298 = vector.shape_cast %297 : vector<1x1x8x32xf32> to vector<8x32xf32>
    %299 = vector.shape_cast %296 : vector<8x32xf32> to vector<1x1x8x32xf32>
    tpu.vector_store %arg9[%c0_244, %c16_245, %c0_246, %c0_247], %299 {strides = array<i32>} : memref<1x32x8x32xf32, #tpu.memory_space<vmem>>, vector<1x1x8x32xf32>,
    %300 = vector.extract_strided_slice %85 {offsets = [8, 0, 0], sizes = [1, 32, 8], strides = [1, 1, 1]} : vector<16x32x8xf32> to vector<1x32x8xf32>
    %301 = vector.shape_cast %300 : vector<1x32x8xf32> to vector<32x8xf32>
    %cst_248 = arith.constant 0.774193525 : f32
    %302 = vector.broadcast %cst_248 : f32 to vector<32x8xf32>
    %303 = arith.mulf %302, %301 : vector<32x8xf32>
    %304 = vector.extract_strided_slice %85 {offsets = [9, 0, 0], sizes = [1, 32, 8], strides = [1, 1, 1]} : vector<16x32x8xf32> to vector<1x32x8xf32>
    %305 = vector.shape_cast %304 : vector<1x32x8xf32> to vector<32x8xf32>
    %cst_249 = arith.constant 0.225806445 : f32
    %306 = vector.broadcast %cst_249 : f32 to vector<32x8xf32>
    %307 = arith.mulf %306, %305 : vector<32x8xf32>
    %308 = arith.addf %303, %307 : vector<32x8xf32>
    %309 = tpu.transpose %308, [1, 0] : vector<32x8xf32> -> vector<8x32xf32>
    %c0_250 = arith.constant 0 : index
    %c17_251 = arith.constant 17 : index
    %c0_252 = arith.constant 0 : index
    %c0_253 = arith.constant 0 : index
    %310 = vector.load %arg9[%c0_250, %c17_251, %c0_252, %c0_253] : memref<1x32x8x32xf32, #tpu.memory_space<vmem>>, vector<1x1x8x32xf32>
    %311 = vector.shape_cast %310 : vector<1x1x8x32xf32> to vector<8x32xf32>
    %312 = vector.shape_cast %309 : vector<8x32xf32> to vector<1x1x8x32xf32>
    tpu.vector_store %arg9[%c0_250, %c17_251, %c0_252, %c0_253], %312 {strides = array<i32>} : memref<1x32x8x32xf32, #tpu.memory_space<vmem>>, vector<1x1x8x32xf32>,
    %313 = vector.extract_strided_slice %85 {offsets = [8, 0, 0], sizes = [1, 32, 8], strides = [1, 1, 1]} : vector<16x32x8xf32> to vector<1x32x8xf32>
    %314 = vector.shape_cast %313 : vector<1x32x8xf32> to vector<32x8xf32>
    %cst_254 = arith.constant 0.290322572 : f32
    %315 = vector.broadcast %cst_254 : f32 to vector<32x8xf32>
    %316 = arith.mulf %315, %314 : vector<32x8xf32>
    %317 = vector.extract_strided_slice %85 {offsets = [9, 0, 0], sizes = [1, 32, 8], strides = [1, 1, 1]} : vector<16x32x8xf32> to vector<1x32x8xf32>
    %318 = vector.shape_cast %317 : vector<1x32x8xf32> to vector<32x8xf32>
    %cst_255 = arith.constant 0.709677398 : f32
    %319 = vector.broadcast %cst_255 : f32 to vector<32x8xf32>
    %320 = arith.mulf %319, %318 : vector<32x8xf32>
    %321 = arith.addf %316, %320 : vector<32x8xf32>
    %322 = tpu.transpose %321, [1, 0] : vector<32x8xf32> -> vector<8x32xf32>
    %c0_256 = arith.constant 0 : index
    %c18 = arith.constant 18 : index
    %c0_257 = arith.constant 0 : index
    %c0_258 = arith.constant 0 : index
    %323 = vector.load %arg9[%c0_256, %c18, %c0_257, %c0_258] : memref<1x32x8x32xf32, #tpu.memory_space<vmem>>, vector<1x1x8x32xf32>
    %324 = vector.shape_cast %323 : vector<1x1x8x32xf32> to vector<8x32xf32>
    %325 = vector.shape_cast %322 : vector<8x32xf32> to vector<1x1x8x32xf32>
    tpu.vector_store %arg9[%c0_256, %c18, %c0_257, %c0_258], %325 {strides = array<i32>} : memref<1x32x8x32xf32, #tpu.memory_space<vmem>>, vector<1x1x8x32xf32>,
    %326 = vector.extract_strided_slice %85 {offsets = [9, 0, 0], sizes = [1, 32, 8], strides = [1, 1, 1]} : vector<16x32x8xf32> to vector<1x32x8xf32>
    %327 = vector.shape_cast %326 : vector<1x32x8xf32> to vector<32x8xf32>
    %cst_259 = arith.constant 0.806451618 : f32
    %328 = vector.broadcast %cst_259 : f32 to vector<32x8xf32>
    %329 = arith.mulf %328, %327 : vector<32x8xf32>
    %330 = vector.extract_strided_slice %85 {offsets = [10, 0, 0], sizes = [1, 32, 8], strides = [1, 1, 1]} : vector<16x32x8xf32> to vector<1x32x8xf32>
    %331 = vector.shape_cast %330 : vector<1x32x8xf32> to vector<32x8xf32>
    %cst_260 = arith.constant 0.193548381 : f32
    %332 = vector.broadcast %cst_260 : f32 to vector<32x8xf32>
    %333 = arith.mulf %332, %331 : vector<32x8xf32>
    %334 = arith.addf %329, %333 : vector<32x8xf32>
    %335 = tpu.transpose %334, [1, 0] : vector<32x8xf32> -> vector<8x32xf32>
    %c0_261 = arith.constant 0 : index
    %c19 = arith.constant 19 : index
    %c0_262 = arith.constant 0 : index
    %c0_263 = arith.constant 0 : index
    %336 = vector.load %arg9[%c0_261, %c19, %c0_262, %c0_263] : memref<1x32x8x32xf32, #tpu.memory_space<vmem>>, vector<1x1x8x32xf32>
    %337 = vector.shape_cast %336 : vector<1x1x8x32xf32> to vector<8x32xf32>
    %338 = vector.shape_cast %335 : vector<8x32xf32> to vector<1x1x8x32xf32>
    tpu.vector_store %arg9[%c0_261, %c19, %c0_262, %c0_263], %338 {strides = array<i32>} : memref<1x32x8x32xf32, #tpu.memory_space<vmem>>, vector<1x1x8x32xf32>,
    %339 = vector.extract_strided_slice %85 {offsets = [9, 0, 0], sizes = [1, 32, 8], strides = [1, 1, 1]} : vector<16x32x8xf32> to vector<1x32x8xf32>
    %340 = vector.shape_cast %339 : vector<1x32x8xf32> to vector<32x8xf32>
    %cst_264 = arith.constant 0.322580636 : f32
    %341 = vector.broadcast %cst_264 : f32 to vector<32x8xf32>
    %342 = arith.mulf %341, %340 : vector<32x8xf32>
    %343 = vector.extract_strided_slice %85 {offsets = [10, 0, 0], sizes = [1, 32, 8], strides = [1, 1, 1]} : vector<16x32x8xf32> to vector<1x32x8xf32>
    %344 = vector.shape_cast %343 : vector<1x32x8xf32> to vector<32x8xf32>
    %cst_265 = arith.constant 0.677419364 : f32
    %345 = vector.broadcast %cst_265 : f32 to vector<32x8xf32>
    %346 = arith.mulf %345, %344 : vector<32x8xf32>
    %347 = arith.addf %342, %346 : vector<32x8xf32>
    %348 = tpu.transpose %347, [1, 0] : vector<32x8xf32> -> vector<8x32xf32>
    %c0_266 = arith.constant 0 : index
    %c20_267 = arith.constant 20 : index
    %c0_268 = arith.constant 0 : index
    %c0_269 = arith.constant 0 : index
    %349 = vector.load %arg9[%c0_266, %c20_267, %c0_268, %c0_269] : memref<1x32x8x32xf32, #tpu.memory_space<vmem>>, vector<1x1x8x32xf32>
    %350 = vector.shape_cast %349 : vector<1x1x8x32xf32> to vector<8x32xf32>
    %351 = vector.shape_cast %348 : vector<8x32xf32> to vector<1x1x8x32xf32>
    tpu.vector_store %arg9[%c0_266, %c20_267, %c0_268, %c0_269], %351 {strides = array<i32>} : memref<1x32x8x32xf32, #tpu.memory_space<vmem>>, vector<1x1x8x32xf32>,
    %352 = vector.extract_strided_slice %85 {offsets = [10, 0, 0], sizes = [1, 32, 8], strides = [1, 1, 1]} : vector<16x32x8xf32> to vector<1x32x8xf32>
    %353 = vector.shape_cast %352 : vector<1x32x8xf32> to vector<32x8xf32>
    %cst_270 = arith.constant 0.838709652 : f32
    %354 = vector.broadcast %cst_270 : f32 to vector<32x8xf32>
    %355 = arith.mulf %354, %353 : vector<32x8xf32>
    %356 = vector.extract_strided_slice %85 {offsets = [11, 0, 0], sizes = [1, 32, 8], strides = [1, 1, 1]} : vector<16x32x8xf32> to vector<1x32x8xf32>
    %357 = vector.shape_cast %356 : vector<1x32x8xf32> to vector<32x8xf32>
    %cst_271 = arith.constant 0.161290318 : f32
    %358 = vector.broadcast %cst_271 : f32 to vector<32x8xf32>
    %359 = arith.mulf %358, %357 : vector<32x8xf32>
    %360 = arith.addf %355, %359 : vector<32x8xf32>
    %361 = tpu.transpose %360, [1, 0] : vector<32x8xf32> -> vector<8x32xf32>
    %c0_272 = arith.constant 0 : index
    %c21 = arith.constant 21 : index
    %c0_273 = arith.constant 0 : index
    %c0_274 = arith.constant 0 : index
    %362 = vector.load %arg9[%c0_272, %c21, %c0_273, %c0_274] : memref<1x32x8x32xf32, #tpu.memory_space<vmem>>, vector<1x1x8x32xf32>
    %363 = vector.shape_cast %362 : vector<1x1x8x32xf32> to vector<8x32xf32>
    %364 = vector.shape_cast %361 : vector<8x32xf32> to vector<1x1x8x32xf32>
    tpu.vector_store %arg9[%c0_272, %c21, %c0_273, %c0_274], %364 {strides = array<i32>} : memref<1x32x8x32xf32, #tpu.memory_space<vmem>>, vector<1x1x8x32xf32>,
    %365 = vector.extract_strided_slice %85 {offsets = [10, 0, 0], sizes = [1, 32, 8], strides = [1, 1, 1]} : vector<16x32x8xf32> to vector<1x32x8xf32>
    %366 = vector.shape_cast %365 : vector<1x32x8xf32> to vector<32x8xf32>
    %cst_275 = arith.constant 0.354838699 : f32
    %367 = vector.broadcast %cst_275 : f32 to vector<32x8xf32>
    %368 = arith.mulf %367, %366 : vector<32x8xf32>
    %369 = vector.extract_strided_slice %85 {offsets = [11, 0, 0], sizes = [1, 32, 8], strides = [1, 1, 1]} : vector<16x32x8xf32> to vector<1x32x8xf32>
    %370 = vector.shape_cast %369 : vector<1x32x8xf32> to vector<32x8xf32>
    %cst_276 = arith.constant 0.645161271 : f32
    %371 = vector.broadcast %cst_276 : f32 to vector<32x8xf32>
    %372 = arith.mulf %371, %370 : vector<32x8xf32>
    %373 = arith.addf %368, %372 : vector<32x8xf32>
    %374 = tpu.transpose %373, [1, 0] : vector<32x8xf32> -> vector<8x32xf32>
    %c0_277 = arith.constant 0 : index
    %c22 = arith.constant 22 : index
    %c0_278 = arith.constant 0 : index
    %c0_279 = arith.constant 0 : index
    %375 = vector.load %arg9[%c0_277, %c22, %c0_278, %c0_279] : memref<1x32x8x32xf32, #tpu.memory_space<vmem>>, vector<1x1x8x32xf32>
    %376 = vector.shape_cast %375 : vector<1x1x8x32xf32> to vector<8x32xf32>
    %377 = vector.shape_cast %374 : vector<8x32xf32> to vector<1x1x8x32xf32>
    tpu.vector_store %arg9[%c0_277, %c22, %c0_278, %c0_279], %377 {strides = array<i32>} : memref<1x32x8x32xf32, #tpu.memory_space<vmem>>, vector<1x1x8x32xf32>,
    %378 = vector.extract_strided_slice %85 {offsets = [11, 0, 0], sizes = [1, 32, 8], strides = [1, 1, 1]} : vector<16x32x8xf32> to vector<1x32x8xf32>
    %379 = vector.shape_cast %378 : vector<1x32x8xf32> to vector<32x8xf32>
    %cst_280 = arith.constant 0.870967745 : f32
    %380 = vector.broadcast %cst_280 : f32 to vector<32x8xf32>
    %381 = arith.mulf %380, %379 : vector<32x8xf32>
    %382 = vector.extract_strided_slice %85 {offsets = [12, 0, 0], sizes = [1, 32, 8], strides = [1, 1, 1]} : vector<16x32x8xf32> to vector<1x32x8xf32>
    %383 = vector.shape_cast %382 : vector<1x32x8xf32> to vector<32x8xf32>
    %cst_281 = arith.constant 0.129032254 : f32
    %384 = vector.broadcast %cst_281 : f32 to vector<32x8xf32>
    %385 = arith.mulf %384, %383 : vector<32x8xf32>
    %386 = arith.addf %381, %385 : vector<32x8xf32>
    %387 = tpu.transpose %386, [1, 0] : vector<32x8xf32> -> vector<8x32xf32>
    %c0_282 = arith.constant 0 : index
    %c23 = arith.constant 23 : index
    %c0_283 = arith.constant 0 : index
    %c0_284 = arith.constant 0 : index
    %388 = vector.load %arg9[%c0_282, %c23, %c0_283, %c0_284] : memref<1x32x8x32xf32, #tpu.memory_space<vmem>>, vector<1x1x8x32xf32>
    %389 = vector.shape_cast %388 : vector<1x1x8x32xf32> to vector<8x32xf32>
    %390 = vector.shape_cast %387 : vector<8x32xf32> to vector<1x1x8x32xf32>
    tpu.vector_store %arg9[%c0_282, %c23, %c0_283, %c0_284], %390 {strides = array<i32>} : memref<1x32x8x32xf32, #tpu.memory_space<vmem>>, vector<1x1x8x32xf32>,
    %391 = vector.extract_strided_slice %85 {offsets = [11, 0, 0], sizes = [1, 32, 8], strides = [1, 1, 1]} : vector<16x32x8xf32> to vector<1x32x8xf32>
    %392 = vector.shape_cast %391 : vector<1x32x8xf32> to vector<32x8xf32>
    %cst_285 = arith.constant 0.387096763 : f32
    %393 = vector.broadcast %cst_285 : f32 to vector<32x8xf32>
    %394 = arith.mulf %393, %392 : vector<32x8xf32>
    %395 = vector.extract_strided_slice %85 {offsets = [12, 0, 0], sizes = [1, 32, 8], strides = [1, 1, 1]} : vector<16x32x8xf32> to vector<1x32x8xf32>
    %396 = vector.shape_cast %395 : vector<1x32x8xf32> to vector<32x8xf32>
    %cst_286 = arith.constant 0.612903237 : f32
    %397 = vector.broadcast %cst_286 : f32 to vector<32x8xf32>
    %398 = arith.mulf %397, %396 : vector<32x8xf32>
    %399 = arith.addf %394, %398 : vector<32x8xf32>
    %400 = tpu.transpose %399, [1, 0] : vector<32x8xf32> -> vector<8x32xf32>
    %c0_287 = arith.constant 0 : index
    %c24_288 = arith.constant 24 : index
    %c0_289 = arith.constant 0 : index
    %c0_290 = arith.constant 0 : index
    %401 = vector.load %arg9[%c0_287, %c24_288, %c0_289, %c0_290] : memref<1x32x8x32xf32, #tpu.memory_space<vmem>>, vector<1x1x8x32xf32>
    %402 = vector.shape_cast %401 : vector<1x1x8x32xf32> to vector<8x32xf32>
    %403 = vector.shape_cast %400 : vector<8x32xf32> to vector<1x1x8x32xf32>
    tpu.vector_store %arg9[%c0_287, %c24_288, %c0_289, %c0_290], %403 {strides = array<i32>} : memref<1x32x8x32xf32, #tpu.memory_space<vmem>>, vector<1x1x8x32xf32>,
    %404 = vector.extract_strided_slice %85 {offsets = [12, 0, 0], sizes = [1, 32, 8], strides = [1, 1, 1]} : vector<16x32x8xf32> to vector<1x32x8xf32>
    %405 = vector.shape_cast %404 : vector<1x32x8xf32> to vector<32x8xf32>
    %cst_291 = arith.constant 0.903225779 : f32
    %406 = vector.broadcast %cst_291 : f32 to vector<32x8xf32>
    %407 = arith.mulf %406, %405 : vector<32x8xf32>
    %408 = vector.extract_strided_slice %85 {offsets = [13, 0, 0], sizes = [1, 32, 8], strides = [1, 1, 1]} : vector<16x32x8xf32> to vector<1x32x8xf32>
    %409 = vector.shape_cast %408 : vector<1x32x8xf32> to vector<32x8xf32>
    %cst_292 = arith.constant 0.0967741906 : f32
    %410 = vector.broadcast %cst_292 : f32 to vector<32x8xf32>
    %411 = arith.mulf %410, %409 : vector<32x8xf32>
    %412 = arith.addf %407, %411 : vector<32x8xf32>
    %413 = tpu.transpose %412, [1, 0] : vector<32x8xf32> -> vector<8x32xf32>
    %c0_293 = arith.constant 0 : index
    %c25 = arith.constant 25 : index
    %c0_294 = arith.constant 0 : index
    %c0_295 = arith.constant 0 : index
    %414 = vector.load %arg9[%c0_293, %c25, %c0_294, %c0_295] : memref<1x32x8x32xf32, #tpu.memory_space<vmem>>, vector<1x1x8x32xf32>
    %415 = vector.shape_cast %414 : vector<1x1x8x32xf32> to vector<8x32xf32>
    %416 = vector.shape_cast %413 : vector<8x32xf32> to vector<1x1x8x32xf32>
    tpu.vector_store %arg9[%c0_293, %c25, %c0_294, %c0_295], %416 {strides = array<i32>} : memref<1x32x8x32xf32, #tpu.memory_space<vmem>>, vector<1x1x8x32xf32>,
    %417 = vector.extract_strided_slice %85 {offsets = [12, 0, 0], sizes = [1, 32, 8], strides = [1, 1, 1]} : vector<16x32x8xf32> to vector<1x32x8xf32>
    %418 = vector.shape_cast %417 : vector<1x32x8xf32> to vector<32x8xf32>
    %cst_296 = arith.constant 0.419354826 : f32
    %419 = vector.broadcast %cst_296 : f32 to vector<32x8xf32>
    %420 = arith.mulf %419, %418 : vector<32x8xf32>
    %421 = vector.extract_strided_slice %85 {offsets = [13, 0, 0], sizes = [1, 32, 8], strides = [1, 1, 1]} : vector<16x32x8xf32> to vector<1x32x8xf32>
    %422 = vector.shape_cast %421 : vector<1x32x8xf32> to vector<32x8xf32>
    %cst_297 = arith.constant 0.580645144 : f32
    %423 = vector.broadcast %cst_297 : f32 to vector<32x8xf32>
    %424 = arith.mulf %423, %422 : vector<32x8xf32>
    %425 = arith.addf %420, %424 : vector<32x8xf32>
    %426 = tpu.transpose %425, [1, 0] : vector<32x8xf32> -> vector<8x32xf32>
    %c0_298 = arith.constant 0 : index
    %c26 = arith.constant 26 : index
    %c0_299 = arith.constant 0 : index
    %c0_300 = arith.constant 0 : index
    %427 = vector.load %arg9[%c0_298, %c26, %c0_299, %c0_300] : memref<1x32x8x32xf32, #tpu.memory_space<vmem>>, vector<1x1x8x32xf32>
    %428 = vector.shape_cast %427 : vector<1x1x8x32xf32> to vector<8x32xf32>
    %429 = vector.shape_cast %426 : vector<8x32xf32> to vector<1x1x8x32xf32>
    tpu.vector_store %arg9[%c0_298, %c26, %c0_299, %c0_300], %429 {strides = array<i32>} : memref<1x32x8x32xf32, #tpu.memory_space<vmem>>, vector<1x1x8x32xf32>,
    %430 = vector.extract_strided_slice %85 {offsets = [13, 0, 0], sizes = [1, 32, 8], strides = [1, 1, 1]} : vector<16x32x8xf32> to vector<1x32x8xf32>
    %431 = vector.shape_cast %430 : vector<1x32x8xf32> to vector<32x8xf32>
    %cst_301 = arith.constant 0.935483872 : f32
    %432 = vector.broadcast %cst_301 : f32 to vector<32x8xf32>
    %433 = arith.mulf %432, %431 : vector<32x8xf32>
    %434 = vector.extract_strided_slice %85 {offsets = [14, 0, 0], sizes = [1, 32, 8], strides = [1, 1, 1]} : vector<16x32x8xf32> to vector<1x32x8xf32>
    %435 = vector.shape_cast %434 : vector<1x32x8xf32> to vector<32x8xf32>
    %cst_302 = arith.constant 0.0645161271 : f32
    %436 = vector.broadcast %cst_302 : f32 to vector<32x8xf32>
    %437 = arith.mulf %436, %435 : vector<32x8xf32>
    %438 = arith.addf %433, %437 : vector<32x8xf32>
    %439 = tpu.transpose %438, [1, 0] : vector<32x8xf32> -> vector<8x32xf32>
    %c0_303 = arith.constant 0 : index
    %c27 = arith.constant 27 : index
    %c0_304 = arith.constant 0 : index
    %c0_305 = arith.constant 0 : index
    %440 = vector.load %arg9[%c0_303, %c27, %c0_304, %c0_305] : memref<1x32x8x32xf32, #tpu.memory_space<vmem>>, vector<1x1x8x32xf32>
    %441 = vector.shape_cast %440 : vector<1x1x8x32xf32> to vector<8x32xf32>
    %442 = vector.shape_cast %439 : vector<8x32xf32> to vector<1x1x8x32xf32>
    tpu.vector_store %arg9[%c0_303, %c27, %c0_304, %c0_305], %442 {strides = array<i32>} : memref<1x32x8x32xf32, #tpu.memory_space<vmem>>, vector<1x1x8x32xf32>,
    %443 = vector.extract_strided_slice %85 {offsets = [13, 0, 0], sizes = [1, 32, 8], strides = [1, 1, 1]} : vector<16x32x8xf32> to vector<1x32x8xf32>
    %444 = vector.shape_cast %443 : vector<1x32x8xf32> to vector<32x8xf32>
    %cst_306 = arith.constant 0.45161289 : f32
    %445 = vector.broadcast %cst_306 : f32 to vector<32x8xf32>
    %446 = arith.mulf %445, %444 : vector<32x8xf32>
    %447 = vector.extract_strided_slice %85 {offsets = [14, 0, 0], sizes = [1, 32, 8], strides = [1, 1, 1]} : vector<16x32x8xf32> to vector<1x32x8xf32>
    %448 = vector.shape_cast %447 : vector<1x32x8xf32> to vector<32x8xf32>
    %cst_307 = arith.constant 0.54838711 : f32
    %449 = vector.broadcast %cst_307 : f32 to vector<32x8xf32>
    %450 = arith.mulf %449, %448 : vector<32x8xf32>
    %451 = arith.addf %446, %450 : vector<32x8xf32>
    %452 = tpu.transpose %451, [1, 0] : vector<32x8xf32> -> vector<8x32xf32>
    %c0_308 = arith.constant 0 : index
    %c28_309 = arith.constant 28 : index
    %c0_310 = arith.constant 0 : index
    %c0_311 = arith.constant 0 : index
    %453 = vector.load %arg9[%c0_308, %c28_309, %c0_310, %c0_311] : memref<1x32x8x32xf32, #tpu.memory_space<vmem>>, vector<1x1x8x32xf32>
    %454 = vector.shape_cast %453 : vector<1x1x8x32xf32> to vector<8x32xf32>
    %455 = vector.shape_cast %452 : vector<8x32xf32> to vector<1x1x8x32xf32>
    tpu.vector_store %arg9[%c0_308, %c28_309, %c0_310, %c0_311], %455 {strides = array<i32>} : memref<1x32x8x32xf32, #tpu.memory_space<vmem>>, vector<1x1x8x32xf32>,
    %456 = vector.extract_strided_slice %85 {offsets = [14, 0, 0], sizes = [1, 32, 8], strides = [1, 1, 1]} : vector<16x32x8xf32> to vector<1x32x8xf32>
    %457 = vector.shape_cast %456 : vector<1x32x8xf32> to vector<32x8xf32>
    %cst_312 = arith.constant 0.967741906 : f32
    %458 = vector.broadcast %cst_312 : f32 to vector<32x8xf32>
    %459 = arith.mulf %458, %457 : vector<32x8xf32>
    %460 = vector.extract_strided_slice %85 {offsets = [15, 0, 0], sizes = [1, 32, 8], strides = [1, 1, 1]} : vector<16x32x8xf32> to vector<1x32x8xf32>
    %461 = vector.shape_cast %460 : vector<1x32x8xf32> to vector<32x8xf32>
    %cst_313 = arith.constant 0.0322580636 : f32
    %462 = vector.broadcast %cst_313 : f32 to vector<32x8xf32>
    %463 = arith.mulf %462, %461 : vector<32x8xf32>
    %464 = arith.addf %459, %463 : vector<32x8xf32>
    %465 = tpu.transpose %464, [1, 0] : vector<32x8xf32> -> vector<8x32xf32>
    %c0_314 = arith.constant 0 : index
    %c29 = arith.constant 29 : index
    %c0_315 = arith.constant 0 : index
    %c0_316 = arith.constant 0 : index
    %466 = vector.load %arg9[%c0_314, %c29, %c0_315, %c0_316] : memref<1x32x8x32xf32, #tpu.memory_space<vmem>>, vector<1x1x8x32xf32>
    %467 = vector.shape_cast %466 : vector<1x1x8x32xf32> to vector<8x32xf32>
    %468 = vector.shape_cast %465 : vector<8x32xf32> to vector<1x1x8x32xf32>
    tpu.vector_store %arg9[%c0_314, %c29, %c0_315, %c0_316], %468 {strides = array<i32>} : memref<1x32x8x32xf32, #tpu.memory_space<vmem>>, vector<1x1x8x32xf32>,
    %469 = vector.extract_strided_slice %85 {offsets = [14, 0, 0], sizes = [1, 32, 8], strides = [1, 1, 1]} : vector<16x32x8xf32> to vector<1x32x8xf32>
    %470 = vector.shape_cast %469 : vector<1x32x8xf32> to vector<32x8xf32>
    %cst_317 = arith.constant 0.483870953 : f32
    %471 = vector.broadcast %cst_317 : f32 to vector<32x8xf32>
    %472 = arith.mulf %471, %470 : vector<32x8xf32>
    %473 = vector.extract_strided_slice %85 {offsets = [15, 0, 0], sizes = [1, 32, 8], strides = [1, 1, 1]} : vector<16x32x8xf32> to vector<1x32x8xf32>
    %474 = vector.shape_cast %473 : vector<1x32x8xf32> to vector<32x8xf32>
    %cst_318 = arith.constant 5.161290e-01 : f32
    %475 = vector.broadcast %cst_318 : f32 to vector<32x8xf32>
    %476 = arith.mulf %475, %474 : vector<32x8xf32>
    %477 = arith.addf %472, %476 : vector<32x8xf32>
    %478 = tpu.transpose %477, [1, 0] : vector<32x8xf32> -> vector<8x32xf32>
    %c0_319 = arith.constant 0 : index
    %c30 = arith.constant 30 : index
    %c0_320 = arith.constant 0 : index
    %c0_321 = arith.constant 0 : index
    %479 = vector.load %arg9[%c0_319, %c30, %c0_320, %c0_321] : memref<1x32x8x32xf32, #tpu.memory_space<vmem>>, vector<1x1x8x32xf32>
    %480 = vector.shape_cast %479 : vector<1x1x8x32xf32> to vector<8x32xf32>
    %481 = vector.shape_cast %478 : vector<8x32xf32> to vector<1x1x8x32xf32>
    tpu.vector_store %arg9[%c0_319, %c30, %c0_320, %c0_321], %481 {strides = array<i32>} : memref<1x32x8x32xf32, #tpu.memory_space<vmem>>, vector<1x1x8x32xf32>,
    %482 = vector.extract_strided_slice %85 {offsets = [15, 0, 0], sizes = [1, 32, 8], strides = [1, 1, 1]} : vector<16x32x8xf32> to vector<1x32x8xf32>
    %483 = vector.shape_cast %482 : vector<1x32x8xf32> to vector<32x8xf32>
    %484 = tpu.transpose %483, [1, 0] : vector<32x8xf32> -> vector<8x32xf32>
    %c0_322 = arith.constant 0 : index
    %c31 = arith.constant 31 : index
    %c0_323 = arith.constant 0 : index
    %c0_324 = arith.constant 0 : index
    %485 = vector.load %arg9[%c0_322, %c31, %c0_323, %c0_324] : memref<1x32x8x32xf32, #tpu.memory_space<vmem>>, vector<1x1x8x32xf32>
    %486 = vector.shape_cast %485 : vector<1x1x8x32xf32> to vector<8x32xf32>
    %487 = vector.shape_cast %484 : vector<8x32xf32> to vector<1x1x8x32xf32>
    tpu.vector_store %arg9[%c0_322, %c31, %c0_323, %c0_324], %487 {strides = array<i32>} : memref<1x32x8x32xf32, #tpu.memory_space<vmem>>, vector<1x1x8x32xf32>,
    return
  }
  func.func @transform_0(%arg0: i32) -> (i32, i32, i32, i32) {
    %c0_i32 = arith.constant 0 : i32
    %c0_i32_0 = arith.constant 0 : i32
    %c0_i32_1 = arith.constant 0 : i32
    %c0_i32_2 = arith.constant 0 : i32
    return %arg0, %c0_i32, %c0_i32_0, %c0_i32_1 : i32, i32, i32, i32
  }
  func.func @transform_1(%arg0: i32) -> (i32, i32) {
    %c0_i32 = arith.constant 0 : i32
    %c0_i32_0 = arith.constant 0 : i32
    %c0_i32_1 = arith.constant 0 : i32
    return %c0_i32, %c0_i32_0 : i32, i32
  }
  func.func @transform_2(%arg0: i32) -> (i32, i32) {
    %c0_i32 = arith.constant 0 : i32
    %c0_i32_0 = arith.constant 0 : i32
    %c0_i32_1 = arith.constant 0 : i32
    return %c0_i32, %c0_i32_0 : i32, i32
  }
  func.func @transform_3(%arg0: i32) -> (i32, i32) {
    %c0_i32 = arith.constant 0 : i32
    %c0_i32_0 = arith.constant 0 : i32
    %c0_i32_1 = arith.constant 0 : i32
    return %c0_i32, %c0_i32_0 : i32, i32
  }
  func.func @transform_4(%arg0: i32) -> (i32, i32) {
    %c0_i32 = arith.constant 0 : i32
    %c0_i32_0 = arith.constant 0 : i32
    %c0_i32_1 = arith.constant 0 : i32
    return %c0_i32, %c0_i32_0 : i32, i32
  }
  func.func @transform_5(%arg0: i32) -> (i32, i32) {
    %c0_i32 = arith.constant 0 : i32
    %c0_i32_0 = arith.constant 0 : i32
    %c0_i32_1 = arith.constant 0 : i32
    return %c0_i32, %c0_i32_0 : i32, i32
  }
  func.func @transform_6(%arg0: i32) -> (i32, i32) {
    %c0_i32 = arith.constant 0 : i32
    %c0_i32_0 = arith.constant 0 : i32
    %c0_i32_1 = arith.constant 0 : i32
    return %c0_i32, %c0_i32_0 : i32, i32
  }
  func.func @transform_7(%arg0: i32) -> (i32, i32) {
    %c0_i32 = arith.constant 0 : i32
    %c0_i32_0 = arith.constant 0 : i32
    %c0_i32_1 = arith.constant 0 : i32
    return %c0_i32, %c0_i32_0 : i32, i32
  }
  func.func @transform_8(%arg0: i32) -> (i32, i32, i32, i32) {
    %c0_i32 = arith.constant 0 : i32
    %c0_i32_0 = arith.constant 0 : i32
    %c0_i32_1 = arith.constant 0 : i32
    %c0_i32_2 = arith.constant 0 : i32
    return %arg0, %c0_i32, %c0_i32_0, %c0_i32_1 : i32, i32, i32, i32
  }
}

</mosaic_0001>

<llo_original>
// kernel: tpu_custom_call.1
$region0: #{tpu_custom_call.1}
  #allocation0 [shape = 'u32[]', space=smem, size = 0x4, offset = 0x4, fixed_abs, tag = 'smem constant byte address 0x4 - core index']
  #allocation1 [shape = 'u32[144,128]{1,0:T(1,128)}', space=vmem, size = 0x12000, scoped, tag = 'internal scratch']
  #allocation2 [shape = 'f32[18,18,4]{2,1,0:T(8,128)}', space=vmem, size = 0x36000, scoped, tag = 'scratch operand']
  #allocation3 [shape = 'f32[18,18,8]{2,1,0:T(8,128)}', space=vmem, size = 0x36000, scoped, tag = 'scratch operand']
  #allocation4 [shape = 'f32[16,16,36]{2,1,0:T(8,128)}', space=vmem, size = 0x20000, scoped, tag = 'scratch operand']
  #allocation5 [shape = 'f32[16,16,72]{2,1,0:T(8,128)}', space=vmem, size = 0x20000, scoped, tag = 'scratch operand']
  %s0 = inlined_call_operand.vmem [shape: f32[2,16,16,4], index: 0, kind: input, shape index: {}]
  %s1 = inlined_call_operand.vmem [shape: f32[36,8], index: 1, kind: input, shape index: {}]
  %s2 = inlined_call_operand.vmem [shape: f32[1,8], index: 2, kind: input, shape index: {}]
  %s3 = inlined_call_operand.vmem [shape: f32[1,8], index: 3, kind: input, shape index: {}]
  %s4 = inlined_call_operand.vmem [shape: f32[72,8], index: 4, kind: input, shape index: {}]
  %s5 = inlined_call_operand.vmem [shape: f32[1,8], index: 5, kind: input, shape index: {}]
  %s6 = inlined_call_operand.vmem [shape: f32[1,8], index: 6, kind: input, shape index: {}]
  %s7 = inlined_call_operand.vmem [shape: f32[32,16], index: 7, kind: input, shape index: {}]
  %s8 = inlined_call_operand.hbm [shape: f32[2,32,8,32], index: 8, kind: output, shape index: {}]
  %s9 = sld [smem:[#allocation0]]
  $region65: #{tpu_custom_call.1} parent=0
    _
  %s11 = ssub.s32 1, %s9
  %s12 = scalar_select 0, %s11, %s9
  $region1: #{tpu_custom_call.1} parent=0
    #allocation6 [shape = 'u8[262144]{0}', space=vmem, size = 0x40000, scoped, tag = 'output window, operand 0']
    #allocation7 [shape = 's32[2]{0}', space=sflag, size = 0x8, scoped, tag = 'scoped memory for tpu_custom_call.1']
    %13 = vsyncpa [#allocation7], 0
    %s14 = scalar_lea.sflag [#allocation7], 1
    %15 = vsyncpa %s14, 0
    loop: start=0, step=1, limit=4
    $region2: #{tpu_custom_call.1} parent=1 // loop_pre_header
      _
    $region3: #{tpu_custom_call.1} parent=1 // loop_header
      %s17 = sphi 0, %s21
      %p18 = scmp.ge.s32.totalorder %s17, 4
      %s27 = sphi 0, %s29
      %s30 = sphi 0, %s27
      %s31 = sphi 0, %s30
      %s47 = sphi 0, %s31
      %s51 = sphi 0, %s51
      %s53 = sphi 0, %s51
      %s54 = sphi 0, %s53
      %s68 = sphi 0, %s54
      %s72 = sphi 0, %s72
      %s74 = sphi 0, %s72
      %s75 = sphi 0, %s74
      %s89 = sphi 0, %s75
      %s93 = sphi 0, %s93
      %s95 = sphi 0, %s93
      %s96 = sphi 0, %s95
      %s110 = sphi 0, %s96
      %s114 = sphi 0, %s114
      %s116 = sphi 0, %s114
      %s117 = sphi 0, %s116
      %s131 = sphi 0, %s117
      %s135 = sphi 0, %s135
      %s137 = sphi 0, %s135
      %s138 = sphi 0, %s137
      %s152 = sphi 0, %s138
      %s156 = sphi 0, %s156
      %s158 = sphi 0, %s156
      %s159 = sphi 0, %s158
      %s173 = sphi 0, %s159
      %s177 = sphi 0, %s177
      %s179 = sphi 0, %s177
      %s180 = sphi 0, %s179
      %s194 = sphi 0, %s180
      %s200 = sphi 0, %s202
      %s203 = sphi 0, %s200
      %s204 = sphi 0, %s203
      %s220 = sphi 0, %s204
    $region4: #{tpu_custom_call.1} parent=1 // loop_header_branch
      %20 = sbr.rel (%p18) target = $region8
    $region5: #{tpu_custom_call.1} parent=1 // loop_body
      %s22 = ssub.s32 %s17, 1
      %s23 = ssub.s32 %s17, 2
      %s24 = sadd.s32 %s17, 1
      %s25 = ssub.s32 %s17, %s24
      %p26 = scmp.eq.s32.totalorder %s25, 0
      %s28 = sadd.s32 %s27, 1
      %s29 = scalar_select %p26, %s27, %s28
      %p32 = pneg %p26
      %p33 = scmp.eq.s32.totalorder %s17, 1
      %p34 = por %p32, %p33
      %p35 = scmp.ne.s32.totalorder %s27, %s30
      %p36 = scmp.eq.s32.totalorder %s17, 0
      %p37 = por %p35, %p36
      %p38 = scmp.ne.s32.totalorder %s27, %s30
      %p39 = scmp.eq.s32.totalorder %s22, 1
      %p40 = por %p38, %p39
      %p41 = scmp.ne.s32.totalorder %s30, %s31
      %p42 = scmp.eq.s32.totalorder %s22, 0
      %p43 = por %p41, %p42
      %p44 = scmp.ne.s32.totalorder %s30, %s31
      %p45 = scmp.eq.s32.totalorder %s23, 1
      %p46 = por %p44, %p45
      %p48 = scmp.ne.s32.totalorder %s31, %s47
      %p49 = scmp.eq.s32.totalorder %s23, 0
      %p50 = por %p48, %p49
      %s52 = sadd.s32 %s51, 1
      %p55 = scmp.eq.s32.totalorder %s17, 1
      %p56 = scmp.ne.s32.totalorder %s51, %s53
      %p57 = scmp.eq.s32.totalorder %s17, 0
      %p58 = por %p56, %p57
      %p59 = scmp.ne.s32.totalorder %s51, %s53
      %p60 = scmp.eq.s32.totalorder %s22, 1
      %p61 = por %p59, %p60
      %p62 = scmp.ne.s32.totalorder %s53, %s54
      %p63 = scmp.eq.s32.totalorder %s22, 0
      %p64 = por %p62, %p63
      %p65 = scmp.ne.s32.totalorder %s53, %s54
      %p66 = scmp.eq.s32.totalorder %s23, 1
      %p67 = por %p65, %p66
      %p69 = scmp.ne.s32.totalorder %s54, %s68
      %p70 = scmp.eq.s32.totalorder %s23, 0
      %p71 = por %p69, %p70
      %s73 = sadd.s32 %s72, 1
      %p76 = scmp.eq.s32.totalorder %s17, 1
      %p77 = scmp.ne.s32.totalorder %s72, %s74
      %p78 = scmp.eq.s32.totalorder %s17, 0
      %p79 = por %p77, %p78
      %p80 = scmp.ne.s32.totalorder %s72, %s74
      %p81 = scmp.eq.s32.totalorder %s22, 1
      %p82 = por %p80, %p81
      %p83 = scmp.ne.s32.totalorder %s74, %s75
      %p84 = scmp.eq.s32.totalorder %s22, 0
      %p85 = por %p83, %p84
      %p86 = scmp.ne.s32.totalorder %s74, %s75
      %p87 = scmp.eq.s32.totalorder %s23, 1
      %p88 = por %p86, %p87
      %p90 = scmp.ne.s32.totalorder %s75, %s89
      %p91 = scmp.eq.s32.totalorder %s23, 0
      %p92 = por %p90, %p91
      %s94 = sadd.s32 %s93, 1
      %p97 = scmp.eq.s32.totalorder %s17, 1
      %p98 = scmp.ne.s32.totalorder %s93, %s95
      %p99 = scmp.eq.s32.totalorder %s17, 0
      %p100 = por %p98, %p99
      %p101 = scmp.ne.s32.totalorder %s93, %s95
      %p102 = scmp.eq.s32.totalorder %s22, 1
      %p103 = por %p101, %p102
      %p104 = scmp.ne.s32.totalorder %s95, %s96
      %p105 = scmp.eq.s32.totalorder %s22, 0
      %p106 = por %p104, %p105
      %p107 = scmp.ne.s32.totalorder %s95, %s96
      %p108 = scmp.eq.s32.totalorder %s23, 1
      %p109 = por %p107, %p108
      %p111 = scmp.ne.s32.totalorder %s96, %s110
      %p112 = scmp.eq.s32.totalorder %s23, 0
      %p113 = por %p111, %p112
      %s115 = sadd.s32 %s114, 1
      %p118 = scmp.eq.s32.totalorder %s17, 1
      %p119 = scmp.ne.s32.totalorder %s114, %s116
      %p120 = scmp.eq.s32.totalorder %s17, 0
      %p121 = por %p119, %p120
      %p122 = scmp.ne.s32.totalorder %s114, %s116
      %p123 = scmp.eq.s32.totalorder %s22, 1
      %p124 = por %p122, %p123
      %p125 = scmp.ne.s32.totalorder %s116, %s117
      %p126 = scmp.eq.s32.totalorder %s22, 0
      %p127 = por %p125, %p126
      %p128 = scmp.ne.s32.totalorder %s116, %s117
      %p129 = scmp.eq.s32.totalorder %s23, 1
      %p130 = por %p128, %p129
      %p132 = scmp.ne.s32.totalorder %s117, %s131
      %p133 = scmp.eq.s32.totalorder %s23, 0
      %p134 = por %p132, %p133
      %s136 = sadd.s32 %s135, 1
      %p139 = scmp.eq.s32.totalorder %s17, 1
      %p140 = scmp.ne.s32.totalorder %s135, %s137
      %p141 = scmp.eq.s32.totalorder %s17, 0
      %p142 = por %p140, %p141
      %p143 = scmp.ne.s32.totalorder %s135, %s137
      %p144 = scmp.eq.s32.totalorder %s22, 1
      %p145 = por %p143, %p144
      %p146 = scmp.ne.s32.totalorder %s137, %s138
      %p147 = scmp.eq.s32.totalorder %s22, 0
      %p148 = por %p146, %p147
      %p149 = scmp.ne.s32.totalorder %s137, %s138
      %p150 = scmp.eq.s32.totalorder %s23, 1
      %p151 = por %p149, %p150
      %p153 = scmp.ne.s32.totalorder %s138, %s152
      %p154 = scmp.eq.s32.totalorder %s23, 0
      %p155 = por %p153, %p154
      %s157 = sadd.s32 %s156, 1
      %p160 = scmp.eq.s32.totalorder %s17, 1
      %p161 = scmp.ne.s32.totalorder %s156, %s158
      %p162 = scmp.eq.s32.totalorder %s17, 0
      %p163 = por %p161, %p162
      %p164 = scmp.ne.s32.totalorder %s156, %s158
      %p165 = scmp.eq.s32.totalorder %s22, 1
      %p166 = por %p164, %p165
      %p167 = scmp.ne.s32.totalorder %s158, %s159
      %p168 = scmp.eq.s32.totalorder %s22, 0
      %p169 = por %p167, %p168
      %p170 = scmp.ne.s32.totalorder %s158, %s159
      %p171 = scmp.eq.s32.totalorder %s23, 1
      %p172 = por %p170, %p171
      %p174 = scmp.ne.s32.totalorder %s159, %s173
      %p175 = scmp.eq.s32.totalorder %s23, 0
      %p176 = por %p174, %p175
      %s178 = sadd.s32 %s177, 1
      %p181 = scmp.eq.s32.totalorder %s17, 1
      %p182 = scmp.ne.s32.totalorder %s177, %s179
      %p183 = scmp.eq.s32.totalorder %s17, 0
      %p184 = por %p182, %p183
      %p185 = scmp.ne.s32.totalorder %s177, %s179
      %p186 = scmp.eq.s32.totalorder %s22, 1
      %p187 = por %p185, %p186
      %p188 = scmp.ne.s32.totalorder %s179, %s180
      %p189 = scmp.eq.s32.totalorder %s22, 0
      %p190 = por %p188, %p189
      %p191 = scmp.ne.s32.totalorder %s179, %s180
      %p192 = scmp.eq.s32.totalorder %s23, 1
      %p193 = por %p191, %p192
      %p195 = scmp.ne.s32.totalorder %s180, %s194
      %p196 = scmp.eq.s32.totalorder %s23, 0
      %p197 = por %p195, %p196
      %s198 = ssub.s32 %s17, %s24
      %p199 = scmp.eq.s32.totalorder %s198, 0
      %s201 = sadd.s32 %s200, 1
      %s202 = scalar_select %p199, %s200, %s201
      %p205 = pneg %p199
      %p206 = scmp.eq.s32.totalorder %s17, 1
      %p207 = por %p205, %p206
      %p208 = scmp.ne.s32.totalorder %s200, %s203
      %p209 = scmp.eq.s32.totalorder %s17, 0
      %p210 = por %p208, %p209
      %p211 = scmp.ne.s32.totalorder %s200, %s203
      %p212 = scmp.eq.s32.totalorder %s22, 1
      %p213 = por %p211, %p212
      %p214 = scmp.ne.s32.totalorder %s203, %s204
      %p215 = scmp.eq.s32.totalorder %s22, 0
      %p216 = por %p214, %p215
      %p217 = scmp.ne.s32.totalorder %s203, %s204
      %p218 = scmp.eq.s32.totalorder %s23, 1
      %p219 = por %p217, %p218
      %p221 = scmp.ne.s32.totalorder %s204, %s220
      %p222 = scmp.eq.s32.totalorder %s23, 0
      %p223 = por %p221, %p222
      %p224 = scmp.le.s32.totalorder 1, %s17
      %p225 = scmp.lt.s32.totalorder %s17, 3
      %p226 = pnand %p224, %p225
      %p227 = pneg %p226
      // Predicated region
      $region9: #{tpu_custom_call.1} parent=5 // pred_check
        _
      $region10: #{tpu_custom_call.1} parent=5 // pred_check_branch
        %229 = sbr.rel (%p226) target = $region12
      $region11: #{tpu_custom_call.1} parent=5 // pred_region
        %s230 = ssub.s32 %s17, 1
        // Predicated region
        $region13: #{tpu_custom_call.1} parent=11 // pred_check
          %p231 = pneg %p64
        $region14: #{tpu_custom_call.1} parent=11 // pred_check_branch
          %233 = sbr.rel (%p231) target = $region16
        $region15: #{tpu_custom_call.1} parent=11 // pred_region
          _
        $region16: #{tpu_custom_call.1} parent=11 // pred_fallthru
          _
        // Predicated region
        $region17: #{tpu_custom_call.1} parent=11 // pred_check
          %p234 = pneg %p85
        $region18: #{tpu_custom_call.1} parent=11 // pred_check_branch
          %236 = sbr.rel (%p234) target = $region20
        $region19: #{tpu_custom_call.1} parent=11 // pred_region
          _
        $region20: #{tpu_custom_call.1} parent=11 // pred_fallthru
          _
        // Predicated region
        $region21: #{tpu_custom_call.1} parent=11 // pred_check
          %p237 = pneg %p106
        $region22: #{tpu_custom_call.1} parent=11 // pred_check_branch
          %239 = sbr.rel (%p237) target = $region24
        $region23: #{tpu_custom_call.1} parent=11 // pred_region
          _
        $region24: #{tpu_custom_call.1} parent=11 // pred_fallthru
          _
        // Predicated region
        $region25: #{tpu_custom_call.1} parent=11 // pred_check
          %p240 = pneg %p127
        $region26: #{tpu_custom_call.1} parent=11 // pred_check_branch
          %242 = sbr.rel (%p240) target = $region28
        $region27: #{tpu_custom_call.1} parent=11 // pred_region
          _
        $region28: #{tpu_custom_call.1} parent=11 // pred_fallthru
          _
        // Predicated region
        $region29: #{tpu_custom_call.1} parent=11 // pred_check
          %p243 = pneg %p148
        $region30: #{tpu_custom_call.1} parent=11 // pred_check_branch
          %245 = sbr.rel (%p243) target = $region32
        $region31: #{tpu_custom_call.1} parent=11 // pred_region
          _
        $region32: #{tpu_custom_call.1} parent=11 // pred_fallthru
          _
        // Predicated region
        $region33: #{tpu_custom_call.1} parent=11 // pred_check
          %p246 = pneg %p169
        $region34: #{tpu_custom_call.1} parent=11 // pred_check_branch
          %248 = sbr.rel (%p246) target = $region36
        $region35: #{tpu_custom_call.1} parent=11 // pred_region
          _
        $region36: #{tpu_custom_call.1} parent=11 // pred_fallthru
          _
        // Predicated region
        $region37: #{tpu_custom_call.1} parent=11 // pred_check
          %p249 = pneg %p190
        $region38: #{tpu_custom_call.1} parent=11 // pred_check_branch
          %251 = sbr.rel (%p249) target = $region40
        $region39: #{tpu_custom_call.1} parent=11 // pred_region
          _
        $region40: #{tpu_custom_call.1} parent=11 // pred_fallthru
          _
      $region12: #{tpu_custom_call.1} parent=5 // pred_fallthru
        _
      %p252 = scmp.lt.s32.totalorder %s17, 2
      // Predicated region
      $region41: #{tpu_custom_call.1} parent=5 // pred_check
        %p253 = pneg %p252
      $region42: #{tpu_custom_call.1} parent=5 // pred_check_branch
        %255 = sbr.rel (%p253) target = $region44
      $region43: #{tpu_custom_call.1} parent=5 // pred_region
        // Predicated region
        $region45: #{tpu_custom_call.1} parent=43 // pred_check
          %p256 = pneg %p37
        $region46: #{tpu_custom_call.1} parent=43 // pred_check_branch
          %258 = sbr.rel (%p256) target = $region48
        $region47: #{tpu_custom_call.1} parent=43 // pred_region
          %p259 = scmp.lt.s32.totalorder %s17, 1
          %s260 = scalar_select %p259, %s17, 1
          %s261 = smul.addr %s260, 32
          %s262 = smul.addr %s261, 8
          %s263 = scalar_lea.vmem %s0, %s262
        $region48: #{tpu_custom_call.1} parent=43 // pred_fallthru
          _
      $region44: #{tpu_custom_call.1} parent=5 // pred_fallthru
        _
      %p264 = scmp.le.s32.totalorder 1, %s17
      %p265 = scmp.lt.s32.totalorder %s17, 3
      %p266 = pnand %p264, %p265
      %p267 = pneg %p266
      // Predicated region
      $region49: #{tpu_custom_call.1} parent=5 // pred_check
        _
      $region50: #{tpu_custom_call.1} parent=5 // pred_check_branch
        %269 = sbr.rel (%p266) target = $region52
      $region51: #{tpu_custom_call.1} parent=5 // pred_region
        %s270 = ssub.s32 %s17, 1
        %p271 = scmp.lt.s32.totalorder %s22, 1
        %s272 = scalar_select %p271, %s22, 1
        %s273 = smul.addr %s272, 32
        %s274 = smul.addr %s273, 8
        %s275 = scalar_lea.vmem %s0, %s274
        %p276 = pneg %p43
        %p277 = pneg %p40
        %p278 = pneg %p64
        %p279 = pneg %p61
        %p280 = pneg %p85
        %p281 = pneg %p82
        %p282 = pneg %p106
        %p283 = pneg %p103
        %p284 = pneg %p127
        %p285 = pneg %p124
        %p286 = pneg %p148
        %p287 = pneg %p145
        %p288 = pneg %p169
        %p289 = pneg %p166
        %p290 = pneg %p190
        %p291 = pneg %p187
        %p292 = pneg %p216
        %p293 = pneg %p213
        %s294 = sand.u32 %s203, 1
        %s295 = scalar_lea.sflag [#allocation7], %s294
        %s296 = sand.u32 %s203, 1
        %s297 = smul.addr %s296, 256
        %s298 = scalar_lea.vmem [#allocation6], %s297
        %p299 = scmp.lt.s32.totalorder %s22, 1
        %s300 = scalar_select %p299, %s22, 1
        %s301 = smul.addr %s300, 32
        %s302 = smul.addr %s301, 8
        %s303 = scalar_lea.vmem %s0, %s302
        %vm304 = vcmask 31744
        %305 = vst.msk [vmem:[#allocation2] sm:$0xff] %vm304, 0.0
        %306 = vst.msk [vmem:[#allocation2 + $0x8] sm:$0xff] %vm304, 0.0
        %vm307 = vcmask 25600
        %308 = vst.msk [vmem:[#allocation2 + $0x10] sm:$0x3] %vm307, 0.0
        %s309 = scalar_lea.vmem [#allocation2], 408
        %310 = vst.msk [vmem:[%s309] sm:$0xff] %vm304, 0.0
        %311 = vst.msk [vmem:[%s309 + $0x8] sm:$0xff] %vm304, 0.0
        %312 = vst.msk [vmem:[%s309 + $0x10] sm:$0x3] %vm307, 0.0
        %vm313 = vcmask 24576
        %314 = vst.msk [vmem:[#allocation2] sm:$0x1] %vm313, 0.0
        %315 = vst.msk [vmem:[#allocation2 + $0x18] sm:$0x1] %vm313, 0.0
        %316 = vst.msk [vmem:[#allocation2 + $0x30] sm:$0x1] %vm313, 0.0
        %317 = vst.msk [vmem:[#allocation2 + $0x48] sm:$0x1] %vm313, 0.0
        %318 = vst.msk [vmem:[#allocation2 + $0x60] sm:$0x1] %vm313, 0.0
        %319 = vst.msk [vmem:[#allocation2 + $0x78] sm:$0x1] %vm313, 0.0
        %320 = vst.msk [vmem:[#allocation2 + $0x90] sm:$0x1] %vm313, 0.0
        %321 = vst.msk [vmem:[#allocation2 + $0xa8] sm:$0x1] %vm313, 0.0
        %322 = vst.msk [vmem:[#allocation2 + $0xc0] sm:$0x1] %vm313, 0.0
        %323 = vst.msk [vmem:[#allocation2 + $0xd8] sm:$0x1] %vm313, 0.0
        %324 = vst.msk [vmem:[#allocation2 + $0xf0] sm:$0x1] %vm313, 0.0
        %325 = vst.msk [vmem:[#allocation2 + $0x108] sm:$0x1] %vm313, 0.0
        %326 = vst.msk [vmem:[#allocation2 + $0x120] sm:$0x1] %vm313, 0.0
        %327 = vst.msk [vmem:[#allocation2 + $0x138] sm:$0x1] %vm313, 0.0
        %328 = vst.msk [vmem:[#allocation2 + $0x150] sm:$0x1] %vm313, 0.0
        %329 = vst.msk [vmem:[#allocation2 + $0x168] sm:$0x1] %vm313, 0.0
        %330 = vst.msk [vmem:[#allocation2 + $0x180] sm:$0x1] %vm313, 0.0
        %331 = vst.msk [vmem:[#allocation2 + $0x198] sm:$0x1] %vm313, 0.0
        %332 = vst.msk [vmem:[#allocation2 + $0x11] sm:$0x1] %vm313, 0.0
        %333 = vst.msk [vmem:[#allocation2 + $0x29] sm:$0x1] %vm313, 0.0
        %334 = vst.msk [vmem:[#allocation2 + $0x41] sm:$0x1] %vm313, 0.0
        %335 = vst.msk [vmem:[#allocation2 + $0x59] sm:$0x1] %vm313, 0.0
        %336 = vst.msk [vmem:[#allocation2 + $0x71] sm:$0x1] %vm313, 0.0
        %337 = vst.msk [vmem:[#allocation2 + $0x89] sm:$0x1] %vm313, 0.0
        %338 = vst.msk [vmem:[#allocation2 + $0xa1] sm:$0x1] %vm313, 0.0
        %339 = vst.msk [vmem:[#allocation2 + $0xb9] sm:$0x1] %vm313, 0.0
        %340 = vst.msk [vmem:[#allocation2 + $0xd1] sm:$0x1] %vm313, 0.0
        %341 = vst.msk [vmem:[#allocation2 + $0xe9] sm:$0x1] %vm313, 0.0
        %342 = vst.msk [vmem:[#allocation2 + $0x101] sm:$0x1] %vm313, 0.0
        %343 = vst.msk [vmem:[#allocation2 + $0x119] sm:$0x1] %vm313, 0.0
        %344 = vst.msk [vmem:[#allocation2 + $0x131] sm:$0x1] %vm313, 0.0
        %345 = vst.msk [vmem:[#allocation2 + $0x149] sm:$0x1] %vm313, 0.0
        %346 = vst.msk [vmem:[#allocation2 + $0x161] sm:$0x1] %vm313, 0.0
        %347 = vst.msk [vmem:[#allocation2 + $0x179] sm:$0x1] %vm313, 0.0
        %348 = vst.msk [vmem:[#allocation2 + $0x191] sm:$0x1] %vm313, 0.0
        %349 = vst.msk [vmem:[#allocation2 + $0x1a9] sm:$0x1] %vm313, 0.0
        %vm350 = vcmask 64512
        %351 = vst.msk [vmem:[#allocation3] sm:$0xff] %vm350, 0.0
        %352 = vst.msk [vmem:[#allocation3 + $0x8] sm:$0xff] %vm350, 0.0
        %vm353 = vcmask 58368
        %354 = vst.msk [vmem:[#allocation3 + $0x10] sm:$0x3] %vm353, 0.0
        %s355 = scalar_lea.vmem [#allocation3], 408
        %356 = vst.msk [vmem:[%s355] sm:$0xff] %vm350, 0.0
        %357 = vst.msk [vmem:[%s355 + $0x8] sm:$0xff] %vm350, 0.0
        %358 = vst.msk [vmem:[%s355 + $0x10] sm:$0x3] %vm353, 0.0
        %vm359 = vcmask 57344
        %360 = vst.msk [vmem:[#allocation3] sm:$0x1] %vm359, 0.0
        %361 = vst.msk [vmem:[#allocation3 + $0x18] sm:$0x1] %vm359, 0.0
        %362 = vst.msk [vmem:[#allocation3 + $0x30] sm:$0x1] %vm359, 0.0
        %363 = vst.msk [vmem:[#allocation3 + $0x48] sm:$0x1] %vm359, 0.0
        %364 = vst.msk [vmem:[#allocation3 + $0x60] sm:$0x1] %vm359, 0.0
        %365 = vst.msk [vmem:[#allocation3 + $0x78] sm:$0x1] %vm359, 0.0
        %366 = vst.msk [vmem:[#allocation3 + $0x90] sm:$0x1] %vm359, 0.0
        %367 = vst.msk [vmem:[#allocation3 + $0xa8] sm:$0x1] %vm359, 0.0
        %368 = vst.msk [vmem:[#allocation3 + $0xc0] sm:$0x1] %vm359, 0.0
        %369 = vst.msk [vmem:[#allocation3 + $0xd8] sm:$0x1] %vm359, 0.0
        %370 = vst.msk [vmem:[#allocation3 + $0xf0] sm:$0x1] %vm359, 0.0
        %371 = vst.msk [vmem:[#allocation3 + $0x108] sm:$0x1] %vm359, 0.0
        %372 = vst.msk [vmem:[#allocation3 + $0x120] sm:$0x1] %vm359, 0.0
        %373 = vst.msk [vmem:[#allocation3 + $0x138] sm:$0x1] %vm359, 0.0
        %374 = vst.msk [vmem:[#allocation3 + $0x150] sm:$0x1] %vm359, 0.0
        %375 = vst.msk [vmem:[#allocation3 + $0x168] sm:$0x1] %vm359, 0.0
        %376 = vst.msk [vmem:[#allocation3 + $0x180] sm:$0x1] %vm359, 0.0
        %377 = vst.msk [vmem:[#allocation3 + $0x198] sm:$0x1] %vm359, 0.0
        %378 = vst.msk [vmem:[#allocation3 + $0x11] sm:$0x1] %vm359, 0.0
        %379 = vst.msk [vmem:[#allocation3 + $0x29] sm:$0x1] %vm359, 0.0
        %380 = vst.msk [vmem:[#allocation3 + $0x41] sm:$0x1] %vm359, 0.0
        %381 = vst.msk [vmem:[#allocation3 + $0x59] sm:$0x1] %vm359, 0.0
        %382 = vst.msk [vmem:[#allocation3 + $0x71] sm:$0x1] %vm359, 0.0
        %383 = vst.msk [vmem:[#allocation3 + $0x89] sm:$0x1] %vm359, 0.0
        %384 = vst.msk [vmem:[#allocation3 + $0xa1] sm:$0x1] %vm359, 0.0
        %385 = vst.msk [vmem:[#allocation3 + $0xb9] sm:$0x1] %vm359, 0.0
        %386 = vst.msk [vmem:[#allocation3 + $0xd1] sm:$0x1] %vm359, 0.0
        %387 = vst.msk [vmem:[#allocation3 + $0xe9] sm:$0x1] %vm359, 0.0
        %388 = vst.msk [vmem:[#allocation3 + $0x101] sm:$0x1] %vm359, 0.0
        %389 = vst.msk [vmem:[#allocation3 + $0x119] sm:$0x1] %vm359, 0.0
        %390 = vst.msk [vmem:[#allocation3 + $0x131] sm:$0x1] %vm359, 0.0
        %391 = vst.msk [vmem:[#allocation3 + $0x149] sm:$0x1] %vm359, 0.0
        %392 = vst.msk [vmem:[#allocation3 + $0x161] sm:$0x1] %vm359, 0.0
        %393 = vst.msk [vmem:[#allocation3 + $0x179] sm:$0x1] %vm359, 0.0
        %394 = vst.msk [vmem:[#allocation3 + $0x191] sm:$0x1] %vm359, 0.0
        %395 = vst.msk [vmem:[#allocation3 + $0x1a9] sm:$0x1] %vm359, 0.0
        %v396 = vld [vmem:[%s303] sm:$0xff]
        %v397 = vld [vmem:[%s303 + $0x8] sm:$0xff]
        %v398 = vld [vmem:[%s303 + $0x10] sm:$0xff]
        %v399 = vld [vmem:[%s303 + $0x18] sm:$0xff]
        %v400 = vld [vmem:[%s303 + $0x20] sm:$0xff]
        %v401 = vld [vmem:[%s303 + $0x28] sm:$0xff]
        %v402 = vld [vmem:[%s303 + $0x30] sm:$0xff]
        %v403 = vld [vmem:[%s303 + $0x38] sm:$0xff]
        %v404 = vld [vmem:[%s303 + $0x40] sm:$0xff]
        %v405 = vld [vmem:[%s303 + $0x48] sm:$0xff]
        %v406 = vld [vmem:[%s303 + $0x50] sm:$0xff]
        %v407 = vld [vmem:[%s303 + $0x58] sm:$0xff]
        %v408 = vld [vmem:[%s303 + $0x60] sm:$0xff]
        %v409 = vld [vmem:[%s303 + $0x68] sm:$0xff]
        %v410 = vld [vmem:[%s303 + $0x70] sm:$0xff]
        %v411 = vld [vmem:[%s303 + $0x78] sm:$0xff]
        %v412 = vld [vmem:[%s303 + $0x80] sm:$0xff]
        %v413 = vld [vmem:[%s303 + $0x88] sm:$0xff]
        %v414 = vld [vmem:[%s303 + $0x90] sm:$0xff]
        %v415 = vld [vmem:[%s303 + $0x98] sm:$0xff]
        %v416 = vld [vmem:[%s303 + $0xa0] sm:$0xff]
        %v417 = vld [vmem:[%s303 + $0xa8] sm:$0xff]
        %v418 = vld [vmem:[%s303 + $0xb0] sm:$0xff]
        %v419 = vld [vmem:[%s303 + $0xb8] sm:$0xff]
        %v420 = vld [vmem:[%s303 + $0xc0] sm:$0xff]
        %v421 = vld [vmem:[%s303 + $0xc8] sm:$0xff]
        %v422 = vld [vmem:[%s303 + $0xd0] sm:$0xff]
        %v423 = vld [vmem:[%s303 + $0xd8] sm:$0xff]
        %v424 = vld [vmem:[%s303 + $0xe0] sm:$0xff]
        %v425 = vld [vmem:[%s303 + $0xe8] sm:$0xff]
        %v426 = vld [vmem:[%s303 + $0xf0] sm:$0xff]
        %v427 = vld [vmem:[%s303 + $0xf8] sm:$0xff]
        %s428 = scalar_lea.vmem [#allocation2], 24
        %429 = vst.msk [vmem:[%s428 + $0x1] sm:$0xff] %vm304, %v396
        %430 = vst.msk [vmem:[%s428 + $0x9] sm:$0xff] %vm304, %v397
        %431 = vst.msk [vmem:[%s428 + $0x19] sm:$0xff] %vm304, %v398
        %432 = vst.msk [vmem:[%s428 + $0x21] sm:$0xff] %vm304, %v399
        %433 = vst.msk [vmem:[%s428 + $0x31] sm:$0xff] %vm304, %v400
        %434 = vst.msk [vmem:[%s428 + $0x39] sm:$0xff] %vm304, %v401
        %435 = vst.msk [vmem:[%s428 + $0x49] sm:$0xff] %vm304, %v402
        %436 = vst.msk [vmem:[%s428 + $0x51] sm:$0xff] %vm304, %v403
        %437 = vst.msk [vmem:[%s428 + $0x61] sm:$0xff] %vm304, %v404
        %438 = vst.msk [vmem:[%s428 + $0x69] sm:$0xff] %vm304, %v405
        %439 = vst.msk [vmem:[%s428 + $0x79] sm:$0xff] %vm304, %v406
        %440 = vst.msk [vmem:[%s428 + $0x81] sm:$0xff] %vm304, %v407
        %441 = vst.msk [vmem:[%s428 + $0x91] sm:$0xff] %vm304, %v408
        %442 = vst.msk [vmem:[%s428 + $0x99] sm:$0xff] %vm304, %v409
        %443 = vst.msk [vmem:[%s428 + $0xa9] sm:$0xff] %vm304, %v410
        %444 = vst.msk [vmem:[%s428 + $0xb1] sm:$0xff] %vm304, %v411
        %445 = vst.msk [vmem:[%s428 + $0xc1] sm:$0xff] %vm304, %v412
        %446 = vst.msk [vmem:[%s428 + $0xc9] sm:$0xff] %vm304, %v413
        %447 = vst.msk [vmem:[%s428 + $0xd9] sm:$0xff] %vm304, %v414
        %448 = vst.msk [vmem:[%s428 + $0xe1] sm:$0xff] %vm304, %v415
        %449 = vst.msk [vmem:[%s428 + $0xf1] sm:$0xff] %vm304, %v416
        %450 = vst.msk [vmem:[%s428 + $0xf9] sm:$0xff] %vm304, %v417
        %451 = vst.msk [vmem:[%s428 + $0x109] sm:$0xff] %vm304, %v418
        %452 = vst.msk [vmem:[%s428 + $0x111] sm:$0xff] %vm304, %v419
        %453 = vst.msk [vmem:[%s428 + $0x121] sm:$0xff] %vm304, %v420
        %454 = vst.msk [vmem:[%s428 + $0x129] sm:$0xff] %vm304, %v421
        %455 = vst.msk [vmem:[%s428 + $0x139] sm:$0xff] %vm304, %v422
        %456 = vst.msk [vmem:[%s428 + $0x141] sm:$0xff] %vm304, %v423
        %457 = vst.msk [vmem:[%s428 + $0x151] sm:$0xff] %vm304, %v424
        %458 = vst.msk [vmem:[%s428 + $0x159] sm:$0xff] %vm304, %v425
        %459 = vst.msk [vmem:[%s428 + $0x169] sm:$0xff] %vm304, %v426
        %460 = vst.msk [vmem:[%s428 + $0x171] sm:$0xff] %vm304, %v427
        %v461 = vld [vmem:[#allocation2] sm:$0xff]
        %v462 = vld [vmem:[#allocation2 + $0x8] sm:$0xff]
        %v463 = vld [vmem:[#allocation2 + $0x18] sm:$0xff]
        %v464 = vld [vmem:[#allocation2 + $0x20] sm:$0xff]
        %v465 = vld [vmem:[#allocation2 + $0x30] sm:$0xff]
        %v466 = vld [vmem:[#allocation2 + $0x38] sm:$0xff]
        %v467 = vld [vmem:[#allocation2 + $0x48] sm:$0xff]
        %v468 = vld [vmem:[#allocation2 + $0x50] sm:$0xff]
        %v469 = vld [vmem:[#allocation2 + $0x60] sm:$0xff]
        %v470 = vld [vmem:[#allocation2 + $0x68] sm:$0xff]
        %v471 = vld [vmem:[#allocation2 + $0x78] sm:$0xff]
        %v472 = vld [vmem:[#allocation2 + $0x80] sm:$0xff]
        %v473 = vld [vmem:[#allocation2 + $0x90] sm:$0xff]
        %v474 = vld [vmem:[#allocation2 + $0x98] sm:$0xff]
        %v475 = vld [vmem:[#allocation2 + $0xa8] sm:$0xff]
        %v476 = vld [vmem:[#allocation2 + $0xb0] sm:$0xff]
        %v477 = vld [vmem:[#allocation2 + $0xc0] sm:$0xff]
        %v478 = vld [vmem:[#allocation2 + $0xc8] sm:$0xff]
        %v479 = vld [vmem:[#allocation2 + $0xd8] sm:$0xff]
        %v480 = vld [vmem:[#allocation2 + $0xe0] sm:$0xff]
        %v481 = vld [vmem:[#allocation2 + $0xf0] sm:$0xff]
        %v482 = vld [vmem:[#allocation2 + $0xf8] sm:$0xff]
        %v483 = vld [vmem:[#allocation2 + $0x108] sm:$0xff]
        %v484 = vld [vmem:[#allocation2 + $0x110] sm:$0xff]
        %v485 = vld [vmem:[#allocation2 + $0x120] sm:$0xff]
        %v486 = vld [vmem:[#allocation2 + $0x128] sm:$0xff]
        %v487 = vld [vmem:[#allocation2 + $0x138] sm:$0xff]
        %v488 = vld [vmem:[#allocation2 + $0x140] sm:$0xff]
        %v489 = vld [vmem:[#allocation2 + $0x150] sm:$0xff]
        %v490 = vld [vmem:[#allocation2 + $0x158] sm:$0xff]
        %v491 = vld [vmem:[#allocation2 + $0x168] sm:$0xff]
        %v492 = vld [vmem:[#allocation2 + $0x170] sm:$0xff]
        %493 = vst.msk [vmem:[#allocation4] sm:$0xff] %vm304, %v461
        %494 = vst.msk [vmem:[#allocation4 + $0x8] sm:$0xff] %vm304, %v462
        %495 = vst.msk [vmem:[#allocation4 + $0x10] sm:$0xff] %vm304, %v463
        %496 = vst.msk [vmem:[#allocation4 + $0x18] sm:$0xff] %vm304, %v464
        %497 = vst.msk [vmem:[#allocation4 + $0x20] sm:$0xff] %vm304, %v465
        %498 = vst.msk [vmem:[#allocation4 + $0x28] sm:$0xff] %vm304, %v466
        %499 = vst.msk [vmem:[#allocation4 + $0x30] sm:$0xff] %vm304, %v467
        %500 = vst.msk [vmem:[#allocation4 + $0x38] sm:$0xff] %vm304, %v468
        %501 = vst.msk [vmem:[#allocation4 + $0x40] sm:$0xff] %vm304, %v469
        %502 = vst.msk [vmem:[#allocation4 + $0x48] sm:$0xff] %vm304, %v470
        %503 = vst.msk [vmem:[#allocation4 + $0x50] sm:$0xff] %vm304, %v471
        %504 = vst.msk [vmem:[#allocation4 + $0x58] sm:$0xff] %vm304, %v472
        %505 = vst.msk [vmem:[#allocation4 + $0x60] sm:$0xff] %vm304, %v473
        %506 = vst.msk [vmem:[#allocation4 + $0x68] sm:$0xff] %vm304, %v474
        %507 = vst.msk [vmem:[#allocation4 + $0x70] sm:$0xff] %vm304, %v475
        %508 = vst.msk [vmem:[#allocation4 + $0x78] sm:$0xff] %vm304, %v476
        %509 = vst.msk [vmem:[#allocation4 + $0x80] sm:$0xff] %vm304, %v477
        %510 = vst.msk [vmem:[#allocation4 + $0x88] sm:$0xff] %vm304, %v478
        %511 = vst.msk [vmem:[#allocation4 + $0x90] sm:$0xff] %vm304, %v479
        %512 = vst.msk [vmem:[#allocation4 + $0x98] sm:$0xff] %vm304, %v480
        %513 = vst.msk [vmem:[#allocation4 + $0xa0] sm:$0xff] %vm304, %v481
        %514 = vst.msk [vmem:[#allocation4 + $0xa8] sm:$0xff] %vm304, %v482
        %515 = vst.msk [vmem:[#allocation4 + $0xb0] sm:$0xff] %vm304, %v483
        %516 = vst.msk [vmem:[#allocation4 + $0xb8] sm:$0xff] %vm304, %v484
        %517 = vst.msk [vmem:[#allocation4 + $0xc0] sm:$0xff] %vm304, %v485
        %518 = vst.msk [vmem:[#allocation4 + $0xc8] sm:$0xff] %vm304, %v486
        %519 = vst.msk [vmem:[#allocation4 + $0xd0] sm:$0xff] %vm304, %v487
        %520 = vst.msk [vmem:[#allocation4 + $0xd8] sm:$0xff] %vm304, %v488
        %521 = vst.msk [vmem:[#allocation4 + $0xe0] sm:$0xff] %vm304, %v489
        %522 = vst.msk [vmem:[#allocation4 + $0xe8] sm:$0xff] %vm304, %v490
        %523 = vst.msk [vmem:[#allocation4 + $0xf0] sm:$0xff] %vm304, %v491
        %524 = vst.msk [vmem:[#allocation4 + $0xf8] sm:$0xff] %vm304, %v492
        %v525 = vld [vmem:[#allocation2 + $0x1] sm:$0xff]
        %v526 = vld [vmem:[#allocation2 + $0x9] sm:$0xff]
        %v527 = vld [vmem:[#allocation2 + $0x19] sm:$0xff]
        %v528 = vld [vmem:[#allocation2 + $0x21] sm:$0xff]
        %v529 = vld [vmem:[#allocation2 + $0x31] sm:$0xff]
        %v530 = vld [vmem:[#allocation2 + $0x39] sm:$0xff]
        %v531 = vld [vmem:[#allocation2 + $0x49] sm:$0xff]
        %v532 = vld [vmem:[#allocation2 + $0x51] sm:$0xff]
        %v533 = vld [vmem:[#allocation2 + $0x61] sm:$0xff]
        %v534 = vld [vmem:[#allocation2 + $0x69] sm:$0xff]
        %v535 = vld [vmem:[#allocation2 + $0x79] sm:$0xff]
        %v536 = vld [vmem:[#allocation2 + $0x81] sm:$0xff]
        %v537 = vld [vmem:[#allocation2 + $0x91] sm:$0xff]
        %v538 = vld [vmem:[#allocation2 + $0x99] sm:$0xff]
        %v539 = vld [vmem:[#allocation2 + $0xa9] sm:$0xff]
        %v540 = vld [vmem:[#allocation2 + $0xb1] sm:$0xff]
        %v541 = vld [vmem:[#allocation2 + $0xc1] sm:$0xff]
        %v542 = vld [vmem:[#allocation2 + $0xc9] sm:$0xff]
        %v543 = vld [vmem:[#allocation2 + $0xd9] sm:$0xff]
        %v544 = vld [vmem:[#allocation2 + $0xe1] sm:$0xff]
        %v545 = vld [vmem:[#allocation2 + $0xf1] sm:$0xff]
        %v546 = vld [vmem:[#allocation2 + $0xf9] sm:$0xff]
        %v547 = vld [vmem:[#allocation2 + $0x109] sm:$0xff]
        %v548 = vld [vmem:[#allocation2 + $0x111] sm:$0xff]
        %v549 = vld [vmem:[#allocation2 + $0x121] sm:$0xff]
        %v550 = vld [vmem:[#allocation2 + $0x129] sm:$0xff]
        %v551 = vld [vmem:[#allocation2 + $0x139] sm:$0xff]
        %v552 = vld [vmem:[#allocation2 + $0x141] sm:$0xff]
        %v553 = vld [vmem:[#allocation2 + $0x151] sm:$0xff]
        %v554 = vld [vmem:[#allocation2 + $0x159] sm:$0xff]
        %v555 = vld [vmem:[#allocation2 + $0x169] sm:$0xff]
        %v556 = vld [vmem:[#allocation2 + $0x171] sm:$0xff]
        %589 = vrot.lane.b32.xlu0 %v525, 4
        %v590 = vpop.permute.xlu0 %589
        %591 = vrot.lane.b32.xlu0 %v526, 4
        %v592 = vpop.permute.xlu0 %591
        %593 = vrot.lane.b32.xlu0 %v527, 4
        %v594 = vpop.permute.xlu0 %593
        %595 = vrot.lane.b32.xlu0 %v528, 4
        %v596 = vpop.permute.xlu0 %595
        %597 = vrot.lane.b32.xlu0 %v529, 4
        %v598 = vpop.permute.xlu0 %597
        %599 = vrot.lane.b32.xlu0 %v530, 4
        %v600 = vpop.permute.xlu0 %599
        %601 = vrot.lane.b32.xlu0 %v531, 4
        %v602 = vpop.permute.xlu0 %601
        %603 = vrot.lane.b32.xlu0 %v532, 4
        %v604 = vpop.permute.xlu0 %603
        %605 = vrot.lane.b32.xlu0 %v533, 4
        %v606 = vpop.permute.xlu0 %605
        %607 = vrot.lane.b32.xlu0 %v534, 4
        %v608 = vpop.permute.xlu0 %607
        %609 = vrot.lane.b32.xlu0 %v535, 4
        %v610 = vpop.permute.xlu0 %609
        %611 = vrot.lane.b32.xlu0 %v536, 4
        %v612 = vpop.permute.xlu0 %611
        %613 = vrot.lane.b32.xlu0 %v537, 4
        %v614 = vpop.permute.xlu0 %613
        %615 = vrot.lane.b32.xlu0 %v538, 4
        %v616 = vpop.permute.xlu0 %615
        %617 = vrot.lane.b32.xlu0 %v539, 4
        %v618 = vpop.permute.xlu0 %617
        %619 = vrot.lane.b32.xlu0 %v540, 4
        %v620 = vpop.permute.xlu0 %619
        %621 = vrot.lane.b32.xlu0 %v541, 4
        %v622 = vpop.permute.xlu0 %621
        %623 = vrot.lane.b32.xlu0 %v542, 4
        %v624 = vpop.permute.xlu0 %623
        %625 = vrot.lane.b32.xlu0 %v543, 4
        %v626 = vpop.permute.xlu0 %625
        %627 = vrot.lane.b32.xlu0 %v544, 4
        %v628 = vpop.permute.xlu0 %627
        %629 = vrot.lane.b32.xlu0 %v545, 4
        %v630 = vpop.permute.xlu0 %629
        %631 = vrot.lane.b32.xlu0 %v546, 4
        %v632 = vpop.permute.xlu0 %631
        %633 = vrot.lane.b32.xlu0 %v547, 4
        %v634 = vpop.permute.xlu0 %633
        %635 = vrot.lane.b32.xlu0 %v548, 4
        %v636 = vpop.permute.xlu0 %635
        %637 = vrot.lane.b32.xlu0 %v549, 4
        %v638 = vpop.permute.xlu0 %637
        %639 = vrot.lane.b32.xlu0 %v550, 4
        %v640 = vpop.permute.xlu0 %639
        %641 = vrot.lane.b32.xlu0 %v551, 4
        %v642 = vpop.permute.xlu0 %641
        %643 = vrot.lane.b32.xlu0 %v552, 4
        %v644 = vpop.permute.xlu0 %643
        %645 = vrot.lane.b32.xlu0 %v553, 4
        %v646 = vpop.permute.xlu0 %645
        %647 = vrot.lane.b32.xlu0 %v554, 4
        %v648 = vpop.permute.xlu0 %647
        %649 = vrot.lane.b32.xlu0 %v555, 4
        %v650 = vpop.permute.xlu0 %649
        %651 = vrot.lane.b32.xlu0 %v556, 4
        %v652 = vpop.permute.xlu0 %651
        %vm685 = vcmask 64544
        %686 = vst.msk [vmem:[#allocation4] sm:$0xff] %vm685, %v590
        %687 = vst.msk [vmem:[#allocation4 + $0x8] sm:$0xff] %vm685, %v592
        %688 = vst.msk [vmem:[#allocation4 + $0x10] sm:$0xff] %vm685, %v594
        %689 = vst.msk [vmem:[#allocation4 + $0x18] sm:$0xff] %vm685, %v596
        %690 = vst.msk [vmem:[#allocation4 + $0x20] sm:$0xff] %vm685, %v598
        %691 = vst.msk [vmem:[#allocation4 + $0x28] sm:$0xff] %vm685, %v600
        %692 = vst.msk [vmem:[#allocation4 + $0x30] sm:$0xff] %vm685, %v602
        %693 = vst.msk [vmem:[#allocation4 + $0x38] sm:$0xff] %vm685, %v604
        %694 = vst.msk [vmem:[#allocation4 + $0x40] sm:$0xff] %vm685, %v606
        %695 = vst.msk [vmem:[#allocation4 + $0x48] sm:$0xff] %vm685, %v608
        %696 = vst.msk [vmem:[#allocation4 + $0x50] sm:$0xff] %vm685, %v610
        %697 = vst.msk [vmem:[#allocation4 + $0x58] sm:$0xff] %vm685, %v612
        %698 = vst.msk [vmem:[#allocation4 + $0x60] sm:$0xff] %vm685, %v614
        %699 = vst.msk [vmem:[#allocation4 + $0x68] sm:$0xff] %vm685, %v616
        %700 = vst.msk [vmem:[#allocation4 + $0x70] sm:$0xff] %vm685, %v618
        %701 = vst.msk [vmem:[#allocation4 + $0x78] sm:$0xff] %vm685, %v620
        %702 = vst.msk [vmem:[#allocation4 + $0x80] sm:$0xff] %vm685, %v622
        %703 = vst.msk [vmem:[#allocation4 + $0x88] sm:$0xff] %vm685, %v624
        %704 = vst.msk [vmem:[#allocation4 + $0x90] sm:$0xff] %vm685, %v626
        %705 = vst.msk [vmem:[#allocation4 + $0x98] sm:$0xff] %vm685, %v628
        %706 = vst.msk [vmem:[#allocation4 + $0xa0] sm:$0xff] %vm685, %v630
        %707 = vst.msk [vmem:[#allocation4 + $0xa8] sm:$0xff] %vm685, %v632
        %708 = vst.msk [vmem:[#allocation4 + $0xb0] sm:$0xff] %vm685, %v634
        %709 = vst.msk [vmem:[#allocation4 + $0xb8] sm:$0xff] %vm685, %v636
        %710 = vst.msk [vmem:[#allocation4 + $0xc0] sm:$0xff] %vm685, %v638
        %711 = vst.msk [vmem:[#allocation4 + $0xc8] sm:$0xff] %vm685, %v640
        %712 = vst.msk [vmem:[#allocation4 + $0xd0] sm:$0xff] %vm685, %v642
        %713 = vst.msk [vmem:[#allocation4 + $0xd8] sm:$0xff] %vm685, %v644
        %714 = vst.msk [vmem:[#allocation4 + $0xe0] sm:$0xff] %vm685, %v646
        %715 = vst.msk [vmem:[#allocation4 + $0xe8] sm:$0xff] %vm685, %v648
        %716 = vst.msk [vmem:[#allocation4 + $0xf0] sm:$0xff] %vm685, %v650
        %717 = vst.msk [vmem:[#allocation4 + $0xf8] sm:$0xff] %vm685, %v652
        %v718 = vld [vmem:[#allocation2 + $0x2] sm:$0xff]
        %v719 = vld [vmem:[#allocation2 + $0xa] sm:$0xff]
        %v720 = vld [vmem:[#allocation2 + $0x1a] sm:$0xff]
        %v721 = vld [vmem:[#allocation2 + $0x22] sm:$0xff]
        %v722 = vld [vmem:[#allocation2 + $0x32] sm:$0xff]
        %v723 = vld [vmem:[#allocation2 + $0x3a] sm:$0xff]
        %v724 = vld [vmem:[#allocation2 + $0x4a] sm:$0xff]
        %v725 = vld [vmem:[#allocation2 + $0x52] sm:$0xff]
        %v726 = vld [vmem:[#allocation2 + $0x62] sm:$0xff]
        %v727 = vld [vmem:[#allocation2 + $0x6a] sm:$0xff]
        %v728 = vld [vmem:[#allocation2 + $0x7a] sm:$0xff]
        %v729 = vld [vmem:[#allocation2 + $0x82] sm:$0xff]
        %v730 = vld [vmem:[#allocation2 + $0x92] sm:$0xff]
        %v731 = vld [vmem:[#allocation2 + $0x9a] sm:$0xff]
        %v732 = vld [vmem:[#allocation2 + $0xaa] sm:$0xff]
        %v733 = vld [vmem:[#allocation2 + $0xb2] sm:$0xff]
        %v734 = vld [vmem:[#allocation2 + $0xc2] sm:$0xff]
        %v735 = vld [vmem:[#allocation2 + $0xca] sm:$0xff]
        %v736 = vld [vmem:[#allocation2 + $0xda] sm:$0xff]
        %v737 = vld [vmem:[#allocation2 + $0xe2] sm:$0xff]
        %v738 = vld [vmem:[#allocation2 + $0xf2] sm:$0xff]
        %v739 = vld [vmem:[#allocation2 + $0xfa] sm:$0xff]
        %v740 = vld [vmem:[#allocation2 + $0x10a] sm:$0xff]
        %v741 = vld [vmem:[#allocation2 + $0x112] sm:$0xff]
        %v742 = vld [vmem:[#allocation2 + $0x122] sm:$0xff]
        %v743 = vld [vmem:[#allocation2 + $0x12a] sm:$0xff]
        %v744 = vld [vmem:[#allocation2 + $0x13a] sm:$0xff]
        %v745 = vld [vmem:[#allocation2 + $0x142] sm:$0xff]
        %v746 = vld [vmem:[#allocation2 + $0x152] sm:$0xff]
        %v747 = vld [vmem:[#allocation2 + $0x15a] sm:$0xff]
        %v748 = vld [vmem:[#allocation2 + $0x16a] sm:$0xff]
        %v749 = vld [vmem:[#allocation2 + $0x172] sm:$0xff]
        %782 = vrot.lane.b32.xlu0 %v718, 8
        %v783 = vpop.permute.xlu0 %782
        %784 = vrot.lane.b32.xlu0 %v719, 8
        %v785 = vpop.permute.xlu0 %784
        %786 = vrot.lane.b32.xlu0 %v720, 8
        %v787 = vpop.permute.xlu0 %786
        %788 = vrot.lane.b32.xlu0 %v721, 8
        %v789 = vpop.permute.xlu0 %788
        %790 = vrot.lane.b32.xlu0 %v722, 8
        %v791 = vpop.permute.xlu0 %790
        %792 = vrot.lane.b32.xlu0 %v723, 8
        %v793 = vpop.permute.xlu0 %792
        %794 = vrot.lane.b32.xlu0 %v724, 8
        %v795 = vpop.permute.xlu0 %794
        %796 = vrot.lane.b32.xlu0 %v725, 8
        %v797 = vpop.permute.xlu0 %796
        %798 = vrot.lane.b32.xlu0 %v726, 8
        %v799 = vpop.permute.xlu0 %798
        %800 = vrot.lane.b32.xlu0 %v727, 8
        %v801 = vpop.permute.xlu0 %800
        %802 = vrot.lane.b32.xlu0 %v728, 8
        %v803 = vpop.permute.xlu0 %802
        %804 = vrot.lane.b32.xlu0 %v729, 8
        %v805 = vpop.permute.xlu0 %804
        %806 = vrot.lane.b32.xlu0 %v730, 8
        %v807 = vpop.permute.xlu0 %806
        %808 = vrot.lane.b32.xlu0 %v731, 8
        %v809 = vpop.permute.xlu0 %808
        %810 = vrot.lane.b32.xlu0 %v732, 8
        %v811 = vpop.permute.xlu0 %810
        %812 = vrot.lane.b32.xlu0 %v733, 8
        %v813 = vpop.permute.xlu0 %812
        %814 = vrot.lane.b32.xlu0 %v734, 8
        %v815 = vpop.permute.xlu0 %814
        %816 = vrot.lane.b32.xlu0 %v735, 8
        %v817 = vpop.permute.xlu0 %816
        %818 = vrot.lane.b32.xlu0 %v736, 8
        %v819 = vpop.permute.xlu0 %818
        %820 = vrot.lane.b32.xlu0 %v737, 8
        %v821 = vpop.permute.xlu0 %820
        %822 = vrot.lane.b32.xlu0 %v738, 8
        %v823 = vpop.permute.xlu0 %822
        %824 = vrot.lane.b32.xlu0 %v739, 8
        %v825 = vpop.permute.xlu0 %824
        %826 = vrot.lane.b32.xlu0 %v740, 8
        %v827 = vpop.permute.xlu0 %826
        %828 = vrot.lane.b32.xlu0 %v741, 8
        %v829 = vpop.permute.xlu0 %828
        %830 = vrot.lane.b32.xlu0 %v742, 8
        %v831 = vpop.permute.xlu0 %830
        %832 = vrot.lane.b32.xlu0 %v743, 8
        %v833 = vpop.permute.xlu0 %832
        %834 = vrot.lane.b32.xlu0 %v744, 8
        %v835 = vpop.permute.xlu0 %834
        %836 = vrot.lane.b32.xlu0 %v745, 8
        %v837 = vpop.permute.xlu0 %836
        %838 = vrot.lane.b32.xlu0 %v746, 8
        %v839 = vpop.permute.xlu0 %838
        %840 = vrot.lane.b32.xlu0 %v747, 8
        %v841 = vpop.permute.xlu0 %840
        %842 = vrot.lane.b32.xlu0 %v748, 8
        %v843 = vpop.permute.xlu0 %842
        %844 = vrot.lane.b32.xlu0 %v749, 8
        %v845 = vpop.permute.xlu0 %844
        %vm878 = vcmask 97344
        %879 = vst.msk [vmem:[#allocation4] sm:$0xff] %vm878, %v783
        %880 = vst.msk [vmem:[#allocation4 + $0x8] sm:$0xff] %vm878, %v785
        %881 = vst.msk [vmem:[#allocation4 + $0x10] sm:$0xff] %vm878, %v787
        %882 = vst.msk [vmem:[#allocation4 + $0x18] sm:$0xff] %vm878, %v789
        %883 = vst.msk [vmem:[#allocation4 + $0x20] sm:$0xff] %vm878, %v791
        %884 = vst.msk [vmem:[#allocation4 + $0x28] sm:$0xff] %vm878, %v793
        %885 = vst.msk [vmem:[#allocation4 + $0x30] sm:$0xff] %vm878, %v795
        %886 = vst.msk [vmem:[#allocation4 + $0x38] sm:$0xff] %vm878, %v797
        %887 = vst.msk [vmem:[#allocation4 + $0x40] sm:$0xff] %vm878, %v799
        %888 = vst.msk [vmem:[#allocation4 + $0x48] sm:$0xff] %vm878, %v801
        %889 = vst.msk [vmem:[#allocation4 + $0x50] sm:$0xff] %vm878, %v803
        %890 = vst.msk [vmem:[#allocation4 + $0x58] sm:$0xff] %vm878, %v805
        %891 = vst.msk [vmem:[#allocation4 + $0x60] sm:$0xff] %vm878, %v807
        %892 = vst.msk [vmem:[#allocation4 + $0x68] sm:$0xff] %vm878, %v809
        %893 = vst.msk [vmem:[#allocation4 + $0x70] sm:$0xff] %vm878, %v811
        %894 = vst.msk [vmem:[#allocation4 + $0x78] sm:$0xff] %vm878, %v813
        %895 = vst.msk [vmem:[#allocation4 + $0x80] sm:$0xff] %vm878, %v815
        %896 = vst.msk [vmem:[#allocation4 + $0x88] sm:$0xff] %vm878, %v817
        %897 = vst.msk [vmem:[#allocation4 + $0x90] sm:$0xff] %vm878, %v819
        %898 = vst.msk [vmem:[#allocation4 + $0x98] sm:$0xff] %vm878, %v821
        %899 = vst.msk [vmem:[#allocation4 + $0xa0] sm:$0xff] %vm878, %v823
        %900 = vst.msk [vmem:[#allocation4 + $0xa8] sm:$0xff] %vm878, %v825
        %901 = vst.msk [vmem:[#allocation4 + $0xb0] sm:$0xff] %vm878, %v827
        %902 = vst.msk [vmem:[#allocation4 + $0xb8] sm:$0xff] %vm878, %v829
        %903 = vst.msk [vmem:[#allocation4 + $0xc0] sm:$0xff] %vm878, %v831
        %904 = vst.msk [vmem:[#allocation4 + $0xc8] sm:$0xff] %vm878, %v833
        %905 = vst.msk [vmem:[#allocation4 + $0xd0] sm:$0xff] %vm878, %v835
        %906 = vst.msk [vmem:[#allocation4 + $0xd8] sm:$0xff] %vm878, %v837
        %907 = vst.msk [vmem:[#allocation4 + $0xe0] sm:$0xff] %vm878, %v839
        %908 = vst.msk [vmem:[#allocation4 + $0xe8] sm:$0xff] %vm878, %v841
        %909 = vst.msk [vmem:[#allocation4 + $0xf0] sm:$0xff] %vm878, %v843
        %910 = vst.msk [vmem:[#allocation4 + $0xf8] sm:$0xff] %vm878, %v845
        %v911 = vld [vmem:[%s428] sm:$0xff]
        %v912 = vld [vmem:[%s428 + $0x8] sm:$0xff]
        %v913 = vld [vmem:[%s428 + $0x18] sm:$0xff]
        %v914 = vld [vmem:[%s428 + $0x20] sm:$0xff]
        %v915 = vld [vmem:[%s428 + $0x30] sm:$0xff]
        %v916 = vld [vmem:[%s428 + $0x38] sm:$0xff]
        %v917 = vld [vmem:[%s428 + $0x48] sm:$0xff]
        %v918 = vld [vmem:[%s428 + $0x50] sm:$0xff]
        %v919 = vld [vmem:[%s428 + $0x60] sm:$0xff]
        %v920 = vld [vmem:[%s428 + $0x68] sm:$0xff]
        %v921 = vld [vmem:[%s428 + $0x78] sm:$0xff]
        %v922 = vld [vmem:[%s428 + $0x80] sm:$0xff]
        %v923 = vld [vmem:[%s428 + $0x90] sm:$0xff]
        %v924 = vld [vmem:[%s428 + $0x98] sm:$0xff]
        %v925 = vld [vmem:[%s428 + $0xa8] sm:$0xff]
        %v926 = vld [vmem:[%s428 + $0xb0] sm:$0xff]
        %v927 = vld [vmem:[%s428 + $0xc0] sm:$0xff]
        %v928 = vld [vmem:[%s428 + $0xc8] sm:$0xff]
        %v929 = vld [vmem:[%s428 + $0xd8] sm:$0xff]
        %v930 = vld [vmem:[%s428 + $0xe0] sm:$0xff]
        %v931 = vld [vmem:[%s428 + $0xf0] sm:$0xff]
        %v932 = vld [vmem:[%s428 + $0xf8] sm:$0xff]
        %v933 = vld [vmem:[%s428 + $0x108] sm:$0xff]
        %v934 = vld [vmem:[%s428 + $0x110] sm:$0xff]
        %v935 = vld [vmem:[%s428 + $0x120] sm:$0xff]
        %v936 = vld [vmem:[%s428 + $0x128] sm:$0xff]
        %v937 = vld [vmem:[%s428 + $0x138] sm:$0xff]
        %v938 = vld [vmem:[%s428 + $0x140] sm:$0xff]
        %v939 = vld [vmem:[%s428 + $0x150] sm:$0xff]
        %v940 = vld [vmem:[%s428 + $0x158] sm:$0xff]
        %v941 = vld [vmem:[%s428 + $0x168] sm:$0xff]
        %v942 = vld [vmem:[%s428 + $0x170] sm:$0xff]
        %975 = vrot.lane.b32.xlu0 %v911, 12
        %v976 = vpop.permute.xlu0 %975
        %977 = vrot.lane.b32.xlu0 %v912, 12
        %v978 = vpop.permute.xlu0 %977
        %979 = vrot.lane.b32.xlu0 %v913, 12
        %v980 = vpop.permute.xlu0 %979
        %981 = vrot.lane.b32.xlu0 %v914, 12
        %v982 = vpop.permute.xlu0 %981
        %983 = vrot.lane.b32.xlu0 %v915, 12
        %v984 = vpop.permute.xlu0 %983
        %985 = vrot.lane.b32.xlu0 %v916, 12
        %v986 = vpop.permute.xlu0 %985
        %987 = vrot.lane.b32.xlu0 %v917, 12
        %v988 = vpop.permute.xlu0 %987
        %989 = vrot.lane.b32.xlu0 %v918, 12
        %v990 = vpop.permute.xlu0 %989
        %991 = vrot.lane.b32.xlu0 %v919, 12
        %v992 = vpop.permute.xlu0 %991
        %993 = vrot.lane.b32.xlu0 %v920, 12
        %v994 = vpop.permute.xlu0 %993
        %995 = vrot.lane.b32.xlu0 %v921, 12
        %v996 = vpop.permute.xlu0 %995
        %997 = vrot.lane.b32.xlu0 %v922, 12
        %v998 = vpop.permute.xlu0 %997
        %999 = vrot.lane.b32.xlu0 %v923, 12
        %v1000 = vpop.permute.xlu0 %999
        %1001 = vrot.lane.b32.xlu0 %v924, 12
        %v1002 = vpop.permute.xlu0 %1001
        %1003 = vrot.lane.b32.xlu0 %v925, 12
        %v1004 = vpop.permute.xlu0 %1003
        %1005 = vrot.lane.b32.xlu0 %v926, 12
        %v1006 = vpop.permute.xlu0 %1005
        %1007 = vrot.lane.b32.xlu0 %v927, 12
        %v1008 = vpop.permute.xlu0 %1007
        %1009 = vrot.lane.b32.xlu0 %v928, 12
        %v1010 = vpop.permute.xlu0 %1009
        %1011 = vrot.lane.b32.xlu0 %v929, 12
        %v1012 = vpop.permute.xlu0 %1011
        %1013 = vrot.lane.b32.xlu0 %v930, 12
        %v1014 = vpop.permute.xlu0 %1013
        %1015 = vrot.lane.b32.xlu0 %v931, 12
        %v1016 = vpop.permute.xlu0 %1015
        %1017 = vrot.lane.b32.xlu0 %v932, 12
        %v1018 = vpop.permute.xlu0 %1017
        %1019 = vrot.lane.b32.xlu0 %v933, 12
        %v1020 = vpop.permute.xlu0 %1019
        %1021 = vrot.lane.b32.xlu0 %v934, 12
        %v1022 = vpop.permute.xlu0 %1021
        %1023 = vrot.lane.b32.xlu0 %v935, 12
        %v1024 = vpop.permute.xlu0 %1023
        %1025 = vrot.lane.b32.xlu0 %v936, 12
        %v1026 = vpop.permute.xlu0 %1025
        %1027 = vrot.lane.b32.xlu0 %v937, 12
        %v1028 = vpop.permute.xlu0 %1027
        %1029 = vrot.lane.b32.xlu0 %v938, 12
        %v1030 = vpop.permute.xlu0 %1029
        %1031 = vrot.lane.b32.xlu0 %v939, 12
        %v1032 = vpop.permute.xlu0 %1031
        %1033 = vrot.lane.b32.xlu0 %v940, 12
        %v1034 = vpop.permute.xlu0 %1033
        %1035 = vrot.lane.b32.xlu0 %v941, 12
        %v1036 = vpop.permute.xlu0 %1035
        %1037 = vrot.lane.b32.xlu0 %v942, 12
        %v1038 = vpop.permute.xlu0 %1037
        %vm1071 = vcmask 130144
        %1072 = vst.msk [vmem:[#allocation4] sm:$0xff] %vm1071, %v976
        %1073 = vst.msk [vmem:[#allocation4 + $0x8] sm:$0xff] %vm1071, %v978
        %1074 = vst.msk [vmem:[#allocation4 + $0x10] sm:$0xff] %vm1071, %v980
        %1075 = vst.msk [vmem:[#allocation4 + $0x18] sm:$0xff] %vm1071, %v982
        %1076 = vst.msk [vmem:[#allocation4 + $0x20] sm:$0xff] %vm1071, %v984
        %1077 = vst.msk [vmem:[#allocation4 + $0x28] sm:$0xff] %vm1071, %v986
        %1078 = vst.msk [vmem:[#allocation4 + $0x30] sm:$0xff] %vm1071, %v988
        %1079 = vst.msk [vmem:[#allocation4 + $0x38] sm:$0xff] %vm1071, %v990
        %1080 = vst.msk [vmem:[#allocation4 + $0x40] sm:$0xff] %vm1071, %v992
        %1081 = vst.msk [vmem:[#allocation4 + $0x48] sm:$0xff] %vm1071, %v994
        %1082 = vst.msk [vmem:[#allocation4 + $0x50] sm:$0xff] %vm1071, %v996
        %1083 = vst.msk [vmem:[#allocation4 + $0x58] sm:$0xff] %vm1071, %v998
        %1084 = vst.msk [vmem:[#allocation4 + $0x60] sm:$0xff] %vm1071, %v1000
        %1085 = vst.msk [vmem:[#allocation4 + $0x68] sm:$0xff] %vm1071, %v1002
        %1086 = vst.msk [vmem:[#allocation4 + $0x70] sm:$0xff] %vm1071, %v1004
        %1087 = vst.msk [vmem:[#allocation4 + $0x78] sm:$0xff] %vm1071, %v1006
        %1088 = vst.msk [vmem:[#allocation4 + $0x80] sm:$0xff] %vm1071, %v1008
        %1089 = vst.msk [vmem:[#allocation4 + $0x88] sm:$0xff] %vm1071, %v1010
        %1090 = vst.msk [vmem:[#allocation4 + $0x90] sm:$0xff] %vm1071, %v1012
        %1091 = vst.msk [vmem:[#allocation4 + $0x98] sm:$0xff] %vm1071, %v1014
        %1092 = vst.msk [vmem:[#allocation4 + $0xa0] sm:$0xff] %vm1071, %v1016
        %1093 = vst.msk [vmem:[#allocation4 + $0xa8] sm:$0xff] %vm1071, %v1018
        %1094 = vst.msk [vmem:[#allocation4 + $0xb0] sm:$0xff] %vm1071, %v1020
        %1095 = vst.msk [vmem:[#allocation4 + $0xb8] sm:$0xff] %vm1071, %v1022
        %1096 = vst.msk [vmem:[#allocation4 + $0xc0] sm:$0xff] %vm1071, %v1024
        %1097 = vst.msk [vmem:[#allocation4 + $0xc8] sm:$0xff] %vm1071, %v1026
        %1098 = vst.msk [vmem:[#allocation4 + $0xd0] sm:$0xff] %vm1071, %v1028
        %1099 = vst.msk [vmem:[#allocation4 + $0xd8] sm:$0xff] %vm1071, %v1030
        %1100 = vst.msk [vmem:[#allocation4 + $0xe0] sm:$0xff] %vm1071, %v1032
        %1101 = vst.msk [vmem:[#allocation4 + $0xe8] sm:$0xff] %vm1071, %v1034
        %1102 = vst.msk [vmem:[#allocation4 + $0xf0] sm:$0xff] %vm1071, %v1036
        %1103 = vst.msk [vmem:[#allocation4 + $0xf8] sm:$0xff] %vm1071, %v1038
        %v1104 = vld [vmem:[%s428 + $0x1] sm:$0xff]
        %v1105 = vld [vmem:[%s428 + $0x9] sm:$0xff]
        %v1106 = vld [vmem:[%s428 + $0x19] sm:$0xff]
        %v1107 = vld [vmem:[%s428 + $0x21] sm:$0xff]
        %v1108 = vld [vmem:[%s428 + $0x31] sm:$0xff]
        %v1109 = vld [vmem:[%s428 + $0x39] sm:$0xff]
        %v1110 = vld [vmem:[%s428 + $0x49] sm:$0xff]
        %v1111 = vld [vmem:[%s428 + $0x51] sm:$0xff]
        %v1112 = vld [vmem:[%s428 + $0x61] sm:$0xff]
        %v1113 = vld [vmem:[%s428 + $0x69] sm:$0xff]
        %v1114 = vld [vmem:[%s428 + $0x79] sm:$0xff]
        %v1115 = vld [vmem:[%s428 + $0x81] sm:$0xff]
        %v1116 = vld [vmem:[%s428 + $0x91] sm:$0xff]
        %v1117 = vld [vmem:[%s428 + $0x99] sm:$0xff]
        %v1118 = vld [vmem:[%s428 + $0xa9] sm:$0xff]
        %v1119 = vld [vmem:[%s428 + $0xb1] sm:$0xff]
        %v1120 = vld [vmem:[%s428 + $0xc1] sm:$0xff]
        %v1121 = vld [vmem:[%s428 + $0xc9] sm:$0xff]
        %v1122 = vld [vmem:[%s428 + $0xd9] sm:$0xff]
        %v1123 = vld [vmem:[%s428 + $0xe1] sm:$0xff]
        %v1124 = vld [vmem:[%s428 + $0xf1] sm:$0xff]
        %v1125 = vld [vmem:[%s428 + $0xf9] sm:$0xff]
        %v1126 = vld [vmem:[%s428 + $0x109] sm:$0xff]
        %v1127 = vld [vmem:[%s428 + $0x111] sm:$0xff]
        %v1128 = vld [vmem:[%s428 + $0x121] sm:$0xff]
        %v1129 = vld [vmem:[%s428 + $0x129] sm:$0xff]
        %v1130 = vld [vmem:[%s428 + $0x139] sm:$0xff]
        %v1131 = vld [vmem:[%s428 + $0x141] sm:$0xff]
        %v1132 = vld [vmem:[%s428 + $0x151] sm:$0xff]
        %v1133 = vld [vmem:[%s428 + $0x159] sm:$0xff]
        %v1134 = vld [vmem:[%s428 + $0x169] sm:$0xff]
        %v1135 = vld [vmem:[%s428 + $0x171] sm:$0xff]
        %1168 = vrot.lane.b32.xlu0 %v1104, 16
        %v1169 = vpop.permute.xlu0 %1168
        %1170 = vrot.lane.b32.xlu0 %v1105, 16
        %v1171 = vpop.permute.xlu0 %1170
        %1172 = vrot.lane.b32.xlu0 %v1106, 16
        %v1173 = vpop.permute.xlu0 %1172
        %1174 = vrot.lane.b32.xlu0 %v1107, 16
        %v1175 = vpop.permute.xlu0 %1174
        %1176 = vrot.lane.b32.xlu0 %v1108, 16
        %v1177 = vpop.permute.xlu0 %1176
        %1178 = vrot.lane.b32.xlu0 %v1109, 16
        %v1179 = vpop.permute.xlu0 %1178
        %1180 = vrot.lane.b32.xlu0 %v1110, 16
        %v1181 = vpop.permute.xlu0 %1180
        %1182 = vrot.lane.b32.xlu0 %v1111, 16
        %v1183 = vpop.permute.xlu0 %1182
        %1184 = vrot.lane.b32.xlu0 %v1112, 16
        %v1185 = vpop.permute.xlu0 %1184
        %1186 = vrot.lane.b32.xlu0 %v1113, 16
        %v1187 = vpop.permute.xlu0 %1186
        %1188 = vrot.lane.b32.xlu0 %v1114, 16
        %v1189 = vpop.permute.xlu0 %1188
        %1190 = vrot.lane.b32.xlu0 %v1115, 16
        %v1191 = vpop.permute.xlu0 %1190
        %1192 = vrot.lane.b32.xlu0 %v1116, 16
        %v1193 = vpop.permute.xlu0 %1192
        %1194 = vrot.lane.b32.xlu0 %v1117, 16
        %v1195 = vpop.permute.xlu0 %1194
        %1196 = vrot.lane.b32.xlu0 %v1118, 16
        %v1197 = vpop.permute.xlu0 %1196
        %1198 = vrot.lane.b32.xlu0 %v1119, 16
        %v1199 = vpop.permute.xlu0 %1198
        %1200 = vrot.lane.b32.xlu0 %v1120, 16
        %v1201 = vpop.permute.xlu0 %1200
        %1202 = vrot.lane.b32.xlu0 %v1121, 16
        %v1203 = vpop.permute.xlu0 %1202
        %1204 = vrot.lane.b32.xlu0 %v1122, 16
        %v1205 = vpop.permute.xlu0 %1204
        %1206 = vrot.lane.b32.xlu0 %v1123, 16
        %v1207 = vpop.permute.xlu0 %1206
        %1208 = vrot.lane.b32.xlu0 %v1124, 16
        %v1209 = vpop.permute.xlu0 %1208
        %1210 = vrot.lane.b32.xlu0 %v1125, 16
        %v1211 = vpop.permute.xlu0 %1210
        %1212 = vrot.lane.b32.xlu0 %v1126, 16
        %v1213 = vpop.permute.xlu0 %1212
        %1214 = vrot.lane.b32.xlu0 %v1127, 16
        %v1215 = vpop.permute.xlu0 %1214
        %1216 = vrot.lane.b32.xlu0 %v1128, 16
        %v1217 = vpop.permute.xlu0 %1216
        %1218 = vrot.lane.b32.xlu0 %v1129, 16
        %v1219 = vpop.permute.xlu0 %1218
        %1220 = vrot.lane.b32.xlu0 %v1130, 16
        %v1221 = vpop.permute.xlu0 %1220
        %1222 = vrot.lane.b32.xlu0 %v1131, 16
        %v1223 = vpop.permute.xlu0 %1222
        %1224 = vrot.lane.b32.xlu0 %v1132, 16
        %v1225 = vpop.permute.xlu0 %1224
        %1226 = vrot.lane.b32.xlu0 %v1133, 16
        %v1227 = vpop.permute.xlu0 %1226
        %1228 = vrot.lane.b32.xlu0 %v1134, 16
        %v1229 = vpop.permute.xlu0 %1228
        %1230 = vrot.lane.b32.xlu0 %v1135, 16
        %v1231 = vpop.permute.xlu0 %1230
        %vm1264 = vcmask 162944
        %1265 = vst.msk [vmem:[#allocation4] sm:$0xff] %vm1264, %v1169
        %1266 = vst.msk [vmem:[#allocation4 + $0x8] sm:$0xff] %vm1264, %v1171
        %1267 = vst.msk [vmem:[#allocation4 + $0x10] sm:$0xff] %vm1264, %v1173
        %1268 = vst.msk [vmem:[#allocation4 + $0x18] sm:$0xff] %vm1264, %v1175
        %1269 = vst.msk [vmem:[#allocation4 + $0x20] sm:$0xff] %vm1264, %v1177
        %1270 = vst.msk [vmem:[#allocation4 + $0x28] sm:$0xff] %vm1264, %v1179
        %1271 = vst.msk [vmem:[#allocation4 + $0x30] sm:$0xff] %vm1264, %v1181
        %1272 = vst.msk [vmem:[#allocation4 + $0x38] sm:$0xff] %vm1264, %v1183
        %1273 = vst.msk [vmem:[#allocation4 + $0x40] sm:$0xff] %vm1264, %v1185
        %1274 = vst.msk [vmem:[#allocation4 + $0x48] sm:$0xff] %vm1264, %v1187
        %1275 = vst.msk [vmem:[#allocation4 + $0x50] sm:$0xff] %vm1264, %v1189
        %1276 = vst.msk [vmem:[#allocation4 + $0x58] sm:$0xff] %vm1264, %v1191
        %1277 = vst.msk [vmem:[#allocation4 + $0x60] sm:$0xff] %vm1264, %v1193
        %1278 = vst.msk [vmem:[#allocation4 + $0x68] sm:$0xff] %vm1264, %v1195
        %1279 = vst.msk [vmem:[#allocation4 + $0x70] sm:$0xff] %vm1264, %v1197
        %1280 = vst.msk [vmem:[#allocation4 + $0x78] sm:$0xff] %vm1264, %v1199
        %1281 = vst.msk [vmem:[#allocation4 + $0x80] sm:$0xff] %vm1264, %v1201
        %1282 = vst.msk [vmem:[#allocation4 + $0x88] sm:$0xff] %vm1264, %v1203
        %1283 = vst.msk [vmem:[#allocation4 + $0x90] sm:$0xff] %vm1264, %v1205
        %1284 = vst.msk [vmem:[#allocation4 + $0x98] sm:$0xff] %vm1264, %v1207
        %1285 = vst.msk [vmem:[#allocation4 + $0xa0] sm:$0xff] %vm1264, %v1209
        %1286 = vst.msk [vmem:[#allocation4 + $0xa8] sm:$0xff] %vm1264, %v1211
        %1287 = vst.msk [vmem:[#allocation4 + $0xb0] sm:$0xff] %vm1264, %v1213
        %1288 = vst.msk [vmem:[#allocation4 + $0xb8] sm:$0xff] %vm1264, %v1215
        %1289 = vst.msk [vmem:[#allocation4 + $0xc0] sm:$0xff] %vm1264, %v1217
        %1290 = vst.msk [vmem:[#allocation4 + $0xc8] sm:$0xff] %vm1264, %v1219
        %1291 = vst.msk [vmem:[#allocation4 + $0xd0] sm:$0xff] %vm1264, %v1221
        %1292 = vst.msk [vmem:[#allocation4 + $0xd8] sm:$0xff] %vm1264, %v1223
        %1293 = vst.msk [vmem:[#allocation4 + $0xe0] sm:$0xff] %vm1264, %v1225
        %1294 = vst.msk [vmem:[#allocation4 + $0xe8] sm:$0xff] %vm1264, %v1227
        %1295 = vst.msk [vmem:[#allocation4 + $0xf0] sm:$0xff] %vm1264, %v1229
        %1296 = vst.msk [vmem:[#allocation4 + $0xf8] sm:$0xff] %vm1264, %v1231
        %v1297 = vld [vmem:[%s428 + $0x2] sm:$0xff]
        %v1298 = vld [vmem:[%s428 + $0xa] sm:$0xff]
        %v1299 = vld [vmem:[%s428 + $0x1a] sm:$0xff]
        %v1300 = vld [vmem:[%s428 + $0x22] sm:$0xff]
        %v1301 = vld [vmem:[%s428 + $0x32] sm:$0xff]
        %v1302 = vld [vmem:[%s428 + $0x3a] sm:$0xff]
        %v1303 = vld [vmem:[%s428 + $0x4a] sm:$0xff]
        %v1304 = vld [vmem:[%s428 + $0x52] sm:$0xff]
        %v1305 = vld [vmem:[%s428 + $0x62] sm:$0xff]
        %v1306 = vld [vmem:[%s428 + $0x6a] sm:$0xff]
        %v1307 = vld [vmem:[%s428 + $0x7a] sm:$0xff]
        %v1308 = vld [vmem:[%s428 + $0x82] sm:$0xff]
        %v1309 = vld [vmem:[%s428 + $0x92] sm:$0xff]
        %v1310 = vld [vmem:[%s428 + $0x9a] sm:$0xff]
        %v1311 = vld [vmem:[%s428 + $0xaa] sm:$0xff]
        %v1312 = vld [vmem:[%s428 + $0xb2] sm:$0xff]
        %v1313 = vld [vmem:[%s428 + $0xc2] sm:$0xff]
        %v1314 = vld [vmem:[%s428 + $0xca] sm:$0xff]
        %v1315 = vld [vmem:[%s428 + $0xda] sm:$0xff]
        %v1316 = vld [vmem:[%s428 + $0xe2] sm:$0xff]
        %v1317 = vld [vmem:[%s428 + $0xf2] sm:$0xff]
        %v1318 = vld [vmem:[%s428 + $0xfa] sm:$0xff]
        %v1319 = vld [vmem:[%s428 + $0x10a] sm:$0xff]
        %v1320 = vld [vmem:[%s428 + $0x112] sm:$0xff]
        %v1321 = vld [vmem:[%s428 + $0x122] sm:$0xff]
        %v1322 = vld [vmem:[%s428 + $0x12a] sm:$0xff]
        %v1323 = vld [vmem:[%s428 + $0x13a] sm:$0xff]
        %v1324 = vld [vmem:[%s428 + $0x142] sm:$0xff]
        %v1325 = vld [vmem:[%s428 + $0x152] sm:$0xff]
        %v1326 = vld [vmem:[%s428 + $0x15a] sm:$0xff]
        %v1327 = vld [vmem:[%s428 + $0x16a] sm:$0xff]
        %v1328 = vld [vmem:[%s428 + $0x172] sm:$0xff]
        %1361 = vrot.lane.b32.xlu0 %v1297, 20
        %v1362 = vpop.permute.xlu0 %1361
        %1363 = vrot.lane.b32.xlu0 %v1298, 20
        %v1364 = vpop.permute.xlu0 %1363
        %1365 = vrot.lane.b32.xlu0 %v1299, 20
        %v1366 = vpop.permute.xlu0 %1365
        %1367 = vrot.lane.b32.xlu0 %v1300, 20
        %v1368 = vpop.permute.xlu0 %1367
        %1369 = vrot.lane.b32.xlu0 %v1301, 20
        %v1370 = vpop.permute.xlu0 %1369
        %1371 = vrot.lane.b32.xlu0 %v1302, 20
        %v1372 = vpop.permute.xlu0 %1371
        %1373 = vrot.lane.b32.xlu0 %v1303, 20
        %v1374 = vpop.permute.xlu0 %1373
        %1375 = vrot.lane.b32.xlu0 %v1304, 20
        %v1376 = vpop.permute.xlu0 %1375
        %1377 = vrot.lane.b32.xlu0 %v1305, 20
        %v1378 = vpop.permute.xlu0 %1377
        %1379 = vrot.lane.b32.xlu0 %v1306, 20
        %v1380 = vpop.permute.xlu0 %1379
        %1381 = vrot.lane.b32.xlu0 %v1307, 20
        %v1382 = vpop.permute.xlu0 %1381
        %1383 = vrot.lane.b32.xlu0 %v1308, 20
        %v1384 = vpop.permute.xlu0 %1383
        %1385 = vrot.lane.b32.xlu0 %v1309, 20
        %v1386 = vpop.permute.xlu0 %1385
        %1387 = vrot.lane.b32.xlu0 %v1310, 20
        %v1388 = vpop.permute.xlu0 %1387
        %1389 = vrot.lane.b32.xlu0 %v1311, 20
        %v1390 = vpop.permute.xlu0 %1389
        %1391 = vrot.lane.b32.xlu0 %v1312, 20
        %v1392 = vpop.permute.xlu0 %1391
        %1393 = vrot.lane.b32.xlu0 %v1313, 20
        %v1394 = vpop.permute.xlu0 %1393
        %1395 = vrot.lane.b32.xlu0 %v1314, 20
        %v1396 = vpop.permute.xlu0 %1395
        %1397 = vrot.lane.b32.xlu0 %v1315, 20
        %v1398 = vpop.permute.xlu0 %1397
        %1399 = vrot.lane.b32.xlu0 %v1316, 20
        %v1400 = vpop.permute.xlu0 %1399
        %1401 = vrot.lane.b32.xlu0 %v1317, 20
        %v1402 = vpop.permute.xlu0 %1401
        %1403 = vrot.lane.b32.xlu0 %v1318, 20
        %v1404 = vpop.permute.xlu0 %1403
        %1405 = vrot.lane.b32.xlu0 %v1319, 20
        %v1406 = vpop.permute.xlu0 %1405
        %1407 = vrot.lane.b32.xlu0 %v1320, 20
        %v1408 = vpop.permute.xlu0 %1407
        %1409 = vrot.lane.b32.xlu0 %v1321, 20
        %v1410 = vpop.permute.xlu0 %1409
        %1411 = vrot.lane.b32.xlu0 %v1322, 20
        %v1412 = vpop.permute.xlu0 %1411
        %1413 = vrot.lane.b32.xlu0 %v1323, 20
        %v1414 = vpop.permute.xlu0 %1413
        %1415 = vrot.lane.b32.xlu0 %v1324, 20
        %v1416 = vpop.permute.xlu0 %1415
        %1417 = vrot.lane.b32.xlu0 %v1325, 20
        %v1418 = vpop.permute.xlu0 %1417
        %1419 = vrot.lane.b32.xlu0 %v1326, 20
        %v1420 = vpop.permute.xlu0 %1419
        %1421 = vrot.lane.b32.xlu0 %v1327, 20
        %v1422 = vpop.permute.xlu0 %1421
        %1423 = vrot.lane.b32.xlu0 %v1328, 20
        %v1424 = vpop.permute.xlu0 %1423
        %vm1457 = vcmask 195744
        %1458 = vst.msk [vmem:[#allocation4] sm:$0xff] %vm1457, %v1362
        %1459 = vst.msk [vmem:[#allocation4 + $0x8] sm:$0xff] %vm1457, %v1364
        %1460 = vst.msk [vmem:[#allocation4 + $0x10] sm:$0xff] %vm1457, %v1366
        %1461 = vst.msk [vmem:[#allocation4 + $0x18] sm:$0xff] %vm1457, %v1368
        %1462 = vst.msk [vmem:[#allocation4 + $0x20] sm:$0xff] %vm1457, %v1370
        %1463 = vst.msk [vmem:[#allocation4 + $0x28] sm:$0xff] %vm1457, %v1372
        %1464 = vst.msk [vmem:[#allocation4 + $0x30] sm:$0xff] %vm1457, %v1374
        %1465 = vst.msk [vmem:[#allocation4 + $0x38] sm:$0xff] %vm1457, %v1376
        %1466 = vst.msk [vmem:[#allocation4 + $0x40] sm:$0xff] %vm1457, %v1378
        %1467 = vst.msk [vmem:[#allocation4 + $0x48] sm:$0xff] %vm1457, %v1380
        %1468 = vst.msk [vmem:[#allocation4 + $0x50] sm:$0xff] %vm1457, %v1382
        %1469 = vst.msk [vmem:[#allocation4 + $0x58] sm:$0xff] %vm1457, %v1384
        %1470 = vst.msk [vmem:[#allocation4 + $0x60] sm:$0xff] %vm1457, %v1386
        %1471 = vst.msk [vmem:[#allocation4 + $0x68] sm:$0xff] %vm1457, %v1388
        %1472 = vst.msk [vmem:[#allocation4 + $0x70] sm:$0xff] %vm1457, %v1390
        %1473 = vst.msk [vmem:[#allocation4 + $0x78] sm:$0xff] %vm1457, %v1392
        %1474 = vst.msk [vmem:[#allocation4 + $0x80] sm:$0xff] %vm1457, %v1394
        %1475 = vst.msk [vmem:[#allocation4 + $0x88] sm:$0xff] %vm1457, %v1396
        %1476 = vst.msk [vmem:[#allocation4 + $0x90] sm:$0xff] %vm1457, %v1398
        %1477 = vst.msk [vmem:[#allocation4 + $0x98] sm:$0xff] %vm1457, %v1400
        %1478 = vst.msk [vmem:[#allocation4 + $0xa0] sm:$0xff] %vm1457, %v1402
        %1479 = vst.msk [vmem:[#allocation4 + $0xa8] sm:$0xff] %vm1457, %v1404
        %1480 = vst.msk [vmem:[#allocation4 + $0xb0] sm:$0xff] %vm1457, %v1406
        %1481 = vst.msk [vmem:[#allocation4 + $0xb8] sm:$0xff] %vm1457, %v1408
        %1482 = vst.msk [vmem:[#allocation4 + $0xc0] sm:$0xff] %vm1457, %v1410
        %1483 = vst.msk [vmem:[#allocation4 + $0xc8] sm:$0xff] %vm1457, %v1412
        %1484 = vst.msk [vmem:[#allocation4 + $0xd0] sm:$0xff] %vm1457, %v1414
        %1485 = vst.msk [vmem:[#allocation4 + $0xd8] sm:$0xff] %vm1457, %v1416
        %1486 = vst.msk [vmem:[#allocation4 + $0xe0] sm:$0xff] %vm1457, %v1418
        %1487 = vst.msk [vmem:[#allocation4 + $0xe8] sm:$0xff] %vm1457, %v1420
        %1488 = vst.msk [vmem:[#allocation4 + $0xf0] sm:$0xff] %vm1457, %v1422
        %1489 = vst.msk [vmem:[#allocation4 + $0xf8] sm:$0xff] %vm1457, %v1424
        %s1490 = scalar_lea.vmem [#allocation2], 48
        %v1491 = vld [vmem:[%s1490] sm:$0xff]
        %v1492 = vld [vmem:[%s1490 + $0x8] sm:$0xff]
        %v1493 = vld [vmem:[%s1490 + $0x18] sm:$0xff]
        %v1494 = vld [vmem:[%s1490 + $0x20] sm:$0xff]
        %v1495 = vld [vmem:[%s1490 + $0x30] sm:$0xff]
        %v1496 = vld [vmem:[%s1490 + $0x38] sm:$0xff]
        %v1497 = vld [vmem:[%s1490 + $0x48] sm:$0xff]
        %v1498 = vld [vmem:[%s1490 + $0x50] sm:$0xff]
        %v1499 = vld [vmem:[%s1490 + $0x60] sm:$0xff]
        %v1500 = vld [vmem:[%s1490 + $0x68] sm:$0xff]
        %v1501 = vld [vmem:[%s1490 + $0x78] sm:$0xff]
        %v1502 = vld [vmem:[%s1490 + $0x80] sm:$0xff]
        %v1503 = vld [vmem:[%s1490 + $0x90] sm:$0xff]
        %v1504 = vld [vmem:[%s1490 + $0x98] sm:$0xff]
        %v1505 = vld [vmem:[%s1490 + $0xa8] sm:$0xff]
        %v1506 = vld [vmem:[%s1490 + $0xb0] sm:$0xff]
        %v1507 = vld [vmem:[%s1490 + $0xc0] sm:$0xff]
        %v1508 = vld [vmem:[%s1490 + $0xc8] sm:$0xff]
        %v1509 = vld [vmem:[%s1490 + $0xd8] sm:$0xff]
        %v1510 = vld [vmem:[%s1490 + $0xe0] sm:$0xff]
        %v1511 = vld [vmem:[%s1490 + $0xf0] sm:$0xff]
        %v1512 = vld [vmem:[%s1490 + $0xf8] sm:$0xff]
        %v1513 = vld [vmem:[%s1490 + $0x108] sm:$0xff]
        %v1514 = vld [vmem:[%s1490 + $0x110] sm:$0xff]
        %v1515 = vld [vmem:[%s1490 + $0x120] sm:$0xff]
        %v1516 = vld [vmem:[%s1490 + $0x128] sm:$0xff]
        %v1517 = vld [vmem:[%s1490 + $0x138] sm:$0xff]
        %v1518 = vld [vmem:[%s1490 + $0x140] sm:$0xff]
        %v1519 = vld [vmem:[%s1490 + $0x150] sm:$0xff]
        %v1520 = vld [vmem:[%s1490 + $0x158] sm:$0xff]
        %v1521 = vld [vmem:[%s1490 + $0x168] sm:$0xff]
        %v1522 = vld [vmem:[%s1490 + $0x170] sm:$0xff]
        %1555 = vrot.lane.b32.xlu0 %v1491, 24
        %v1556 = vpop.permute.xlu0 %1555
        %1557 = vrot.lane.b32.xlu0 %v1492, 24
        %v1558 = vpop.permute.xlu0 %1557
        %1559 = vrot.lane.b32.xlu0 %v1493, 24
        %v1560 = vpop.permute.xlu0 %1559
        %1561 = vrot.lane.b32.xlu0 %v1494, 24
        %v1562 = vpop.permute.xlu0 %1561
        %1563 = vrot.lane.b32.xlu0 %v1495, 24
        %v1564 = vpop.permute.xlu0 %1563
        %1565 = vrot.lane.b32.xlu0 %v1496, 24
        %v1566 = vpop.permute.xlu0 %1565
        %1567 = vrot.lane.b32.xlu0 %v1497, 24
        %v1568 = vpop.permute.xlu0 %1567
        %1569 = vrot.lane.b32.xlu0 %v1498, 24
        %v1570 = vpop.permute.xlu0 %1569
        %1571 = vrot.lane.b32.xlu0 %v1499, 24
        %v1572 = vpop.permute.xlu0 %1571
        %1573 = vrot.lane.b32.xlu0 %v1500, 24
        %v1574 = vpop.permute.xlu0 %1573
        %1575 = vrot.lane.b32.xlu0 %v1501, 24
        %v1576 = vpop.permute.xlu0 %1575
        %1577 = vrot.lane.b32.xlu0 %v1502, 24
        %v1578 = vpop.permute.xlu0 %1577
        %1579 = vrot.lane.b32.xlu0 %v1503, 24
        %v1580 = vpop.permute.xlu0 %1579
        %1581 = vrot.lane.b32.xlu0 %v1504, 24
        %v1582 = vpop.permute.xlu0 %1581
        %1583 = vrot.lane.b32.xlu0 %v1505, 24
        %v1584 = vpop.permute.xlu0 %1583
        %1585 = vrot.lane.b32.xlu0 %v1506, 24
        %v1586 = vpop.permute.xlu0 %1585
        %1587 = vrot.lane.b32.xlu0 %v1507, 24
        %v1588 = vpop.permute.xlu0 %1587
        %1589 = vrot.lane.b32.xlu0 %v1508, 24
        %v1590 = vpop.permute.xlu0 %1589
        %1591 = vrot.lane.b32.xlu0 %v1509, 24
        %v1592 = vpop.permute.xlu0 %1591
        %1593 = vrot.lane.b32.xlu0 %v1510, 24
        %v1594 = vpop.permute.xlu0 %1593
        %1595 = vrot.lane.b32.xlu0 %v1511, 24
        %v1596 = vpop.permute.xlu0 %1595
        %1597 = vrot.lane.b32.xlu0 %v1512, 24
        %v1598 = vpop.permute.xlu0 %1597
        %1599 = vrot.lane.b32.xlu0 %v1513, 24
        %v1600 = vpop.permute.xlu0 %1599
        %1601 = vrot.lane.b32.xlu0 %v1514, 24
        %v1602 = vpop.permute.xlu0 %1601
        %1603 = vrot.lane.b32.xlu0 %v1515, 24
        %v1604 = vpop.permute.xlu0 %1603
        %1605 = vrot.lane.b32.xlu0 %v1516, 24
        %v1606 = vpop.permute.xlu0 %1605
        %1607 = vrot.lane.b32.xlu0 %v1517, 24
        %v1608 = vpop.permute.xlu0 %1607
        %1609 = vrot.lane.b32.xlu0 %v1518, 24
        %v1610 = vpop.permute.xlu0 %1609
        %1611 = vrot.lane.b32.xlu0 %v1519, 24
        %v1612 = vpop.permute.xlu0 %1611
        %1613 = vrot.lane.b32.xlu0 %v1520, 24
        %v1614 = vpop.permute.xlu0 %1613
        %1615 = vrot.lane.b32.xlu0 %v1521, 24
        %v1616 = vpop.permute.xlu0 %1615
        %1617 = vrot.lane.b32.xlu0 %v1522, 24
        %v1618 = vpop.permute.xlu0 %1617
        %vm1651 = vcmask 228544
        %1652 = vst.msk [vmem:[#allocation4] sm:$0xff] %vm1651, %v1556
        %1653 = vst.msk [vmem:[#allocation4 + $0x8] sm:$0xff] %vm1651, %v1558
        %1654 = vst.msk [vmem:[#allocation4 + $0x10] sm:$0xff] %vm1651, %v1560
        %1655 = vst.msk [vmem:[#allocation4 + $0x18] sm:$0xff] %vm1651, %v1562
        %1656 = vst.msk [vmem:[#allocation4 + $0x20] sm:$0xff] %vm1651, %v1564
        %1657 = vst.msk [vmem:[#allocation4 + $0x28] sm:$0xff] %vm1651, %v1566
        %1658 = vst.msk [vmem:[#allocation4 + $0x30] sm:$0xff] %vm1651, %v1568
        %1659 = vst.msk [vmem:[#allocation4 + $0x38] sm:$0xff] %vm1651, %v1570
        %1660 = vst.msk [vmem:[#allocation4 + $0x40] sm:$0xff] %vm1651, %v1572
        %1661 = vst.msk [vmem:[#allocation4 + $0x48] sm:$0xff] %vm1651, %v1574
        %1662 = vst.msk [vmem:[#allocation4 + $0x50] sm:$0xff] %vm1651, %v1576
        %1663 = vst.msk [vmem:[#allocation4 + $0x58] sm:$0xff] %vm1651, %v1578
        %1664 = vst.msk [vmem:[#allocation4 + $0x60] sm:$0xff] %vm1651, %v1580
        %1665 = vst.msk [vmem:[#allocation4 + $0x68] sm:$0xff] %vm1651, %v1582
        %1666 = vst.msk [vmem:[#allocation4 + $0x70] sm:$0xff] %vm1651, %v1584
        %1667 = vst.msk [vmem:[#allocation4 + $0x78] sm:$0xff] %vm1651, %v1586
        %1668 = vst.msk [vmem:[#allocation4 + $0x80] sm:$0xff] %vm1651, %v1588
        %1669 = vst.msk [vmem:[#allocation4 + $0x88] sm:$0xff] %vm1651, %v1590
        %1670 = vst.msk [vmem:[#allocation4 + $0x90] sm:$0xff] %vm1651, %v1592
        %1671 = vst.msk [vmem:[#allocation4 + $0x98] sm:$0xff] %vm1651, %v1594
        %1672 = vst.msk [vmem:[#allocation4 + $0xa0] sm:$0xff] %vm1651, %v1596
        %1673 = vst.msk [vmem:[#allocation4 + $0xa8] sm:$0xff] %vm1651, %v1598
        %1674 = vst.msk [vmem:[#allocation4 + $0xb0] sm:$0xff] %vm1651, %v1600
        %1675 = vst.msk [vmem:[#allocation4 + $0xb8] sm:$0xff] %vm1651, %v1602
        %1676 = vst.msk [vmem:[#allocation4 + $0xc0] sm:$0xff] %vm1651, %v1604
        %1677 = vst.msk [vmem:[#allocation4 + $0xc8] sm:$0xff] %vm1651, %v1606
        %1678 = vst.msk [vmem:[#allocation4 + $0xd0] sm:$0xff] %vm1651, %v1608
        %1679 = vst.msk [vmem:[#allocation4 + $0xd8] sm:$0xff] %vm1651, %v1610
        %1680 = vst.msk [vmem:[#allocation4 + $0xe0] sm:$0xff] %vm1651, %v1612
        %1681 = vst.msk [vmem:[#allocation4 + $0xe8] sm:$0xff] %vm1651, %v1614
        %1682 = vst.msk [vmem:[#allocation4 + $0xf0] sm:$0xff] %vm1651, %v1616
        %1683 = vst.msk [vmem:[#allocation4 + $0xf8] sm:$0xff] %vm1651, %v1618
        %v1684 = vld [vmem:[%s1490 + $0x1] sm:$0xff]
        %v1685 = vld [vmem:[%s1490 + $0x9] sm:$0xff]
        %v1686 = vld [vmem:[%s1490 + $0x19] sm:$0xff]
        %v1687 = vld [vmem:[%s1490 + $0x21] sm:$0xff]
        %v1688 = vld [vmem:[%s1490 + $0x31] sm:$0xff]
        %v1689 = vld [vmem:[%s1490 + $0x39] sm:$0xff]
        %v1690 = vld [vmem:[%s1490 + $0x49] sm:$0xff]
        %v1691 = vld [vmem:[%s1490 + $0x51] sm:$0xff]
        %v1692 = vld [vmem:[%s1490 + $0x61] sm:$0xff]
        %v1693 = vld [vmem:[%s1490 + $0x69] sm:$0xff]
        %v1694 = vld [vmem:[%s1490 + $0x79] sm:$0xff]
        %v1695 = vld [vmem:[%s1490 + $0x81] sm:$0xff]
        %v1696 = vld [vmem:[%s1490 + $0x91] sm:$0xff]
        %v1697 = vld [vmem:[%s1490 + $0x99] sm:$0xff]
        %v1698 = vld [vmem:[%s1490 + $0xa9] sm:$0xff]
        %v1699 = vld [vmem:[%s1490 + $0xb1] sm:$0xff]
        %v1700 = vld [vmem:[%s1490 + $0xc1] sm:$0xff]
        %v1701 = vld [vmem:[%s1490 + $0xc9] sm:$0xff]
        %v1702 = vld [vmem:[%s1490 + $0xd9] sm:$0xff]
        %v1703 = vld [vmem:[%s1490 + $0xe1] sm:$0xff]
        %v1704 = vld [vmem:[%s1490 + $0xf1] sm:$0xff]
        %v1705 = vld [vmem:[%s1490 + $0xf9] sm:$0xff]
        %v1706 = vld [vmem:[%s1490 + $0x109] sm:$0xff]
        %v1707 = vld [vmem:[%s1490 + $0x111] sm:$0xff]
        %v1708 = vld [vmem:[%s1490 + $0x121] sm:$0xff]
        %v1709 = vld [vmem:[%s1490 + $0x129] sm:$0xff]
        %v1710 = vld [vmem:[%s1490 + $0x139] sm:$0xff]
        %v1711 = vld [vmem:[%s1490 + $0x141] sm:$0xff]
        %v1712 = vld [vmem:[%s1490 + $0x151] sm:$0xff]
        %v1713 = vld [vmem:[%s1490 + $0x159] sm:$0xff]
        %v1714 = vld [vmem:[%s1490 + $0x169] sm:$0xff]
        %v1715 = vld [vmem:[%s1490 + $0x171] sm:$0xff]
        %1748 = vrot.lane.b32.xlu0 %v1684, 28
        %v1749 = vpop.permute.xlu0 %1748
        %1750 = vrot.lane.b32.xlu0 %v1685, 28
        %v1751 = vpop.permute.xlu0 %1750
        %1752 = vrot.lane.b32.xlu0 %v1686, 28
        %v1753 = vpop.permute.xlu0 %1752
        %1754 = vrot.lane.b32.xlu0 %v1687, 28
        %v1755 = vpop.permute.xlu0 %1754
        %1756 = vrot.lane.b32.xlu0 %v1688, 28
        %v1757 = vpop.permute.xlu0 %1756
        %1758 = vrot.lane.b32.xlu0 %v1689, 28
        %v1759 = vpop.permute.xlu0 %1758
        %1760 = vrot.lane.b32.xlu0 %v1690, 28
        %v1761 = vpop.permute.xlu0 %1760
        %1762 = vrot.lane.b32.xlu0 %v1691, 28
        %v1763 = vpop.permute.xlu0 %1762
        %1764 = vrot.lane.b32.xlu0 %v1692, 28
        %v1765 = vpop.permute.xlu0 %1764
        %1766 = vrot.lane.b32.xlu0 %v1693, 28
        %v1767 = vpop.permute.xlu0 %1766
        %1768 = vrot.lane.b32.xlu0 %v1694, 28
        %v1769 = vpop.permute.xlu0 %1768
        %1770 = vrot.lane.b32.xlu0 %v1695, 28
        %v1771 = vpop.permute.xlu0 %1770
        %1772 = vrot.lane.b32.xlu0 %v1696, 28
        %v1773 = vpop.permute.xlu0 %1772
        %1774 = vrot.lane.b32.xlu0 %v1697, 28
        %v1775 = vpop.permute.xlu0 %1774
        %1776 = vrot.lane.b32.xlu0 %v1698, 28
        %v1777 = vpop.permute.xlu0 %1776
        %1778 = vrot.lane.b32.xlu0 %v1699, 28
        %v1779 = vpop.permute.xlu0 %1778
        %1780 = vrot.lane.b32.xlu0 %v1700, 28
        %v1781 = vpop.permute.xlu0 %1780
        %1782 = vrot.lane.b32.xlu0 %v1701, 28
        %v1783 = vpop.permute.xlu0 %1782
        %1784 = vrot.lane.b32.xlu0 %v1702, 28
        %v1785 = vpop.permute.xlu0 %1784
        %1786 = vrot.lane.b32.xlu0 %v1703, 28
        %v1787 = vpop.permute.xlu0 %1786
        %1788 = vrot.lane.b32.xlu0 %v1704, 28
        %v1789 = vpop.permute.xlu0 %1788
        %1790 = vrot.lane.b32.xlu0 %v1705, 28
        %v1791 = vpop.permute.xlu0 %1790
        %1792 = vrot.lane.b32.xlu0 %v1706, 28
        %v1793 = vpop.permute.xlu0 %1792
        %1794 = vrot.lane.b32.xlu0 %v1707, 28
        %v1795 = vpop.permute.xlu0 %1794
        %1796 = vrot.lane.b32.xlu0 %v1708, 28
        %v1797 = vpop.permute.xlu0 %1796
        %1798 = vrot.lane.b32.xlu0 %v1709, 28
        %v1799 = vpop.permute.xlu0 %1798
        %1800 = vrot.lane.b32.xlu0 %v1710, 28
        %v1801 = vpop.permute.xlu0 %1800
        %1802 = vrot.lane.b32.xlu0 %v1711, 28
        %v1803 = vpop.permute.xlu0 %1802
        %1804 = vrot.lane.b32.xlu0 %v1712, 28
        %v1805 = vpop.permute.xlu0 %1804
        %1806 = vrot.lane.b32.xlu0 %v1713, 28
        %v1807 = vpop.permute.xlu0 %1806
        %1808 = vrot.lane.b32.xlu0 %v1714, 28
        %v1809 = vpop.permute.xlu0 %1808
        %1810 = vrot.lane.b32.xlu0 %v1715, 28
        %v1811 = vpop.permute.xlu0 %1810
        %vm1844 = vcmask 261344
        %1845 = vst.msk [vmem:[#allocation4] sm:$0xff] %vm1844, %v1749
        %1846 = vst.msk [vmem:[#allocation4 + $0x8] sm:$0xff] %vm1844, %v1751
        %1847 = vst.msk [vmem:[#allocation4 + $0x10] sm:$0xff] %vm1844, %v1753
        %1848 = vst.msk [vmem:[#allocation4 + $0x18] sm:$0xff] %vm1844, %v1755
        %1849 = vst.msk [vmem:[#allocation4 + $0x20] sm:$0xff] %vm1844, %v1757
        %1850 = vst.msk [vmem:[#allocation4 + $0x28] sm:$0xff] %vm1844, %v1759
        %1851 = vst.msk [vmem:[#allocation4 + $0x30] sm:$0xff] %vm1844, %v1761
        %1852 = vst.msk [vmem:[#allocation4 + $0x38] sm:$0xff] %vm1844, %v1763
        %1853 = vst.msk [vmem:[#allocation4 + $0x40] sm:$0xff] %vm1844, %v1765
        %1854 = vst.msk [vmem:[#allocation4 + $0x48] sm:$0xff] %vm1844, %v1767
        %1855 = vst.msk [vmem:[#allocation4 + $0x50] sm:$0xff] %vm1844, %v1769
        %1856 = vst.msk [vmem:[#allocation4 + $0x58] sm:$0xff] %vm1844, %v1771
        %1857 = vst.msk [vmem:[#allocation4 + $0x60] sm:$0xff] %vm1844, %v1773
        %1858 = vst.msk [vmem:[#allocation4 + $0x68] sm:$0xff] %vm1844, %v1775
        %1859 = vst.msk [vmem:[#allocation4 + $0x70] sm:$0xff] %vm1844, %v1777
        %1860 = vst.msk [vmem:[#allocation4 + $0x78] sm:$0xff] %vm1844, %v1779
        %1861 = vst.msk [vmem:[#allocation4 + $0x80] sm:$0xff] %vm1844, %v1781
        %1862 = vst.msk [vmem:[#allocation4 + $0x88] sm:$0xff] %vm1844, %v1783
        %1863 = vst.msk [vmem:[#allocation4 + $0x90] sm:$0xff] %vm1844, %v1785
        %1864 = vst.msk [vmem:[#allocation4 + $0x98] sm:$0xff] %vm1844, %v1787
        %1865 = vst.msk [vmem:[#allocation4 + $0xa0] sm:$0xff] %vm1844, %v1789
        %1866 = vst.msk [vmem:[#allocation4 + $0xa8] sm:$0xff] %vm1844, %v1791
        %1867 = vst.msk [vmem:[#allocation4 + $0xb0] sm:$0xff] %vm1844, %v1793
        %1868 = vst.msk [vmem:[#allocation4 + $0xb8] sm:$0xff] %vm1844, %v1795
        %1869 = vst.msk [vmem:[#allocation4 + $0xc0] sm:$0xff] %vm1844, %v1797
        %1870 = vst.msk [vmem:[#allocation4 + $0xc8] sm:$0xff] %vm1844, %v1799
        %1871 = vst.msk [vmem:[#allocation4 + $0xd0] sm:$0xff] %vm1844, %v1801
        %1872 = vst.msk [vmem:[#allocation4 + $0xd8] sm:$0xff] %vm1844, %v1803
        %1873 = vst.msk [vmem:[#allocation4 + $0xe0] sm:$0xff] %vm1844, %v1805
        %1874 = vst.msk [vmem:[#allocation4 + $0xe8] sm:$0xff] %vm1844, %v1807
        %1875 = vst.msk [vmem:[#allocation4 + $0xf0] sm:$0xff] %vm1844, %v1809
        %1876 = vst.msk [vmem:[#allocation4 + $0xf8] sm:$0xff] %vm1844, %v1811
        %v1877 = vld [vmem:[%s1490 + $0x2] sm:$0xff]
        %v1878 = vld [vmem:[%s1490 + $0xa] sm:$0xff]
        %v1879 = vld [vmem:[%s1490 + $0x1a] sm:$0xff]
        %v1880 = vld [vmem:[%s1490 + $0x22] sm:$0xff]
        %v1881 = vld [vmem:[%s1490 + $0x32] sm:$0xff]
        %v1882 = vld [vmem:[%s1490 + $0x3a] sm:$0xff]
        %v1883 = vld [vmem:[%s1490 + $0x4a] sm:$0xff]
        %v1884 = vld [vmem:[%s1490 + $0x52] sm:$0xff]
        %v1885 = vld [vmem:[%s1490 + $0x62] sm:$0xff]
        %v1886 = vld [vmem:[%s1490 + $0x6a] sm:$0xff]
        %v1887 = vld [vmem:[%s1490 + $0x7a] sm:$0xff]
        %v1888 = vld [vmem:[%s1490 + $0x82] sm:$0xff]
        %v1889 = vld [vmem:[%s1490 + $0x92] sm:$0xff]
        %v1890 = vld [vmem:[%s1490 + $0x9a] sm:$0xff]
        %v1891 = vld [vmem:[%s1490 + $0xaa] sm:$0xff]
        %v1892 = vld [vmem:[%s1490 + $0xb2] sm:$0xff]
        %v1893 = vld [vmem:[%s1490 + $0xc2] sm:$0xff]
        %v1894 = vld [vmem:[%s1490 + $0xca] sm:$0xff]
        %v1895 = vld [vmem:[%s1490 + $0xda] sm:$0xff]
        %v1896 = vld [vmem:[%s1490 + $0xe2] sm:$0xff]
        %v1897 = vld [vmem:[%s1490 + $0xf2] sm:$0xff]
        %v1898 = vld [vmem:[%s1490 + $0xfa] sm:$0xff]
        %v1899 = vld [vmem:[%s1490 + $0x10a] sm:$0xff]
        %v1900 = vld [vmem:[%s1490 + $0x112] sm:$0xff]
        %v1901 = vld [vmem:[%s1490 + $0x122] sm:$0xff]
        %v1902 = vld [vmem:[%s1490 + $0x12a] sm:$0xff]
        %v1903 = vld [vmem:[%s1490 + $0x13a] sm:$0xff]
        %v1904 = vld [vmem:[%s1490 + $0x142] sm:$0xff]
        %v1905 = vld [vmem:[%s1490 + $0x152] sm:$0xff]
        %v1906 = vld [vmem:[%s1490 + $0x15a] sm:$0xff]
        %v1907 = vld [vmem:[%s1490 + $0x16a] sm:$0xff]
        %v1908 = vld [vmem:[%s1490 + $0x172] sm:$0xff]
        %1941 = vrot.lane.b32.xlu0 %v1877, 32
        %v1942 = vpop.permute.xlu0 %1941
        %1943 = vrot.lane.b32.xlu0 %v1878, 32
        %v1944 = vpop.permute.xlu0 %1943
        %1945 = vrot.lane.b32.xlu0 %v1879, 32
        %v1946 = vpop.permute.xlu0 %1945
        %1947 = vrot.lane.b32.xlu0 %v1880, 32
        %v1948 = vpop.permute.xlu0 %1947
        %1949 = vrot.lane.b32.xlu0 %v1881, 32
        %v1950 = vpop.permute.xlu0 %1949
        %1951 = vrot.lane.b32.xlu0 %v1882, 32
        %v1952 = vpop.permute.xlu0 %1951
        %1953 = vrot.lane.b32.xlu0 %v1883, 32
        %v1954 = vpop.permute.xlu0 %1953
        %1955 = vrot.lane.b32.xlu0 %v1884, 32
        %v1956 = vpop.permute.xlu0 %1955
        %1957 = vrot.lane.b32.xlu0 %v1885, 32
        %v1958 = vpop.permute.xlu0 %1957
        %1959 = vrot.lane.b32.xlu0 %v1886, 32
        %v1960 = vpop.permute.xlu0 %1959
        %1961 = vrot.lane.b32.xlu0 %v1887, 32
        %v1962 = vpop.permute.xlu0 %1961
        %1963 = vrot.lane.b32.xlu0 %v1888, 32
        %v1964 = vpop.permute.xlu0 %1963
        %1965 = vrot.lane.b32.xlu0 %v1889, 32
        %v1966 = vpop.permute.xlu0 %1965
        %1967 = vrot.lane.b32.xlu0 %v1890, 32
        %v1968 = vpop.permute.xlu0 %1967
        %1969 = vrot.lane.b32.xlu0 %v1891, 32
        %v1970 = vpop.permute.xlu0 %1969
        %1971 = vrot.lane.b32.xlu0 %v1892, 32
        %v1972 = vpop.permute.xlu0 %1971
        %1973 = vrot.lane.b32.xlu0 %v1893, 32
        %v1974 = vpop.permute.xlu0 %1973
        %1975 = vrot.lane.b32.xlu0 %v1894, 32
        %v1976 = vpop.permute.xlu0 %1975
        %1977 = vrot.lane.b32.xlu0 %v1895, 32
        %v1978 = vpop.permute.xlu0 %1977
        %1979 = vrot.lane.b32.xlu0 %v1896, 32
        %v1980 = vpop.permute.xlu0 %1979
        %1981 = vrot.lane.b32.xlu0 %v1897, 32
        %v1982 = vpop.permute.xlu0 %1981
        %1983 = vrot.lane.b32.xlu0 %v1898, 32
        %v1984 = vpop.permute.xlu0 %1983
        %1985 = vrot.lane.b32.xlu0 %v1899, 32
        %v1986 = vpop.permute.xlu0 %1985
        %1987 = vrot.lane.b32.xlu0 %v1900, 32
        %v1988 = vpop.permute.xlu0 %1987
        %1989 = vrot.lane.b32.xlu0 %v1901, 32
        %v1990 = vpop.permute.xlu0 %1989
        %1991 = vrot.lane.b32.xlu0 %v1902, 32
        %v1992 = vpop.permute.xlu0 %1991
        %1993 = vrot.lane.b32.xlu0 %v1903, 32
        %v1994 = vpop.permute.xlu0 %1993
        %1995 = vrot.lane.b32.xlu0 %v1904, 32
        %v1996 = vpop.permute.xlu0 %1995
        %1997 = vrot.lane.b32.xlu0 %v1905, 32
        %v1998 = vpop.permute.xlu0 %1997
        %1999 = vrot.lane.b32.xlu0 %v1906, 32
        %v2000 = vpop.permute.xlu0 %1999
        %2001 = vrot.lane.b32.xlu0 %v1907, 32
        %v2002 = vpop.permute.xlu0 %2001
        %2003 = vrot.lane.b32.xlu0 %v1908, 32
        %v2004 = vpop.permute.xlu0 %2003
        %vm2037 = vcmask 294144
        %2038 = vst.msk [vmem:[#allocation4] sm:$0xff] %vm2037, %v1942
        %2039 = vst.msk [vmem:[#allocation4 + $0x8] sm:$0xff] %vm2037, %v1944
        %2040 = vst.msk [vmem:[#allocation4 + $0x10] sm:$0xff] %vm2037, %v1946
        %2041 = vst.msk [vmem:[#allocation4 + $0x18] sm:$0xff] %vm2037, %v1948
        %2042 = vst.msk [vmem:[#allocation4 + $0x20] sm:$0xff] %vm2037, %v1950
        %2043 = vst.msk [vmem:[#allocation4 + $0x28] sm:$0xff] %vm2037, %v1952
        %2044 = vst.msk [vmem:[#allocation4 + $0x30] sm:$0xff] %vm2037, %v1954
        %2045 = vst.msk [vmem:[#allocation4 + $0x38] sm:$0xff] %vm2037, %v1956
        %2046 = vst.msk [vmem:[#allocation4 + $0x40] sm:$0xff] %vm2037, %v1958
        %2047 = vst.msk [vmem:[#allocation4 + $0x48] sm:$0xff] %vm2037, %v1960
        %2048 = vst.msk [vmem:[#allocation4 + $0x50] sm:$0xff] %vm2037, %v1962
        %2049 = vst.msk [vmem:[#allocation4 + $0x58] sm:$0xff] %vm2037, %v1964
        %2050 = vst.msk [vmem:[#allocation4 + $0x60] sm:$0xff] %vm2037, %v1966
        %2051 = vst.msk [vmem:[#allocation4 + $0x68] sm:$0xff] %vm2037, %v1968
        %2052 = vst.msk [vmem:[#allocation4 + $0x70] sm:$0xff] %vm2037, %v1970
        %2053 = vst.msk [vmem:[#allocation4 + $0x78] sm:$0xff] %vm2037, %v1972
        %2054 = vst.msk [vmem:[#allocation4 + $0x80] sm:$0xff] %vm2037, %v1974
        %2055 = vst.msk [vmem:[#allocation4 + $0x88] sm:$0xff] %vm2037, %v1976
        %2056 = vst.msk [vmem:[#allocation4 + $0x90] sm:$0xff] %vm2037, %v1978
        %2057 = vst.msk [vmem:[#allocation4 + $0x98] sm:$0xff] %vm2037, %v1980
        %2058 = vst.msk [vmem:[#allocation4 + $0xa0] sm:$0xff] %vm2037, %v1982
        %2059 = vst.msk [vmem:[#allocation4 + $0xa8] sm:$0xff] %vm2037, %v1984
        %2060 = vst.msk [vmem:[#allocation4 + $0xb0] sm:$0xff] %vm2037, %v1986
        %2061 = vst.msk [vmem:[#allocation4 + $0xb8] sm:$0xff] %vm2037, %v1988
        %2062 = vst.msk [vmem:[#allocation4 + $0xc0] sm:$0xff] %vm2037, %v1990
        %2063 = vst.msk [vmem:[#allocation4 + $0xc8] sm:$0xff] %vm2037, %v1992
        %2064 = vst.msk [vmem:[#allocation4 + $0xd0] sm:$0xff] %vm2037, %v1994
        %2065 = vst.msk [vmem:[#allocation4 + $0xd8] sm:$0xff] %vm2037, %v1996
        %2066 = vst.msk [vmem:[#allocation4 + $0xe0] sm:$0xff] %vm2037, %v1998
        %2067 = vst.msk [vmem:[#allocation4 + $0xe8] sm:$0xff] %vm2037, %v2000
        %2068 = vst.msk [vmem:[#allocation4 + $0xf0] sm:$0xff] %vm2037, %v2002
        %2069 = vst.msk [vmem:[#allocation4 + $0xf8] sm:$0xff] %vm2037, %v2004
        %v2070 = vld [vmem:[#allocation4] sm:$0xff]
        %v2071 = vld [vmem:[#allocation4 + $0x8] sm:$0xff]
        %v2072 = vld [vmem:[#allocation4 + $0x10] sm:$0xff]
        %v2073 = vld [vmem:[#allocation4 + $0x18] sm:$0xff]
        %v2074 = vld [vmem:[#allocation4 + $0x20] sm:$0xff]
        %v2075 = vld [vmem:[#allocation4 + $0x28] sm:$0xff]
        %v2076 = vld [vmem:[#allocation4 + $0x30] sm:$0xff]
        %v2077 = vld [vmem:[#allocation4 + $0x38] sm:$0xff]
        %v2078 = vld [vmem:[#allocation4 + $0x40] sm:$0xff]
        %v2079 = vld [vmem:[#allocation4 + $0x48] sm:$0xff]
        %v2080 = vld [vmem:[#allocation4 + $0x50] sm:$0xff]
        %v2081 = vld [vmem:[#allocation4 + $0x58] sm:$0xff]
        %v2082 = vld [vmem:[#allocation4 + $0x60] sm:$0xff]
        %v2083 = vld [vmem:[#allocation4 + $0x68] sm:$0xff]
        %v2084 = vld [vmem:[#allocation4 + $0x70] sm:$0xff]
        %v2085 = vld [vmem:[#allocation4 + $0x78] sm:$0xff]
        %v2086 = vld [vmem:[#allocation4 + $0x80] sm:$0xff]
        %v2087 = vld [vmem:[#allocation4 + $0x88] sm:$0xff]
        %v2088 = vld [vmem:[#allocation4 + $0x90] sm:$0xff]
        %v2089 = vld [vmem:[#allocation4 + $0x98] sm:$0xff]
        %v2090 = vld [vmem:[#allocation4 + $0xa0] sm:$0xff]
        %v2091 = vld [vmem:[#allocation4 + $0xa8] sm:$0xff]
        %v2092 = vld [vmem:[#allocation4 + $0xb0] sm:$0xff]
        %v2093 = vld [vmem:[#allocation4 + $0xb8] sm:$0xff]
        %v2094 = vld [vmem:[#allocation4 + $0xc0] sm:$0xff]
        %v2095 = vld [vmem:[#allocation4 + $0xc8] sm:$0xff]
        %v2096 = vld [vmem:[#allocation4 + $0xd0] sm:$0xff]
        %v2097 = vld [vmem:[#allocation4 + $0xd8] sm:$0xff]
        %v2098 = vld [vmem:[#allocation4 + $0xe0] sm:$0xff]
        %v2099 = vld [vmem:[#allocation4 + $0xe8] sm:$0xff]
        %v2100 = vld [vmem:[#allocation4 + $0xf0] sm:$0xff]
        %v2101 = vld [vmem:[#allocation4 + $0xf8] sm:$0xff]
        %v2102 = vld [vmem:[%s1] sm:$0xff]
        %v2103 = vld [vmem:[%s1 + $0x8] sm:$0xff]
        %v2104 = vld [vmem:[%s1 + $0x10] sm:$0xff]
        %v2105 = vld [vmem:[%s1 + $0x18] sm:$0xff]
        %v2106 = vld [vmem:[%s1 + $0x20] sm:$0xf]
        %vm2107 = vcmask 293888
        %v2109 = vsel %vm2107, %v2070, 0
        %v2112 = vsel %vm2107, %v2071, 0
        %v2115 = vsel %vm2107, %v2072, 0
        %v2118 = vsel %vm2107, %v2073, 0
        %v2121 = vsel %vm2107, %v2074, 0
        %v2124 = vsel %vm2107, %v2075, 0
        %v2127 = vsel %vm2107, %v2076, 0
        %v2130 = vsel %vm2107, %v2077, 0
        %v2133 = vsel %vm2107, %v2078, 0
        %v2136 = vsel %vm2107, %v2079, 0
        %v2139 = vsel %vm2107, %v2080, 0
        %v2142 = vsel %vm2107, %v2081, 0
        %v2145 = vsel %vm2107, %v2082, 0
        %v2148 = vsel %vm2107, %v2083, 0
        %v2151 = vsel %vm2107, %v2084, 0
        %v2154 = vsel %vm2107, %v2085, 0
        %v2157 = vsel %vm2107, %v2086, 0
        %v2160 = vsel %vm2107, %v2087, 0
        %v2163 = vsel %vm2107, %v2088, 0
        %v2166 = vsel %vm2107, %v2089, 0
        %v2169 = vsel %vm2107, %v2090, 0
        %v2172 = vsel %vm2107, %v2091, 0
        %v2175 = vsel %vm2107, %v2092, 0
        %v2178 = vsel %vm2107, %v2093, 0
        %v2181 = vsel %vm2107, %v2094, 0
        %v2184 = vsel %vm2107, %v2095, 0
        %v2187 = vsel %vm2107, %v2096, 0
        %v2190 = vsel %vm2107, %v2097, 0
        %v2193 = vsel %vm2107, %v2098, 0
        %v2196 = vsel %vm2107, %v2099, 0
        %v2199 = vsel %vm2107, %v2100, 0
        %v2202 = vsel %vm2107, %v2101, 0
        %vm2204 = vcmask 1043456
        %v2206 = vsel %vm2204, %v2106, 0
        %2208 = vmatprep.subr.mxu0 0.0
        %2209 = vmatpush1.msra.mxu0 %v2102
        %2210 = vmatprep.subr.mxu0 0.0
        %2211 = vmatpush1.msra.mxu0 %v2103
        %2212 = vmatprep.subr.mxu0 0.0
        %2213 = vmatpush1.msra.mxu0 %v2104
        %2214 = vmatprep.subr.mxu0 0.0
        %2215 = vmatpush1.msra.mxu0 %v2105
        %2216 = vmatprep.subr.mxu0 0.0
        %2217 = vmatpush1.msra.mxu0 %v2206
        %2218 = vmatprep.subr.mxu0 0.0
        %2219 = vmatpush1.msra.mxu0 0.0
        %2220 = vmatprep.subr.mxu0 0.0
        %2221 = vmatpush1.msra.mxu0 0.0
        %2222 = vmatprep.subr.mxu0 0.0
        %2223 = vmatpush1.msra.mxu0 0.0
        %2224 = vmatprep.subr.mxu0 0.0
        %2225 = vmatpush1.msra.mxu0 0.0
        %2226 = vmatprep.subr.mxu0 0.0
        %2227 = vmatpush1.msra.mxu0 0.0
        %2228 = vmatprep.subr.mxu0 0.0
        %2229 = vmatpush1.msra.mxu0 0.0
        %2230 = vmatprep.subr.mxu0 0.0
        %2231 = vmatpush1.msra.mxu0 0.0
        %2232 = vmatprep.subr.mxu0 0.0
        %2233 = vmatpush1.msra.mxu0 0.0
        %2234 = vmatprep.subr.mxu0 0.0
        %2235 = vmatpush1.msra.mxu0 0.0
        %2236 = vmatprep.subr.mxu0 0.0
        %2237 = vmatpush1.msra.mxu0 0.0
        %2238 = vmatprep.subr.mxu0 0.0
        %2239 = vmatpush1.msra.mxu0 0.0
        %2240 = vmatprep.subr.mxu0 0.0
        %2241 = vmatpush1.msra.mxu0 0.0
        %2242 = vmatprep.subr.mxu0 0.0
        %2243 = vmatpush1.msra.mxu0 0.0
        %2244 = vmatprep.subr.mxu0 0.0
        %2245 = vmatpush1.msra.mxu0 0.0
        %2246 = vmatprep.subr.mxu0 0.0
        %2247 = vmatpush1.msra.mxu0 0.0
        %2248 = vmatprep.subr.mxu0 0.0
        %2249 = vmatpush1.msra.mxu0 0.0
        %2250 = vmatprep.subr.mxu0 0.0
        %2251 = vmatpush1.msra.mxu0 0.0
        %2252 = vmatprep.subr.mxu0 0.0
        %2253 = vmatpush1.msra.mxu0 0.0
        %2254 = vmatprep.subr.mxu0 0.0
        %2255 = vmatpush1.msra.mxu0 0.0
        %2256 = vmatprep.subr.mxu0 0.0
        %2257 = vmatpush1.msra.mxu0 0.0
        %2258 = vmatprep.subr.mxu0 0.0
        %2259 = vmatpush1.msra.mxu0 0.0
        %2260 = vmatprep.subr.mxu0 0.0
        %2261 = vmatpush1.msra.mxu0 0.0
        %2262 = vmatprep.subr.mxu0 0.0
        %2263 = vmatpush1.msra.mxu0 0.0
        %2264 = vmatprep.subr.mxu0 0.0
        %2265 = vmatpush1.msra.mxu0 0.0
        %2266 = vmatprep.subr.mxu0 0.0
        %2267 = vmatpush1.msra.mxu0 0.0
        %2268 = vmatprep.subr.mxu0 0.0
        %2269 = vmatpush1.msra.mxu0 0.0
        %2270 = vmatprep.subr.mxu0 0.0
        %2271 = vmatpush1.msra.mxu0 0.0
        %2272 = vmatprep.mubr.f32.mxu0 0.0
        %2273 = vmatmul.mubr.f32.gmra.mrb[0].mxu0 %v2109
        %v2274 = vpop.f32.mrb[0].mxu0
        %v2275 = vadd.f32 0.0, %v2274
        %v2276 = vpop.f32.mrb[0].mxu0
        %2277 = vmatprep.mubr.f32.mxu0 0.0
        %2278 = vmatmul.mubr.f32.gmra.mrb[0].mxu0 %v2112
        %v2279 = vpop.f32.mrb[0].mxu0
        %v2280 = vadd.f32 0.0, %v2279
        %v2281 = vpop.f32.mrb[0].mxu0
        %2282 = vmatprep.mubr.f32.mxu0 0.0
        %2283 = vmatmul.mubr.f32.gmra.mrb[0].mxu0 %v2115
        %v2284 = vpop.f32.mrb[0].mxu0
        %v2285 = vadd.f32 0.0, %v2284
        %v2286 = vpop.f32.mrb[0].mxu0
        %2287 = vmatprep.mubr.f32.mxu0 0.0
        %2288 = vmatmul.mubr.f32.gmra.mrb[0].mxu0 %v2118
        %v2289 = vpop.f32.mrb[0].mxu0
        %v2290 = vadd.f32 0.0, %v2289
        %v2291 = vpop.f32.mrb[0].mxu0
        %2292 = vmatprep.mubr.f32.mxu0 0.0
        %2293 = vmatmul.mubr.f32.gmra.mrb[0].mxu0 %v2121
        %v2294 = vpop.f32.mrb[0].mxu0
        %v2295 = vadd.f32 0.0, %v2294
        %v2296 = vpop.f32.mrb[0].mxu0
        %2297 = vmatprep.mubr.f32.mxu0 0.0
        %2298 = vmatmul.mubr.f32.gmra.mrb[0].mxu0 %v2124
        %v2299 = vpop.f32.mrb[0].mxu0
        %v2300 = vadd.f32 0.0, %v2299
        %v2301 = vpop.f32.mrb[0].mxu0
        %2302 = vmatprep.mubr.f32.mxu0 0.0
        %2303 = vmatmul.mubr.f32.gmra.mrb[0].mxu0 %v2127
        %v2304 = vpop.f32.mrb[0].mxu0
        %v2305 = vadd.f32 0.0, %v2304
        %v2306 = vpop.f32.mrb[0].mxu0
        %2307 = vmatprep.mubr.f32.mxu0 0.0
        %2308 = vmatmul.mubr.f32.gmra.mrb[0].mxu0 %v2130
        %v2309 = vpop.f32.mrb[0].mxu0
        %v2310 = vadd.f32 0.0, %v2309
        %v2311 = vpop.f32.mrb[0].mxu0
        %2312 = vmatprep.mubr.f32.mxu0 0.0
        %2313 = vmatmul.mubr.f32.gmra.mrb[0].mxu0 %v2133
        %v2314 = vpop.f32.mrb[0].mxu0
        %v2315 = vadd.f32 0.0, %v2314
        %v2316 = vpop.f32.mrb[0].mxu0
        %2317 = vmatprep.mubr.f32.mxu0 0.0
        %2318 = vmatmul.mubr.f32.gmra.mrb[0].mxu0 %v2136
        %v2319 = vpop.f32.mrb[0].mxu0
        %v2320 = vadd.f32 0.0, %v2319
        %v2321 = vpop.f32.mrb[0].mxu0
        %2322 = vmatprep.mubr.f32.mxu0 0.0
        %2323 = vmatmul.mubr.f32.gmra.mrb[0].mxu0 %v2139
        %v2324 = vpop.f32.mrb[0].mxu0
        %v2325 = vadd.f32 0.0, %v2324
        %v2326 = vpop.f32.mrb[0].mxu0
        %2327 = vmatprep.mubr.f32.mxu0 0.0
        %2328 = vmatmul.mubr.f32.gmra.mrb[0].mxu0 %v2142
        %v2329 = vpop.f32.mrb[0].mxu0
        %v2330 = vadd.f32 0.0, %v2329
        %v2331 = vpop.f32.mrb[0].mxu0
        %2332 = vmatprep.mubr.f32.mxu0 0.0
        %2333 = vmatmul.mubr.f32.gmra.mrb[0].mxu0 %v2145
        %v2334 = vpop.f32.mrb[0].mxu0
        %v2335 = vadd.f32 0.0, %v2334
        %v2336 = vpop.f32.mrb[0].mxu0
        %2337 = vmatprep.mubr.f32.mxu0 0.0
        %2338 = vmatmul.mubr.f32.gmra.mrb[0].mxu0 %v2148
        %v2339 = vpop.f32.mrb[0].mxu0
        %v2340 = vadd.f32 0.0, %v2339
        %v2341 = vpop.f32.mrb[0].mxu0
        %2342 = vmatprep.mubr.f32.mxu0 0.0
        %2343 = vmatmul.mubr.f32.gmra.mrb[0].mxu0 %v2151
        %v2344 = vpop.f32.mrb[0].mxu0
        %v2345 = vadd.f32 0.0, %v2344
        %v2346 = vpop.f32.mrb[0].mxu0
        %2347 = vmatprep.mubr.f32.mxu0 0.0
        %2348 = vmatmul.mubr.f32.gmra.mrb[0].mxu0 %v2154
        %v2349 = vpop.f32.mrb[0].mxu0
        %v2350 = vadd.f32 0.0, %v2349
        %v2351 = vpop.f32.mrb[0].mxu0
        %2352 = vmatprep.mubr.f32.mxu0 0.0
        %2353 = vmatmul.mubr.f32.gmra.mrb[0].mxu0 %v2157
        %v2354 = vpop.f32.mrb[0].mxu0
        %v2355 = vadd.f32 0.0, %v2354
        %v2356 = vpop.f32.mrb[0].mxu0
        %2357 = vmatprep.mubr.f32.mxu0 0.0
        %2358 = vmatmul.mubr.f32.gmra.mrb[0].mxu0 %v2160
        %v2359 = vpop.f32.mrb[0].mxu0
        %v2360 = vadd.f32 0.0, %v2359
        %v2361 = vpop.f32.mrb[0].mxu0
        %2362 = vmatprep.mubr.f32.mxu0 0.0
        %2363 = vmatmul.mubr.f32.gmra.mrb[0].mxu0 %v2163
        %v2364 = vpop.f32.mrb[0].mxu0
        %v2365 = vadd.f32 0.0, %v2364
        %v2366 = vpop.f32.mrb[0].mxu0
        %2367 = vmatprep.mubr.f32.mxu0 0.0
        %2368 = vmatmul.mubr.f32.gmra.mrb[0].mxu0 %v2166
        %v2369 = vpop.f32.mrb[0].mxu0
        %v2370 = vadd.f32 0.0, %v2369
        %v2371 = vpop.f32.mrb[0].mxu0
        %2372 = vmatprep.mubr.f32.mxu0 0.0
        %2373 = vmatmul.mubr.f32.gmra.mrb[0].mxu0 %v2169
        %v2374 = vpop.f32.mrb[0].mxu0
        %v2375 = vadd.f32 0.0, %v2374
        %v2376 = vpop.f32.mrb[0].mxu0
        %2377 = vmatprep.mubr.f32.mxu0 0.0
        %2378 = vmatmul.mubr.f32.gmra.mrb[0].mxu0 %v2172
        %v2379 = vpop.f32.mrb[0].mxu0
        %v2380 = vadd.f32 0.0, %v2379
        %v2381 = vpop.f32.mrb[0].mxu0
        %2382 = vmatprep.mubr.f32.mxu0 0.0
        %2383 = vmatmul.mubr.f32.gmra.mrb[0].mxu0 %v2175
        %v2384 = vpop.f32.mrb[0].mxu0
        %v2385 = vadd.f32 0.0, %v2384
        %v2386 = vpop.f32.mrb[0].mxu0
        %2387 = vmatprep.mubr.f32.mxu0 0.0
        %2388 = vmatmul.mubr.f32.gmra.mrb[0].mxu0 %v2178
        %v2389 = vpop.f32.mrb[0].mxu0
        %v2390 = vadd.f32 0.0, %v2389
        %v2391 = vpop.f32.mrb[0].mxu0
        %2392 = vmatprep.mubr.f32.mxu0 0.0
        %2393 = vmatmul.mubr.f32.gmra.mrb[0].mxu0 %v2181
        %v2394 = vpop.f32.mrb[0].mxu0
        %v2395 = vadd.f32 0.0, %v2394
        %v2396 = vpop.f32.mrb[0].mxu0
        %2397 = vmatprep.mubr.f32.mxu0 0.0
        %2398 = vmatmul.mubr.f32.gmra.mrb[0].mxu0 %v2184
        %v2399 = vpop.f32.mrb[0].mxu0
        %v2400 = vadd.f32 0.0, %v2399
        %v2401 = vpop.f32.mrb[0].mxu0
        %2402 = vmatprep.mubr.f32.mxu0 0.0
        %2403 = vmatmul.mubr.f32.gmra.mrb[0].mxu0 %v2187
        %v2404 = vpop.f32.mrb[0].mxu0
        %v2405 = vadd.f32 0.0, %v2404
        %v2406 = vpop.f32.mrb[0].mxu0
        %2407 = vmatprep.mubr.f32.mxu0 0.0
        %2408 = vmatmul.mubr.f32.gmra.mrb[0].mxu0 %v2190
        %v2409 = vpop.f32.mrb[0].mxu0
        %v2410 = vadd.f32 0.0, %v2409
        %v2411 = vpop.f32.mrb[0].mxu0
        %2412 = vmatprep.mubr.f32.mxu0 0.0
        %2413 = vmatmul.mubr.f32.gmra.mrb[0].mxu0 %v2193
        %v2414 = vpop.f32.mrb[0].mxu0
        %v2415 = vadd.f32 0.0, %v2414
        %v2416 = vpop.f32.mrb[0].mxu0
        %2417 = vmatprep.mubr.f32.mxu0 0.0
        %2418 = vmatmul.mubr.f32.gmra.mrb[0].mxu0 %v2196
        %v2419 = vpop.f32.mrb[0].mxu0
        %v2420 = vadd.f32 0.0, %v2419
        %v2421 = vpop.f32.mrb[0].mxu0
        %2422 = vmatprep.mubr.f32.mxu0 0.0
        %2423 = vmatmul.mubr.f32.gmra.mrb[0].mxu0 %v2199
        %v2424 = vpop.f32.mrb[0].mxu0
        %v2425 = vadd.f32 0.0, %v2424
        %v2426 = vpop.f32.mrb[0].mxu0
        %2427 = vmatprep.mubr.f32.mxu0 0.0
        %2428 = vmatmul.mubr.f32.gmra.mrb[0].mxu0 %v2202
        %v2429 = vpop.f32.mrb[0].mxu0
        %v2430 = vadd.f32 0.0, %v2429
        %v2431 = vpop.f32.mrb[0].mxu0
        %2432 = vdwg.mxu0
        %v2433 = vld [vmem:[%s2] sm:$0x1]
        %v2435 = vlaneseq
        %v2436 = vshrl.u32 %v2435, 7
        %v2437 = vsub.s32 0, %v2436
        %v2438 = vrot.slane %v2433, %v2437
        %v2440 = vmul.f32 %v2275, %v2438
        %v2441 = vmul.f32 %v2280, %v2438
        %v2442 = vmul.f32 %v2285, %v2438
        %v2443 = vmul.f32 %v2290, %v2438
        %v2444 = vmul.f32 %v2295, %v2438
        %v2445 = vmul.f32 %v2300, %v2438
        %v2446 = vmul.f32 %v2305, %v2438
        %v2447 = vmul.f32 %v2310, %v2438
        %v2448 = vmul.f32 %v2315, %v2438
        %v2449 = vmul.f32 %v2320, %v2438
        %v2450 = vmul.f32 %v2325, %v2438
        %v2451 = vmul.f32 %v2330, %v2438
        %v2452 = vmul.f32 %v2335, %v2438
        %v2453 = vmul.f32 %v2340, %v2438
        %v2454 = vmul.f32 %v2345, %v2438
        %v2455 = vmul.f32 %v2350, %v2438
        %v2456 = vmul.f32 %v2355, %v2438
        %v2457 = vmul.f32 %v2360, %v2438
        %v2458 = vmul.f32 %v2365, %v2438
        %v2459 = vmul.f32 %v2370, %v2438
        %v2460 = vmul.f32 %v2375, %v2438
        %v2461 = vmul.f32 %v2380, %v2438
        %v2462 = vmul.f32 %v2385, %v2438
        %v2463 = vmul.f32 %v2390, %v2438
        %v2464 = vmul.f32 %v2395, %v2438
        %v2465 = vmul.f32 %v2400, %v2438
        %v2466 = vmul.f32 %v2405, %v2438
        %v2467 = vmul.f32 %v2410, %v2438
        %v2468 = vmul.f32 %v2415, %v2438
        %v2469 = vmul.f32 %v2420, %v2438
        %v2470 = vmul.f32 %v2425, %v2438
        %v2471 = vmul.f32 %v2430, %v2438
        %v2472 = vld [vmem:[%s3] sm:$0x1]
        %v2474 = vlaneseq
        %v2475 = vshrl.u32 %v2474, 7
        %v2476 = vsub.s32 0, %v2475
        %v2477 = vrot.slane %v2472, %v2476
        %v2479 = vadd.f32 %v2440, %v2477
        %v2480 = vadd.f32 %v2441, %v2477
        %v2481 = vadd.f32 %v2442, %v2477
        %v2482 = vadd.f32 %v2443, %v2477
        %v2483 = vadd.f32 %v2444, %v2477
        %v2484 = vadd.f32 %v2445, %v2477
        %v2485 = vadd.f32 %v2446, %v2477
        %v2486 = vadd.f32 %v2447, %v2477
        %v2487 = vadd.f32 %v2448, %v2477
        %v2488 = vadd.f32 %v2449, %v2477
        %v2489 = vadd.f32 %v2450, %v2477
        %v2490 = vadd.f32 %v2451, %v2477
        %v2491 = vadd.f32 %v2452, %v2477
        %v2492 = vadd.f32 %v2453, %v2477
        %v2493 = vadd.f32 %v2454, %v2477
        %v2494 = vadd.f32 %v2455, %v2477
        %v2495 = vadd.f32 %v2456, %v2477
        %v2496 = vadd.f32 %v2457, %v2477
        %v2497 = vadd.f32 %v2458, %v2477
        %v2498 = vadd.f32 %v2459, %v2477
        %v2499 = vadd.f32 %v2460, %v2477
        %v2500 = vadd.f32 %v2461, %v2477
        %v2501 = vadd.f32 %v2462, %v2477
        %v2502 = vadd.f32 %v2463, %v2477
        %v2503 = vadd.f32 %v2464, %v2477
        %v2504 = vadd.f32 %v2465, %v2477
        %v2505 = vadd.f32 %v2466, %v2477
        %v2506 = vadd.f32 %v2467, %v2477
        %v2507 = vadd.f32 %v2468, %v2477
        %v2508 = vadd.f32 %v2469, %v2477
        %v2509 = vadd.f32 %v2470, %v2477
        %v2510 = vadd.f32 %v2471, %v2477
        %v2511 = vmax.f32 %v2479, 0.0
        %v2512 = vmax.f32 %v2480, 0.0
        %v2513 = vmax.f32 %v2481, 0.0
        %v2514 = vmax.f32 %v2482, 0.0
        %v2515 = vmax.f32 %v2483, 0.0
        %v2516 = vmax.f32 %v2484, 0.0
        %v2517 = vmax.f32 %v2485, 0.0
        %v2518 = vmax.f32 %v2486, 0.0
        %v2519 = vmax.f32 %v2487, 0.0
        %v2520 = vmax.f32 %v2488, 0.0
        %v2521 = vmax.f32 %v2489, 0.0
        %v2522 = vmax.f32 %v2490, 0.0
        %v2523 = vmax.f32 %v2491, 0.0
        %v2524 = vmax.f32 %v2492, 0.0
        %v2525 = vmax.f32 %v2493, 0.0
        %v2526 = vmax.f32 %v2494, 0.0
        %v2527 = vmax.f32 %v2495, 0.0
        %v2528 = vmax.f32 %v2496, 0.0
        %v2529 = vmax.f32 %v2497, 0.0
        %v2530 = vmax.f32 %v2498, 0.0
        %v2531 = vmax.f32 %v2499, 0.0
        %v2532 = vmax.f32 %v2500, 0.0
        %v2533 = vmax.f32 %v2501, 0.0
        %v2534 = vmax.f32 %v2502, 0.0
        %v2535 = vmax.f32 %v2503, 0.0
        %v2536 = vmax.f32 %v2504, 0.0
        %v2537 = vmax.f32 %v2505, 0.0
        %v2538 = vmax.f32 %v2506, 0.0
        %v2539 = vmax.f32 %v2507, 0.0
        %v2540 = vmax.f32 %v2508, 0.0
        %v2541 = vmax.f32 %v2509, 0.0
        %v2542 = vmax.f32 %v2510, 0.0
        %s2543 = scalar_lea.vmem [#allocation3], 24
        %2544 = vst.msk [vmem:[%s2543 + $0x1] sm:$0xff] %vm350, %v2511
        %2545 = vst.msk [vmem:[%s2543 + $0x9] sm:$0xff] %vm350, %v2512
        %2546 = vst.msk [vmem:[%s2543 + $0x19] sm:$0xff] %vm350, %v2513
        %2547 = vst.msk [vmem:[%s2543 + $0x21] sm:$0xff] %vm350, %v2514
        %2548 = vst.msk [vmem:[%s2543 + $0x31] sm:$0xff] %vm350, %v2515
        %2549 = vst.msk [vmem:[%s2543 + $0x39] sm:$0xff] %vm350, %v2516
        %2550 = vst.msk [vmem:[%s2543 + $0x49] sm:$0xff] %vm350, %v2517
        %2551 = vst.msk [vmem:[%s2543 + $0x51] sm:$0xff] %vm350, %v2518
        %2552 = vst.msk [vmem:[%s2543 + $0x61] sm:$0xff] %vm350, %v2519
        %2553 = vst.msk [vmem:[%s2543 + $0x69] sm:$0xff] %vm350, %v2520
        %2554 = vst.msk [vmem:[%s2543 + $0x79] sm:$0xff] %vm350, %v2521
        %2555 = vst.msk [vmem:[%s2543 + $0x81] sm:$0xff] %vm350, %v2522
        %2556 = vst.msk [vmem:[%s2543 + $0x91] sm:$0xff] %vm350, %v2523
        %2557 = vst.msk [vmem:[%s2543 + $0x99] sm:$0xff] %vm350, %v2524
        %2558 = vst.msk [vmem:[%s2543 + $0xa9] sm:$0xff] %vm350, %v2525
        %2559 = vst.msk [vmem:[%s2543 + $0xb1] sm:$0xff] %vm350, %v2526
        %2560 = vst.msk [vmem:[%s2543 + $0xc1] sm:$0xff] %vm350, %v2527
        %2561 = vst.msk [vmem:[%s2543 + $0xc9] sm:$0xff] %vm350, %v2528
        %2562 = vst.msk [vmem:[%s2543 + $0xd9] sm:$0xff] %vm350, %v2529
        %2563 = vst.msk [vmem:[%s2543 + $0xe1] sm:$0xff] %vm350, %v2530
        %2564 = vst.msk [vmem:[%s2543 + $0xf1] sm:$0xff] %vm350, %v2531
        %2565 = vst.msk [vmem:[%s2543 + $0xf9] sm:$0xff] %vm350, %v2532
        %2566 = vst.msk [vmem:[%s2543 + $0x109] sm:$0xff] %vm350, %v2533
        %2567 = vst.msk [vmem:[%s2543 + $0x111] sm:$0xff] %vm350, %v2534
        %2568 = vst.msk [vmem:[%s2543 + $0x121] sm:$0xff] %vm350, %v2535
        %2569 = vst.msk [vmem:[%s2543 + $0x129] sm:$0xff] %vm350, %v2536
        %2570 = vst.msk [vmem:[%s2543 + $0x139] sm:$0xff] %vm350, %v2537
        %2571 = vst.msk [vmem:[%s2543 + $0x141] sm:$0xff] %vm350, %v2538
        %2572 = vst.msk [vmem:[%s2543 + $0x151] sm:$0xff] %vm350, %v2539
        %2573 = vst.msk [vmem:[%s2543 + $0x159] sm:$0xff] %vm350, %v2540
        %2574 = vst.msk [vmem:[%s2543 + $0x169] sm:$0xff] %vm350, %v2541
        %2575 = vst.msk [vmem:[%s2543 + $0x171] sm:$0xff] %vm350, %v2542
        %v2576 = vld [vmem:[#allocation3] sm:$0xff]
        %v2577 = vld [vmem:[#allocation3 + $0x8] sm:$0xff]
        %v2578 = vld [vmem:[#allocation3 + $0x18] sm:$0xff]
        %v2579 = vld [vmem:[#allocation3 + $0x20] sm:$0xff]
        %v2580 = vld [vmem:[#allocation3 + $0x30] sm:$0xff]
        %v2581 = vld [vmem:[#allocation3 + $0x38] sm:$0xff]
        %v2582 = vld [vmem:[#allocation3 + $0x48] sm:$0xff]
        %v2583 = vld [vmem:[#allocation3 + $0x50] sm:$0xff]
        %v2584 = vld [vmem:[#allocation3 + $0x60] sm:$0xff]
        %v2585 = vld [vmem:[#allocation3 + $0x68] sm:$0xff]
        %v2586 = vld [vmem:[#allocation3 + $0x78] sm:$0xff]
        %v2587 = vld [vmem:[#allocation3 + $0x80] sm:$0xff]
        %v2588 = vld [vmem:[#allocation3 + $0x90] sm:$0xff]
        %v2589 = vld [vmem:[#allocation3 + $0x98] sm:$0xff]
        %v2590 = vld [vmem:[#allocation3 + $0xa8] sm:$0xff]
        %v2591 = vld [vmem:[#allocation3 + $0xb0] sm:$0xff]
        %v2592 = vld [vmem:[#allocation3 + $0xc0] sm:$0xff]
        %v2593 = vld [vmem:[#allocation3 + $0xc8] sm:$0xff]
        %v2594 = vld [vmem:[#allocation3 + $0xd8] sm:$0xff]
        %v2595 = vld [vmem:[#allocation3 + $0xe0] sm:$0xff]
        %v2596 = vld [vmem:[#allocation3 + $0xf0] sm:$0xff]
        %v2597 = vld [vmem:[#allocation3 + $0xf8] sm:$0xff]
        %v2598 = vld [vmem:[#allocation3 + $0x108] sm:$0xff]
        %v2599 = vld [vmem:[#allocation3 + $0x110] sm:$0xff]
        %v2600 = vld [vmem:[#allocation3 + $0x120] sm:$0xff]
        %v2601 = vld [vmem:[#allocation3 + $0x128] sm:$0xff]
        %v2602 = vld [vmem:[#allocation3 + $0x138] sm:$0xff]
        %v2603 = vld [vmem:[#allocation3 + $0x140] sm:$0xff]
        %v2604 = vld [vmem:[#allocation3 + $0x150] sm:$0xff]
        %v2605 = vld [vmem:[#allocation3 + $0x158] sm:$0xff]
        %v2606 = vld [vmem:[#allocation3 + $0x168] sm:$0xff]
        %v2607 = vld [vmem:[#allocation3 + $0x170] sm:$0xff]
        %2608 = vst.msk [vmem:[#allocation5] sm:$0xff] %vm350, %v2576
        %2609 = vst.msk [vmem:[#allocation5 + $0x8] sm:$0xff] %vm350, %v2577
        %2610 = vst.msk [vmem:[#allocation5 + $0x10] sm:$0xff] %vm350, %v2578
        %2611 = vst.msk [vmem:[#allocation5 + $0x18] sm:$0xff] %vm350, %v2579
        %2612 = vst.msk [vmem:[#allocation5 + $0x20] sm:$0xff] %vm350, %v2580
        %2613 = vst.msk [vmem:[#allocation5 + $0x28] sm:$0xff] %vm350, %v2581
        %2614 = vst.msk [vmem:[#allocation5 + $0x30] sm:$0xff] %vm350, %v2582
        %2615 = vst.msk [vmem:[#allocation5 + $0x38] sm:$0xff] %vm350, %v2583
        %2616 = vst.msk [vmem:[#allocation5 + $0x40] sm:$0xff] %vm350, %v2584
        %2617 = vst.msk [vmem:[#allocation5 + $0x48] sm:$0xff] %vm350, %v2585
        %2618 = vst.msk [vmem:[#allocation5 + $0x50] sm:$0xff] %vm350, %v2586
        %2619 = vst.msk [vmem:[#allocation5 + $0x58] sm:$0xff] %vm350, %v2587
        %2620 = vst.msk [vmem:[#allocation5 + $0x60] sm:$0xff] %vm350, %v2588
        %2621 = vst.msk [vmem:[#allocation5 + $0x68] sm:$0xff] %vm350, %v2589
        %2622 = vst.msk [vmem:[#allocation5 + $0x70] sm:$0xff] %vm350, %v2590
        %2623 = vst.msk [vmem:[#allocation5 + $0x78] sm:$0xff] %vm350, %v2591
        %2624 = vst.msk [vmem:[#allocation5 + $0x80] sm:$0xff] %vm350, %v2592
        %2625 = vst.msk [vmem:[#allocation5 + $0x88] sm:$0xff] %vm350, %v2593
        %2626 = vst.msk [vmem:[#allocation5 + $0x90] sm:$0xff] %vm350, %v2594
        %2627 = vst.msk [vmem:[#allocation5 + $0x98] sm:$0xff] %vm350, %v2595
        %2628 = vst.msk [vmem:[#allocation5 + $0xa0] sm:$0xff] %vm350, %v2596
        %2629 = vst.msk [vmem:[#allocation5 + $0xa8] sm:$0xff] %vm350, %v2597
        %2630 = vst.msk [vmem:[#allocation5 + $0xb0] sm:$0xff] %vm350, %v2598
        %2631 = vst.msk [vmem:[#allocation5 + $0xb8] sm:$0xff] %vm350, %v2599
        %2632 = vst.msk [vmem:[#allocation5 + $0xc0] sm:$0xff] %vm350, %v2600
        %2633 = vst.msk [vmem:[#allocation5 + $0xc8] sm:$0xff] %vm350, %v2601
        %2634 = vst.msk [vmem:[#allocation5 + $0xd0] sm:$0xff] %vm350, %v2602
        %2635 = vst.msk [vmem:[#allocation5 + $0xd8] sm:$0xff] %vm350, %v2603
        %2636 = vst.msk [vmem:[#allocation5 + $0xe0] sm:$0xff] %vm350, %v2604
        %2637 = vst.msk [vmem:[#allocation5 + $0xe8] sm:$0xff] %vm350, %v2605
        %2638 = vst.msk [vmem:[#allocation5 + $0xf0] sm:$0xff] %vm350, %v2606
        %2639 = vst.msk [vmem:[#allocation5 + $0xf8] sm:$0xff] %vm350, %v2607
        %v2640 = vld [vmem:[#allocation3 + $0x1] sm:$0xff]
        %v2641 = vld [vmem:[#allocation3 + $0x9] sm:$0xff]
        %v2642 = vld [vmem:[#allocation3 + $0x19] sm:$0xff]
        %v2643 = vld [vmem:[#allocation3 + $0x21] sm:$0xff]
        %v2644 = vld [vmem:[#allocation3 + $0x31] sm:$0xff]
        %v2645 = vld [vmem:[#allocation3 + $0x39] sm:$0xff]
        %v2646 = vld [vmem:[#allocation3 + $0x49] sm:$0xff]
        %v2647 = vld [vmem:[#allocation3 + $0x51] sm:$0xff]
        %v2648 = vld [vmem:[#allocation3 + $0x61] sm:$0xff]
        %v2649 = vld [vmem:[#allocation3 + $0x69] sm:$0xff]
        %v2650 = vld [vmem:[#allocation3 + $0x79] sm:$0xff]
        %v2651 = vld [vmem:[#allocation3 + $0x81] sm:$0xff]
        %v2652 = vld [vmem:[#allocation3 + $0x91] sm:$0xff]
        %v2653 = vld [vmem:[#allocation3 + $0x99] sm:$0xff]
        %v2654 = vld [vmem:[#allocation3 + $0xa9] sm:$0xff]
        %v2655 = vld [vmem:[#allocation3 + $0xb1] sm:$0xff]
        %v2656 = vld [vmem:[#allocation3 + $0xc1] sm:$0xff]
        %v2657 = vld [vmem:[#allocation3 + $0xc9] sm:$0xff]
        %v2658 = vld [vmem:[#allocation3 + $0xd9] sm:$0xff]
        %v2659 = vld [vmem:[#allocation3 + $0xe1] sm:$0xff]
        %v2660 = vld [vmem:[#allocation3 + $0xf1] sm:$0xff]
        %v2661 = vld [vmem:[#allocation3 + $0xf9] sm:$0xff]
        %v2662 = vld [vmem:[#allocation3 + $0x109] sm:$0xff]
        %v2663 = vld [vmem:[#allocation3 + $0x111] sm:$0xff]
        %v2664 = vld [vmem:[#allocation3 + $0x121] sm:$0xff]
        %v2665 = vld [vmem:[#allocation3 + $0x129] sm:$0xff]
        %v2666 = vld [vmem:[#allocation3 + $0x139] sm:$0xff]
        %v2667 = vld [vmem:[#allocation3 + $0x141] sm:$0xff]
        %v2668 = vld [vmem:[#allocation3 + $0x151] sm:$0xff]
        %v2669 = vld [vmem:[#allocation3 + $0x159] sm:$0xff]
        %v2670 = vld [vmem:[#allocation3 + $0x169] sm:$0xff]
        %v2671 = vld [vmem:[#allocation3 + $0x171] sm:$0xff]
        %2704 = vrot.lane.b32.xlu0 %v2640, 8
        %v2705 = vpop.permute.xlu0 %2704
        %2706 = vrot.lane.b32.xlu0 %v2641, 8
        %v2707 = vpop.permute.xlu0 %2706
        %2708 = vrot.lane.b32.xlu0 %v2642, 8
        %v2709 = vpop.permute.xlu0 %2708
        %2710 = vrot.lane.b32.xlu0 %v2643, 8
        %v2711 = vpop.permute.xlu0 %2710
        %2712 = vrot.lane.b32.xlu0 %v2644, 8
        %v2713 = vpop.permute.xlu0 %2712
        %2714 = vrot.lane.b32.xlu0 %v2645, 8
        %v2715 = vpop.permute.xlu0 %2714
        %2716 = vrot.lane.b32.xlu0 %v2646, 8
        %v2717 = vpop.permute.xlu0 %2716
        %2718 = vrot.lane.b32.xlu0 %v2647, 8
        %v2719 = vpop.permute.xlu0 %2718
        %2720 = vrot.lane.b32.xlu0 %v2648, 8
        %v2721 = vpop.permute.xlu0 %2720
        %2722 = vrot.lane.b32.xlu0 %v2649, 8
        %v2723 = vpop.permute.xlu0 %2722
        %2724 = vrot.lane.b32.xlu0 %v2650, 8
        %v2725 = vpop.permute.xlu0 %2724
        %2726 = vrot.lane.b32.xlu0 %v2651, 8
        %v2727 = vpop.permute.xlu0 %2726
        %2728 = vrot.lane.b32.xlu0 %v2652, 8
        %v2729 = vpop.permute.xlu0 %2728
        %2730 = vrot.lane.b32.xlu0 %v2653, 8
        %v2731 = vpop.permute.xlu0 %2730
        %2732 = vrot.lane.b32.xlu0 %v2654, 8
        %v2733 = vpop.permute.xlu0 %2732
        %2734 = vrot.lane.b32.xlu0 %v2655, 8
        %v2735 = vpop.permute.xlu0 %2734
        %2736 = vrot.lane.b32.xlu0 %v2656, 8
        %v2737 = vpop.permute.xlu0 %2736
        %2738 = vrot.lane.b32.xlu0 %v2657, 8
        %v2739 = vpop.permute.xlu0 %2738
        %2740 = vrot.lane.b32.xlu0 %v2658, 8
        %v2741 = vpop.permute.xlu0 %2740
        %2742 = vrot.lane.b32.xlu0 %v2659, 8
        %v2743 = vpop.permute.xlu0 %2742
        %2744 = vrot.lane.b32.xlu0 %v2660, 8
        %v2745 = vpop.permute.xlu0 %2744
        %2746 = vrot.lane.b32.xlu0 %v2661, 8
        %v2747 = vpop.permute.xlu0 %2746
        %2748 = vrot.lane.b32.xlu0 %v2662, 8
        %v2749 = vpop.permute.xlu0 %2748
        %2750 = vrot.lane.b32.xlu0 %v2663, 8
        %v2751 = vpop.permute.xlu0 %2750
        %2752 = vrot.lane.b32.xlu0 %v2664, 8
        %v2753 = vpop.permute.xlu0 %2752
        %2754 = vrot.lane.b32.xlu0 %v2665, 8
        %v2755 = vpop.permute.xlu0 %2754
        %2756 = vrot.lane.b32.xlu0 %v2666, 8
        %v2757 = vpop.permute.xlu0 %2756
        %2758 = vrot.lane.b32.xlu0 %v2667, 8
        %v2759 = vpop.permute.xlu0 %2758
        %2760 = vrot.lane.b32.xlu0 %v2668, 8
        %v2761 = vpop.permute.xlu0 %2760
        %2762 = vrot.lane.b32.xlu0 %v2669, 8
        %v2763 = vpop.permute.xlu0 %2762
        %2764 = vrot.lane.b32.xlu0 %v2670, 8
        %v2765 = vpop.permute.xlu0 %2764
        %2766 = vrot.lane.b32.xlu0 %v2671, 8
        %v2767 = vpop.permute.xlu0 %2766
        %vm2800 = vcmask 130112
        %2801 = vst.msk [vmem:[#allocation5] sm:$0xff] %vm2800, %v2705
        %2802 = vst.msk [vmem:[#allocation5 + $0x8] sm:$0xff] %vm2800, %v2707
        %2803 = vst.msk [vmem:[#allocation5 + $0x10] sm:$0xff] %vm2800, %v2709
        %2804 = vst.msk [vmem:[#allocation5 + $0x18] sm:$0xff] %vm2800, %v2711
        %2805 = vst.msk [vmem:[#allocation5 + $0x20] sm:$0xff] %vm2800, %v2713
        %2806 = vst.msk [vmem:[#allocation5 + $0x28] sm:$0xff] %vm2800, %v2715
        %2807 = vst.msk [vmem:[#allocation5 + $0x30] sm:$0xff] %vm2800, %v2717
        %2808 = vst.msk [vmem:[#allocation5 + $0x38] sm:$0xff] %vm2800, %v2719
        %2809 = vst.msk [vmem:[#allocation5 + $0x40] sm:$0xff] %vm2800, %v2721
        %2810 = vst.msk [vmem:[#allocation5 + $0x48] sm:$0xff] %vm2800, %v2723
        %2811 = vst.msk [vmem:[#allocation5 + $0x50] sm:$0xff] %vm2800, %v2725
        %2812 = vst.msk [vmem:[#allocation5 + $0x58] sm:$0xff] %vm2800, %v2727
        %2813 = vst.msk [vmem:[#allocation5 + $0x60] sm:$0xff] %vm2800, %v2729
        %2814 = vst.msk [vmem:[#allocation5 + $0x68] sm:$0xff] %vm2800, %v2731
        %2815 = vst.msk [vmem:[#allocation5 + $0x70] sm:$0xff] %vm2800, %v2733
        %2816 = vst.msk [vmem:[#allocation5 + $0x78] sm:$0xff] %vm2800, %v2735
        %2817 = vst.msk [vmem:[#allocation5 + $0x80] sm:$0xff] %vm2800, %v2737
        %2818 = vst.msk [vmem:[#allocation5 + $0x88] sm:$0xff] %vm2800, %v2739
        %2819 = vst.msk [vmem:[#allocation5 + $0x90] sm:$0xff] %vm2800, %v2741
        %2820 = vst.msk [vmem:[#allocation5 + $0x98] sm:$0xff] %vm2800, %v2743
        %2821 = vst.msk [vmem:[#allocation5 + $0xa0] sm:$0xff] %vm2800, %v2745
        %2822 = vst.msk [vmem:[#allocation5 + $0xa8] sm:$0xff] %vm2800, %v2747
        %2823 = vst.msk [vmem:[#allocation5 + $0xb0] sm:$0xff] %vm2800, %v2749
        %2824 = vst.msk [vmem:[#allocation5 + $0xb8] sm:$0xff] %vm2800, %v2751
        %2825 = vst.msk [vmem:[#allocation5 + $0xc0] sm:$0xff] %vm2800, %v2753
        %2826 = vst.msk [vmem:[#allocation5 + $0xc8] sm:$0xff] %vm2800, %v2755
        %2827 = vst.msk [vmem:[#allocation5 + $0xd0] sm:$0xff] %vm2800, %v2757
        %2828 = vst.msk [vmem:[#allocation5 + $0xd8] sm:$0xff] %vm2800, %v2759
        %2829 = vst.msk [vmem:[#allocation5 + $0xe0] sm:$0xff] %vm2800, %v2761
        %2830 = vst.msk [vmem:[#allocation5 + $0xe8] sm:$0xff] %vm2800, %v2763
        %2831 = vst.msk [vmem:[#allocation5 + $0xf0] sm:$0xff] %vm2800, %v2765
        %2832 = vst.msk [vmem:[#allocation5 + $0xf8] sm:$0xff] %vm2800, %v2767
        %v2833 = vld [vmem:[#allocation3 + $0x2] sm:$0xff]
        %v2834 = vld [vmem:[#allocation3 + $0xa] sm:$0xff]
        %v2835 = vld [vmem:[#allocation3 + $0x1a] sm:$0xff]
        %v2836 = vld [vmem:[#allocation3 + $0x22] sm:$0xff]
        %v2837 = vld [vmem:[#allocation3 + $0x32] sm:$0xff]
        %v2838 = vld [vmem:[#allocation3 + $0x3a] sm:$0xff]
        %v2839 = vld [vmem:[#allocation3 + $0x4a] sm:$0xff]
        %v2840 = vld [vmem:[#allocation3 + $0x52] sm:$0xff]
        %v2841 = vld [vmem:[#allocation3 + $0x62] sm:$0xff]
        %v2842 = vld [vmem:[#allocation3 + $0x6a] sm:$0xff]
        %v2843 = vld [vmem:[#allocation3 + $0x7a] sm:$0xff]
        %v2844 = vld [vmem:[#allocation3 + $0x82] sm:$0xff]
        %v2845 = vld [vmem:[#allocation3 + $0x92] sm:$0xff]
        %v2846 = vld [vmem:[#allocation3 + $0x9a] sm:$0xff]
        %v2847 = vld [vmem:[#allocation3 + $0xaa] sm:$0xff]
        %v2848 = vld [vmem:[#allocation3 + $0xb2] sm:$0xff]
        %v2849 = vld [vmem:[#allocation3 + $0xc2] sm:$0xff]
        %v2850 = vld [vmem:[#allocation3 + $0xca] sm:$0xff]
        %v2851 = vld [vmem:[#allocation3 + $0xda] sm:$0xff]
        %v2852 = vld [vmem:[#allocation3 + $0xe2] sm:$0xff]
        %v2853 = vld [vmem:[#allocation3 + $0xf2] sm:$0xff]
        %v2854 = vld [vmem:[#allocation3 + $0xfa] sm:$0xff]
        %v2855 = vld [vmem:[#allocation3 + $0x10a] sm:$0xff]
        %v2856 = vld [vmem:[#allocation3 + $0x112] sm:$0xff]
        %v2857 = vld [vmem:[#allocation3 + $0x122] sm:$0xff]
        %v2858 = vld [vmem:[#allocation3 + $0x12a] sm:$0xff]
        %v2859 = vld [vmem:[#allocation3 + $0x13a] sm:$0xff]
        %v2860 = vld [vmem:[#allocation3 + $0x142] sm:$0xff]
        %v2861 = vld [vmem:[#allocation3 + $0x152] sm:$0xff]
        %v2862 = vld [vmem:[#allocation3 + $0x15a] sm:$0xff]
        %v2863 = vld [vmem:[#allocation3 + $0x16a] sm:$0xff]
        %v2864 = vld [vmem:[#allocation3 + $0x172] sm:$0xff]
        %2897 = vrot.lane.b32.xlu0 %v2833, 16
        %v2898 = vpop.permute.xlu0 %2897
        %2899 = vrot.lane.b32.xlu0 %v2834, 16
        %v2900 = vpop.permute.xlu0 %2899
        %2901 = vrot.lane.b32.xlu0 %v2835, 16
        %v2902 = vpop.permute.xlu0 %2901
        %2903 = vrot.lane.b32.xlu0 %v2836, 16
        %v2904 = vpop.permute.xlu0 %2903
        %2905 = vrot.lane.b32.xlu0 %v2837, 16
        %v2906 = vpop.permute.xlu0 %2905
        %2907 = vrot.lane.b32.xlu0 %v2838, 16
        %v2908 = vpop.permute.xlu0 %2907
        %2909 = vrot.lane.b32.xlu0 %v2839, 16
        %v2910 = vpop.permute.xlu0 %2909
        %2911 = vrot.lane.b32.xlu0 %v2840, 16
        %v2912 = vpop.permute.xlu0 %2911
        %2913 = vrot.lane.b32.xlu0 %v2841, 16
        %v2914 = vpop.permute.xlu0 %2913
        %2915 = vrot.lane.b32.xlu0 %v2842, 16
        %v2916 = vpop.permute.xlu0 %2915
        %2917 = vrot.lane.b32.xlu0 %v2843, 16
        %v2918 = vpop.permute.xlu0 %2917
        %2919 = vrot.lane.b32.xlu0 %v2844, 16
        %v2920 = vpop.permute.xlu0 %2919
        %2921 = vrot.lane.b32.xlu0 %v2845, 16
        %v2922 = vpop.permute.xlu0 %2921
        %2923 = vrot.lane.b32.xlu0 %v2846, 16
        %v2924 = vpop.permute.xlu0 %2923
        %2925 = vrot.lane.b32.xlu0 %v2847, 16
        %v2926 = vpop.permute.xlu0 %2925
        %2927 = vrot.lane.b32.xlu0 %v2848, 16
        %v2928 = vpop.permute.xlu0 %2927
        %2929 = vrot.lane.b32.xlu0 %v2849, 16
        %v2930 = vpop.permute.xlu0 %2929
        %2931 = vrot.lane.b32.xlu0 %v2850, 16
        %v2932 = vpop.permute.xlu0 %2931
        %2933 = vrot.lane.b32.xlu0 %v2851, 16
        %v2934 = vpop.permute.xlu0 %2933
        %2935 = vrot.lane.b32.xlu0 %v2852, 16
        %v2936 = vpop.permute.xlu0 %2935
        %2937 = vrot.lane.b32.xlu0 %v2853, 16
        %v2938 = vpop.permute.xlu0 %2937
        %2939 = vrot.lane.b32.xlu0 %v2854, 16
        %v2940 = vpop.permute.xlu0 %2939
        %2941 = vrot.lane.b32.xlu0 %v2855, 16
        %v2942 = vpop.permute.xlu0 %2941
        %2943 = vrot.lane.b32.xlu0 %v2856, 16
        %v2944 = vpop.permute.xlu0 %2943
        %2945 = vrot.lane.b32.xlu0 %v2857, 16
        %v2946 = vpop.permute.xlu0 %2945
        %2947 = vrot.lane.b32.xlu0 %v2858, 16
        %v2948 = vpop.permute.xlu0 %2947
        %2949 = vrot.lane.b32.xlu0 %v2859, 16
        %v2950 = vpop.permute.xlu0 %2949
        %2951 = vrot.lane.b32.xlu0 %v2860, 16
        %v2952 = vpop.permute.xlu0 %2951
        %2953 = vrot.lane.b32.xlu0 %v2861, 16
        %v2954 = vpop.permute.xlu0 %2953
        %2955 = vrot.lane.b32.xlu0 %v2862, 16
        %v2956 = vpop.permute.xlu0 %2955
        %2957 = vrot.lane.b32.xlu0 %v2863, 16
        %v2958 = vpop.permute.xlu0 %2957
        %2959 = vrot.lane.b32.xlu0 %v2864, 16
        %v2960 = vpop.permute.xlu0 %2959
        %vm2993 = vcmask 195712
        %2994 = vst.msk [vmem:[#allocation5] sm:$0xff] %vm2993, %v2898
        %2995 = vst.msk [vmem:[#allocation5 + $0x8] sm:$0xff] %vm2993, %v2900
        %2996 = vst.msk [vmem:[#allocation5 + $0x10] sm:$0xff] %vm2993, %v2902
        %2997 = vst.msk [vmem:[#allocation5 + $0x18] sm:$0xff] %vm2993, %v2904
        %2998 = vst.msk [vmem:[#allocation5 + $0x20] sm:$0xff] %vm2993, %v2906
        %2999 = vst.msk [vmem:[#allocation5 + $0x28] sm:$0xff] %vm2993, %v2908
        %3000 = vst.msk [vmem:[#allocation5 + $0x30] sm:$0xff] %vm2993, %v2910
        %3001 = vst.msk [vmem:[#allocation5 + $0x38] sm:$0xff] %vm2993, %v2912
        %3002 = vst.msk [vmem:[#allocation5 + $0x40] sm:$0xff] %vm2993, %v2914
        %3003 = vst.msk [vmem:[#allocation5 + $0x48] sm:$0xff] %vm2993, %v2916
        %3004 = vst.msk [vmem:[#allocation5 + $0x50] sm:$0xff] %vm2993, %v2918
        %3005 = vst.msk [vmem:[#allocation5 + $0x58] sm:$0xff] %vm2993, %v2920
        %3006 = vst.msk [vmem:[#allocation5 + $0x60] sm:$0xff] %vm2993, %v2922
        %3007 = vst.msk [vmem:[#allocation5 + $0x68] sm:$0xff] %vm2993, %v2924
        %3008 = vst.msk [vmem:[#allocation5 + $0x70] sm:$0xff] %vm2993, %v2926
        %3009 = vst.msk [vmem:[#allocation5 + $0x78] sm:$0xff] %vm2993, %v2928
        %3010 = vst.msk [vmem:[#allocation5 + $0x80] sm:$0xff] %vm2993, %v2930
        %3011 = vst.msk [vmem:[#allocation5 + $0x88] sm:$0xff] %vm2993, %v2932
        %3012 = vst.msk [vmem:[#allocation5 + $0x90] sm:$0xff] %vm2993, %v2934
        %3013 = vst.msk [vmem:[#allocation5 + $0x98] sm:$0xff] %vm2993, %v2936
        %3014 = vst.msk [vmem:[#allocation5 + $0xa0] sm:$0xff] %vm2993, %v2938
        %3015 = vst.msk [vmem:[#allocation5 + $0xa8] sm:$0xff] %vm2993, %v2940
        %3016 = vst.msk [vmem:[#allocation5 + $0xb0] sm:$0xff] %vm2993, %v2942
        %3017 = vst.msk [vmem:[#allocation5 + $0xb8] sm:$0xff] %vm2993, %v2944
        %3018 = vst.msk [vmem:[#allocation5 + $0xc0] sm:$0xff] %vm2993, %v2946
        %3019 = vst.msk [vmem:[#allocation5 + $0xc8] sm:$0xff] %vm2993, %v2948
        %3020 = vst.msk [vmem:[#allocation5 + $0xd0] sm:$0xff] %vm2993, %v2950
        %3021 = vst.msk [vmem:[#allocation5 + $0xd8] sm:$0xff] %vm2993, %v2952
        %3022 = vst.msk [vmem:[#allocation5 + $0xe0] sm:$0xff] %vm2993, %v2954
        %3023 = vst.msk [vmem:[#allocation5 + $0xe8] sm:$0xff] %vm2993, %v2956
        %3024 = vst.msk [vmem:[#allocation5 + $0xf0] sm:$0xff] %vm2993, %v2958
        %3025 = vst.msk [vmem:[#allocation5 + $0xf8] sm:$0xff] %vm2993, %v2960
        %v3026 = vld [vmem:[%s2543] sm:$0xff]
        %v3027 = vld [vmem:[%s2543 + $0x8] sm:$0xff]
        %v3028 = vld [vmem:[%s2543 + $0x18] sm:$0xff]
        %v3029 = vld [vmem:[%s2543 + $0x20] sm:$0xff]
        %v3030 = vld [vmem:[%s2543 + $0x30] sm:$0xff]
        %v3031 = vld [vmem:[%s2543 + $0x38] sm:$0xff]
        %v3032 = vld [vmem:[%s2543 + $0x48] sm:$0xff]
        %v3033 = vld [vmem:[%s2543 + $0x50] sm:$0xff]
        %v3034 = vld [vmem:[%s2543 + $0x60] sm:$0xff]
        %v3035 = vld [vmem:[%s2543 + $0x68] sm:$0xff]
        %v3036 = vld [vmem:[%s2543 + $0x78] sm:$0xff]
        %v3037 = vld [vmem:[%s2543 + $0x80] sm:$0xff]
        %v3038 = vld [vmem:[%s2543 + $0x90] sm:$0xff]
        %v3039 = vld [vmem:[%s2543 + $0x98] sm:$0xff]
        %v3040 = vld [vmem:[%s2543 + $0xa8] sm:$0xff]
        %v3041 = vld [vmem:[%s2543 + $0xb0] sm:$0xff]
        %v3042 = vld [vmem:[%s2543 + $0xc0] sm:$0xff]
        %v3043 = vld [vmem:[%s2543 + $0xc8] sm:$0xff]
        %v3044 = vld [vmem:[%s2543 + $0xd8] sm:$0xff]
        %v3045 = vld [vmem:[%s2543 + $0xe0] sm:$0xff]
        %v3046 = vld [vmem:[%s2543 + $0xf0] sm:$0xff]
        %v3047 = vld [vmem:[%s2543 + $0xf8] sm:$0xff]
        %v3048 = vld [vmem:[%s2543 + $0x108] sm:$0xff]
        %v3049 = vld [vmem:[%s2543 + $0x110] sm:$0xff]
        %v3050 = vld [vmem:[%s2543 + $0x120] sm:$0xff]
        %v3051 = vld [vmem:[%s2543 + $0x128] sm:$0xff]
        %v3052 = vld [vmem:[%s2543 + $0x138] sm:$0xff]
        %v3053 = vld [vmem:[%s2543 + $0x140] sm:$0xff]
        %v3054 = vld [vmem:[%s2543 + $0x150] sm:$0xff]
        %v3055 = vld [vmem:[%s2543 + $0x158] sm:$0xff]
        %v3056 = vld [vmem:[%s2543 + $0x168] sm:$0xff]
        %v3057 = vld [vmem:[%s2543 + $0x170] sm:$0xff]
        %3090 = vrot.lane.b32.xlu0 %v3026, 24
        %v3091 = vpop.permute.xlu0 %3090
        %3092 = vrot.lane.b32.xlu0 %v3027, 24
        %v3093 = vpop.permute.xlu0 %3092
        %3094 = vrot.lane.b32.xlu0 %v3028, 24
        %v3095 = vpop.permute.xlu0 %3094
        %3096 = vrot.lane.b32.xlu0 %v3029, 24
        %v3097 = vpop.permute.xlu0 %3096
        %3098 = vrot.lane.b32.xlu0 %v3030, 24
        %v3099 = vpop.permute.xlu0 %3098
        %3100 = vrot.lane.b32.xlu0 %v3031, 24
        %v3101 = vpop.permute.xlu0 %3100
        %3102 = vrot.lane.b32.xlu0 %v3032, 24
        %v3103 = vpop.permute.xlu0 %3102
        %3104 = vrot.lane.b32.xlu0 %v3033, 24
        %v3105 = vpop.permute.xlu0 %3104
        %3106 = vrot.lane.b32.xlu0 %v3034, 24
        %v3107 = vpop.permute.xlu0 %3106
        %3108 = vrot.lane.b32.xlu0 %v3035, 24
        %v3109 = vpop.permute.xlu0 %3108
        %3110 = vrot.lane.b32.xlu0 %v3036, 24
        %v3111 = vpop.permute.xlu0 %3110
        %3112 = vrot.lane.b32.xlu0 %v3037, 24
        %v3113 = vpop.permute.xlu0 %3112
        %3114 = vrot.lane.b32.xlu0 %v3038, 24
        %v3115 = vpop.permute.xlu0 %3114
        %3116 = vrot.lane.b32.xlu0 %v3039, 24
        %v3117 = vpop.permute.xlu0 %3116
        %3118 = vrot.lane.b32.xlu0 %v3040, 24
        %v3119 = vpop.permute.xlu0 %3118
        %3120 = vrot.lane.b32.xlu0 %v3041, 24
        %v3121 = vpop.permute.xlu0 %3120
        %3122 = vrot.lane.b32.xlu0 %v3042, 24
        %v3123 = vpop.permute.xlu0 %3122
        %3124 = vrot.lane.b32.xlu0 %v3043, 24
        %v3125 = vpop.permute.xlu0 %3124
        %3126 = vrot.lane.b32.xlu0 %v3044, 24
        %v3127 = vpop.permute.xlu0 %3126
        %3128 = vrot.lane.b32.xlu0 %v3045, 24
        %v3129 = vpop.permute.xlu0 %3128
        %3130 = vrot.lane.b32.xlu0 %v3046, 24
        %v3131 = vpop.permute.xlu0 %3130
        %3132 = vrot.lane.b32.xlu0 %v3047, 24
        %v3133 = vpop.permute.xlu0 %3132
        %3134 = vrot.lane.b32.xlu0 %v3048, 24
        %v3135 = vpop.permute.xlu0 %3134
        %3136 = vrot.lane.b32.xlu0 %v3049, 24
        %v3137 = vpop.permute.xlu0 %3136
        %3138 = vrot.lane.b32.xlu0 %v3050, 24
        %v3139 = vpop.permute.xlu0 %3138
        %3140 = vrot.lane.b32.xlu0 %v3051, 24
        %v3141 = vpop.permute.xlu0 %3140
        %3142 = vrot.lane.b32.xlu0 %v3052, 24
        %v3143 = vpop.permute.xlu0 %3142
        %3144 = vrot.lane.b32.xlu0 %v3053, 24
        %v3145 = vpop.permute.xlu0 %3144
        %3146 = vrot.lane.b32.xlu0 %v3054, 24
        %v3147 = vpop.permute.xlu0 %3146
        %3148 = vrot.lane.b32.xlu0 %v3055, 24
        %v3149 = vpop.permute.xlu0 %3148
        %3150 = vrot.lane.b32.xlu0 %v3056, 24
        %v3151 = vpop.permute.xlu0 %3150
        %3152 = vrot.lane.b32.xlu0 %v3057, 24
        %v3153 = vpop.permute.xlu0 %3152
        %vm3186 = vcmask 261312
        %3187 = vst.msk [vmem:[#allocation5] sm:$0xff] %vm3186, %v3091
        %3188 = vst.msk [vmem:[#allocation5 + $0x8] sm:$0xff] %vm3186, %v3093
        %3189 = vst.msk [vmem:[#allocation5 + $0x10] sm:$0xff] %vm3186, %v3095
        %3190 = vst.msk [vmem:[#allocation5 + $0x18] sm:$0xff] %vm3186, %v3097
        %3191 = vst.msk [vmem:[#allocation5 + $0x20] sm:$0xff] %vm3186, %v3099
        %3192 = vst.msk [vmem:[#allocation5 + $0x28] sm:$0xff] %vm3186, %v3101
        %3193 = vst.msk [vmem:[#allocation5 + $0x30] sm:$0xff] %vm3186, %v3103
        %3194 = vst.msk [vmem:[#allocation5 + $0x38] sm:$0xff] %vm3186, %v3105
        %3195 = vst.msk [vmem:[#allocation5 + $0x40] sm:$0xff] %vm3186, %v3107
        %3196 = vst.msk [vmem:[#allocation5 + $0x48] sm:$0xff] %vm3186, %v3109
        %3197 = vst.msk [vmem:[#allocation5 + $0x50] sm:$0xff] %vm3186, %v3111
        %3198 = vst.msk [vmem:[#allocation5 + $0x58] sm:$0xff] %vm3186, %v3113
        %3199 = vst.msk [vmem:[#allocation5 + $0x60] sm:$0xff] %vm3186, %v3115
        %3200 = vst.msk [vmem:[#allocation5 + $0x68] sm:$0xff] %vm3186, %v3117
        %3201 = vst.msk [vmem:[#allocation5 + $0x70] sm:$0xff] %vm3186, %v3119
        %3202 = vst.msk [vmem:[#allocation5 + $0x78] sm:$0xff] %vm3186, %v3121
        %3203 = vst.msk [vmem:[#allocation5 + $0x80] sm:$0xff] %vm3186, %v3123
        %3204 = vst.msk [vmem:[#allocation5 + $0x88] sm:$0xff] %vm3186, %v3125
        %3205 = vst.msk [vmem:[#allocation5 + $0x90] sm:$0xff] %vm3186, %v3127
        %3206 = vst.msk [vmem:[#allocation5 + $0x98] sm:$0xff] %vm3186, %v3129
        %3207 = vst.msk [vmem:[#allocation5 + $0xa0] sm:$0xff] %vm3186, %v3131
        %3208 = vst.msk [vmem:[#allocation5 + $0xa8] sm:$0xff] %vm3186, %v3133
        %3209 = vst.msk [vmem:[#allocation5 + $0xb0] sm:$0xff] %vm3186, %v3135
        %3210 = vst.msk [vmem:[#allocation5 + $0xb8] sm:$0xff] %vm3186, %v3137
        %3211 = vst.msk [vmem:[#allocation5 + $0xc0] sm:$0xff] %vm3186, %v3139
        %3212 = vst.msk [vmem:[#allocation5 + $0xc8] sm:$0xff] %vm3186, %v3141
        %3213 = vst.msk [vmem:[#allocation5 + $0xd0] sm:$0xff] %vm3186, %v3143
        %3214 = vst.msk [vmem:[#allocation5 + $0xd8] sm:$0xff] %vm3186, %v3145
        %3215 = vst.msk [vmem:[#allocation5 + $0xe0] sm:$0xff] %vm3186, %v3147
        %3216 = vst.msk [vmem:[#allocation5 + $0xe8] sm:$0xff] %vm3186, %v3149
        %3217 = vst.msk [vmem:[#allocation5 + $0xf0] sm:$0xff] %vm3186, %v3151
        %3218 = vst.msk [vmem:[#allocation5 + $0xf8] sm:$0xff] %vm3186, %v3153
        %v3219 = vld [vmem:[%s2543 + $0x1] sm:$0xff]
        %v3220 = vld [vmem:[%s2543 + $0x9] sm:$0xff]
        %v3221 = vld [vmem:[%s2543 + $0x19] sm:$0xff]
        %v3222 = vld [vmem:[%s2543 + $0x21] sm:$0xff]
        %v3223 = vld [vmem:[%s2543 + $0x31] sm:$0xff]
        %v3224 = vld [vmem:[%s2543 + $0x39] sm:$0xff]
        %v3225 = vld [vmem:[%s2543 + $0x49] sm:$0xff]
        %v3226 = vld [vmem:[%s2543 + $0x51] sm:$0xff]
        %v3227 = vld [vmem:[%s2543 + $0x61] sm:$0xff]
        %v3228 = vld [vmem:[%s2543 + $0x69] sm:$0xff]
        %v3229 = vld [vmem:[%s2543 + $0x79] sm:$0xff]
        %v3230 = vld [vmem:[%s2543 + $0x81] sm:$0xff]
        %v3231 = vld [vmem:[%s2543 + $0x91] sm:$0xff]
        %v3232 = vld [vmem:[%s2543 + $0x99] sm:$0xff]
        %v3233 = vld [vmem:[%s2543 + $0xa9] sm:$0xff]
        %v3234 = vld [vmem:[%s2543 + $0xb1] sm:$0xff]
        %v3235 = vld [vmem:[%s2543 + $0xc1] sm:$0xff]
        %v3236 = vld [vmem:[%s2543 + $0xc9] sm:$0xff]
        %v3237 = vld [vmem:[%s2543 + $0xd9] sm:$0xff]
        %v3238 = vld [vmem:[%s2543 + $0xe1] sm:$0xff]
        %v3239 = vld [vmem:[%s2543 + $0xf1] sm:$0xff]
        %v3240 = vld [vmem:[%s2543 + $0xf9] sm:$0xff]
        %v3241 = vld [vmem:[%s2543 + $0x109] sm:$0xff]
        %v3242 = vld [vmem:[%s2543 + $0x111] sm:$0xff]
        %v3243 = vld [vmem:[%s2543 + $0x121] sm:$0xff]
        %v3244 = vld [vmem:[%s2543 + $0x129] sm:$0xff]
        %v3245 = vld [vmem:[%s2543 + $0x139] sm:$0xff]
        %v3246 = vld [vmem:[%s2543 + $0x141] sm:$0xff]
        %v3247 = vld [vmem:[%s2543 + $0x151] sm:$0xff]
        %v3248 = vld [vmem:[%s2543 + $0x159] sm:$0xff]
        %v3249 = vld [vmem:[%s2543 + $0x169] sm:$0xff]
        %v3250 = vld [vmem:[%s2543 + $0x171] sm:$0xff]
        %3283 = vrot.lane.b32.xlu0 %v3219, 32
        %v3284 = vpop.permute.xlu0 %3283
        %3285 = vrot.lane.b32.xlu0 %v3220, 32
        %v3286 = vpop.permute.xlu0 %3285
        %3287 = vrot.lane.b32.xlu0 %v3221, 32
        %v3288 = vpop.permute.xlu0 %3287
        %3289 = vrot.lane.b32.xlu0 %v3222, 32
        %v3290 = vpop.permute.xlu0 %3289
        %3291 = vrot.lane.b32.xlu0 %v3223, 32
        %v3292 = vpop.permute.xlu0 %3291
        %3293 = vrot.lane.b32.xlu0 %v3224, 32
        %v3294 = vpop.permute.xlu0 %3293
        %3295 = vrot.lane.b32.xlu0 %v3225, 32
        %v3296 = vpop.permute.xlu0 %3295
        %3297 = vrot.lane.b32.xlu0 %v3226, 32
        %v3298 = vpop.permute.xlu0 %3297
        %3299 = vrot.lane.b32.xlu0 %v3227, 32
        %v3300 = vpop.permute.xlu0 %3299
        %3301 = vrot.lane.b32.xlu0 %v3228, 32
        %v3302 = vpop.permute.xlu0 %3301
        %3303 = vrot.lane.b32.xlu0 %v3229, 32
        %v3304 = vpop.permute.xlu0 %3303
        %3305 = vrot.lane.b32.xlu0 %v3230, 32
        %v3306 = vpop.permute.xlu0 %3305
        %3307 = vrot.lane.b32.xlu0 %v3231, 32
        %v3308 = vpop.permute.xlu0 %3307
        %3309 = vrot.lane.b32.xlu0 %v3232, 32
        %v3310 = vpop.permute.xlu0 %3309
        %3311 = vrot.lane.b32.xlu0 %v3233, 32
        %v3312 = vpop.permute.xlu0 %3311
        %3313 = vrot.lane.b32.xlu0 %v3234, 32
        %v3314 = vpop.permute.xlu0 %3313
        %3315 = vrot.lane.b32.xlu0 %v3235, 32
        %v3316 = vpop.permute.xlu0 %3315
        %3317 = vrot.lane.b32.xlu0 %v3236, 32
        %v3318 = vpop.permute.xlu0 %3317
        %3319 = vrot.lane.b32.xlu0 %v3237, 32
        %v3320 = vpop.permute.xlu0 %3319
        %3321 = vrot.lane.b32.xlu0 %v3238, 32
        %v3322 = vpop.permute.xlu0 %3321
        %3323 = vrot.lane.b32.xlu0 %v3239, 32
        %v3324 = vpop.permute.xlu0 %3323
        %3325 = vrot.lane.b32.xlu0 %v3240, 32
        %v3326 = vpop.permute.xlu0 %3325
        %3327 = vrot.lane.b32.xlu0 %v3241, 32
        %v3328 = vpop.permute.xlu0 %3327
        %3329 = vrot.lane.b32.xlu0 %v3242, 32
        %v3330 = vpop.permute.xlu0 %3329
        %3331 = vrot.lane.b32.xlu0 %v3243, 32
        %v3332 = vpop.permute.xlu0 %3331
        %3333 = vrot.lane.b32.xlu0 %v3244, 32
        %v3334 = vpop.permute.xlu0 %3333
        %3335 = vrot.lane.b32.xlu0 %v3245, 32
        %v3336 = vpop.permute.xlu0 %3335
        %3337 = vrot.lane.b32.xlu0 %v3246, 32
        %v3338 = vpop.permute.xlu0 %3337
        %3339 = vrot.lane.b32.xlu0 %v3247, 32
        %v3340 = vpop.permute.xlu0 %3339
        %3341 = vrot.lane.b32.xlu0 %v3248, 32
        %v3342 = vpop.permute.xlu0 %3341
        %3343 = vrot.lane.b32.xlu0 %v3249, 32
        %v3344 = vpop.permute.xlu0 %3343
        %3345 = vrot.lane.b32.xlu0 %v3250, 32
        %v3346 = vpop.permute.xlu0 %3345
        %vm3379 = vcmask 326912
        %3380 = vst.msk [vmem:[#allocation5] sm:$0xff] %vm3379, %v3284
        %3381 = vst.msk [vmem:[#allocation5 + $0x8] sm:$0xff] %vm3379, %v3286
        %3382 = vst.msk [vmem:[#allocation5 + $0x10] sm:$0xff] %vm3379, %v3288
        %3383 = vst.msk [vmem:[#allocation5 + $0x18] sm:$0xff] %vm3379, %v3290
        %3384 = vst.msk [vmem:[#allocation5 + $0x20] sm:$0xff] %vm3379, %v3292
        %3385 = vst.msk [vmem:[#allocation5 + $0x28] sm:$0xff] %vm3379, %v3294
        %3386 = vst.msk [vmem:[#allocation5 + $0x30] sm:$0xff] %vm3379, %v3296
        %3387 = vst.msk [vmem:[#allocation5 + $0x38] sm:$0xff] %vm3379, %v3298
        %3388 = vst.msk [vmem:[#allocation5 + $0x40] sm:$0xff] %vm3379, %v3300
        %3389 = vst.msk [vmem:[#allocation5 + $0x48] sm:$0xff] %vm3379, %v3302
        %3390 = vst.msk [vmem:[#allocation5 + $0x50] sm:$0xff] %vm3379, %v3304
        %3391 = vst.msk [vmem:[#allocation5 + $0x58] sm:$0xff] %vm3379, %v3306
        %3392 = vst.msk [vmem:[#allocation5 + $0x60] sm:$0xff] %vm3379, %v3308
        %3393 = vst.msk [vmem:[#allocation5 + $0x68] sm:$0xff] %vm3379, %v3310
        %3394 = vst.msk [vmem:[#allocation5 + $0x70] sm:$0xff] %vm3379, %v3312
        %3395 = vst.msk [vmem:[#allocation5 + $0x78] sm:$0xff] %vm3379, %v3314
        %3396 = vst.msk [vmem:[#allocation5 + $0x80] sm:$0xff] %vm3379, %v3316
        %3397 = vst.msk [vmem:[#allocation5 + $0x88] sm:$0xff] %vm3379, %v3318
        %3398 = vst.msk [vmem:[#allocation5 + $0x90] sm:$0xff] %vm3379, %v3320
        %3399 = vst.msk [vmem:[#allocation5 + $0x98] sm:$0xff] %vm3379, %v3322
        %3400 = vst.msk [vmem:[#allocation5 + $0xa0] sm:$0xff] %vm3379, %v3324
        %3401 = vst.msk [vmem:[#allocation5 + $0xa8] sm:$0xff] %vm3379, %v3326
        %3402 = vst.msk [vmem:[#allocation5 + $0xb0] sm:$0xff] %vm3379, %v3328
        %3403 = vst.msk [vmem:[#allocation5 + $0xb8] sm:$0xff] %vm3379, %v3330
        %3404 = vst.msk [vmem:[#allocation5 + $0xc0] sm:$0xff] %vm3379, %v3332
        %3405 = vst.msk [vmem:[#allocation5 + $0xc8] sm:$0xff] %vm3379, %v3334
        %3406 = vst.msk [vmem:[#allocation5 + $0xd0] sm:$0xff] %vm3379, %v3336
        %3407 = vst.msk [vmem:[#allocation5 + $0xd8] sm:$0xff] %vm3379, %v3338
        %3408 = vst.msk [vmem:[#allocation5 + $0xe0] sm:$0xff] %vm3379, %v3340
        %3409 = vst.msk [vmem:[#allocation5 + $0xe8] sm:$0xff] %vm3379, %v3342
        %3410 = vst.msk [vmem:[#allocation5 + $0xf0] sm:$0xff] %vm3379, %v3344
        %3411 = vst.msk [vmem:[#allocation5 + $0xf8] sm:$0xff] %vm3379, %v3346
        %v3412 = vld [vmem:[%s2543 + $0x2] sm:$0xff]
        %v3413 = vld [vmem:[%s2543 + $0xa] sm:$0xff]
        %v3414 = vld [vmem:[%s2543 + $0x1a] sm:$0xff]
        %v3415 = vld [vmem:[%s2543 + $0x22] sm:$0xff]
        %v3416 = vld [vmem:[%s2543 + $0x32] sm:$0xff]
        %v3417 = vld [vmem:[%s2543 + $0x3a] sm:$0xff]
        %v3418 = vld [vmem:[%s2543 + $0x4a] sm:$0xff]
        %v3419 = vld [vmem:[%s2543 + $0x52] sm:$0xff]
        %v3420 = vld [vmem:[%s2543 + $0x62] sm:$0xff]
        %v3421 = vld [vmem:[%s2543 + $0x6a] sm:$0xff]
        %v3422 = vld [vmem:[%s2543 + $0x7a] sm:$0xff]
        %v3423 = vld [vmem:[%s2543 + $0x82] sm:$0xff]
        %v3424 = vld [vmem:[%s2543 + $0x92] sm:$0xff]
        %v3425 = vld [vmem:[%s2543 + $0x9a] sm:$0xff]
        %v3426 = vld [vmem:[%s2543 + $0xaa] sm:$0xff]
        %v3427 = vld [vmem:[%s2543 + $0xb2] sm:$0xff]
        %v3428 = vld [vmem:[%s2543 + $0xc2] sm:$0xff]
        %v3429 = vld [vmem:[%s2543 + $0xca] sm:$0xff]
        %v3430 = vld [vmem:[%s2543 + $0xda] sm:$0xff]
        %v3431 = vld [vmem:[%s2543 + $0xe2] sm:$0xff]
        %v3432 = vld [vmem:[%s2543 + $0xf2] sm:$0xff]
        %v3433 = vld [vmem:[%s2543 + $0xfa] sm:$0xff]
        %v3434 = vld [vmem:[%s2543 + $0x10a] sm:$0xff]
        %v3435 = vld [vmem:[%s2543 + $0x112] sm:$0xff]
        %v3436 = vld [vmem:[%s2543 + $0x122] sm:$0xff]
        %v3437 = vld [vmem:[%s2543 + $0x12a] sm:$0xff]
        %v3438 = vld [vmem:[%s2543 + $0x13a] sm:$0xff]
        %v3439 = vld [vmem:[%s2543 + $0x142] sm:$0xff]
        %v3440 = vld [vmem:[%s2543 + $0x152] sm:$0xff]
        %v3441 = vld [vmem:[%s2543 + $0x15a] sm:$0xff]
        %v3442 = vld [vmem:[%s2543 + $0x16a] sm:$0xff]
        %v3443 = vld [vmem:[%s2543 + $0x172] sm:$0xff]
        %3476 = vrot.lane.b32.xlu0 %v3412, 40
        %v3477 = vpop.permute.xlu0 %3476
        %3478 = vrot.lane.b32.xlu0 %v3413, 40
        %v3479 = vpop.permute.xlu0 %3478
        %3480 = vrot.lane.b32.xlu0 %v3414, 40
        %v3481 = vpop.permute.xlu0 %3480
        %3482 = vrot.lane.b32.xlu0 %v3415, 40
        %v3483 = vpop.permute.xlu0 %3482
        %3484 = vrot.lane.b32.xlu0 %v3416, 40
        %v3485 = vpop.permute.xlu0 %3484
        %3486 = vrot.lane.b32.xlu0 %v3417, 40
        %v3487 = vpop.permute.xlu0 %3486
        %3488 = vrot.lane.b32.xlu0 %v3418, 40
        %v3489 = vpop.permute.xlu0 %3488
        %3490 = vrot.lane.b32.xlu0 %v3419, 40
        %v3491 = vpop.permute.xlu0 %3490
        %3492 = vrot.lane.b32.xlu0 %v3420, 40
        %v3493 = vpop.permute.xlu0 %3492
        %3494 = vrot.lane.b32.xlu0 %v3421, 40
        %v3495 = vpop.permute.xlu0 %3494
        %3496 = vrot.lane.b32.xlu0 %v3422, 40
        %v3497 = vpop.permute.xlu0 %3496
        %3498 = vrot.lane.b32.xlu0 %v3423, 40
        %v3499 = vpop.permute.xlu0 %3498
        %3500 = vrot.lane.b32.xlu0 %v3424, 40
        %v3501 = vpop.permute.xlu0 %3500
        %3502 = vrot.lane.b32.xlu0 %v3425, 40
        %v3503 = vpop.permute.xlu0 %3502
        %3504 = vrot.lane.b32.xlu0 %v3426, 40
        %v3505 = vpop.permute.xlu0 %3504
        %3506 = vrot.lane.b32.xlu0 %v3427, 40
        %v3507 = vpop.permute.xlu0 %3506
        %3508 = vrot.lane.b32.xlu0 %v3428, 40
        %v3509 = vpop.permute.xlu0 %3508
        %3510 = vrot.lane.b32.xlu0 %v3429, 40
        %v3511 = vpop.permute.xlu0 %3510
        %3512 = vrot.lane.b32.xlu0 %v3430, 40
        %v3513 = vpop.permute.xlu0 %3512
        %3514 = vrot.lane.b32.xlu0 %v3431, 40
        %v3515 = vpop.permute.xlu0 %3514
        %3516 = vrot.lane.b32.xlu0 %v3432, 40
        %v3517 = vpop.permute.xlu0 %3516
        %3518 = vrot.lane.b32.xlu0 %v3433, 40
        %v3519 = vpop.permute.xlu0 %3518
        %3520 = vrot.lane.b32.xlu0 %v3434, 40
        %v3521 = vpop.permute.xlu0 %3520
        %3522 = vrot.lane.b32.xlu0 %v3435, 40
        %v3523 = vpop.permute.xlu0 %3522
        %3524 = vrot.lane.b32.xlu0 %v3436, 40
        %v3525 = vpop.permute.xlu0 %3524
        %3526 = vrot.lane.b32.xlu0 %v3437, 40
        %v3527 = vpop.permute.xlu0 %3526
        %3528 = vrot.lane.b32.xlu0 %v3438, 40
        %v3529 = vpop.permute.xlu0 %3528
        %3530 = vrot.lane.b32.xlu0 %v3439, 40
        %v3531 = vpop.permute.xlu0 %3530
        %3532 = vrot.lane.b32.xlu0 %v3440, 40
        %v3533 = vpop.permute.xlu0 %3532
        %3534 = vrot.lane.b32.xlu0 %v3441, 40
        %v3535 = vpop.permute.xlu0 %3534
        %3536 = vrot.lane.b32.xlu0 %v3442, 40
        %v3537 = vpop.permute.xlu0 %3536
        %3538 = vrot.lane.b32.xlu0 %v3443, 40
        %v3539 = vpop.permute.xlu0 %3538
        %vm3572 = vcmask 392512
        %3573 = vst.msk [vmem:[#allocation5] sm:$0xff] %vm3572, %v3477
        %3574 = vst.msk [vmem:[#allocation5 + $0x8] sm:$0xff] %vm3572, %v3479
        %3575 = vst.msk [vmem:[#allocation5 + $0x10] sm:$0xff] %vm3572, %v3481
        %3576 = vst.msk [vmem:[#allocation5 + $0x18] sm:$0xff] %vm3572, %v3483
        %3577 = vst.msk [vmem:[#allocation5 + $0x20] sm:$0xff] %vm3572, %v3485
        %3578 = vst.msk [vmem:[#allocation5 + $0x28] sm:$0xff] %vm3572, %v3487
        %3579 = vst.msk [vmem:[#allocation5 + $0x30] sm:$0xff] %vm3572, %v3489
        %3580 = vst.msk [vmem:[#allocation5 + $0x38] sm:$0xff] %vm3572, %v3491
        %3581 = vst.msk [vmem:[#allocation5 + $0x40] sm:$0xff] %vm3572, %v3493
        %3582 = vst.msk [vmem:[#allocation5 + $0x48] sm:$0xff] %vm3572, %v3495
        %3583 = vst.msk [vmem:[#allocation5 + $0x50] sm:$0xff] %vm3572, %v3497
        %3584 = vst.msk [vmem:[#allocation5 + $0x58] sm:$0xff] %vm3572, %v3499
        %3585 = vst.msk [vmem:[#allocation5 + $0x60] sm:$0xff] %vm3572, %v3501
        %3586 = vst.msk [vmem:[#allocation5 + $0x68] sm:$0xff] %vm3572, %v3503
        %3587 = vst.msk [vmem:[#allocation5 + $0x70] sm:$0xff] %vm3572, %v3505
        %3588 = vst.msk [vmem:[#allocation5 + $0x78] sm:$0xff] %vm3572, %v3507
        %3589 = vst.msk [vmem:[#allocation5 + $0x80] sm:$0xff] %vm3572, %v3509
        %3590 = vst.msk [vmem:[#allocation5 + $0x88] sm:$0xff] %vm3572, %v3511
        %3591 = vst.msk [vmem:[#allocation5 + $0x90] sm:$0xff] %vm3572, %v3513
        %3592 = vst.msk [vmem:[#allocation5 + $0x98] sm:$0xff] %vm3572, %v3515
        %3593 = vst.msk [vmem:[#allocation5 + $0xa0] sm:$0xff] %vm3572, %v3517
        %3594 = vst.msk [vmem:[#allocation5 + $0xa8] sm:$0xff] %vm3572, %v3519
        %3595 = vst.msk [vmem:[#allocation5 + $0xb0] sm:$0xff] %vm3572, %v3521
        %3596 = vst.msk [vmem:[#allocation5 + $0xb8] sm:$0xff] %vm3572, %v3523
        %3597 = vst.msk [vmem:[#allocation5 + $0xc0] sm:$0xff] %vm3572, %v3525
        %3598 = vst.msk [vmem:[#allocation5 + $0xc8] sm:$0xff] %vm3572, %v3527
        %3599 = vst.msk [vmem:[#allocation5 + $0xd0] sm:$0xff] %vm3572, %v3529
        %3600 = vst.msk [vmem:[#allocation5 + $0xd8] sm:$0xff] %vm3572, %v3531
        %3601 = vst.msk [vmem:[#allocation5 + $0xe0] sm:$0xff] %vm3572, %v3533
        %3602 = vst.msk [vmem:[#allocation5 + $0xe8] sm:$0xff] %vm3572, %v3535
        %3603 = vst.msk [vmem:[#allocation5 + $0xf0] sm:$0xff] %vm3572, %v3537
        %3604 = vst.msk [vmem:[#allocation5 + $0xf8] sm:$0xff] %vm3572, %v3539
        %s3605 = scalar_lea.vmem [#allocation3], 48
        %v3606 = vld [vmem:[%s3605] sm:$0xff]
        %v3607 = vld [vmem:[%s3605 + $0x8] sm:$0xff]
        %v3608 = vld [vmem:[%s3605 + $0x18] sm:$0xff]
        %v3609 = vld [vmem:[%s3605 + $0x20] sm:$0xff]
        %v3610 = vld [vmem:[%s3605 + $0x30] sm:$0xff]
        %v3611 = vld [vmem:[%s3605 + $0x38] sm:$0xff]
        %v3612 = vld [vmem:[%s3605 + $0x48] sm:$0xff]
        %v3613 = vld [vmem:[%s3605 + $0x50] sm:$0xff]
        %v3614 = vld [vmem:[%s3605 + $0x60] sm:$0xff]
        %v3615 = vld [vmem:[%s3605 + $0x68] sm:$0xff]
        %v3616 = vld [vmem:[%s3605 + $0x78] sm:$0xff]
        %v3617 = vld [vmem:[%s3605 + $0x80] sm:$0xff]
        %v3618 = vld [vmem:[%s3605 + $0x90] sm:$0xff]
        %v3619 = vld [vmem:[%s3605 + $0x98] sm:$0xff]
        %v3620 = vld [vmem:[%s3605 + $0xa8] sm:$0xff]
        %v3621 = vld [vmem:[%s3605 + $0xb0] sm:$0xff]
        %v3622 = vld [vmem:[%s3605 + $0xc0] sm:$0xff]
        %v3623 = vld [vmem:[%s3605 + $0xc8] sm:$0xff]
        %v3624 = vld [vmem:[%s3605 + $0xd8] sm:$0xff]
        %v3625 = vld [vmem:[%s3605 + $0xe0] sm:$0xff]
        %v3626 = vld [vmem:[%s3605 + $0xf0] sm:$0xff]
        %v3627 = vld [vmem:[%s3605 + $0xf8] sm:$0xff]
        %v3628 = vld [vmem:[%s3605 + $0x108] sm:$0xff]
        %v3629 = vld [vmem:[%s3605 + $0x110] sm:$0xff]
        %v3630 = vld [vmem:[%s3605 + $0x120] sm:$0xff]
        %v3631 = vld [vmem:[%s3605 + $0x128] sm:$0xff]
        %v3632 = vld [vmem:[%s3605 + $0x138] sm:$0xff]
        %v3633 = vld [vmem:[%s3605 + $0x140] sm:$0xff]
        %v3634 = vld [vmem:[%s3605 + $0x150] sm:$0xff]
        %v3635 = vld [vmem:[%s3605 + $0x158] sm:$0xff]
        %v3636 = vld [vmem:[%s3605 + $0x168] sm:$0xff]
        %v3637 = vld [vmem:[%s3605 + $0x170] sm:$0xff]
        %3670 = vrot.lane.b32.xlu0 %v3606, 48
        %v3671 = vpop.permute.xlu0 %3670
        %3672 = vrot.lane.b32.xlu0 %v3607, 48
        %v3673 = vpop.permute.xlu0 %3672
        %3674 = vrot.lane.b32.xlu0 %v3608, 48
        %v3675 = vpop.permute.xlu0 %3674
        %3676 = vrot.lane.b32.xlu0 %v3609, 48
        %v3677 = vpop.permute.xlu0 %3676
        %3678 = vrot.lane.b32.xlu0 %v3610, 48
        %v3679 = vpop.permute.xlu0 %3678
        %3680 = vrot.lane.b32.xlu0 %v3611, 48
        %v3681 = vpop.permute.xlu0 %3680
        %3682 = vrot.lane.b32.xlu0 %v3612, 48
        %v3683 = vpop.permute.xlu0 %3682
        %3684 = vrot.lane.b32.xlu0 %v3613, 48
        %v3685 = vpop.permute.xlu0 %3684
        %3686 = vrot.lane.b32.xlu0 %v3614, 48
        %v3687 = vpop.permute.xlu0 %3686
        %3688 = vrot.lane.b32.xlu0 %v3615, 48
        %v3689 = vpop.permute.xlu0 %3688
        %3690 = vrot.lane.b32.xlu0 %v3616, 48
        %v3691 = vpop.permute.xlu0 %3690
        %3692 = vrot.lane.b32.xlu0 %v3617, 48
        %v3693 = vpop.permute.xlu0 %3692
        %3694 = vrot.lane.b32.xlu0 %v3618, 48
        %v3695 = vpop.permute.xlu0 %3694
        %3696 = vrot.lane.b32.xlu0 %v3619, 48
        %v3697 = vpop.permute.xlu0 %3696
        %3698 = vrot.lane.b32.xlu0 %v3620, 48
        %v3699 = vpop.permute.xlu0 %3698
        %3700 = vrot.lane.b32.xlu0 %v3621, 48
        %v3701 = vpop.permute.xlu0 %3700
        %3702 = vrot.lane.b32.xlu0 %v3622, 48
        %v3703 = vpop.permute.xlu0 %3702
        %3704 = vrot.lane.b32.xlu0 %v3623, 48
        %v3705 = vpop.permute.xlu0 %3704
        %3706 = vrot.lane.b32.xlu0 %v3624, 48
        %v3707 = vpop.permute.xlu0 %3706
        %3708 = vrot.lane.b32.xlu0 %v3625, 48
        %v3709 = vpop.permute.xlu0 %3708
        %3710 = vrot.lane.b32.xlu0 %v3626, 48
        %v3711 = vpop.permute.xlu0 %3710
        %3712 = vrot.lane.b32.xlu0 %v3627, 48
        %v3713 = vpop.permute.xlu0 %3712
        %3714 = vrot.lane.b32.xlu0 %v3628, 48
        %v3715 = vpop.permute.xlu0 %3714
        %3716 = vrot.lane.b32.xlu0 %v3629, 48
        %v3717 = vpop.permute.xlu0 %3716
        %3718 = vrot.lane.b32.xlu0 %v3630, 48
        %v3719 = vpop.permute.xlu0 %3718
        %3720 = vrot.lane.b32.xlu0 %v3631, 48
        %v3721 = vpop.permute.xlu0 %3720
        %3722 = vrot.lane.b32.xlu0 %v3632, 48
        %v3723 = vpop.permute.xlu0 %3722
        %3724 = vrot.lane.b32.xlu0 %v3633, 48
        %v3725 = vpop.permute.xlu0 %3724
        %3726 = vrot.lane.b32.xlu0 %v3634, 48
        %v3727 = vpop.permute.xlu0 %3726
        %3728 = vrot.lane.b32.xlu0 %v3635, 48
        %v3729 = vpop.permute.xlu0 %3728
        %3730 = vrot.lane.b32.xlu0 %v3636, 48
        %v3731 = vpop.permute.xlu0 %3730
        %3732 = vrot.lane.b32.xlu0 %v3637, 48
        %v3733 = vpop.permute.xlu0 %3732
        %vm3766 = vcmask 458112
        %3767 = vst.msk [vmem:[#allocation5] sm:$0xff] %vm3766, %v3671
        %3768 = vst.msk [vmem:[#allocation5 + $0x8] sm:$0xff] %vm3766, %v3673
        %3769 = vst.msk [vmem:[#allocation5 + $0x10] sm:$0xff] %vm3766, %v3675
        %3770 = vst.msk [vmem:[#allocation5 + $0x18] sm:$0xff] %vm3766, %v3677
        %3771 = vst.msk [vmem:[#allocation5 + $0x20] sm:$0xff] %vm3766, %v3679
        %3772 = vst.msk [vmem:[#allocation5 + $0x28] sm:$0xff] %vm3766, %v3681
        %3773 = vst.msk [vmem:[#allocation5 + $0x30] sm:$0xff] %vm3766, %v3683
        %3774 = vst.msk [vmem:[#allocation5 + $0x38] sm:$0xff] %vm3766, %v3685
        %3775 = vst.msk [vmem:[#allocation5 + $0x40] sm:$0xff] %vm3766, %v3687
        %3776 = vst.msk [vmem:[#allocation5 + $0x48] sm:$0xff] %vm3766, %v3689
        %3777 = vst.msk [vmem:[#allocation5 + $0x50] sm:$0xff] %vm3766, %v3691
        %3778 = vst.msk [vmem:[#allocation5 + $0x58] sm:$0xff] %vm3766, %v3693
        %3779 = vst.msk [vmem:[#allocation5 + $0x60] sm:$0xff] %vm3766, %v3695
        %3780 = vst.msk [vmem:[#allocation5 + $0x68] sm:$0xff] %vm3766, %v3697
        %3781 = vst.msk [vmem:[#allocation5 + $0x70] sm:$0xff] %vm3766, %v3699
        %3782 = vst.msk [vmem:[#allocation5 + $0x78] sm:$0xff] %vm3766, %v3701
        %3783 = vst.msk [vmem:[#allocation5 + $0x80] sm:$0xff] %vm3766, %v3703
        %3784 = vst.msk [vmem:[#allocation5 + $0x88] sm:$0xff] %vm3766, %v3705
        %3785 = vst.msk [vmem:[#allocation5 + $0x90] sm:$0xff] %vm3766, %v3707
        %3786 = vst.msk [vmem:[#allocation5 + $0x98] sm:$0xff] %vm3766, %v3709
        %3787 = vst.msk [vmem:[#allocation5 + $0xa0] sm:$0xff] %vm3766, %v3711
        %3788 = vst.msk [vmem:[#allocation5 + $0xa8] sm:$0xff] %vm3766, %v3713
        %3789 = vst.msk [vmem:[#allocation5 + $0xb0] sm:$0xff] %vm3766, %v3715
        %3790 = vst.msk [vmem:[#allocation5 + $0xb8] sm:$0xff] %vm3766, %v3717
        %3791 = vst.msk [vmem:[#allocation5 + $0xc0] sm:$0xff] %vm3766, %v3719
        %3792 = vst.msk [vmem:[#allocation5 + $0xc8] sm:$0xff] %vm3766, %v3721
        %3793 = vst.msk [vmem:[#allocation5 + $0xd0] sm:$0xff] %vm3766, %v3723
        %3794 = vst.msk [vmem:[#allocation5 + $0xd8] sm:$0xff] %vm3766, %v3725
        %3795 = vst.msk [vmem:[#allocation5 + $0xe0] sm:$0xff] %vm3766, %v3727
        %3796 = vst.msk [vmem:[#allocation5 + $0xe8] sm:$0xff] %vm3766, %v3729
        %3797 = vst.msk [vmem:[#allocation5 + $0xf0] sm:$0xff] %vm3766, %v3731
        %3798 = vst.msk [vmem:[#allocation5 + $0xf8] sm:$0xff] %vm3766, %v3733
        %v3799 = vld [vmem:[%s3605 + $0x1] sm:$0xff]
        %v3800 = vld [vmem:[%s3605 + $0x9] sm:$0xff]
        %v3801 = vld [vmem:[%s3605 + $0x19] sm:$0xff]
        %v3802 = vld [vmem:[%s3605 + $0x21] sm:$0xff]
        %v3803 = vld [vmem:[%s3605 + $0x31] sm:$0xff]
        %v3804 = vld [vmem:[%s3605 + $0x39] sm:$0xff]
        %v3805 = vld [vmem:[%s3605 + $0x49] sm:$0xff]
        %v3806 = vld [vmem:[%s3605 + $0x51] sm:$0xff]
        %v3807 = vld [vmem:[%s3605 + $0x61] sm:$0xff]
        %v3808 = vld [vmem:[%s3605 + $0x69] sm:$0xff]
        %v3809 = vld [vmem:[%s3605 + $0x79] sm:$0xff]
        %v3810 = vld [vmem:[%s3605 + $0x81] sm:$0xff]
        %v3811 = vld [vmem:[%s3605 + $0x91] sm:$0xff]
        %v3812 = vld [vmem:[%s3605 + $0x99] sm:$0xff]
        %v3813 = vld [vmem:[%s3605 + $0xa9] sm:$0xff]
        %v3814 = vld [vmem:[%s3605 + $0xb1] sm:$0xff]
        %v3815 = vld [vmem:[%s3605 + $0xc1] sm:$0xff]
        %v3816 = vld [vmem:[%s3605 + $0xc9] sm:$0xff]
        %v3817 = vld [vmem:[%s3605 + $0xd9] sm:$0xff]
        %v3818 = vld [vmem:[%s3605 + $0xe1] sm:$0xff]
        %v3819 = vld [vmem:[%s3605 + $0xf1] sm:$0xff]
        %v3820 = vld [vmem:[%s3605 + $0xf9] sm:$0xff]
        %v3821 = vld [vmem:[%s3605 + $0x109] sm:$0xff]
        %v3822 = vld [vmem:[%s3605 + $0x111] sm:$0xff]
        %v3823 = vld [vmem:[%s3605 + $0x121] sm:$0xff]
        %v3824 = vld [vmem:[%s3605 + $0x129] sm:$0xff]
        %v3825 = vld [vmem:[%s3605 + $0x139] sm:$0xff]
        %v3826 = vld [vmem:[%s3605 + $0x141] sm:$0xff]
        %v3827 = vld [vmem:[%s3605 + $0x151] sm:$0xff]
        %v3828 = vld [vmem:[%s3605 + $0x159] sm:$0xff]
        %v3829 = vld [vmem:[%s3605 + $0x169] sm:$0xff]
        %v3830 = vld [vmem:[%s3605 + $0x171] sm:$0xff]
        %3863 = vrot.lane.b32.xlu0 %v3799, 56
        %v3864 = vpop.permute.xlu0 %3863
        %3865 = vrot.lane.b32.xlu0 %v3800, 56
        %v3866 = vpop.permute.xlu0 %3865
        %3867 = vrot.lane.b32.xlu0 %v3801, 56
        %v3868 = vpop.permute.xlu0 %3867
        %3869 = vrot.lane.b32.xlu0 %v3802, 56
        %v3870 = vpop.permute.xlu0 %3869
        %3871 = vrot.lane.b32.xlu0 %v3803, 56
        %v3872 = vpop.permute.xlu0 %3871
        %3873 = vrot.lane.b32.xlu0 %v3804, 56
        %v3874 = vpop.permute.xlu0 %3873
        %3875 = vrot.lane.b32.xlu0 %v3805, 56
        %v3876 = vpop.permute.xlu0 %3875
        %3877 = vrot.lane.b32.xlu0 %v3806, 56
        %v3878 = vpop.permute.xlu0 %3877
        %3879 = vrot.lane.b32.xlu0 %v3807, 56
        %v3880 = vpop.permute.xlu0 %3879
        %3881 = vrot.lane.b32.xlu0 %v3808, 56
        %v3882 = vpop.permute.xlu0 %3881
        %3883 = vrot.lane.b32.xlu0 %v3809, 56
        %v3884 = vpop.permute.xlu0 %3883
        %3885 = vrot.lane.b32.xlu0 %v3810, 56
        %v3886 = vpop.permute.xlu0 %3885
        %3887 = vrot.lane.b32.xlu0 %v3811, 56
        %v3888 = vpop.permute.xlu0 %3887
        %3889 = vrot.lane.b32.xlu0 %v3812, 56
        %v3890 = vpop.permute.xlu0 %3889
        %3891 = vrot.lane.b32.xlu0 %v3813, 56
        %v3892 = vpop.permute.xlu0 %3891
        %3893 = vrot.lane.b32.xlu0 %v3814, 56
        %v3894 = vpop.permute.xlu0 %3893
        %3895 = vrot.lane.b32.xlu0 %v3815, 56
        %v3896 = vpop.permute.xlu0 %3895
        %3897 = vrot.lane.b32.xlu0 %v3816, 56
        %v3898 = vpop.permute.xlu0 %3897
        %3899 = vrot.lane.b32.xlu0 %v3817, 56
        %v3900 = vpop.permute.xlu0 %3899
        %3901 = vrot.lane.b32.xlu0 %v3818, 56
        %v3902 = vpop.permute.xlu0 %3901
        %3903 = vrot.lane.b32.xlu0 %v3819, 56
        %v3904 = vpop.permute.xlu0 %3903
        %3905 = vrot.lane.b32.xlu0 %v3820, 56
        %v3906 = vpop.permute.xlu0 %3905
        %3907 = vrot.lane.b32.xlu0 %v3821, 56
        %v3908 = vpop.permute.xlu0 %3907
        %3909 = vrot.lane.b32.xlu0 %v3822, 56
        %v3910 = vpop.permute.xlu0 %3909
        %3911 = vrot.lane.b32.xlu0 %v3823, 56
        %v3912 = vpop.permute.xlu0 %3911
        %3913 = vrot.lane.b32.xlu0 %v3824, 56
        %v3914 = vpop.permute.xlu0 %3913
        %3915 = vrot.lane.b32.xlu0 %v3825, 56
        %v3916 = vpop.permute.xlu0 %3915
        %3917 = vrot.lane.b32.xlu0 %v3826, 56
        %v3918 = vpop.permute.xlu0 %3917
        %3919 = vrot.lane.b32.xlu0 %v3827, 56
        %v3920 = vpop.permute.xlu0 %3919
        %3921 = vrot.lane.b32.xlu0 %v3828, 56
        %v3922 = vpop.permute.xlu0 %3921
        %3923 = vrot.lane.b32.xlu0 %v3829, 56
        %v3924 = vpop.permute.xlu0 %3923
        %3925 = vrot.lane.b32.xlu0 %v3830, 56
        %v3926 = vpop.permute.xlu0 %3925
        %vm3959 = vcmask 523712
        %3960 = vst.msk [vmem:[#allocation5] sm:$0xff] %vm3959, %v3864
        %3961 = vst.msk [vmem:[#allocation5 + $0x8] sm:$0xff] %vm3959, %v3866
        %3962 = vst.msk [vmem:[#allocation5 + $0x10] sm:$0xff] %vm3959, %v3868
        %3963 = vst.msk [vmem:[#allocation5 + $0x18] sm:$0xff] %vm3959, %v3870
        %3964 = vst.msk [vmem:[#allocation5 + $0x20] sm:$0xff] %vm3959, %v3872
        %3965 = vst.msk [vmem:[#allocation5 + $0x28] sm:$0xff] %vm3959, %v3874
        %3966 = vst.msk [vmem:[#allocation5 + $0x30] sm:$0xff] %vm3959, %v3876
        %3967 = vst.msk [vmem:[#allocation5 + $0x38] sm:$0xff] %vm3959, %v3878
        %3968 = vst.msk [vmem:[#allocation5 + $0x40] sm:$0xff] %vm3959, %v3880
        %3969 = vst.msk [vmem:[#allocation5 + $0x48] sm:$0xff] %vm3959, %v3882
        %3970 = vst.msk [vmem:[#allocation5 + $0x50] sm:$0xff] %vm3959, %v3884
        %3971 = vst.msk [vmem:[#allocation5 + $0x58] sm:$0xff] %vm3959, %v3886
        %3972 = vst.msk [vmem:[#allocation5 + $0x60] sm:$0xff] %vm3959, %v3888
        %3973 = vst.msk [vmem:[#allocation5 + $0x68] sm:$0xff] %vm3959, %v3890
        %3974 = vst.msk [vmem:[#allocation5 + $0x70] sm:$0xff] %vm3959, %v3892
        %3975 = vst.msk [vmem:[#allocation5 + $0x78] sm:$0xff] %vm3959, %v3894
        %3976 = vst.msk [vmem:[#allocation5 + $0x80] sm:$0xff] %vm3959, %v3896
        %3977 = vst.msk [vmem:[#allocation5 + $0x88] sm:$0xff] %vm3959, %v3898
        %3978 = vst.msk [vmem:[#allocation5 + $0x90] sm:$0xff] %vm3959, %v3900
        %3979 = vst.msk [vmem:[#allocation5 + $0x98] sm:$0xff] %vm3959, %v3902
        %3980 = vst.msk [vmem:[#allocation5 + $0xa0] sm:$0xff] %vm3959, %v3904
        %3981 = vst.msk [vmem:[#allocation5 + $0xa8] sm:$0xff] %vm3959, %v3906
        %3982 = vst.msk [vmem:[#allocation5 + $0xb0] sm:$0xff] %vm3959, %v3908
        %3983 = vst.msk [vmem:[#allocation5 + $0xb8] sm:$0xff] %vm3959, %v3910
        %3984 = vst.msk [vmem:[#allocation5 + $0xc0] sm:$0xff] %vm3959, %v3912
        %3985 = vst.msk [vmem:[#allocation5 + $0xc8] sm:$0xff] %vm3959, %v3914
        %3986 = vst.msk [vmem:[#allocation5 + $0xd0] sm:$0xff] %vm3959, %v3916
        %3987 = vst.msk [vmem:[#allocation5 + $0xd8] sm:$0xff] %vm3959, %v3918
        %3988 = vst.msk [vmem:[#allocation5 + $0xe0] sm:$0xff] %vm3959, %v3920
        %3989 = vst.msk [vmem:[#allocation5 + $0xe8] sm:$0xff] %vm3959, %v3922
        %3990 = vst.msk [vmem:[#allocation5 + $0xf0] sm:$0xff] %vm3959, %v3924
        %3991 = vst.msk [vmem:[#allocation5 + $0xf8] sm:$0xff] %vm3959, %v3926
        %v3992 = vld [vmem:[%s3605 + $0x2] sm:$0xff]
        %v3993 = vld [vmem:[%s3605 + $0xa] sm:$0xff]
        %v3994 = vld [vmem:[%s3605 + $0x1a] sm:$0xff]
        %v3995 = vld [vmem:[%s3605 + $0x22] sm:$0xff]
        %v3996 = vld [vmem:[%s3605 + $0x32] sm:$0xff]
        %v3997 = vld [vmem:[%s3605 + $0x3a] sm:$0xff]
        %v3998 = vld [vmem:[%s3605 + $0x4a] sm:$0xff]
        %v3999 = vld [vmem:[%s3605 + $0x52] sm:$0xff]
        %v4000 = vld [vmem:[%s3605 + $0x62] sm:$0xff]
        %v4001 = vld [vmem:[%s3605 + $0x6a] sm:$0xff]
        %v4002 = vld [vmem:[%s3605 + $0x7a] sm:$0xff]
        %v4003 = vld [vmem:[%s3605 + $0x82] sm:$0xff]
        %v4004 = vld [vmem:[%s3605 + $0x92] sm:$0xff]
        %v4005 = vld [vmem:[%s3605 + $0x9a] sm:$0xff]
        %v4006 = vld [vmem:[%s3605 + $0xaa] sm:$0xff]
        %v4007 = vld [vmem:[%s3605 + $0xb2] sm:$0xff]
        %v4008 = vld [vmem:[%s3605 + $0xc2] sm:$0xff]
        %v4009 = vld [vmem:[%s3605 + $0xca] sm:$0xff]
        %v4010 = vld [vmem:[%s3605 + $0xda] sm:$0xff]
        %v4011 = vld [vmem:[%s3605 + $0xe2] sm:$0xff]
        %v4012 = vld [vmem:[%s3605 + $0xf2] sm:$0xff]
        %v4013 = vld [vmem:[%s3605 + $0xfa] sm:$0xff]
        %v4014 = vld [vmem:[%s3605 + $0x10a] sm:$0xff]
        %v4015 = vld [vmem:[%s3605 + $0x112] sm:$0xff]
        %v4016 = vld [vmem:[%s3605 + $0x122] sm:$0xff]
        %v4017 = vld [vmem:[%s3605 + $0x12a] sm:$0xff]
        %v4018 = vld [vmem:[%s3605 + $0x13a] sm:$0xff]
        %v4019 = vld [vmem:[%s3605 + $0x142] sm:$0xff]
        %v4020 = vld [vmem:[%s3605 + $0x152] sm:$0xff]
        %v4021 = vld [vmem:[%s3605 + $0x15a] sm:$0xff]
        %v4022 = vld [vmem:[%s3605 + $0x16a] sm:$0xff]
        %v4023 = vld [vmem:[%s3605 + $0x172] sm:$0xff]
        %4056 = vrot.lane.b32.xlu0 %v3992, 64
        %v4057 = vpop.permute.xlu0 %4056
        %4058 = vrot.lane.b32.xlu0 %v3993, 64
        %v4059 = vpop.permute.xlu0 %4058
        %4060 = vrot.lane.b32.xlu0 %v3994, 64
        %v4061 = vpop.permute.xlu0 %4060
        %4062 = vrot.lane.b32.xlu0 %v3995, 64
        %v4063 = vpop.permute.xlu0 %4062
        %4064 = vrot.lane.b32.xlu0 %v3996, 64
        %v4065 = vpop.permute.xlu0 %4064
        %4066 = vrot.lane.b32.xlu0 %v3997, 64
        %v4067 = vpop.permute.xlu0 %4066
        %4068 = vrot.lane.b32.xlu0 %v3998, 64
        %v4069 = vpop.permute.xlu0 %4068
        %4070 = vrot.lane.b32.xlu0 %v3999, 64
        %v4071 = vpop.permute.xlu0 %4070
        %4072 = vrot.lane.b32.xlu0 %v4000, 64
        %v4073 = vpop.permute.xlu0 %4072
        %4074 = vrot.lane.b32.xlu0 %v4001, 64
        %v4075 = vpop.permute.xlu0 %4074
        %4076 = vrot.lane.b32.xlu0 %v4002, 64
        %v4077 = vpop.permute.xlu0 %4076
        %4078 = vrot.lane.b32.xlu0 %v4003, 64
        %v4079 = vpop.permute.xlu0 %4078
        %4080 = vrot.lane.b32.xlu0 %v4004, 64
        %v4081 = vpop.permute.xlu0 %4080
        %4082 = vrot.lane.b32.xlu0 %v4005, 64
        %v4083 = vpop.permute.xlu0 %4082
        %4084 = vrot.lane.b32.xlu0 %v4006, 64
        %v4085 = vpop.permute.xlu0 %4084
        %4086 = vrot.lane.b32.xlu0 %v4007, 64
        %v4087 = vpop.permute.xlu0 %4086
        %4088 = vrot.lane.b32.xlu0 %v4008, 64
        %v4089 = vpop.permute.xlu0 %4088
        %4090 = vrot.lane.b32.xlu0 %v4009, 64
        %v4091 = vpop.permute.xlu0 %4090
        %4092 = vrot.lane.b32.xlu0 %v4010, 64
        %v4093 = vpop.permute.xlu0 %4092
        %4094 = vrot.lane.b32.xlu0 %v4011, 64
        %v4095 = vpop.permute.xlu0 %4094
        %4096 = vrot.lane.b32.xlu0 %v4012, 64
        %v4097 = vpop.permute.xlu0 %4096
        %4098 = vrot.lane.b32.xlu0 %v4013, 64
        %v4099 = vpop.permute.xlu0 %4098
        %4100 = vrot.lane.b32.xlu0 %v4014, 64
        %v4101 = vpop.permute.xlu0 %4100
        %4102 = vrot.lane.b32.xlu0 %v4015, 64
        %v4103 = vpop.permute.xlu0 %4102
        %4104 = vrot.lane.b32.xlu0 %v4016, 64
        %v4105 = vpop.permute.xlu0 %4104
        %4106 = vrot.lane.b32.xlu0 %v4017, 64
        %v4107 = vpop.permute.xlu0 %4106
        %4108 = vrot.lane.b32.xlu0 %v4018, 64
        %v4109 = vpop.permute.xlu0 %4108
        %4110 = vrot.lane.b32.xlu0 %v4019, 64
        %v4111 = vpop.permute.xlu0 %4110
        %4112 = vrot.lane.b32.xlu0 %v4020, 64
        %v4113 = vpop.permute.xlu0 %4112
        %4114 = vrot.lane.b32.xlu0 %v4021, 64
        %v4115 = vpop.permute.xlu0 %4114
        %4116 = vrot.lane.b32.xlu0 %v4022, 64
        %v4117 = vpop.permute.xlu0 %4116
        %4118 = vrot.lane.b32.xlu0 %v4023, 64
        %v4119 = vpop.permute.xlu0 %4118
        %vm4152 = vcmask 589312
        %4153 = vst.msk [vmem:[#allocation5] sm:$0xff] %vm4152, %v4057
        %4154 = vst.msk [vmem:[#allocation5 + $0x8] sm:$0xff] %vm4152, %v4059
        %4155 = vst.msk [vmem:[#allocation5 + $0x10] sm:$0xff] %vm4152, %v4061
        %4156 = vst.msk [vmem:[#allocation5 + $0x18] sm:$0xff] %vm4152, %v4063
        %4157 = vst.msk [vmem:[#allocation5 + $0x20] sm:$0xff] %vm4152, %v4065
        %4158 = vst.msk [vmem:[#allocation5 + $0x28] sm:$0xff] %vm4152, %v4067
        %4159 = vst.msk [vmem:[#allocation5 + $0x30] sm:$0xff] %vm4152, %v4069
        %4160 = vst.msk [vmem:[#allocation5 + $0x38] sm:$0xff] %vm4152, %v4071
        %4161 = vst.msk [vmem:[#allocation5 + $0x40] sm:$0xff] %vm4152, %v4073
        %4162 = vst.msk [vmem:[#allocation5 + $0x48] sm:$0xff] %vm4152, %v4075
        %4163 = vst.msk [vmem:[#allocation5 + $0x50] sm:$0xff] %vm4152, %v4077
        %4164 = vst.msk [vmem:[#allocation5 + $0x58] sm:$0xff] %vm4152, %v4079
        %4165 = vst.msk [vmem:[#allocation5 + $0x60] sm:$0xff] %vm4152, %v4081
        %4166 = vst.msk [vmem:[#allocation5 + $0x68] sm:$0xff] %vm4152, %v4083
        %4167 = vst.msk [vmem:[#allocation5 + $0x70] sm:$0xff] %vm4152, %v4085
        %4168 = vst.msk [vmem:[#allocation5 + $0x78] sm:$0xff] %vm4152, %v4087
        %4169 = vst.msk [vmem:[#allocation5 + $0x80] sm:$0xff] %vm4152, %v4089
        %4170 = vst.msk [vmem:[#allocation5 + $0x88] sm:$0xff] %vm4152, %v4091
        %4171 = vst.msk [vmem:[#allocation5 + $0x90] sm:$0xff] %vm4152, %v4093
        %4172 = vst.msk [vmem:[#allocation5 + $0x98] sm:$0xff] %vm4152, %v4095
        %4173 = vst.msk [vmem:[#allocation5 + $0xa0] sm:$0xff] %vm4152, %v4097
        %4174 = vst.msk [vmem:[#allocation5 + $0xa8] sm:$0xff] %vm4152, %v4099
        %4175 = vst.msk [vmem:[#allocation5 + $0xb0] sm:$0xff] %vm4152, %v4101
        %4176 = vst.msk [vmem:[#allocation5 + $0xb8] sm:$0xff] %vm4152, %v4103
        %4177 = vst.msk [vmem:[#allocation5 + $0xc0] sm:$0xff] %vm4152, %v4105
        %4178 = vst.msk [vmem:[#allocation5 + $0xc8] sm:$0xff] %vm4152, %v4107
        %4179 = vst.msk [vmem:[#allocation5 + $0xd0] sm:$0xff] %vm4152, %v4109
        %4180 = vst.msk [vmem:[#allocation5 + $0xd8] sm:$0xff] %vm4152, %v4111
        %4181 = vst.msk [vmem:[#allocation5 + $0xe0] sm:$0xff] %vm4152, %v4113
        %4182 = vst.msk [vmem:[#allocation5 + $0xe8] sm:$0xff] %vm4152, %v4115
        %4183 = vst.msk [vmem:[#allocation5 + $0xf0] sm:$0xff] %vm4152, %v4117
        %4184 = vst.msk [vmem:[#allocation5 + $0xf8] sm:$0xff] %vm4152, %v4119
        %v4185 = vld [vmem:[#allocation5] sm:$0xff]
        %v4186 = vld [vmem:[#allocation5 + $0x8] sm:$0xff]
        %v4187 = vld [vmem:[#allocation5 + $0x10] sm:$0xff]
        %v4188 = vld [vmem:[#allocation5 + $0x18] sm:$0xff]
        %v4189 = vld [vmem:[#allocation5 + $0x20] sm:$0xff]
        %v4190 = vld [vmem:[#allocation5 + $0x28] sm:$0xff]
        %v4191 = vld [vmem:[#allocation5 + $0x30] sm:$0xff]
        %v4192 = vld [vmem:[#allocation5 + $0x38] sm:$0xff]
        %v4193 = vld [vmem:[#allocation5 + $0x40] sm:$0xff]
        %v4194 = vld [vmem:[#allocation5 + $0x48] sm:$0xff]
        %v4195 = vld [vmem:[#allocation5 + $0x50] sm:$0xff]
        %v4196 = vld [vmem:[#allocation5 + $0x58] sm:$0xff]
        %v4197 = vld [vmem:[#allocation5 + $0x60] sm:$0xff]
        %v4198 = vld [vmem:[#allocation5 + $0x68] sm:$0xff]
        %v4199 = vld [vmem:[#allocation5 + $0x70] sm:$0xff]
        %v4200 = vld [vmem:[#allocation5 + $0x78] sm:$0xff]
        %v4201 = vld [vmem:[#allocation5 + $0x80] sm:$0xff]
        %v4202 = vld [vmem:[#allocation5 + $0x88] sm:$0xff]
        %v4203 = vld [vmem:[#allocation5 + $0x90] sm:$0xff]
        %v4204 = vld [vmem:[#allocation5 + $0x98] sm:$0xff]
        %v4205 = vld [vmem:[#allocation5 + $0xa0] sm:$0xff]
        %v4206 = vld [vmem:[#allocation5 + $0xa8] sm:$0xff]
        %v4207 = vld [vmem:[#allocation5 + $0xb0] sm:$0xff]
        %v4208 = vld [vmem:[#allocation5 + $0xb8] sm:$0xff]
        %v4209 = vld [vmem:[#allocation5 + $0xc0] sm:$0xff]
        %v4210 = vld [vmem:[#allocation5 + $0xc8] sm:$0xff]
        %v4211 = vld [vmem:[#allocation5 + $0xd0] sm:$0xff]
        %v4212 = vld [vmem:[#allocation5 + $0xd8] sm:$0xff]
        %v4213 = vld [vmem:[#allocation5 + $0xe0] sm:$0xff]
        %v4214 = vld [vmem:[#allocation5 + $0xe8] sm:$0xff]
        %v4215 = vld [vmem:[#allocation5 + $0xf0] sm:$0xff]
        %v4216 = vld [vmem:[#allocation5 + $0xf8] sm:$0xff]
        %v4217 = vld [vmem:[%s4] sm:$0xff]
        %v4218 = vld [vmem:[%s4 + $0x8] sm:$0xff]
        %v4219 = vld [vmem:[%s4 + $0x10] sm:$0xff]
        %v4220 = vld [vmem:[%s4 + $0x18] sm:$0xff]
        %v4221 = vld [vmem:[%s4 + $0x20] sm:$0xff]
        %v4222 = vld [vmem:[%s4 + $0x28] sm:$0xff]
        %v4223 = vld [vmem:[%s4 + $0x30] sm:$0xff]
        %v4224 = vld [vmem:[%s4 + $0x38] sm:$0xff]
        %v4225 = vld [vmem:[%s4 + $0x40] sm:$0xff]
        %vm4226 = vcmask 588800
        %v4228 = vsel %vm4226, %v4185, 0
        %v4231 = vsel %vm4226, %v4186, 0
        %v4234 = vsel %vm4226, %v4187, 0
        %v4237 = vsel %vm4226, %v4188, 0
        %v4240 = vsel %vm4226, %v4189, 0
        %v4243 = vsel %vm4226, %v4190, 0
        %v4246 = vsel %vm4226, %v4191, 0
        %v4249 = vsel %vm4226, %v4192, 0
        %v4252 = vsel %vm4226, %v4193, 0
        %v4255 = vsel %vm4226, %v4194, 0
        %v4258 = vsel %vm4226, %v4195, 0
        %v4261 = vsel %vm4226, %v4196, 0
        %v4264 = vsel %vm4226, %v4197, 0
        %v4267 = vsel %vm4226, %v4198, 0
        %v4270 = vsel %vm4226, %v4199, 0
        %v4273 = vsel %vm4226, %v4200, 0
        %v4276 = vsel %vm4226, %v4201, 0
        %v4279 = vsel %vm4226, %v4202, 0
        %v4282 = vsel %vm4226, %v4203, 0
        %v4285 = vsel %vm4226, %v4204, 0
        %v4288 = vsel %vm4226, %v4205, 0
        %v4291 = vsel %vm4226, %v4206, 0
        %v4294 = vsel %vm4226, %v4207, 0
        %v4297 = vsel %vm4226, %v4208, 0
        %v4300 = vsel %vm4226, %v4209, 0
        %v4303 = vsel %vm4226, %v4210, 0
        %v4306 = vsel %vm4226, %v4211, 0
        %v4309 = vsel %vm4226, %v4212, 0
        %v4312 = vsel %vm4226, %v4213, 0
        %v4315 = vsel %vm4226, %v4214, 0
        %v4318 = vsel %vm4226, %v4215, 0
        %v4321 = vsel %vm4226, %v4216, 0
        %4323 = vmatprep.subr.mxu0 0.0
        %4324 = vmatpush1.msra.mxu0 %v4217
        %4325 = vmatprep.subr.mxu0 0.0
        %4326 = vmatpush1.msra.mxu0 %v4218
        %4327 = vmatprep.subr.mxu0 0.0
        %4328 = vmatpush1.msra.mxu0 %v4219
        %4329 = vmatprep.subr.mxu0 0.0
        %4330 = vmatpush1.msra.mxu0 %v4220
        %4331 = vmatprep.subr.mxu0 0.0
        %4332 = vmatpush1.msra.mxu0 %v4221
        %4333 = vmatprep.subr.mxu0 0.0
        %4334 = vmatpush1.msra.mxu0 %v4222
        %4335 = vmatprep.subr.mxu0 0.0
        %4336 = vmatpush1.msra.mxu0 %v4223
        %4337 = vmatprep.subr.mxu0 0.0
        %4338 = vmatpush1.msra.mxu0 %v4224
        %4339 = vmatprep.subr.mxu0 0.0
        %4340 = vmatpush1.msra.mxu0 %v4225
        %4341 = vmatprep.subr.mxu0 0.0
        %4342 = vmatpush1.msra.mxu0 0.0
        %4343 = vmatprep.subr.mxu0 0.0
        %4344 = vmatpush1.msra.mxu0 0.0
        %4345 = vmatprep.subr.mxu0 0.0
        %4346 = vmatpush1.msra.mxu0 0.0
        %4347 = vmatprep.subr.mxu0 0.0
        %4348 = vmatpush1.msra.mxu0 0.0
        %4349 = vmatprep.subr.mxu0 0.0
        %4350 = vmatpush1.msra.mxu0 0.0
        %4351 = vmatprep.subr.mxu0 0.0
        %4352 = vmatpush1.msra.mxu0 0.0
        %4353 = vmatprep.subr.mxu0 0.0
        %4354 = vmatpush1.msra.mxu0 0.0
        %4355 = vmatprep.subr.mxu0 0.0
        %4356 = vmatpush1.msra.mxu0 0.0
        %4357 = vmatprep.subr.mxu0 0.0
        %4358 = vmatpush1.msra.mxu0 0.0
        %4359 = vmatprep.subr.mxu0 0.0
        %4360 = vmatpush1.msra.mxu0 0.0
        %4361 = vmatprep.subr.mxu0 0.0
        %4362 = vmatpush1.msra.mxu0 0.0
        %4363 = vmatprep.subr.mxu0 0.0
        %4364 = vmatpush1.msra.mxu0 0.0
        %4365 = vmatprep.subr.mxu0 0.0
        %4366 = vmatpush1.msra.mxu0 0.0
        %4367 = vmatprep.subr.mxu0 0.0
        %4368 = vmatpush1.msra.mxu0 0.0
        %4369 = vmatprep.subr.mxu0 0.0
        %4370 = vmatpush1.msra.mxu0 0.0
        %4371 = vmatprep.subr.mxu0 0.0
        %4372 = vmatpush1.msra.mxu0 0.0
        %4373 = vmatprep.subr.mxu0 0.0
        %4374 = vmatpush1.msra.mxu0 0.0
        %4375 = vmatprep.subr.mxu0 0.0
        %4376 = vmatpush1.msra.mxu0 0.0
        %4377 = vmatprep.subr.mxu0 0.0
        %4378 = vmatpush1.msra.mxu0 0.0
        %4379 = vmatprep.subr.mxu0 0.0
        %4380 = vmatpush1.msra.mxu0 0.0
        %4381 = vmatprep.subr.mxu0 0.0
        %4382 = vmatpush1.msra.mxu0 0.0
        %4383 = vmatprep.subr.mxu0 0.0
        %4384 = vmatpush1.msra.mxu0 0.0
        %4385 = vmatprep.subr.mxu0 0.0
        %4386 = vmatpush1.msra.mxu0 0.0
        %4387 = vmatprep.mubr.f32.mxu0 0.0
        %4388 = vmatmul.mubr.f32.gmra.mrb[0].mxu0 %v4228
        %v4389 = vpop.f32.mrb[0].mxu0
        %v4390 = vadd.f32 0.0, %v4389
        %v4391 = vpop.f32.mrb[0].mxu0
        %4392 = vmatprep.mubr.f32.mxu0 0.0
        %4393 = vmatmul.mubr.f32.gmra.mrb[0].mxu0 %v4231
        %v4394 = vpop.f32.mrb[0].mxu0
        %v4395 = vadd.f32 0.0, %v4394
        %v4396 = vpop.f32.mrb[0].mxu0
        %4397 = vmatprep.mubr.f32.mxu0 0.0
        %4398 = vmatmul.mubr.f32.gmra.mrb[0].mxu0 %v4234
        %v4399 = vpop.f32.mrb[0].mxu0
        %v4400 = vadd.f32 0.0, %v4399
        %v4401 = vpop.f32.mrb[0].mxu0
        %4402 = vmatprep.mubr.f32.mxu0 0.0
        %4403 = vmatmul.mubr.f32.gmra.mrb[0].mxu0 %v4237
        %v4404 = vpop.f32.mrb[0].mxu0
        %v4405 = vadd.f32 0.0, %v4404
        %v4406 = vpop.f32.mrb[0].mxu0
        %4407 = vmatprep.mubr.f32.mxu0 0.0
        %4408 = vmatmul.mubr.f32.gmra.mrb[0].mxu0 %v4240
        %v4409 = vpop.f32.mrb[0].mxu0
        %v4410 = vadd.f32 0.0, %v4409
        %v4411 = vpop.f32.mrb[0].mxu0
        %4412 = vmatprep.mubr.f32.mxu0 0.0
        %4413 = vmatmul.mubr.f32.gmra.mrb[0].mxu0 %v4243
        %v4414 = vpop.f32.mrb[0].mxu0
        %v4415 = vadd.f32 0.0, %v4414
        %v4416 = vpop.f32.mrb[0].mxu0
        %4417 = vmatprep.mubr.f32.mxu0 0.0
        %4418 = vmatmul.mubr.f32.gmra.mrb[0].mxu0 %v4246
        %v4419 = vpop.f32.mrb[0].mxu0
        %v4420 = vadd.f32 0.0, %v4419
        %v4421 = vpop.f32.mrb[0].mxu0
        %4422 = vmatprep.mubr.f32.mxu0 0.0
        %4423 = vmatmul.mubr.f32.gmra.mrb[0].mxu0 %v4249
        %v4424 = vpop.f32.mrb[0].mxu0
        %v4425 = vadd.f32 0.0, %v4424
        %v4426 = vpop.f32.mrb[0].mxu0
        %4427 = vmatprep.mubr.f32.mxu0 0.0
        %4428 = vmatmul.mubr.f32.gmra.mrb[0].mxu0 %v4252
        %v4429 = vpop.f32.mrb[0].mxu0
        %v4430 = vadd.f32 0.0, %v4429
        %v4431 = vpop.f32.mrb[0].mxu0
        %4432 = vmatprep.mubr.f32.mxu0 0.0
        %4433 = vmatmul.mubr.f32.gmra.mrb[0].mxu0 %v4255
        %v4434 = vpop.f32.mrb[0].mxu0
        %v4435 = vadd.f32 0.0, %v4434
        %v4436 = vpop.f32.mrb[0].mxu0
        %4437 = vmatprep.mubr.f32.mxu0 0.0
        %4438 = vmatmul.mubr.f32.gmra.mrb[0].mxu0 %v4258
        %v4439 = vpop.f32.mrb[0].mxu0
        %v4440 = vadd.f32 0.0, %v4439
        %v4441 = vpop.f32.mrb[0].mxu0
        %4442 = vmatprep.mubr.f32.mxu0 0.0
        %4443 = vmatmul.mubr.f32.gmra.mrb[0].mxu0 %v4261
        %v4444 = vpop.f32.mrb[0].mxu0
        %v4445 = vadd.f32 0.0, %v4444
        %v4446 = vpop.f32.mrb[0].mxu0
        %4447 = vmatprep.mubr.f32.mxu0 0.0
        %4448 = vmatmul.mubr.f32.gmra.mrb[0].mxu0 %v4264
        %v4449 = vpop.f32.mrb[0].mxu0
        %v4450 = vadd.f32 0.0, %v4449
        %v4451 = vpop.f32.mrb[0].mxu0
        %4452 = vmatprep.mubr.f32.mxu0 0.0
        %4453 = vmatmul.mubr.f32.gmra.mrb[0].mxu0 %v4267
        %v4454 = vpop.f32.mrb[0].mxu0
        %v4455 = vadd.f32 0.0, %v4454
        %v4456 = vpop.f32.mrb[0].mxu0
        %4457 = vmatprep.mubr.f32.mxu0 0.0
        %4458 = vmatmul.mubr.f32.gmra.mrb[0].mxu0 %v4270
        %v4459 = vpop.f32.mrb[0].mxu0
        %v4460 = vadd.f32 0.0, %v4459
        %v4461 = vpop.f32.mrb[0].mxu0
        %4462 = vmatprep.mubr.f32.mxu0 0.0
        %4463 = vmatmul.mubr.f32.gmra.mrb[0].mxu0 %v4273
        %v4464 = vpop.f32.mrb[0].mxu0
        %v4465 = vadd.f32 0.0, %v4464
        %v4466 = vpop.f32.mrb[0].mxu0
        %4467 = vmatprep.mubr.f32.mxu0 0.0
        %4468 = vmatmul.mubr.f32.gmra.mrb[0].mxu0 %v4276
        %v4469 = vpop.f32.mrb[0].mxu0
        %v4470 = vadd.f32 0.0, %v4469
        %v4471 = vpop.f32.mrb[0].mxu0
        %4472 = vmatprep.mubr.f32.mxu0 0.0
        %4473 = vmatmul.mubr.f32.gmra.mrb[0].mxu0 %v4279
        %v4474 = vpop.f32.mrb[0].mxu0
        %v4475 = vadd.f32 0.0, %v4474
        %v4476 = vpop.f32.mrb[0].mxu0
        %4477 = vmatprep.mubr.f32.mxu0 0.0
        %4478 = vmatmul.mubr.f32.gmra.mrb[0].mxu0 %v4282
        %v4479 = vpop.f32.mrb[0].mxu0
        %v4480 = vadd.f32 0.0, %v4479
        %v4481 = vpop.f32.mrb[0].mxu0
        %4482 = vmatprep.mubr.f32.mxu0 0.0
        %4483 = vmatmul.mubr.f32.gmra.mrb[0].mxu0 %v4285
        %v4484 = vpop.f32.mrb[0].mxu0
        %v4485 = vadd.f32 0.0, %v4484
        %v4486 = vpop.f32.mrb[0].mxu0
        %4487 = vmatprep.mubr.f32.mxu0 0.0
        %4488 = vmatmul.mubr.f32.gmra.mrb[0].mxu0 %v4288
        %v4489 = vpop.f32.mrb[0].mxu0
        %v4490 = vadd.f32 0.0, %v4489
        %v4491 = vpop.f32.mrb[0].mxu0
        %4492 = vmatprep.mubr.f32.mxu0 0.0
        %4493 = vmatmul.mubr.f32.gmra.mrb[0].mxu0 %v4291
        %v4494 = vpop.f32.mrb[0].mxu0
        %v4495 = vadd.f32 0.0, %v4494
        %v4496 = vpop.f32.mrb[0].mxu0
        %4497 = vmatprep.mubr.f32.mxu0 0.0
        %4498 = vmatmul.mubr.f32.gmra.mrb[0].mxu0 %v4294
        %v4499 = vpop.f32.mrb[0].mxu0
        %v4500 = vadd.f32 0.0, %v4499
        %v4501 = vpop.f32.mrb[0].mxu0
        %4502 = vmatprep.mubr.f32.mxu0 0.0
        %4503 = vmatmul.mubr.f32.gmra.mrb[0].mxu0 %v4297
        %v4504 = vpop.f32.mrb[0].mxu0
        %v4505 = vadd.f32 0.0, %v4504
        %v4506 = vpop.f32.mrb[0].mxu0
        %4507 = vmatprep.mubr.f32.mxu0 0.0
        %4508 = vmatmul.mubr.f32.gmra.mrb[0].mxu0 %v4300
        %v4509 = vpop.f32.mrb[0].mxu0
        %v4510 = vadd.f32 0.0, %v4509
        %v4511 = vpop.f32.mrb[0].mxu0
        %4512 = vmatprep.mubr.f32.mxu0 0.0
        %4513 = vmatmul.mubr.f32.gmra.mrb[0].mxu0 %v4303
        %v4514 = vpop.f32.mrb[0].mxu0
        %v4515 = vadd.f32 0.0, %v4514
        %v4516 = vpop.f32.mrb[0].mxu0
        %4517 = vmatprep.mubr.f32.mxu0 0.0
        %4518 = vmatmul.mubr.f32.gmra.mrb[0].mxu0 %v4306
        %v4519 = vpop.f32.mrb[0].mxu0
        %v4520 = vadd.f32 0.0, %v4519
        %v4521 = vpop.f32.mrb[0].mxu0
        %4522 = vmatprep.mubr.f32.mxu0 0.0
        %4523 = vmatmul.mubr.f32.gmra.mrb[0].mxu0 %v4309
        %v4524 = vpop.f32.mrb[0].mxu0
        %v4525 = vadd.f32 0.0, %v4524
        %v4526 = vpop.f32.mrb[0].mxu0
        %4527 = vmatprep.mubr.f32.mxu0 0.0
        %4528 = vmatmul.mubr.f32.gmra.mrb[0].mxu0 %v4312
        %v4529 = vpop.f32.mrb[0].mxu0
        %v4530 = vadd.f32 0.0, %v4529
        %v4531 = vpop.f32.mrb[0].mxu0
        %4532 = vmatprep.mubr.f32.mxu0 0.0
        %4533 = vmatmul.mubr.f32.gmra.mrb[0].mxu0 %v4315
        %v4534 = vpop.f32.mrb[0].mxu0
        %v4535 = vadd.f32 0.0, %v4534
        %v4536 = vpop.f32.mrb[0].mxu0
        %4537 = vmatprep.mubr.f32.mxu0 0.0
        %4538 = vmatmul.mubr.f32.gmra.mrb[0].mxu0 %v4318
        %v4539 = vpop.f32.mrb[0].mxu0
        %v4540 = vadd.f32 0.0, %v4539
        %v4541 = vpop.f32.mrb[0].mxu0
        %4542 = vmatprep.mubr.f32.mxu0 0.0
        %4543 = vmatmul.mubr.f32.gmra.mrb[0].mxu0 %v4321
        %v4544 = vpop.f32.mrb[0].mxu0
        %v4545 = vadd.f32 0.0, %v4544
        %v4546 = vpop.f32.mrb[0].mxu0
        %4547 = vdwg.mxu0
        %v4548 = vld [vmem:[%s5] sm:$0x1]
        %v4550 = vlaneseq
        %v4551 = vshrl.u32 %v4550, 7
        %v4552 = vsub.s32 0, %v4551
        %v4553 = vrot.slane %v4548, %v4552
        %v4555 = vmul.f32 %v4390, %v4553
        %v4556 = vmul.f32 %v4395, %v4553
        %v4557 = vmul.f32 %v4400, %v4553
        %v4558 = vmul.f32 %v4405, %v4553
        %v4559 = vmul.f32 %v4410, %v4553
        %v4560 = vmul.f32 %v4415, %v4553
        %v4561 = vmul.f32 %v4420, %v4553
        %v4562 = vmul.f32 %v4425, %v4553
        %v4563 = vmul.f32 %v4430, %v4553
        %v4564 = vmul.f32 %v4435, %v4553
        %v4565 = vmul.f32 %v4440, %v4553
        %v4566 = vmul.f32 %v4445, %v4553
        %v4567 = vmul.f32 %v4450, %v4553
        %v4568 = vmul.f32 %v4455, %v4553
        %v4569 = vmul.f32 %v4460, %v4553
        %v4570 = vmul.f32 %v4465, %v4553
        %v4571 = vmul.f32 %v4470, %v4553
        %v4572 = vmul.f32 %v4475, %v4553
        %v4573 = vmul.f32 %v4480, %v4553
        %v4574 = vmul.f32 %v4485, %v4553
        %v4575 = vmul.f32 %v4490, %v4553
        %v4576 = vmul.f32 %v4495, %v4553
        %v4577 = vmul.f32 %v4500, %v4553
        %v4578 = vmul.f32 %v4505, %v4553
        %v4579 = vmul.f32 %v4510, %v4553
        %v4580 = vmul.f32 %v4515, %v4553
        %v4581 = vmul.f32 %v4520, %v4553
        %v4582 = vmul.f32 %v4525, %v4553
        %v4583 = vmul.f32 %v4530, %v4553
        %v4584 = vmul.f32 %v4535, %v4553
        %v4585 = vmul.f32 %v4540, %v4553
        %v4586 = vmul.f32 %v4545, %v4553
        %v4587 = vld [vmem:[%s6] sm:$0x1]
        %v4589 = vlaneseq
        %v4590 = vshrl.u32 %v4589, 7
        %v4591 = vsub.s32 0, %v4590
        %v4592 = vrot.slane %v4587, %v4591
        %v4594 = vadd.f32 %v4555, %v4592
        %v4595 = vadd.f32 %v4556, %v4592
        %v4596 = vadd.f32 %v4557, %v4592
        %v4597 = vadd.f32 %v4558, %v4592
        %v4598 = vadd.f32 %v4559, %v4592
        %v4599 = vadd.f32 %v4560, %v4592
        %v4600 = vadd.f32 %v4561, %v4592
        %v4601 = vadd.f32 %v4562, %v4592
        %v4602 = vadd.f32 %v4563, %v4592
        %v4603 = vadd.f32 %v4564, %v4592
        %v4604 = vadd.f32 %v4565, %v4592
        %v4605 = vadd.f32 %v4566, %v4592
        %v4606 = vadd.f32 %v4567, %v4592
        %v4607 = vadd.f32 %v4568, %v4592
        %v4608 = vadd.f32 %v4569, %v4592
        %v4609 = vadd.f32 %v4570, %v4592
        %v4610 = vadd.f32 %v4571, %v4592
        %v4611 = vadd.f32 %v4572, %v4592
        %v4612 = vadd.f32 %v4573, %v4592
        %v4613 = vadd.f32 %v4574, %v4592
        %v4614 = vadd.f32 %v4575, %v4592
        %v4615 = vadd.f32 %v4576, %v4592
        %v4616 = vadd.f32 %v4577, %v4592
        %v4617 = vadd.f32 %v4578, %v4592
        %v4618 = vadd.f32 %v4579, %v4592
        %v4619 = vadd.f32 %v4580, %v4592
        %v4620 = vadd.f32 %v4581, %v4592
        %v4621 = vadd.f32 %v4582, %v4592
        %v4622 = vadd.f32 %v4583, %v4592
        %v4623 = vadd.f32 %v4584, %v4592
        %v4624 = vadd.f32 %v4585, %v4592
        %v4625 = vadd.f32 %v4586, %v4592
        %v4626 = vmax.f32 %v4594, 0.0
        %v4627 = vmax.f32 %v4595, 0.0
        %v4628 = vmax.f32 %v4596, 0.0
        %v4629 = vmax.f32 %v4597, 0.0
        %v4630 = vmax.f32 %v4598, 0.0
        %v4631 = vmax.f32 %v4599, 0.0
        %v4632 = vmax.f32 %v4600, 0.0
        %v4633 = vmax.f32 %v4601, 0.0
        %v4634 = vmax.f32 %v4602, 0.0
        %v4635 = vmax.f32 %v4603, 0.0
        %v4636 = vmax.f32 %v4604, 0.0
        %v4637 = vmax.f32 %v4605, 0.0
        %v4638 = vmax.f32 %v4606, 0.0
        %v4639 = vmax.f32 %v4607, 0.0
        %v4640 = vmax.f32 %v4608, 0.0
        %v4641 = vmax.f32 %v4609, 0.0
        %v4642 = vmax.f32 %v4610, 0.0
        %v4643 = vmax.f32 %v4611, 0.0
        %v4644 = vmax.f32 %v4612, 0.0
        %v4645 = vmax.f32 %v4613, 0.0
        %v4646 = vmax.f32 %v4614, 0.0
        %v4647 = vmax.f32 %v4615, 0.0
        %v4648 = vmax.f32 %v4616, 0.0
        %v4649 = vmax.f32 %v4617, 0.0
        %v4650 = vmax.f32 %v4618, 0.0
        %v4651 = vmax.f32 %v4619, 0.0
        %v4652 = vmax.f32 %v4620, 0.0
        %v4653 = vmax.f32 %v4621, 0.0
        %v4654 = vmax.f32 %v4622, 0.0
        %v4655 = vmax.f32 %v4623, 0.0
        %v4656 = vmax.f32 %v4624, 0.0
        %v4657 = vmax.f32 %v4625, 0.0
        %v4658 = vld [vmem:[%s7] sm:$0xff]
        %v4659 = vld [vmem:[%s7 + $0x8] sm:$0xff]
        %v4660 = vld [vmem:[%s7 + $0x10] sm:$0xff]
        %v4661 = vld [vmem:[%s7 + $0x18] sm:$0xff]
        %vm4662 = vcmask 130048
        %v4664 = vsel %vm4662, %v4658, 0
        %v4667 = vsel %vm4662, %v4659, 0
        %v4670 = vsel %vm4662, %v4660, 0
        %v4673 = vsel %vm4662, %v4661, 0
        %4675 = vmatprep.subr.mxu0 0.0
        %4676 = vmatpush1.msra.mxu0 %v4626
        %4677 = vmatprep.subr.mxu0 0.0
        %4678 = vmatpush1.msra.mxu0 %v4627
        %4679 = vmatprep.subr.mxu0 0.0
        %4680 = vmatpush1.msra.mxu0 0.0
        %4681 = vmatprep.subr.mxu0 0.0
        %4682 = vmatpush1.msra.mxu0 0.0
        %4683 = vmatprep.subr.mxu0 0.0
        %4684 = vmatpush1.msra.mxu0 0.0
        %4685 = vmatprep.subr.mxu0 0.0
        %4686 = vmatpush1.msra.mxu0 0.0
        %4687 = vmatprep.subr.mxu0 0.0
        %4688 = vmatpush1.msra.mxu0 0.0
        %4689 = vmatprep.subr.mxu0 0.0
        %4690 = vmatpush1.msra.mxu0 0.0
        %4691 = vmatprep.subr.mxu0 0.0
        %4692 = vmatpush1.msra.mxu0 0.0
        %4693 = vmatprep.subr.mxu0 0.0
        %4694 = vmatpush1.msra.mxu0 0.0
        %4695 = vmatprep.subr.mxu0 0.0
        %4696 = vmatpush1.msra.mxu0 0.0
        %4697 = vmatprep.subr.mxu0 0.0
        %4698 = vmatpush1.msra.mxu0 0.0
        %4699 = vmatprep.subr.mxu0 0.0
        %4700 = vmatpush1.msra.mxu0 0.0
        %4701 = vmatprep.subr.mxu0 0.0
        %4702 = vmatpush1.msra.mxu0 0.0
        %4703 = vmatprep.subr.mxu0 0.0
        %4704 = vmatpush1.msra.mxu0 0.0
        %4705 = vmatprep.subr.mxu0 0.0
        %4706 = vmatpush1.msra.mxu0 0.0
        %4707 = vmatprep.subr.mxu0 0.0
        %4708 = vmatpush1.msra.mxu0 0.0
        %4709 = vmatprep.subr.mxu0 0.0
        %4710 = vmatpush1.msra.mxu0 0.0
        %4711 = vmatprep.subr.mxu0 0.0
        %4712 = vmatpush1.msra.mxu0 0.0
        %4713 = vmatprep.subr.mxu0 0.0
        %4714 = vmatpush1.msra.mxu0 0.0
        %4715 = vmatprep.subr.mxu0 0.0
        %4716 = vmatpush1.msra.mxu0 0.0
        %4717 = vmatprep.subr.mxu0 0.0
        %4718 = vmatpush1.msra.mxu0 0.0
        %4719 = vmatprep.subr.mxu0 0.0
        %4720 = vmatpush1.msra.mxu0 0.0
        %4721 = vmatprep.subr.mxu0 0.0
        %4722 = vmatpush1.msra.mxu0 0.0
        %4723 = vmatprep.subr.mxu0 0.0
        %4724 = vmatpush1.msra.mxu0 0.0
        %4725 = vmatprep.subr.mxu0 0.0
        %4726 = vmatpush1.msra.mxu0 0.0
        %4727 = vmatprep.subr.mxu0 0.0
        %4728 = vmatpush1.msra.mxu0 0.0
        %4729 = vmatprep.subr.mxu0 0.0
        %4730 = vmatpush1.msra.mxu0 0.0
        %4731 = vmatprep.subr.mxu0 0.0
        %4732 = vmatpush1.msra.mxu0 0.0
        %4733 = vmatprep.subr.mxu0 0.0
        %4734 = vmatpush1.msra.mxu0 0.0
        %4735 = vmatprep.subr.mxu0 0.0
        %4736 = vmatpush1.msra.mxu0 0.0
        %4737 = vmatprep.subr.mxu0 0.0
        %4738 = vmatpush1.msra.mxu0 0.0
        %4739 = vmatprep.mubr.f32.mxu0 0.0
        %4740 = vmatmul.mubr.f32.gmra.mrb[0].mxu0 %v4664
        %v4741 = vpop.f32.mrb[0].mxu0
        %v4742 = vadd.f32 0.0, %v4741
        %v4743 = vpop.f32.mrb[0].mxu0
        %4744 = vmatprep.mubr.f32.mxu0 0.0
        %4745 = vmatmul.mubr.f32.gmra.mrb[0].mxu0 %v4667
        %v4746 = vpop.f32.mrb[0].mxu0
        %v4747 = vadd.f32 0.0, %v4746
        %v4748 = vpop.f32.mrb[0].mxu0
        %4749 = vmatprep.mubr.f32.mxu0 0.0
        %4750 = vmatmul.mubr.f32.gmra.mrb[0].mxu0 %v4670
        %v4751 = vpop.f32.mrb[0].mxu0
        %v4752 = vadd.f32 0.0, %v4751
        %v4753 = vpop.f32.mrb[0].mxu0
        %4754 = vmatprep.mubr.f32.mxu0 0.0
        %4755 = vmatmul.mubr.f32.gmra.mrb[0].mxu0 %v4673
        %v4756 = vpop.f32.mrb[0].mxu0
        %v4757 = vadd.f32 0.0, %v4756
        %v4758 = vpop.f32.mrb[0].mxu0
        %4759 = vdwg.mxu0
        %4760 = vmatprep.subr.mxu0 0.0
        %4761 = vmatpush1.msra.mxu0 %v4628
        %4762 = vmatprep.subr.mxu0 0.0
        %4763 = vmatpush1.msra.mxu0 %v4629
        %4764 = vmatprep.subr.mxu0 0.0
        %4765 = vmatpush1.msra.mxu0 0.0
        %4766 = vmatprep.subr.mxu0 0.0
        %4767 = vmatpush1.msra.mxu0 0.0
        %4768 = vmatprep.subr.mxu0 0.0
        %4769 = vmatpush1.msra.mxu0 0.0
        %4770 = vmatprep.subr.mxu0 0.0
        %4771 = vmatpush1.msra.mxu0 0.0
        %4772 = vmatprep.subr.mxu0 0.0
        %4773 = vmatpush1.msra.mxu0 0.0
        %4774 = vmatprep.subr.mxu0 0.0
        %4775 = vmatpush1.msra.mxu0 0.0
        %4776 = vmatprep.subr.mxu0 0.0
        %4777 = vmatpush1.msra.mxu0 0.0
        %4778 = vmatprep.subr.mxu0 0.0
        %4779 = vmatpush1.msra.mxu0 0.0
        %4780 = vmatprep.subr.mxu0 0.0
        %4781 = vmatpush1.msra.mxu0 0.0
        %4782 = vmatprep.subr.mxu0 0.0
        %4783 = vmatpush1.msra.mxu0 0.0
        %4784 = vmatprep.subr.mxu0 0.0
        %4785 = vmatpush1.msra.mxu0 0.0
        %4786 = vmatprep.subr.mxu0 0.0
        %4787 = vmatpush1.msra.mxu0 0.0
        %4788 = vmatprep.subr.mxu0 0.0
        %4789 = vmatpush1.msra.mxu0 0.0
        %4790 = vmatprep.subr.mxu0 0.0
        %4791 = vmatpush1.msra.mxu0 0.0
        %4792 = vmatprep.subr.mxu0 0.0
        %4793 = vmatpush1.msra.mxu0 0.0
        %4794 = vmatprep.subr.mxu0 0.0
        %4795 = vmatpush1.msra.mxu0 0.0
        %4796 = vmatprep.subr.mxu0 0.0
        %4797 = vmatpush1.msra.mxu0 0.0
        %4798 = vmatprep.subr.mxu0 0.0
        %4799 = vmatpush1.msra.mxu0 0.0
        %4800 = vmatprep.subr.mxu0 0.0
        %4801 = vmatpush1.msra.mxu0 0.0
        %4802 = vmatprep.subr.mxu0 0.0
        %4803 = vmatpush1.msra.mxu0 0.0
        %4804 = vmatprep.subr.mxu0 0.0
        %4805 = vmatpush1.msra.mxu0 0.0
        %4806 = vmatprep.subr.mxu0 0.0
        %4807 = vmatpush1.msra.mxu0 0.0
        %4808 = vmatprep.subr.mxu0 0.0
        %4809 = vmatpush1.msra.mxu0 0.0
        %4810 = vmatprep.subr.mxu0 0.0
        %4811 = vmatpush1.msra.mxu0 0.0
        %4812 = vmatprep.subr.mxu0 0.0
        %4813 = vmatpush1.msra.mxu0 0.0
        %4814 = vmatprep.subr.mxu0 0.0
        %4815 = vmatpush1.msra.mxu0 0.0
        %4816 = vmatprep.subr.mxu0 0.0
        %4817 = vmatpush1.msra.mxu0 0.0
        %4818 = vmatprep.subr.mxu0 0.0
        %4819 = vmatpush1.msra.mxu0 0.0
        %4820 = vmatprep.subr.mxu0 0.0
        %4821 = vmatpush1.msra.mxu0 0.0
        %4822 = vmatprep.subr.mxu0 0.0
        %4823 = vmatpush1.msra.mxu0 0.0
        %4824 = vmatprep.mubr.f32.mxu0 0.0
        %4825 = vmatmul.mubr.f32.gmra.mrb[0].mxu0 %v4664
        %v4826 = vpop.f32.mrb[0].mxu0
        %v4827 = vadd.f32 0.0, %v4826
        %v4828 = vpop.f32.mrb[0].mxu0
        %4829 = vmatprep.mubr.f32.mxu0 0.0
        %4830 = vmatmul.mubr.f32.gmra.mrb[0].mxu0 %v4667
        %v4831 = vpop.f32.mrb[0].mxu0
        %v4832 = vadd.f32 0.0, %v4831
        %v4833 = vpop.f32.mrb[0].mxu0
        %4834 = vmatprep.mubr.f32.mxu0 0.0
        %4835 = vmatmul.mubr.f32.gmra.mrb[0].mxu0 %v4670
        %v4836 = vpop.f32.mrb[0].mxu0
        %v4837 = vadd.f32 0.0, %v4836
        %v4838 = vpop.f32.mrb[0].mxu0
        %4839 = vmatprep.mubr.f32.mxu0 0.0
        %4840 = vmatmul.mubr.f32.gmra.mrb[0].mxu0 %v4673
        %v4841 = vpop.f32.mrb[0].mxu0
        %v4842 = vadd.f32 0.0, %v4841
        %v4843 = vpop.f32.mrb[0].mxu0
        %4844 = vdwg.mxu0
        %4845 = vmatprep.subr.mxu0 0.0
        %4846 = vmatpush1.msra.mxu0 %v4630
        %4847 = vmatprep.subr.mxu0 0.0
        %4848 = vmatpush1.msra.mxu0 %v4631
        %4849 = vmatprep.subr.mxu0 0.0
        %4850 = vmatpush1.msra.mxu0 0.0
        %4851 = vmatprep.subr.mxu0 0.0
        %4852 = vmatpush1.msra.mxu0 0.0
        %4853 = vmatprep.subr.mxu0 0.0
        %4854 = vmatpush1.msra.mxu0 0.0
        %4855 = vmatprep.subr.mxu0 0.0
        %4856 = vmatpush1.msra.mxu0 0.0
        %4857 = vmatprep.subr.mxu0 0.0
        %4858 = vmatpush1.msra.mxu0 0.0
        %4859 = vmatprep.subr.mxu0 0.0
        %4860 = vmatpush1.msra.mxu0 0.0
        %4861 = vmatprep.subr.mxu0 0.0
        %4862 = vmatpush1.msra.mxu0 0.0
        %4863 = vmatprep.subr.mxu0 0.0
        %4864 = vmatpush1.msra.mxu0 0.0
        %4865 = vmatprep.subr.mxu0 0.0
        %4866 = vmatpush1.msra.mxu0 0.0
        %4867 = vmatprep.subr.mxu0 0.0
        %4868 = vmatpush1.msra.mxu0 0.0
        %4869 = vmatprep.subr.mxu0 0.0
        %4870 = vmatpush1.msra.mxu0 0.0
        %4871 = vmatprep.subr.mxu0 0.0
        %4872 = vmatpush1.msra.mxu0 0.0
        %4873 = vmatprep.subr.mxu0 0.0
        %4874 = vmatpush1.msra.mxu0 0.0
        %4875 = vmatprep.subr.mxu0 0.0
        %4876 = vmatpush1.msra.mxu0 0.0
        %4877 = vmatprep.subr.mxu0 0.0
        %4878 = vmatpush1.msra.mxu0 0.0
        %4879 = vmatprep.subr.mxu0 0.0
        %4880 = vmatpush1.msra.mxu0 0.0
        %4881 = vmatprep.subr.mxu0 0.0
        %4882 = vmatpush1.msra.mxu0 0.0
        %4883 = vmatprep.subr.mxu0 0.0
        %4884 = vmatpush1.msra.mxu0 0.0
        %4885 = vmatprep.subr.mxu0 0.0
        %4886 = vmatpush1.msra.mxu0 0.0
        %4887 = vmatprep.subr.mxu0 0.0
        %4888 = vmatpush1.msra.mxu0 0.0
        %4889 = vmatprep.subr.mxu0 0.0
        %4890 = vmatpush1.msra.mxu0 0.0
        %4891 = vmatprep.subr.mxu0 0.0
        %4892 = vmatpush1.msra.mxu0 0.0
        %4893 = vmatprep.subr.mxu0 0.0
        %4894 = vmatpush1.msra.mxu0 0.0
        %4895 = vmatprep.subr.mxu0 0.0
        %4896 = vmatpush1.msra.mxu0 0.0
        %4897 = vmatprep.subr.mxu0 0.0
        %4898 = vmatpush1.msra.mxu0 0.0
        %4899 = vmatprep.subr.mxu0 0.0
        %4900 = vmatpush1.msra.mxu0 0.0
        %4901 = vmatprep.subr.mxu0 0.0
        %4902 = vmatpush1.msra.mxu0 0.0
        %4903 = vmatprep.subr.mxu0 0.0
        %4904 = vmatpush1.msra.mxu0 0.0
        %4905 = vmatprep.subr.mxu0 0.0
        %4906 = vmatpush1.msra.mxu0 0.0
        %4907 = vmatprep.subr.mxu0 0.0
        %4908 = vmatpush1.msra.mxu0 0.0
        %4909 = vmatprep.mubr.f32.mxu0 0.0
        %4910 = vmatmul.mubr.f32.gmra.mrb[0].mxu0 %v4664
        %v4911 = vpop.f32.mrb[0].mxu0
        %v4912 = vadd.f32 0.0, %v4911
        %v4913 = vpop.f32.mrb[0].mxu0
        %4914 = vmatprep.mubr.f32.mxu0 0.0
        %4915 = vmatmul.mubr.f32.gmra.mrb[0].mxu0 %v4667
        %v4916 = vpop.f32.mrb[0].mxu0
        %v4917 = vadd.f32 0.0, %v4916
        %v4918 = vpop.f32.mrb[0].mxu0
        %4919 = vmatprep.mubr.f32.mxu0 0.0
        %4920 = vmatmul.mubr.f32.gmra.mrb[0].mxu0 %v4670
        %v4921 = vpop.f32.mrb[0].mxu0
        %v4922 = vadd.f32 0.0, %v4921
        %v4923 = vpop.f32.mrb[0].mxu0
        %4924 = vmatprep.mubr.f32.mxu0 0.0
        %4925 = vmatmul.mubr.f32.gmra.mrb[0].mxu0 %v4673
        %v4926 = vpop.f32.mrb[0].mxu0
        %v4927 = vadd.f32 0.0, %v4926
        %v4928 = vpop.f32.mrb[0].mxu0
        %4929 = vdwg.mxu0
        %4930 = vmatprep.subr.mxu0 0.0
        %4931 = vmatpush1.msra.mxu0 %v4632
        %4932 = vmatprep.subr.mxu0 0.0
        %4933 = vmatpush1.msra.mxu0 %v4633
        %4934 = vmatprep.subr.mxu0 0.0
        %4935 = vmatpush1.msra.mxu0 0.0
        %4936 = vmatprep.subr.mxu0 0.0
        %4937 = vmatpush1.msra.mxu0 0.0
        %4938 = vmatprep.subr.mxu0 0.0
        %4939 = vmatpush1.msra.mxu0 0.0
        %4940 = vmatprep.subr.mxu0 0.0
        %4941 = vmatpush1.msra.mxu0 0.0
        %4942 = vmatprep.subr.mxu0 0.0
        %4943 = vmatpush1.msra.mxu0 0.0
        %4944 = vmatprep.subr.mxu0 0.0
        %4945 = vmatpush1.msra.mxu0 0.0
        %4946 = vmatprep.subr.mxu0 0.0
        %4947 = vmatpush1.msra.mxu0 0.0
        %4948 = vmatprep.subr.mxu0 0.0
        %4949 = vmatpush1.msra.mxu0 0.0
        %4950 = vmatprep.subr.mxu0 0.0
        %4951 = vmatpush1.msra.mxu0 0.0
        %4952 = vmatprep.subr.mxu0 0.0
        %4953 = vmatpush1.msra.mxu0 0.0
        %4954 = vmatprep.subr.mxu0 0.0
        %4955 = vmatpush1.msra.mxu0 0.0
        %4956 = vmatprep.subr.mxu0 0.0
        %4957 = vmatpush1.msra.mxu0 0.0
        %4958 = vmatprep.subr.mxu0 0.0
        %4959 = vmatpush1.msra.mxu0 0.0
        %4960 = vmatprep.subr.mxu0 0.0
        %4961 = vmatpush1.msra.mxu0 0.0
        %4962 = vmatprep.subr.mxu0 0.0
        %4963 = vmatpush1.msra.mxu0 0.0
        %4964 = vmatprep.subr.mxu0 0.0
        %4965 = vmatpush1.msra.mxu0 0.0
        %4966 = vmatprep.subr.mxu0 0.0
        %4967 = vmatpush1.msra.mxu0 0.0
        %4968 = vmatprep.subr.mxu0 0.0
        %4969 = vmatpush1.msra.mxu0 0.0
        %4970 = vmatprep.subr.mxu0 0.0
        %4971 = vmatpush1.msra.mxu0 0.0
        %4972 = vmatprep.subr.mxu0 0.0
        %4973 = vmatpush1.msra.mxu0 0.0
        %4974 = vmatprep.subr.mxu0 0.0
        %4975 = vmatpush1.msra.mxu0 0.0
        %4976 = vmatprep.subr.mxu0 0.0
        %4977 = vmatpush1.msra.mxu0 0.0
        %4978 = vmatprep.subr.mxu0 0.0
        %4979 = vmatpush1.msra.mxu0 0.0
        %4980 = vmatprep.subr.mxu0 0.0
        %4981 = vmatpush1.msra.mxu0 0.0
        %4982 = vmatprep.subr.mxu0 0.0
        %4983 = vmatpush1.msra.mxu0 0.0
        %4984 = vmatprep.subr.mxu0 0.0
        %4985 = vmatpush1.msra.mxu0 0.0
        %4986 = vmatprep.subr.mxu0 0.0
        %4987 = vmatpush1.msra.mxu0 0.0
        %4988 = vmatprep.subr.mxu0 0.0
        %4989 = vmatpush1.msra.mxu0 0.0
        %4990 = vmatprep.subr.mxu0 0.0
        %4991 = vmatpush1.msra.mxu0 0.0
        %4992 = vmatprep.subr.mxu0 0.0
        %4993 = vmatpush1.msra.mxu0 0.0
        %4994 = vmatprep.mubr.f32.mxu0 0.0
        %4995 = vmatmul.mubr.f32.gmra.mrb[0].mxu0 %v4664
        %v4996 = vpop.f32.mrb[0].mxu0
        %v4997 = vadd.f32 0.0, %v4996
        %v4998 = vpop.f32.mrb[0].mxu0
        %4999 = vmatprep.mubr.f32.mxu0 0.0
        %5000 = vmatmul.mubr.f32.gmra.mrb[0].mxu0 %v4667
        %v5001 = vpop.f32.mrb[0].mxu0
        %v5002 = vadd.f32 0.0, %v5001
        %v5003 = vpop.f32.mrb[0].mxu0
        %5004 = vmatprep.mubr.f32.mxu0 0.0
        %5005 = vmatmul.mubr.f32.gmra.mrb[0].mxu0 %v4670
        %v5006 = vpop.f32.mrb[0].mxu0
        %v5007 = vadd.f32 0.0, %v5006
        %v5008 = vpop.f32.mrb[0].mxu0
        %5009 = vmatprep.mubr.f32.mxu0 0.0
        %5010 = vmatmul.mubr.f32.gmra.mrb[0].mxu0 %v4673
        %v5011 = vpop.f32.mrb[0].mxu0
        %v5012 = vadd.f32 0.0, %v5011
        %v5013 = vpop.f32.mrb[0].mxu0
        %5014 = vdwg.mxu0
        %5015 = vmatprep.subr.mxu0 0.0
        %5016 = vmatpush1.msra.mxu0 %v4634
        %5017 = vmatprep.subr.mxu0 0.0
        %5018 = vmatpush1.msra.mxu0 %v4635
        %5019 = vmatprep.subr.mxu0 0.0
        %5020 = vmatpush1.msra.mxu0 0.0
        %5021 = vmatprep.subr.mxu0 0.0
        %5022 = vmatpush1.msra.mxu0 0.0
        %5023 = vmatprep.subr.mxu0 0.0
        %5024 = vmatpush1.msra.mxu0 0.0
        %5025 = vmatprep.subr.mxu0 0.0
        %5026 = vmatpush1.msra.mxu0 0.0
        %5027 = vmatprep.subr.mxu0 0.0
        %5028 = vmatpush1.msra.mxu0 0.0
        %5029 = vmatprep.subr.mxu0 0.0
        %5030 = vmatpush1.msra.mxu0 0.0
        %5031 = vmatprep.subr.mxu0 0.0
        %5032 = vmatpush1.msra.mxu0 0.0
        %5033 = vmatprep.subr.mxu0 0.0
        %5034 = vmatpush1.msra.mxu0 0.0
        %5035 = vmatprep.subr.mxu0 0.0
        %5036 = vmatpush1.msra.mxu0 0.0
        %5037 = vmatprep.subr.mxu0 0.0
        %5038 = vmatpush1.msra.mxu0 0.0
        %5039 = vmatprep.subr.mxu0 0.0
        %5040 = vmatpush1.msra.mxu0 0.0
        %5041 = vmatprep.subr.mxu0 0.0
        %5042 = vmatpush1.msra.mxu0 0.0
        %5043 = vmatprep.subr.mxu0 0.0
        %5044 = vmatpush1.msra.mxu0 0.0
        %5045 = vmatprep.subr.mxu0 0.0
        %5046 = vmatpush1.msra.mxu0 0.0
        %5047 = vmatprep.subr.mxu0 0.0
        %5048 = vmatpush1.msra.mxu0 0.0
        %5049 = vmatprep.subr.mxu0 0.0
        %5050 = vmatpush1.msra.mxu0 0.0
        %5051 = vmatprep.subr.mxu0 0.0
        %5052 = vmatpush1.msra.mxu0 0.0
        %5053 = vmatprep.subr.mxu0 0.0
        %5054 = vmatpush1.msra.mxu0 0.0
        %5055 = vmatprep.subr.mxu0 0.0
        %5056 = vmatpush1.msra.mxu0 0.0
        %5057 = vmatprep.subr.mxu0 0.0
        %5058 = vmatpush1.msra.mxu0 0.0
        %5059 = vmatprep.subr.mxu0 0.0
        %5060 = vmatpush1.msra.mxu0 0.0
        %5061 = vmatprep.subr.mxu0 0.0
        %5062 = vmatpush1.msra.mxu0 0.0
        %5063 = vmatprep.subr.mxu0 0.0
        %5064 = vmatpush1.msra.mxu0 0.0
        %5065 = vmatprep.subr.mxu0 0.0
        %5066 = vmatpush1.msra.mxu0 0.0
        %5067 = vmatprep.subr.mxu0 0.0
        %5068 = vmatpush1.msra.mxu0 0.0
        %5069 = vmatprep.subr.mxu0 0.0
        %5070 = vmatpush1.msra.mxu0 0.0
        %5071 = vmatprep.subr.mxu0 0.0
        %5072 = vmatpush1.msra.mxu0 0.0
        %5073 = vmatprep.subr.mxu0 0.0
        %5074 = vmatpush1.msra.mxu0 0.0
        %5075 = vmatprep.subr.mxu0 0.0
        %5076 = vmatpush1.msra.mxu0 0.0
        %5077 = vmatprep.subr.mxu0 0.0
        %5078 = vmatpush1.msra.mxu0 0.0
        %5079 = vmatprep.mubr.f32.mxu0 0.0
        %5080 = vmatmul.mubr.f32.gmra.mrb[0].mxu0 %v4664
        %v5081 = vpop.f32.mrb[0].mxu0
        %v5082 = vadd.f32 0.0, %v5081
        %v5083 = vpop.f32.mrb[0].mxu0
        %5084 = vmatprep.mubr.f32.mxu0 0.0
        %5085 = vmatmul.mubr.f32.gmra.mrb[0].mxu0 %v4667
        %v5086 = vpop.f32.mrb[0].mxu0
        %v5087 = vadd.f32 0.0, %v5086
        %v5088 = vpop.f32.mrb[0].mxu0
        %5089 = vmatprep.mubr.f32.mxu0 0.0
        %5090 = vmatmul.mubr.f32.gmra.mrb[0].mxu0 %v4670
        %v5091 = vpop.f32.mrb[0].mxu0
        %v5092 = vadd.f32 0.0, %v5091
        %v5093 = vpop.f32.mrb[0].mxu0
        %5094 = vmatprep.mubr.f32.mxu0 0.0
        %5095 = vmatmul.mubr.f32.gmra.mrb[0].mxu0 %v4673
        %v5096 = vpop.f32.mrb[0].mxu0
        %v5097 = vadd.f32 0.0, %v5096
        %v5098 = vpop.f32.mrb[0].mxu0
        %5099 = vdwg.mxu0
        %5100 = vmatprep.subr.mxu0 0.0
        %5101 = vmatpush1.msra.mxu0 %v4636
        %5102 = vmatprep.subr.mxu0 0.0
        %5103 = vmatpush1.msra.mxu0 %v4637
        %5104 = vmatprep.subr.mxu0 0.0
        %5105 = vmatpush1.msra.mxu0 0.0
        %5106 = vmatprep.subr.mxu0 0.0
        %5107 = vmatpush1.msra.mxu0 0.0
        %5108 = vmatprep.subr.mxu0 0.0
        %5109 = vmatpush1.msra.mxu0 0.0
        %5110 = vmatprep.subr.mxu0 0.0
        %5111 = vmatpush1.msra.mxu0 0.0
        %5112 = vmatprep.subr.mxu0 0.0
        %5113 = vmatpush1.msra.mxu0 0.0
        %5114 = vmatprep.subr.mxu0 0.0
        %5115 = vmatpush1.msra.mxu0 0.0
        %5116 = vmatprep.subr.mxu0 0.0
        %5117 = vmatpush1.msra.mxu0 0.0
        %5118 = vmatprep.subr.mxu0 0.0
        %5119 = vmatpush1.msra.mxu0 0.0
        %5120 = vmatprep.subr.mxu0 0.0
        %5121 = vmatpush1.msra.mxu0 0.0
        %5122 = vmatprep.subr.mxu0 0.0
        %5123 = vmatpush1.msra.mxu0 0.0
        %5124 = vmatprep.subr.mxu0 0.0
        %5125 = vmatpush1.msra.mxu0 0.0
        %5126 = vmatprep.subr.mxu0 0.0
        %5127 = vmatpush1.msra.mxu0 0.0
        %5128 = vmatprep.subr.mxu0 0.0
        %5129 = vmatpush1.msra.mxu0 0.0
        %5130 = vmatprep.subr.mxu0 0.0
        %5131 = vmatpush1.msra.mxu0 0.0
        %5132 = vmatprep.subr.mxu0 0.0
        %5133 = vmatpush1.msra.mxu0 0.0
        %5134 = vmatprep.subr.mxu0 0.0
        %5135 = vmatpush1.msra.mxu0 0.0
        %5136 = vmatprep.subr.mxu0 0.0
        %5137 = vmatpush1.msra.mxu0 0.0
        %5138 = vmatprep.subr.mxu0 0.0
        %5139 = vmatpush1.msra.mxu0 0.0
        %5140 = vmatprep.subr.mxu0 0.0
        %5141 = vmatpush1.msra.mxu0 0.0
        %5142 = vmatprep.subr.mxu0 0.0
        %5143 = vmatpush1.msra.mxu0 0.0
        %5144 = vmatprep.subr.mxu0 0.0
        %5145 = vmatpush1.msra.mxu0 0.0
        %5146 = vmatprep.subr.mxu0 0.0
        %5147 = vmatpush1.msra.mxu0 0.0
        %5148 = vmatprep.subr.mxu0 0.0
        %5149 = vmatpush1.msra.mxu0 0.0
        %5150 = vmatprep.subr.mxu0 0.0
        %5151 = vmatpush1.msra.mxu0 0.0
        %5152 = vmatprep.subr.mxu0 0.0
        %5153 = vmatpush1.msra.mxu0 0.0
        %5154 = vmatprep.subr.mxu0 0.0
        %5155 = vmatpush1.msra.mxu0 0.0
        %5156 = vmatprep.subr.mxu0 0.0
        %5157 = vmatpush1.msra.mxu0 0.0
        %5158 = vmatprep.subr.mxu0 0.0
        %5159 = vmatpush1.msra.mxu0 0.0
        %5160 = vmatprep.subr.mxu0 0.0
        %5161 = vmatpush1.msra.mxu0 0.0
        %5162 = vmatprep.subr.mxu0 0.0
        %5163 = vmatpush1.msra.mxu0 0.0
        %5164 = vmatprep.mubr.f32.mxu0 0.0
        %5165 = vmatmul.mubr.f32.gmra.mrb[0].mxu0 %v4664
        %v5166 = vpop.f32.mrb[0].mxu0
        %v5167 = vadd.f32 0.0, %v5166
        %v5168 = vpop.f32.mrb[0].mxu0
        %5169 = vmatprep.mubr.f32.mxu0 0.0
        %5170 = vmatmul.mubr.f32.gmra.mrb[0].mxu0 %v4667
        %v5171 = vpop.f32.mrb[0].mxu0
        %v5172 = vadd.f32 0.0, %v5171
        %v5173 = vpop.f32.mrb[0].mxu0
        %5174 = vmatprep.mubr.f32.mxu0 0.0
        %5175 = vmatmul.mubr.f32.gmra.mrb[0].mxu0 %v4670
        %v5176 = vpop.f32.mrb[0].mxu0
        %v5177 = vadd.f32 0.0, %v5176
        %v5178 = vpop.f32.mrb[0].mxu0
        %5179 = vmatprep.mubr.f32.mxu0 0.0
        %5180 = vmatmul.mubr.f32.gmra.mrb[0].mxu0 %v4673
        %v5181 = vpop.f32.mrb[0].mxu0
        %v5182 = vadd.f32 0.0, %v5181
        %v5183 = vpop.f32.mrb[0].mxu0
        %5184 = vdwg.mxu0
        %5185 = vmatprep.subr.mxu0 0.0
        %5186 = vmatpush1.msra.mxu0 %v4638
        %5187 = vmatprep.subr.mxu0 0.0
        %5188 = vmatpush1.msra.mxu0 %v4639
        %5189 = vmatprep.subr.mxu0 0.0
        %5190 = vmatpush1.msra.mxu0 0.0
        %5191 = vmatprep.subr.mxu0 0.0
        %5192 = vmatpush1.msra.mxu0 0.0
        %5193 = vmatprep.subr.mxu0 0.0
        %5194 = vmatpush1.msra.mxu0 0.0
        %5195 = vmatprep.subr.mxu0 0.0
        %5196 = vmatpush1.msra.mxu0 0.0
        %5197 = vmatprep.subr.mxu0 0.0
        %5198 = vmatpush1.msra.mxu0 0.0
        %5199 = vmatprep.subr.mxu0 0.0
        %5200 = vmatpush1.msra.mxu0 0.0
        %5201 = vmatprep.subr.mxu0 0.0
        %5202 = vmatpush1.msra.mxu0 0.0
        %5203 = vmatprep.subr.mxu0 0.0
        %5204 = vmatpush1.msra.mxu0 0.0
        %5205 = vmatprep.subr.mxu0 0.0
        %5206 = vmatpush1.msra.mxu0 0.0
        %5207 = vmatprep.subr.mxu0 0.0
        %5208 = vmatpush1.msra.mxu0 0.0
        %5209 = vmatprep.subr.mxu0 0.0
        %5210 = vmatpush1.msra.mxu0 0.0
        %5211 = vmatprep.subr.mxu0 0.0
        %5212 = vmatpush1.msra.mxu0 0.0
        %5213 = vmatprep.subr.mxu0 0.0
        %5214 = vmatpush1.msra.mxu0 0.0
        %5215 = vmatprep.subr.mxu0 0.0
        %5216 = vmatpush1.msra.mxu0 0.0
        %5217 = vmatprep.subr.mxu0 0.0
        %5218 = vmatpush1.msra.mxu0 0.0
        %5219 = vmatprep.subr.mxu0 0.0
        %5220 = vmatpush1.msra.mxu0 0.0
        %5221 = vmatprep.subr.mxu0 0.0
        %5222 = vmatpush1.msra.mxu0 0.0
        %5223 = vmatprep.subr.mxu0 0.0
        %5224 = vmatpush1.msra.mxu0 0.0
        %5225 = vmatprep.subr.mxu0 0.0
        %5226 = vmatpush1.msra.mxu0 0.0
        %5227 = vmatprep.subr.mxu0 0.0
        %5228 = vmatpush1.msra.mxu0 0.0
        %5229 = vmatprep.subr.mxu0 0.0
        %5230 = vmatpush1.msra.mxu0 0.0
        %5231 = vmatprep.subr.mxu0 0.0
        %5232 = vmatpush1.msra.mxu0 0.0
        %5233 = vmatprep.subr.mxu0 0.0
        %5234 = vmatpush1.msra.mxu0 0.0
        %5235 = vmatprep.subr.mxu0 0.0
        %5236 = vmatpush1.msra.mxu0 0.0
        %5237 = vmatprep.subr.mxu0 0.0
        %5238 = vmatpush1.msra.mxu0 0.0
        %5239 = vmatprep.subr.mxu0 0.0
        %5240 = vmatpush1.msra.mxu0 0.0
        %5241 = vmatprep.subr.mxu0 0.0
        %5242 = vmatpush1.msra.mxu0 0.0
        %5243 = vmatprep.subr.mxu0 0.0
        %5244 = vmatpush1.msra.mxu0 0.0
        %5245 = vmatprep.subr.mxu0 0.0
        %5246 = vmatpush1.msra.mxu0 0.0
        %5247 = vmatprep.subr.mxu0 0.0
        %5248 = vmatpush1.msra.mxu0 0.0
        %5249 = vmatprep.mubr.f32.mxu0 0.0
        %5250 = vmatmul.mubr.f32.gmra.mrb[0].mxu0 %v4664
        %v5251 = vpop.f32.mrb[0].mxu0
        %v5252 = vadd.f32 0.0, %v5251
        %v5253 = vpop.f32.mrb[0].mxu0
        %5254 = vmatprep.mubr.f32.mxu0 0.0
        %5255 = vmatmul.mubr.f32.gmra.mrb[0].mxu0 %v4667
        %v5256 = vpop.f32.mrb[0].mxu0
        %v5257 = vadd.f32 0.0, %v5256
        %v5258 = vpop.f32.mrb[0].mxu0
        %5259 = vmatprep.mubr.f32.mxu0 0.0
        %5260 = vmatmul.mubr.f32.gmra.mrb[0].mxu0 %v4670
        %v5261 = vpop.f32.mrb[0].mxu0
        %v5262 = vadd.f32 0.0, %v5261
        %v5263 = vpop.f32.mrb[0].mxu0
        %5264 = vmatprep.mubr.f32.mxu0 0.0
        %5265 = vmatmul.mubr.f32.gmra.mrb[0].mxu0 %v4673
        %v5266 = vpop.f32.mrb[0].mxu0
        %v5267 = vadd.f32 0.0, %v5266
        %v5268 = vpop.f32.mrb[0].mxu0
        %5269 = vdwg.mxu0
        %5270 = vmatprep.subr.mxu0 0.0
        %5271 = vmatpush1.msra.mxu0 %v4640
        %5272 = vmatprep.subr.mxu0 0.0
        %5273 = vmatpush1.msra.mxu0 %v4641
        %5274 = vmatprep.subr.mxu0 0.0
        %5275 = vmatpush1.msra.mxu0 0.0
        %5276 = vmatprep.subr.mxu0 0.0
        %5277 = vmatpush1.msra.mxu0 0.0
        %5278 = vmatprep.subr.mxu0 0.0
        %5279 = vmatpush1.msra.mxu0 0.0
        %5280 = vmatprep.subr.mxu0 0.0
        %5281 = vmatpush1.msra.mxu0 0.0
        %5282 = vmatprep.subr.mxu0 0.0
        %5283 = vmatpush1.msra.mxu0 0.0
        %5284 = vmatprep.subr.mxu0 0.0
        %5285 = vmatpush1.msra.mxu0 0.0
        %5286 = vmatprep.subr.mxu0 0.0
        %5287 = vmatpush1.msra.mxu0 0.0
        %5288 = vmatprep.subr.mxu0 0.0
        %5289 = vmatpush1.msra.mxu0 0.0
        %5290 = vmatprep.subr.mxu0 0.0
        %5291 = vmatpush1.msra.mxu0 0.0
        %5292 = vmatprep.subr.mxu0 0.0
        %5293 = vmatpush1.msra.mxu0 0.0
        %5294 = vmatprep.subr.mxu0 0.0
        %5295 = vmatpush1.msra.mxu0 0.0
        %5296 = vmatprep.subr.mxu0 0.0
        %5297 = vmatpush1.msra.mxu0 0.0
        %5298 = vmatprep.subr.mxu0 0.0
        %5299 = vmatpush1.msra.mxu0 0.0
        %5300 = vmatprep.subr.mxu0 0.0
        %5301 = vmatpush1.msra.mxu0 0.0
        %5302 = vmatprep.subr.mxu0 0.0
        %5303 = vmatpush1.msra.mxu0 0.0
        %5304 = vmatprep.subr.mxu0 0.0
        %5305 = vmatpush1.msra.mxu0 0.0
        %5306 = vmatprep.subr.mxu0 0.0
        %5307 = vmatpush1.msra.mxu0 0.0
        %5308 = vmatprep.subr.mxu0 0.0
        %5309 = vmatpush1.msra.mxu0 0.0
        %5310 = vmatprep.subr.mxu0 0.0
        %5311 = vmatpush1.msra.mxu0 0.0
        %5312 = vmatprep.subr.mxu0 0.0
        %5313 = vmatpush1.msra.mxu0 0.0
        %5314 = vmatprep.subr.mxu0 0.0
        %5315 = vmatpush1.msra.mxu0 0.0
        %5316 = vmatprep.subr.mxu0 0.0
        %5317 = vmatpush1.msra.mxu0 0.0
        %5318 = vmatprep.subr.mxu0 0.0
        %5319 = vmatpush1.msra.mxu0 0.0
        %5320 = vmatprep.subr.mxu0 0.0
        %5321 = vmatpush1.msra.mxu0 0.0
        %5322 = vmatprep.subr.mxu0 0.0
        %5323 = vmatpush1.msra.mxu0 0.0
        %5324 = vmatprep.subr.mxu0 0.0
        %5325 = vmatpush1.msra.mxu0 0.0
        %5326 = vmatprep.subr.mxu0 0.0
        %5327 = vmatpush1.msra.mxu0 0.0
        %5328 = vmatprep.subr.mxu0 0.0
        %5329 = vmatpush1.msra.mxu0 0.0
        %5330 = vmatprep.subr.mxu0 0.0
        %5331 = vmatpush1.msra.mxu0 0.0
        %5332 = vmatprep.subr.mxu0 0.0
        %5333 = vmatpush1.msra.mxu0 0.0
        %5334 = vmatprep.mubr.f32.mxu0 0.0
        %5335 = vmatmul.mubr.f32.gmra.mrb[0].mxu0 %v4664
        %v5336 = vpop.f32.mrb[0].mxu0
        %v5337 = vadd.f32 0.0, %v5336
        %v5338 = vpop.f32.mrb[0].mxu0
        %5339 = vmatprep.mubr.f32.mxu0 0.0
        %5340 = vmatmul.mubr.f32.gmra.mrb[0].mxu0 %v4667
        %v5341 = vpop.f32.mrb[0].mxu0
        %v5342 = vadd.f32 0.0, %v5341
        %v5343 = vpop.f32.mrb[0].mxu0
        %5344 = vmatprep.mubr.f32.mxu0 0.0
        %5345 = vmatmul.mubr.f32.gmra.mrb[0].mxu0 %v4670
        %v5346 = vpop.f32.mrb[0].mxu0
        %v5347 = vadd.f32 0.0, %v5346
        %v5348 = vpop.f32.mrb[0].mxu0
        %5349 = vmatprep.mubr.f32.mxu0 0.0
        %5350 = vmatmul.mubr.f32.gmra.mrb[0].mxu0 %v4673
        %v5351 = vpop.f32.mrb[0].mxu0
        %v5352 = vadd.f32 0.0, %v5351
        %v5353 = vpop.f32.mrb[0].mxu0
        %5354 = vdwg.mxu0
        %5355 = vmatprep.subr.mxu0 0.0
        %5356 = vmatpush1.msra.mxu0 %v4642
        %5357 = vmatprep.subr.mxu0 0.0
        %5358 = vmatpush1.msra.mxu0 %v4643
        %5359 = vmatprep.subr.mxu0 0.0
        %5360 = vmatpush1.msra.mxu0 0.0
        %5361 = vmatprep.subr.mxu0 0.0
        %5362 = vmatpush1.msra.mxu0 0.0
        %5363 = vmatprep.subr.mxu0 0.0
        %5364 = vmatpush1.msra.mxu0 0.0
        %5365 = vmatprep.subr.mxu0 0.0
        %5366 = vmatpush1.msra.mxu0 0.0
        %5367 = vmatprep.subr.mxu0 0.0
        %5368 = vmatpush1.msra.mxu0 0.0
        %5369 = vmatprep.subr.mxu0 0.0
        %5370 = vmatpush1.msra.mxu0 0.0
        %5371 = vmatprep.subr.mxu0 0.0
        %5372 = vmatpush1.msra.mxu0 0.0
        %5373 = vmatprep.subr.mxu0 0.0
        %5374 = vmatpush1.msra.mxu0 0.0
        %5375 = vmatprep.subr.mxu0 0.0
        %5376 = vmatpush1.msra.mxu0 0.0
        %5377 = vmatprep.subr.mxu0 0.0
        %5378 = vmatpush1.msra.mxu0 0.0
        %5379 = vmatprep.subr.mxu0 0.0
        %5380 = vmatpush1.msra.mxu0 0.0
        %5381 = vmatprep.subr.mxu0 0.0
        %5382 = vmatpush1.msra.mxu0 0.0
        %5383 = vmatprep.subr.mxu0 0.0
        %5384 = vmatpush1.msra.mxu0 0.0
        %5385 = vmatprep.subr.mxu0 0.0
        %5386 = vmatpush1.msra.mxu0 0.0
        %5387 = vmatprep.subr.mxu0 0.0
        %5388 = vmatpush1.msra.mxu0 0.0
        %5389 = vmatprep.subr.mxu0 0.0
        %5390 = vmatpush1.msra.mxu0 0.0
        %5391 = vmatprep.subr.mxu0 0.0
        %5392 = vmatpush1.msra.mxu0 0.0
        %5393 = vmatprep.subr.mxu0 0.0
        %5394 = vmatpush1.msra.mxu0 0.0
        %5395 = vmatprep.subr.mxu0 0.0
        %5396 = vmatpush1.msra.mxu0 0.0
        %5397 = vmatprep.subr.mxu0 0.0
        %5398 = vmatpush1.msra.mxu0 0.0
        %5399 = vmatprep.subr.mxu0 0.0
        %5400 = vmatpush1.msra.mxu0 0.0
        %5401 = vmatprep.subr.mxu0 0.0
        %5402 = vmatpush1.msra.mxu0 0.0
        %5403 = vmatprep.subr.mxu0 0.0
        %5404 = vmatpush1.msra.mxu0 0.0
        %5405 = vmatprep.subr.mxu0 0.0
        %5406 = vmatpush1.msra.mxu0 0.0
        %5407 = vmatprep.subr.mxu0 0.0
        %5408 = vmatpush1.msra.mxu0 0.0
        %5409 = vmatprep.subr.mxu0 0.0
        %5410 = vmatpush1.msra.mxu0 0.0
        %5411 = vmatprep.subr.mxu0 0.0
        %5412 = vmatpush1.msra.mxu0 0.0
        %5413 = vmatprep.subr.mxu0 0.0
        %5414 = vmatpush1.msra.mxu0 0.0
        %5415 = vmatprep.subr.mxu0 0.0
        %5416 = vmatpush1.msra.mxu0 0.0
        %5417 = vmatprep.subr.mxu0 0.0
        %5418 = vmatpush1.msra.mxu0 0.0
        %5419 = vmatprep.mubr.f32.mxu0 0.0
        %5420 = vmatmul.mubr.f32.gmra.mrb[0].mxu0 %v4664
        %v5421 = vpop.f32.mrb[0].mxu0
        %v5422 = vadd.f32 0.0, %v5421
        %v5423 = vpop.f32.mrb[0].mxu0
        %5424 = vmatprep.mubr.f32.mxu0 0.0
        %5425 = vmatmul.mubr.f32.gmra.mrb[0].mxu0 %v4667
        %v5426 = vpop.f32.mrb[0].mxu0
        %v5427 = vadd.f32 0.0, %v5426
        %v5428 = vpop.f32.mrb[0].mxu0
        %5429 = vmatprep.mubr.f32.mxu0 0.0
        %5430 = vmatmul.mubr.f32.gmra.mrb[0].mxu0 %v4670
        %v5431 = vpop.f32.mrb[0].mxu0
        %v5432 = vadd.f32 0.0, %v5431
        %v5433 = vpop.f32.mrb[0].mxu0
        %5434 = vmatprep.mubr.f32.mxu0 0.0
        %5435 = vmatmul.mubr.f32.gmra.mrb[0].mxu0 %v4673
        %v5436 = vpop.f32.mrb[0].mxu0
        %v5437 = vadd.f32 0.0, %v5436
        %v5438 = vpop.f32.mrb[0].mxu0
        %5439 = vdwg.mxu0
        %5440 = vmatprep.subr.mxu0 0.0
        %5441 = vmatpush1.msra.mxu0 %v4644
        %5442 = vmatprep.subr.mxu0 0.0
        %5443 = vmatpush1.msra.mxu0 %v4645
        %5444 = vmatprep.subr.mxu0 0.0
        %5445 = vmatpush1.msra.mxu0 0.0
        %5446 = vmatprep.subr.mxu0 0.0
        %5447 = vmatpush1.msra.mxu0 0.0
        %5448 = vmatprep.subr.mxu0 0.0
        %5449 = vmatpush1.msra.mxu0 0.0
        %5450 = vmatprep.subr.mxu0 0.0
        %5451 = vmatpush1.msra.mxu0 0.0
        %5452 = vmatprep.subr.mxu0 0.0
        %5453 = vmatpush1.msra.mxu0 0.0
        %5454 = vmatprep.subr.mxu0 0.0
        %5455 = vmatpush1.msra.mxu0 0.0
        %5456 = vmatprep.subr.mxu0 0.0
        %5457 = vmatpush1.msra.mxu0 0.0
        %5458 = vmatprep.subr.mxu0 0.0
        %5459 = vmatpush1.msra.mxu0 0.0
        %5460 = vmatprep.subr.mxu0 0.0
        %5461 = vmatpush1.msra.mxu0 0.0
        %5462 = vmatprep.subr.mxu0 0.0
        %5463 = vmatpush1.msra.mxu0 0.0
        %5464 = vmatprep.subr.mxu0 0.0
        %5465 = vmatpush1.msra.mxu0 0.0
        %5466 = vmatprep.subr.mxu0 0.0
        %5467 = vmatpush1.msra.mxu0 0.0
        %5468 = vmatprep.subr.mxu0 0.0
        %5469 = vmatpush1.msra.mxu0 0.0
        %5470 = vmatprep.subr.mxu0 0.0
        %5471 = vmatpush1.msra.mxu0 0.0
        %5472 = vmatprep.subr.mxu0 0.0
        %5473 = vmatpush1.msra.mxu0 0.0
        %5474 = vmatprep.subr.mxu0 0.0
        %5475 = vmatpush1.msra.mxu0 0.0
        %5476 = vmatprep.subr.mxu0 0.0
        %5477 = vmatpush1.msra.mxu0 0.0
        %5478 = vmatprep.subr.mxu0 0.0
        %5479 = vmatpush1.msra.mxu0 0.0
        %5480 = vmatprep.subr.mxu0 0.0
        %5481 = vmatpush1.msra.mxu0 0.0
        %5482 = vmatprep.subr.mxu0 0.0
        %5483 = vmatpush1.msra.mxu0 0.0
        %5484 = vmatprep.subr.mxu0 0.0
        %5485 = vmatpush1.msra.mxu0 0.0
        %5486 = vmatprep.subr.mxu0 0.0
        %5487 = vmatpush1.msra.mxu0 0.0
        %5488 = vmatprep.subr.mxu0 0.0
        %5489 = vmatpush1.msra.mxu0 0.0
        %5490 = vmatprep.subr.mxu0 0.0
        %5491 = vmatpush1.msra.mxu0 0.0
        %5492 = vmatprep.subr.mxu0 0.0
        %5493 = vmatpush1.msra.mxu0 0.0
        %5494 = vmatprep.subr.mxu0 0.0
        %5495 = vmatpush1.msra.mxu0 0.0
        %5496 = vmatprep.subr.mxu0 0.0
        %5497 = vmatpush1.msra.mxu0 0.0
        %5498 = vmatprep.subr.mxu0 0.0
        %5499 = vmatpush1.msra.mxu0 0.0
        %5500 = vmatprep.subr.mxu0 0.0
        %5501 = vmatpush1.msra.mxu0 0.0
        %5502 = vmatprep.subr.mxu0 0.0
        %5503 = vmatpush1.msra.mxu0 0.0
        %5504 = vmatprep.mubr.f32.mxu0 0.0
        %5505 = vmatmul.mubr.f32.gmra.mrb[0].mxu0 %v4664
        %v5506 = vpop.f32.mrb[0].mxu0
        %v5507 = vadd.f32 0.0, %v5506
        %v5508 = vpop.f32.mrb[0].mxu0
        %5509 = vmatprep.mubr.f32.mxu0 0.0
        %5510 = vmatmul.mubr.f32.gmra.mrb[0].mxu0 %v4667
        %v5511 = vpop.f32.mrb[0].mxu0
        %v5512 = vadd.f32 0.0, %v5511
        %v5513 = vpop.f32.mrb[0].mxu0
        %5514 = vmatprep.mubr.f32.mxu0 0.0
        %5515 = vmatmul.mubr.f32.gmra.mrb[0].mxu0 %v4670
        %v5516 = vpop.f32.mrb[0].mxu0
        %v5517 = vadd.f32 0.0, %v5516
        %v5518 = vpop.f32.mrb[0].mxu0
        %5519 = vmatprep.mubr.f32.mxu0 0.0
        %5520 = vmatmul.mubr.f32.gmra.mrb[0].mxu0 %v4673
        %v5521 = vpop.f32.mrb[0].mxu0
        %v5522 = vadd.f32 0.0, %v5521
        %v5523 = vpop.f32.mrb[0].mxu0
        %5524 = vdwg.mxu0
        %5525 = vmatprep.subr.mxu0 0.0
        %5526 = vmatpush1.msra.mxu0 %v4646
        %5527 = vmatprep.subr.mxu0 0.0
        %5528 = vmatpush1.msra.mxu0 %v4647
        %5529 = vmatprep.subr.mxu0 0.0
        %5530 = vmatpush1.msra.mxu0 0.0
        %5531 = vmatprep.subr.mxu0 0.0
        %5532 = vmatpush1.msra.mxu0 0.0
        %5533 = vmatprep.subr.mxu0 0.0
        %5534 = vmatpush1.msra.mxu0 0.0
        %5535 = vmatprep.subr.mxu0 0.0
        %5536 = vmatpush1.msra.mxu0 0.0
        %5537 = vmatprep.subr.mxu0 0.0
        %5538 = vmatpush1.msra.mxu0 0.0
        %5539 = vmatprep.subr.mxu0 0.0
        %5540 = vmatpush1.msra.mxu0 0.0
        %5541 = vmatprep.subr.mxu0 0.0
        %5542 = vmatpush1.msra.mxu0 0.0
        %5543 = vmatprep.subr.mxu0 0.0
        %5544 = vmatpush1.msra.mxu0 0.0
        %5545 = vmatprep.subr.mxu0 0.0
        %5546 = vmatpush1.msra.mxu0 0.0
        %5547 = vmatprep.subr.mxu0 0.0
        %5548 = vmatpush1.msra.mxu0 0.0
        %5549 = vmatprep.subr.mxu0 0.0
        %5550 = vmatpush1.msra.mxu0 0.0
        %5551 = vmatprep.subr.mxu0 0.0
        %5552 = vmatpush1.msra.mxu0 0.0
        %5553 = vmatprep.subr.mxu0 0.0
        %5554 = vmatpush1.msra.mxu0 0.0
        %5555 = vmatprep.subr.mxu0 0.0
        %5556 = vmatpush1.msra.mxu0 0.0
        %5557 = vmatprep.subr.mxu0 0.0
        %5558 = vmatpush1.msra.mxu0 0.0
        %5559 = vmatprep.subr.mxu0 0.0
        %5560 = vmatpush1.msra.mxu0 0.0
        %5561 = vmatprep.subr.mxu0 0.0
        %5562 = vmatpush1.msra.mxu0 0.0
        %5563 = vmatprep.subr.mxu0 0.0
        %5564 = vmatpush1.msra.mxu0 0.0
        %5565 = vmatprep.subr.mxu0 0.0
        %5566 = vmatpush1.msra.mxu0 0.0
        %5567 = vmatprep.subr.mxu0 0.0
        %5568 = vmatpush1.msra.mxu0 0.0
        %5569 = vmatprep.subr.mxu0 0.0
        %5570 = vmatpush1.msra.mxu0 0.0
        %5571 = vmatprep.subr.mxu0 0.0
        %5572 = vmatpush1.msra.mxu0 0.0
        %5573 = vmatprep.subr.mxu0 0.0
        %5574 = vmatpush1.msra.mxu0 0.0
        %5575 = vmatprep.subr.mxu0 0.0
        %5576 = vmatpush1.msra.mxu0 0.0
        %5577 = vmatprep.subr.mxu0 0.0
        %5578 = vmatpush1.msra.mxu0 0.0
        %5579 = vmatprep.subr.mxu0 0.0
        %5580 = vmatpush1.msra.mxu0 0.0
        %5581 = vmatprep.subr.mxu0 0.0
        %5582 = vmatpush1.msra.mxu0 0.0
        %5583 = vmatprep.subr.mxu0 0.0
        %5584 = vmatpush1.msra.mxu0 0.0
        %5585 = vmatprep.subr.mxu0 0.0
        %5586 = vmatpush1.msra.mxu0 0.0
        %5587 = vmatprep.subr.mxu0 0.0
        %5588 = vmatpush1.msra.mxu0 0.0
        %5589 = vmatprep.mubr.f32.mxu0 0.0
        %5590 = vmatmul.mubr.f32.gmra.mrb[0].mxu0 %v4664
        %v5591 = vpop.f32.mrb[0].mxu0
        %v5592 = vadd.f32 0.0, %v5591
        %v5593 = vpop.f32.mrb[0].mxu0
        %5594 = vmatprep.mubr.f32.mxu0 0.0
        %5595 = vmatmul.mubr.f32.gmra.mrb[0].mxu0 %v4667
        %v5596 = vpop.f32.mrb[0].mxu0
        %v5597 = vadd.f32 0.0, %v5596
        %v5598 = vpop.f32.mrb[0].mxu0
        %5599 = vmatprep.mubr.f32.mxu0 0.0
        %5600 = vmatmul.mubr.f32.gmra.mrb[0].mxu0 %v4670
        %v5601 = vpop.f32.mrb[0].mxu0
        %v5602 = vadd.f32 0.0, %v5601
        %v5603 = vpop.f32.mrb[0].mxu0
        %5604 = vmatprep.mubr.f32.mxu0 0.0
        %5605 = vmatmul.mubr.f32.gmra.mrb[0].mxu0 %v4673
        %v5606 = vpop.f32.mrb[0].mxu0
        %v5607 = vadd.f32 0.0, %v5606
        %v5608 = vpop.f32.mrb[0].mxu0
        %5609 = vdwg.mxu0
        %5610 = vmatprep.subr.mxu0 0.0
        %5611 = vmatpush1.msra.mxu0 %v4648
        %5612 = vmatprep.subr.mxu0 0.0
        %5613 = vmatpush1.msra.mxu0 %v4649
        %5614 = vmatprep.subr.mxu0 0.0
        %5615 = vmatpush1.msra.mxu0 0.0
        %5616 = vmatprep.subr.mxu0 0.0
        %5617 = vmatpush1.msra.mxu0 0.0
        %5618 = vmatprep.subr.mxu0 0.0
        %5619 = vmatpush1.msra.mxu0 0.0
        %5620 = vmatprep.subr.mxu0 0.0
        %5621 = vmatpush1.msra.mxu0 0.0
        %5622 = vmatprep.subr.mxu0 0.0
        %5623 = vmatpush1.msra.mxu0 0.0
        %5624 = vmatprep.subr.mxu0 0.0
        %5625 = vmatpush1.msra.mxu0 0.0
        %5626 = vmatprep.subr.mxu0 0.0
        %5627 = vmatpush1.msra.mxu0 0.0
        %5628 = vmatprep.subr.mxu0 0.0
        %5629 = vmatpush1.msra.mxu0 0.0
        %5630 = vmatprep.subr.mxu0 0.0
        %5631 = vmatpush1.msra.mxu0 0.0
        %5632 = vmatprep.subr.mxu0 0.0
        %5633 = vmatpush1.msra.mxu0 0.0
        %5634 = vmatprep.subr.mxu0 0.0
        %5635 = vmatpush1.msra.mxu0 0.0
        %5636 = vmatprep.subr.mxu0 0.0
        %5637 = vmatpush1.msra.mxu0 0.0
        %5638 = vmatprep.subr.mxu0 0.0
        %5639 = vmatpush1.msra.mxu0 0.0
        %5640 = vmatprep.subr.mxu0 0.0
        %5641 = vmatpush1.msra.mxu0 0.0
        %5642 = vmatprep.subr.mxu0 0.0
        %5643 = vmatpush1.msra.mxu0 0.0
        %5644 = vmatprep.subr.mxu0 0.0
        %5645 = vmatpush1.msra.mxu0 0.0
        %5646 = vmatprep.subr.mxu0 0.0
        %5647 = vmatpush1.msra.mxu0 0.0
        %5648 = vmatprep.subr.mxu0 0.0
        %5649 = vmatpush1.msra.mxu0 0.0
        %5650 = vmatprep.subr.mxu0 0.0
        %5651 = vmatpush1.msra.mxu0 0.0
        %5652 = vmatprep.subr.mxu0 0.0
        %5653 = vmatpush1.msra.mxu0 0.0
        %5654 = vmatprep.subr.mxu0 0.0
        %5655 = vmatpush1.msra.mxu0 0.0
        %5656 = vmatprep.subr.mxu0 0.0
        %5657 = vmatpush1.msra.mxu0 0.0
        %5658 = vmatprep.subr.mxu0 0.0
        %5659 = vmatpush1.msra.mxu0 0.0
        %5660 = vmatprep.subr.mxu0 0.0
        %5661 = vmatpush1.msra.mxu0 0.0
        %5662 = vmatprep.subr.mxu0 0.0
        %5663 = vmatpush1.msra.mxu0 0.0
        %5664 = vmatprep.subr.mxu0 0.0
        %5665 = vmatpush1.msra.mxu0 0.0
        %5666 = vmatprep.subr.mxu0 0.0
        %5667 = vmatpush1.msra.mxu0 0.0
        %5668 = vmatprep.subr.mxu0 0.0
        %5669 = vmatpush1.msra.mxu0 0.0
        %5670 = vmatprep.subr.mxu0 0.0
        %5671 = vmatpush1.msra.mxu0 0.0
        %5672 = vmatprep.subr.mxu0 0.0
        %5673 = vmatpush1.msra.mxu0 0.0
        %5674 = vmatprep.mubr.f32.mxu0 0.0
        %5675 = vmatmul.mubr.f32.gmra.mrb[0].mxu0 %v4664
        %v5676 = vpop.f32.mrb[0].mxu0
        %v5677 = vadd.f32 0.0, %v5676
        %v5678 = vpop.f32.mrb[0].mxu0
        %5679 = vmatprep.mubr.f32.mxu0 0.0
        %5680 = vmatmul.mubr.f32.gmra.mrb[0].mxu0 %v4667
        %v5681 = vpop.f32.mrb[0].mxu0
        %v5682 = vadd.f32 0.0, %v5681
        %v5683 = vpop.f32.mrb[0].mxu0
        %5684 = vmatprep.mubr.f32.mxu0 0.0
        %5685 = vmatmul.mubr.f32.gmra.mrb[0].mxu0 %v4670
        %v5686 = vpop.f32.mrb[0].mxu0
        %v5687 = vadd.f32 0.0, %v5686
        %v5688 = vpop.f32.mrb[0].mxu0
        %5689 = vmatprep.mubr.f32.mxu0 0.0
        %5690 = vmatmul.mubr.f32.gmra.mrb[0].mxu0 %v4673
        %v5691 = vpop.f32.mrb[0].mxu0
        %v5692 = vadd.f32 0.0, %v5691
        %v5693 = vpop.f32.mrb[0].mxu0
        %5694 = vdwg.mxu0
        %5695 = vmatprep.subr.mxu0 0.0
        %5696 = vmatpush1.msra.mxu0 %v4650
        %5697 = vmatprep.subr.mxu0 0.0
        %5698 = vmatpush1.msra.mxu0 %v4651
        %5699 = vmatprep.subr.mxu0 0.0
        %5700 = vmatpush1.msra.mxu0 0.0
        %5701 = vmatprep.subr.mxu0 0.0
        %5702 = vmatpush1.msra.mxu0 0.0
        %5703 = vmatprep.subr.mxu0 0.0
        %5704 = vmatpush1.msra.mxu0 0.0
        %5705 = vmatprep.subr.mxu0 0.0
        %5706 = vmatpush1.msra.mxu0 0.0
        %5707 = vmatprep.subr.mxu0 0.0
        %5708 = vmatpush1.msra.mxu0 0.0
        %5709 = vmatprep.subr.mxu0 0.0
        %5710 = vmatpush1.msra.mxu0 0.0
        %5711 = vmatprep.subr.mxu0 0.0
        %5712 = vmatpush1.msra.mxu0 0.0
        %5713 = vmatprep.subr.mxu0 0.0
        %5714 = vmatpush1.msra.mxu0 0.0
        %5715 = vmatprep.subr.mxu0 0.0
        %5716 = vmatpush1.msra.mxu0 0.0
        %5717 = vmatprep.subr.mxu0 0.0
        %5718 = vmatpush1.msra.mxu0 0.0
        %5719 = vmatprep.subr.mxu0 0.0
        %5720 = vmatpush1.msra.mxu0 0.0
        %5721 = vmatprep.subr.mxu0 0.0
        %5722 = vmatpush1.msra.mxu0 0.0
        %5723 = vmatprep.subr.mxu0 0.0
        %5724 = vmatpush1.msra.mxu0 0.0
        %5725 = vmatprep.subr.mxu0 0.0
        %5726 = vmatpush1.msra.mxu0 0.0
        %5727 = vmatprep.subr.mxu0 0.0
        %5728 = vmatpush1.msra.mxu0 0.0
        %5729 = vmatprep.subr.mxu0 0.0
        %5730 = vmatpush1.msra.mxu0 0.0
        %5731 = vmatprep.subr.mxu0 0.0
        %5732 = vmatpush1.msra.mxu0 0.0
        %5733 = vmatprep.subr.mxu0 0.0
        %5734 = vmatpush1.msra.mxu0 0.0
        %5735 = vmatprep.subr.mxu0 0.0
        %5736 = vmatpush1.msra.mxu0 0.0
        %5737 = vmatprep.subr.mxu0 0.0
        %5738 = vmatpush1.msra.mxu0 0.0
        %5739 = vmatprep.subr.mxu0 0.0
        %5740 = vmatpush1.msra.mxu0 0.0
        %5741 = vmatprep.subr.mxu0 0.0
        %5742 = vmatpush1.msra.mxu0 0.0
        %5743 = vmatprep.subr.mxu0 0.0
        %5744 = vmatpush1.msra.mxu0 0.0
        %5745 = vmatprep.subr.mxu0 0.0
        %5746 = vmatpush1.msra.mxu0 0.0
        %5747 = vmatprep.subr.mxu0 0.0
        %5748 = vmatpush1.msra.mxu0 0.0
        %5749 = vmatprep.subr.mxu0 0.0
        %5750 = vmatpush1.msra.mxu0 0.0
        %5751 = vmatprep.subr.mxu0 0.0
        %5752 = vmatpush1.msra.mxu0 0.0
        %5753 = vmatprep.subr.mxu0 0.0
        %5754 = vmatpush1.msra.mxu0 0.0
        %5755 = vmatprep.subr.mxu0 0.0
        %5756 = vmatpush1.msra.mxu0 0.0
        %5757 = vmatprep.subr.mxu0 0.0
        %5758 = vmatpush1.msra.mxu0 0.0
        %5759 = vmatprep.mubr.f32.mxu0 0.0
        %5760 = vmatmul.mubr.f32.gmra.mrb[0].mxu0 %v4664
        %v5761 = vpop.f32.mrb[0].mxu0
        %v5762 = vadd.f32 0.0, %v5761
        %v5763 = vpop.f32.mrb[0].mxu0
        %5764 = vmatprep.mubr.f32.mxu0 0.0
        %5765 = vmatmul.mubr.f32.gmra.mrb[0].mxu0 %v4667
        %v5766 = vpop.f32.mrb[0].mxu0
        %v5767 = vadd.f32 0.0, %v5766
        %v5768 = vpop.f32.mrb[0].mxu0
        %5769 = vmatprep.mubr.f32.mxu0 0.0
        %5770 = vmatmul.mubr.f32.gmra.mrb[0].mxu0 %v4670
        %v5771 = vpop.f32.mrb[0].mxu0
        %v5772 = vadd.f32 0.0, %v5771
        %v5773 = vpop.f32.mrb[0].mxu0
        %5774 = vmatprep.mubr.f32.mxu0 0.0
        %5775 = vmatmul.mubr.f32.gmra.mrb[0].mxu0 %v4673
        %v5776 = vpop.f32.mrb[0].mxu0
        %v5777 = vadd.f32 0.0, %v5776
        %v5778 = vpop.f32.mrb[0].mxu0
        %5779 = vdwg.mxu0
        %5780 = vmatprep.subr.mxu0 0.0
        %5781 = vmatpush1.msra.mxu0 %v4652
        %5782 = vmatprep.subr.mxu0 0.0
        %5783 = vmatpush1.msra.mxu0 %v4653
        %5784 = vmatprep.subr.mxu0 0.0
        %5785 = vmatpush1.msra.mxu0 0.0
        %5786 = vmatprep.subr.mxu0 0.0
        %5787 = vmatpush1.msra.mxu0 0.0
        %5788 = vmatprep.subr.mxu0 0.0
        %5789 = vmatpush1.msra.mxu0 0.0
        %5790 = vmatprep.subr.mxu0 0.0
        %5791 = vmatpush1.msra.mxu0 0.0
        %5792 = vmatprep.subr.mxu0 0.0
        %5793 = vmatpush1.msra.mxu0 0.0
        %5794 = vmatprep.subr.mxu0 0.0
        %5795 = vmatpush1.msra.mxu0 0.0
        %5796 = vmatprep.subr.mxu0 0.0
        %5797 = vmatpush1.msra.mxu0 0.0
        %5798 = vmatprep.subr.mxu0 0.0
        %5799 = vmatpush1.msra.mxu0 0.0
        %5800 = vmatprep.subr.mxu0 0.0
        %5801 = vmatpush1.msra.mxu0 0.0
        %5802 = vmatprep.subr.mxu0 0.0
        %5803 = vmatpush1.msra.mxu0 0.0
        %5804 = vmatprep.subr.mxu0 0.0
        %5805 = vmatpush1.msra.mxu0 0.0
        %5806 = vmatprep.subr.mxu0 0.0
        %5807 = vmatpush1.msra.mxu0 0.0
        %5808 = vmatprep.subr.mxu0 0.0
        %5809 = vmatpush1.msra.mxu0 0.0
        %5810 = vmatprep.subr.mxu0 0.0
        %5811 = vmatpush1.msra.mxu0 0.0
        %5812 = vmatprep.subr.mxu0 0.0
        %5813 = vmatpush1.msra.mxu0 0.0
        %5814 = vmatprep.subr.mxu0 0.0
        %5815 = vmatpush1.msra.mxu0 0.0
        %5816 = vmatprep.subr.mxu0 0.0
        %5817 = vmatpush1.msra.mxu0 0.0
        %5818 = vmatprep.subr.mxu0 0.0
        %5819 = vmatpush1.msra.mxu0 0.0
        %5820 = vmatprep.subr.mxu0 0.0
        %5821 = vmatpush1.msra.mxu0 0.0
        %5822 = vmatprep.subr.mxu0 0.0
        %5823 = vmatpush1.msra.mxu0 0.0
        %5824 = vmatprep.subr.mxu0 0.0
        %5825 = vmatpush1.msra.mxu0 0.0
        %5826 = vmatprep.subr.mxu0 0.0
        %5827 = vmatpush1.msra.mxu0 0.0
        %5828 = vmatprep.subr.mxu0 0.0
        %5829 = vmatpush1.msra.mxu0 0.0
        %5830 = vmatprep.subr.mxu0 0.0
        %5831 = vmatpush1.msra.mxu0 0.0
        %5832 = vmatprep.subr.mxu0 0.0
        %5833 = vmatpush1.msra.mxu0 0.0
        %5834 = vmatprep.subr.mxu0 0.0
        %5835 = vmatpush1.msra.mxu0 0.0
        %5836 = vmatprep.subr.mxu0 0.0
        %5837 = vmatpush1.msra.mxu0 0.0
        %5838 = vmatprep.subr.mxu0 0.0
        %5839 = vmatpush1.msra.mxu0 0.0
        %5840 = vmatprep.subr.mxu0 0.0
        %5841 = vmatpush1.msra.mxu0 0.0
        %5842 = vmatprep.subr.mxu0 0.0
        %5843 = vmatpush1.msra.mxu0 0.0
        %5844 = vmatprep.mubr.f32.mxu0 0.0
        %5845 = vmatmul.mubr.f32.gmra.mrb[0].mxu0 %v4664
        %v5846 = vpop.f32.mrb[0].mxu0
        %v5847 = vadd.f32 0.0, %v5846
        %v5848 = vpop.f32.mrb[0].mxu0
        %5849 = vmatprep.mubr.f32.mxu0 0.0
        %5850 = vmatmul.mubr.f32.gmra.mrb[0].mxu0 %v4667
        %v5851 = vpop.f32.mrb[0].mxu0
        %v5852 = vadd.f32 0.0, %v5851
        %v5853 = vpop.f32.mrb[0].mxu0
        %5854 = vmatprep.mubr.f32.mxu0 0.0
        %5855 = vmatmul.mubr.f32.gmra.mrb[0].mxu0 %v4670
        %v5856 = vpop.f32.mrb[0].mxu0
        %v5857 = vadd.f32 0.0, %v5856
        %v5858 = vpop.f32.mrb[0].mxu0
        %5859 = vmatprep.mubr.f32.mxu0 0.0
        %5860 = vmatmul.mubr.f32.gmra.mrb[0].mxu0 %v4673
        %v5861 = vpop.f32.mrb[0].mxu0
        %v5862 = vadd.f32 0.0, %v5861
        %v5863 = vpop.f32.mrb[0].mxu0
        %5864 = vdwg.mxu0
        %5865 = vmatprep.subr.mxu0 0.0
        %5866 = vmatpush1.msra.mxu0 %v4654
        %5867 = vmatprep.subr.mxu0 0.0
        %5868 = vmatpush1.msra.mxu0 %v4655
        %5869 = vmatprep.subr.mxu0 0.0
        %5870 = vmatpush1.msra.mxu0 0.0
        %5871 = vmatprep.subr.mxu0 0.0
        %5872 = vmatpush1.msra.mxu0 0.0
        %5873 = vmatprep.subr.mxu0 0.0
        %5874 = vmatpush1.msra.mxu0 0.0
        %5875 = vmatprep.subr.mxu0 0.0
        %5876 = vmatpush1.msra.mxu0 0.0
        %5877 = vmatprep.subr.mxu0 0.0
        %5878 = vmatpush1.msra.mxu0 0.0
        %5879 = vmatprep.subr.mxu0 0.0
        %5880 = vmatpush1.msra.mxu0 0.0
        %5881 = vmatprep.subr.mxu0 0.0
        %5882 = vmatpush1.msra.mxu0 0.0
        %5883 = vmatprep.subr.mxu0 0.0
        %5884 = vmatpush1.msra.mxu0 0.0
        %5885 = vmatprep.subr.mxu0 0.0
        %5886 = vmatpush1.msra.mxu0 0.0
        %5887 = vmatprep.subr.mxu0 0.0
        %5888 = vmatpush1.msra.mxu0 0.0
        %5889 = vmatprep.subr.mxu0 0.0
        %5890 = vmatpush1.msra.mxu0 0.0
        %5891 = vmatprep.subr.mxu0 0.0
        %5892 = vmatpush1.msra.mxu0 0.0
        %5893 = vmatprep.subr.mxu0 0.0
        %5894 = vmatpush1.msra.mxu0 0.0
        %5895 = vmatprep.subr.mxu0 0.0
        %5896 = vmatpush1.msra.mxu0 0.0
        %5897 = vmatprep.subr.mxu0 0.0
        %5898 = vmatpush1.msra.mxu0 0.0
        %5899 = vmatprep.subr.mxu0 0.0
        %5900 = vmatpush1.msra.mxu0 0.0
        %5901 = vmatprep.subr.mxu0 0.0
        %5902 = vmatpush1.msra.mxu0 0.0
        %5903 = vmatprep.subr.mxu0 0.0
        %5904 = vmatpush1.msra.mxu0 0.0
        %5905 = vmatprep.subr.mxu0 0.0
        %5906 = vmatpush1.msra.mxu0 0.0
        %5907 = vmatprep.subr.mxu0 0.0
        %5908 = vmatpush1.msra.mxu0 0.0
        %5909 = vmatprep.subr.mxu0 0.0
        %5910 = vmatpush1.msra.mxu0 0.0
        %5911 = vmatprep.subr.mxu0 0.0
        %5912 = vmatpush1.msra.mxu0 0.0
        %5913 = vmatprep.subr.mxu0 0.0
        %5914 = vmatpush1.msra.mxu0 0.0
        %5915 = vmatprep.subr.mxu0 0.0
        %5916 = vmatpush1.msra.mxu0 0.0
        %5917 = vmatprep.subr.mxu0 0.0
        %5918 = vmatpush1.msra.mxu0 0.0
        %5919 = vmatprep.subr.mxu0 0.0
        %5920 = vmatpush1.msra.mxu0 0.0
        %5921 = vmatprep.subr.mxu0 0.0
        %5922 = vmatpush1.msra.mxu0 0.0
        %5923 = vmatprep.subr.mxu0 0.0
        %5924 = vmatpush1.msra.mxu0 0.0
        %5925 = vmatprep.subr.mxu0 0.0
        %5926 = vmatpush1.msra.mxu0 0.0
        %5927 = vmatprep.subr.mxu0 0.0
        %5928 = vmatpush1.msra.mxu0 0.0
        %5929 = vmatprep.mubr.f32.mxu0 0.0
        %5930 = vmatmul.mubr.f32.gmra.mrb[0].mxu0 %v4664
        %v5931 = vpop.f32.mrb[0].mxu0
        %v5932 = vadd.f32 0.0, %v5931
        %v5933 = vpop.f32.mrb[0].mxu0
        %5934 = vmatprep.mubr.f32.mxu0 0.0
        %5935 = vmatmul.mubr.f32.gmra.mrb[0].mxu0 %v4667
        %v5936 = vpop.f32.mrb[0].mxu0
        %v5937 = vadd.f32 0.0, %v5936
        %v5938 = vpop.f32.mrb[0].mxu0
        %5939 = vmatprep.mubr.f32.mxu0 0.0
        %5940 = vmatmul.mubr.f32.gmra.mrb[0].mxu0 %v4670
        %v5941 = vpop.f32.mrb[0].mxu0
        %v5942 = vadd.f32 0.0, %v5941
        %v5943 = vpop.f32.mrb[0].mxu0
        %5944 = vmatprep.mubr.f32.mxu0 0.0
        %5945 = vmatmul.mubr.f32.gmra.mrb[0].mxu0 %v4673
        %v5946 = vpop.f32.mrb[0].mxu0
        %v5947 = vadd.f32 0.0, %v5946
        %v5948 = vpop.f32.mrb[0].mxu0
        %5949 = vdwg.mxu0
        %5950 = vmatprep.subr.mxu0 0.0
        %5951 = vmatpush1.msra.mxu0 %v4656
        %5952 = vmatprep.subr.mxu0 0.0
        %5953 = vmatpush1.msra.mxu0 %v4657
        %5954 = vmatprep.subr.mxu0 0.0
        %5955 = vmatpush1.msra.mxu0 0.0
        %5956 = vmatprep.subr.mxu0 0.0
        %5957 = vmatpush1.msra.mxu0 0.0
        %5958 = vmatprep.subr.mxu0 0.0
        %5959 = vmatpush1.msra.mxu0 0.0
        %5960 = vmatprep.subr.mxu0 0.0
        %5961 = vmatpush1.msra.mxu0 0.0
        %5962 = vmatprep.subr.mxu0 0.0
        %5963 = vmatpush1.msra.mxu0 0.0
        %5964 = vmatprep.subr.mxu0 0.0
        %5965 = vmatpush1.msra.mxu0 0.0
        %5966 = vmatprep.subr.mxu0 0.0
        %5967 = vmatpush1.msra.mxu0 0.0
        %5968 = vmatprep.subr.mxu0 0.0
        %5969 = vmatpush1.msra.mxu0 0.0
        %5970 = vmatprep.subr.mxu0 0.0
        %5971 = vmatpush1.msra.mxu0 0.0
        %5972 = vmatprep.subr.mxu0 0.0
        %5973 = vmatpush1.msra.mxu0 0.0
        %5974 = vmatprep.subr.mxu0 0.0
        %5975 = vmatpush1.msra.mxu0 0.0
        %5976 = vmatprep.subr.mxu0 0.0
        %5977 = vmatpush1.msra.mxu0 0.0
        %5978 = vmatprep.subr.mxu0 0.0
        %5979 = vmatpush1.msra.mxu0 0.0
        %5980 = vmatprep.subr.mxu0 0.0
        %5981 = vmatpush1.msra.mxu0 0.0
        %5982 = vmatprep.subr.mxu0 0.0
        %5983 = vmatpush1.msra.mxu0 0.0
        %5984 = vmatprep.subr.mxu0 0.0
        %5985 = vmatpush1.msra.mxu0 0.0
        %5986 = vmatprep.subr.mxu0 0.0
        %5987 = vmatpush1.msra.mxu0 0.0
        %5988 = vmatprep.subr.mxu0 0.0
        %5989 = vmatpush1.msra.mxu0 0.0
        %5990 = vmatprep.subr.mxu0 0.0
        %5991 = vmatpush1.msra.mxu0 0.0
        %5992 = vmatprep.subr.mxu0 0.0
        %5993 = vmatpush1.msra.mxu0 0.0
        %5994 = vmatprep.subr.mxu0 0.0
        %5995 = vmatpush1.msra.mxu0 0.0
        %5996 = vmatprep.subr.mxu0 0.0
        %5997 = vmatpush1.msra.mxu0 0.0
        %5998 = vmatprep.subr.mxu0 0.0
        %5999 = vmatpush1.msra.mxu0 0.0
        %6000 = vmatprep.subr.mxu0 0.0
        %6001 = vmatpush1.msra.mxu0 0.0
        %6002 = vmatprep.subr.mxu0 0.0
        %6003 = vmatpush1.msra.mxu0 0.0
        %6004 = vmatprep.subr.mxu0 0.0
        %6005 = vmatpush1.msra.mxu0 0.0
        %6006 = vmatprep.subr.mxu0 0.0
        %6007 = vmatpush1.msra.mxu0 0.0
        %6008 = vmatprep.subr.mxu0 0.0
        %6009 = vmatpush1.msra.mxu0 0.0
        %6010 = vmatprep.subr.mxu0 0.0
        %6011 = vmatpush1.msra.mxu0 0.0
        %6012 = vmatprep.subr.mxu0 0.0
        %6013 = vmatpush1.msra.mxu0 0.0
        %6014 = vmatprep.mubr.f32.mxu0 0.0
        %6015 = vmatmul.mubr.f32.gmra.mrb[0].mxu0 %v4664
        %v6016 = vpop.f32.mrb[0].mxu0
        %v6017 = vadd.f32 0.0, %v6016
        %v6018 = vpop.f32.mrb[0].mxu0
        %6019 = vmatprep.mubr.f32.mxu0 0.0
        %6020 = vmatmul.mubr.f32.gmra.mrb[0].mxu0 %v4667
        %v6021 = vpop.f32.mrb[0].mxu0
        %v6022 = vadd.f32 0.0, %v6021
        %v6023 = vpop.f32.mrb[0].mxu0
        %6024 = vmatprep.mubr.f32.mxu0 0.0
        %6025 = vmatmul.mubr.f32.gmra.mrb[0].mxu0 %v4670
        %v6026 = vpop.f32.mrb[0].mxu0
        %v6027 = vadd.f32 0.0, %v6026
        %v6028 = vpop.f32.mrb[0].mxu0
        %6029 = vmatprep.mubr.f32.mxu0 0.0
        %6030 = vmatmul.mubr.f32.gmra.mrb[0].mxu0 %v4673
        %v6031 = vpop.f32.mrb[0].mxu0
        %v6032 = vadd.f32 0.0, %v6031
        %v6033 = vpop.f32.mrb[0].mxu0
        %6034 = vdwg.mxu0
        %6035 = vxpose.xlu0.b32.start [1/16] %v4742, 128
        %6036 = vxpose.xlu0.b32.cont [2/16] %v4747, 128
        %6037 = vxpose.xlu0.b32.cont [3/16] %v4752, 128
        %6038 = vxpose.xlu0.b32.cont [4/16] %v4757, 128
        %6039 = vxpose.xlu0.b32.cont [5/16] 0.0, 128
        %6040 = vxpose.xlu0.b32.cont [6/16] 0.0, 128
        %6041 = vxpose.xlu0.b32.cont [7/16] 0.0, 128
        %6042 = vxpose.xlu0.b32.cont [8/16] 0.0, 128
        %6043 = vxpose.xlu0.b32.cont [9/16] 0.0, 128
        %6044 = vxpose.xlu0.b32.cont [10/16] 0.0, 128
        %6045 = vxpose.xlu0.b32.cont [11/16] 0.0, 128
        %6046 = vxpose.xlu0.b32.cont [12/16] 0.0, 128
        %6047 = vxpose.xlu0.b32.cont [13/16] 0.0, 128
        %6048 = vxpose.xlu0.b32.cont [14/16] 0.0, 128
        %6049 = vxpose.xlu0.b32.cont [15/16] 0.0, 128
        %6050 = vxpose.xlu0.b32.end [16/16] 0.0, 128
        %v6051 = vpop.trf.xlu0
        %v6052 = vpop.trf.xlu0
        %v6053 = vpop.trf.xlu0
        %v6054 = vpop.trf.xlu0
        %v6055 = vpop.trf.xlu0
        %v6056 = vpop.trf.xlu0
        %v6057 = vpop.trf.xlu0
        %v6058 = vpop.trf.xlu0
        %v6059 = vpop.trf.xlu0
        %v6060 = vpop.trf.xlu0
        %v6061 = vpop.trf.xlu0
        %v6062 = vpop.trf.xlu0
        %v6063 = vpop.trf.xlu0
        %v6064 = vpop.trf.xlu0
        %v6065 = vpop.trf.xlu0
        %v6066 = vpop.trf.xlu0
        %vm6067 = vcmask 261120
        %6068 = vst.msk [vmem:[%s298] sm:$0xff] %vm6067, %v6051
        %v6069 = vmul.f32 %v4742, 0.516129
        %v6070 = vmul.f32 %v4747, 0.516129
        %v6071 = vmul.f32 %v4752, 0.516129
        %v6072 = vmul.f32 %v4757, 0.516129
        %v6073 = vmul.f32 %v4827, 0.48387095
        %v6074 = vmul.f32 %v4832, 0.48387095
        %v6075 = vmul.f32 %v4837, 0.48387095
        %v6076 = vmul.f32 %v4842, 0.48387095
        %v6077 = vadd.f32 %v6069, %v6073
        %v6078 = vadd.f32 %v6070, %v6074
        %v6079 = vadd.f32 %v6071, %v6075
        %v6080 = vadd.f32 %v6072, %v6076
        %6081 = vxpose.xlu0.b32.start [1/16] %v6077, 128
        %6082 = vxpose.xlu0.b32.cont [2/16] %v6078, 128
        %6083 = vxpose.xlu0.b32.cont [3/16] %v6079, 128
        %6084 = vxpose.xlu0.b32.cont [4/16] %v6080, 128
        %6085 = vxpose.xlu0.b32.cont [5/16] 0.0, 128
        %6086 = vxpose.xlu0.b32.cont [6/16] 0.0, 128
        %6087 = vxpose.xlu0.b32.cont [7/16] 0.0, 128
        %6088 = vxpose.xlu0.b32.cont [8/16] 0.0, 128
        %6089 = vxpose.xlu0.b32.cont [9/16] 0.0, 128
        %6090 = vxpose.xlu0.b32.cont [10/16] 0.0, 128
        %6091 = vxpose.xlu0.b32.cont [11/16] 0.0, 128
        %6092 = vxpose.xlu0.b32.cont [12/16] 0.0, 128
        %6093 = vxpose.xlu0.b32.cont [13/16] 0.0, 128
        %6094 = vxpose.xlu0.b32.cont [14/16] 0.0, 128
        %6095 = vxpose.xlu0.b32.cont [15/16] 0.0, 128
        %6096 = vxpose.xlu0.b32.end [16/16] 0.0, 128
        %v6097 = vpop.trf.xlu0
        %v6098 = vpop.trf.xlu0
        %v6099 = vpop.trf.xlu0
        %v6100 = vpop.trf.xlu0
        %v6101 = vpop.trf.xlu0
        %v6102 = vpop.trf.xlu0
        %v6103 = vpop.trf.xlu0
        %v6104 = vpop.trf.xlu0
        %v6105 = vpop.trf.xlu0
        %v6106 = vpop.trf.xlu0
        %v6107 = vpop.trf.xlu0
        %v6108 = vpop.trf.xlu0
        %v6109 = vpop.trf.xlu0
        %v6110 = vpop.trf.xlu0
        %v6111 = vpop.trf.xlu0
        %v6112 = vpop.trf.xlu0
        %s6113 = scalar_lea.vmem %s298, 8 [#allocation6]
        %6114 = vst.msk [vmem:[%s6113] sm:$0xff] %vm6067, %v6097
        %v6115 = vmul.f32 %v4742, 0.032258064
        %v6116 = vmul.f32 %v4747, 0.032258064
        %v6117 = vmul.f32 %v4752, 0.032258064
        %v6118 = vmul.f32 %v4757, 0.032258064
        %v6119 = vmul.f32 %v4827, 0.9677419
        %v6120 = vmul.f32 %v4832, 0.9677419
        %v6121 = vmul.f32 %v4837, 0.9677419
        %v6122 = vmul.f32 %v4842, 0.9677419
        %v6123 = vadd.f32 %v6115, %v6119
        %v6124 = vadd.f32 %v6116, %v6120
        %v6125 = vadd.f32 %v6117, %v6121
        %v6126 = vadd.f32 %v6118, %v6122
        %6127 = vxpose.xlu0.b32.start [1/16] %v6123, 128
        %6128 = vxpose.xlu0.b32.cont [2/16] %v6124, 128
        %6129 = vxpose.xlu0.b32.cont [3/16] %v6125, 128
        %6130 = vxpose.xlu0.b32.cont [4/16] %v6126, 128
        %6131 = vxpose.xlu0.b32.cont [5/16] 0.0, 128
        %6132 = vxpose.xlu0.b32.cont [6/16] 0.0, 128
        %6133 = vxpose.xlu0.b32.cont [7/16] 0.0, 128
        %6134 = vxpose.xlu0.b32.cont [8/16] 0.0, 128
        %6135 = vxpose.xlu0.b32.cont [9/16] 0.0, 128
        %6136 = vxpose.xlu0.b32.cont [10/16] 0.0, 128
        %6137 = vxpose.xlu0.b32.cont [11/16] 0.0, 128
        %6138 = vxpose.xlu0.b32.cont [12/16] 0.0, 128
        %6139 = vxpose.xlu0.b32.cont [13/16] 0.0, 128
        %6140 = vxpose.xlu0.b32.cont [14/16] 0.0, 128
        %6141 = vxpose.xlu0.b32.cont [15/16] 0.0, 128
        %6142 = vxpose.xlu0.b32.end [16/16] 0.0, 128
        %v6143 = vpop.trf.xlu0
        %v6144 = vpop.trf.xlu0
        %v6145 = vpop.trf.xlu0
        %v6146 = vpop.trf.xlu0
        %v6147 = vpop.trf.xlu0
        %v6148 = vpop.trf.xlu0
        %v6149 = vpop.trf.xlu0
        %v6150 = vpop.trf.xlu0
        %v6151 = vpop.trf.xlu0
        %v6152 = vpop.trf.xlu0
        %v6153 = vpop.trf.xlu0
        %v6154 = vpop.trf.xlu0
        %v6155 = vpop.trf.xlu0
        %v6156 = vpop.trf.xlu0
        %v6157 = vpop.trf.xlu0
        %v6158 = vpop.trf.xlu0
        %s6159 = scalar_lea.vmem %s298, 16 [#allocation6]
        %6160 = vst.msk [vmem:[%s6159] sm:$0xff] %vm6067, %v6143
        %v6161 = vmul.f32 %v4827, 0.5483871
        %v6162 = vmul.f32 %v4832, 0.5483871
        %v6163 = vmul.f32 %v4837, 0.5483871
        %v6164 = vmul.f32 %v4842, 0.5483871
        %v6165 = vmul.f32 %v4912, 0.4516129
        %v6166 = vmul.f32 %v4917, 0.4516129
        %v6167 = vmul.f32 %v4922, 0.4516129
        %v6168 = vmul.f32 %v4927, 0.4516129
        %v6169 = vadd.f32 %v6161, %v6165
        %v6170 = vadd.f32 %v6162, %v6166
        %v6171 = vadd.f32 %v6163, %v6167
        %v6172 = vadd.f32 %v6164, %v6168
        %6173 = vxpose.xlu0.b32.start [1/16] %v6169, 128
        %6174 = vxpose.xlu0.b32.cont [2/16] %v6170, 128
        %6175 = vxpose.xlu0.b32.cont [3/16] %v6171, 128
        %6176 = vxpose.xlu0.b32.cont [4/16] %v6172, 128
        %6177 = vxpose.xlu0.b32.cont [5/16] 0.0, 128
        %6178 = vxpose.xlu0.b32.cont [6/16] 0.0, 128
        %6179 = vxpose.xlu0.b32.cont [7/16] 0.0, 128
        %6180 = vxpose.xlu0.b32.cont [8/16] 0.0, 128
        %6181 = vxpose.xlu0.b32.cont [9/16] 0.0, 128
        %6182 = vxpose.xlu0.b32.cont [10/16] 0.0, 128
        %6183 = vxpose.xlu0.b32.cont [11/16] 0.0, 128
        %6184 = vxpose.xlu0.b32.cont [12/16] 0.0, 128
        %6185 = vxpose.xlu0.b32.cont [13/16] 0.0, 128
        %6186 = vxpose.xlu0.b32.cont [14/16] 0.0, 128
        %6187 = vxpose.xlu0.b32.cont [15/16] 0.0, 128
        %6188 = vxpose.xlu0.b32.end [16/16] 0.0, 128
        %v6189 = vpop.trf.xlu0
        %v6190 = vpop.trf.xlu0
        %v6191 = vpop.trf.xlu0
        %v6192 = vpop.trf.xlu0
        %v6193 = vpop.trf.xlu0
        %v6194 = vpop.trf.xlu0
        %v6195 = vpop.trf.xlu0
        %v6196 = vpop.trf.xlu0
        %v6197 = vpop.trf.xlu0
        %v6198 = vpop.trf.xlu0
        %v6199 = vpop.trf.xlu0
        %v6200 = vpop.trf.xlu0
        %v6201 = vpop.trf.xlu0
        %v6202 = vpop.trf.xlu0
        %v6203 = vpop.trf.xlu0
        %v6204 = vpop.trf.xlu0
        %s6205 = scalar_lea.vmem %s298, 24 [#allocation6]
        %6206 = vst.msk [vmem:[%s6205] sm:$0xff] %vm6067, %v6189
        %v6207 = vmul.f32 %v4827, 0.06451613
        %v6208 = vmul.f32 %v4832, 0.06451613
        %v6209 = vmul.f32 %v4837, 0.06451613
        %v6210 = vmul.f32 %v4842, 0.06451613
        %v6211 = vmul.f32 %v4912, 0.9354839
        %v6212 = vmul.f32 %v4917, 0.9354839
        %v6213 = vmul.f32 %v4922, 0.9354839
        %v6214 = vmul.f32 %v4927, 0.9354839
        %v6215 = vadd.f32 %v6207, %v6211
        %v6216 = vadd.f32 %v6208, %v6212
        %v6217 = vadd.f32 %v6209, %v6213
        %v6218 = vadd.f32 %v6210, %v6214
        %6219 = vxpose.xlu0.b32.start [1/16] %v6215, 128
        %6220 = vxpose.xlu0.b32.cont [2/16] %v6216, 128
        %6221 = vxpose.xlu0.b32.cont [3/16] %v6217, 128
        %6222 = vxpose.xlu0.b32.cont [4/16] %v6218, 128
        %6223 = vxpose.xlu0.b32.cont [5/16] 0.0, 128
        %6224 = vxpose.xlu0.b32.cont [6/16] 0.0, 128
        %6225 = vxpose.xlu0.b32.cont [7/16] 0.0, 128
        %6226 = vxpose.xlu0.b32.cont [8/16] 0.0, 128
        %6227 = vxpose.xlu0.b32.cont [9/16] 0.0, 128
        %6228 = vxpose.xlu0.b32.cont [10/16] 0.0, 128
        %6229 = vxpose.xlu0.b32.cont [11/16] 0.0, 128
        %6230 = vxpose.xlu0.b32.cont [12/16] 0.0, 128
        %6231 = vxpose.xlu0.b32.cont [13/16] 0.0, 128
        %6232 = vxpose.xlu0.b32.cont [14/16] 0.0, 128
        %6233 = vxpose.xlu0.b32.cont [15/16] 0.0, 128
        %6234 = vxpose.xlu0.b32.end [16/16] 0.0, 128
        %v6235 = vpop.trf.xlu0
        %v6236 = vpop.trf.xlu0
        %v6237 = vpop.trf.xlu0
        %v6238 = vpop.trf.xlu0
        %v6239 = vpop.trf.xlu0
        %v6240 = vpop.trf.xlu0
        %v6241 = vpop.trf.xlu0
        %v6242 = vpop.trf.xlu0
        %v6243 = vpop.trf.xlu0
        %v6244 = vpop.trf.xlu0
        %v6245 = vpop.trf.xlu0
        %v6246 = vpop.trf.xlu0
        %v6247 = vpop.trf.xlu0
        %v6248 = vpop.trf.xlu0
        %v6249 = vpop.trf.xlu0
        %v6250 = vpop.trf.xlu0
        %s6251 = scalar_lea.vmem %s298, 32 [#allocation6]
        %6252 = vst.msk [vmem:[%s6251] sm:$0xff] %vm6067, %v6235
        %v6253 = vmul.f32 %v4912, 0.58064514
        %v6254 = vmul.f32 %v4917, 0.58064514
        %v6255 = vmul.f32 %v4922, 0.58064514
        %v6256 = vmul.f32 %v4927, 0.58064514
        %v6257 = vmul.f32 %v4997, 0.41935483
        %v6258 = vmul.f32 %v5002, 0.41935483
        %v6259 = vmul.f32 %v5007, 0.41935483
        %v6260 = vmul.f32 %v5012, 0.41935483
        %v6261 = vadd.f32 %v6253, %v6257
        %v6262 = vadd.f32 %v6254, %v6258
        %v6263 = vadd.f32 %v6255, %v6259
        %v6264 = vadd.f32 %v6256, %v6260
        %6265 = vxpose.xlu0.b32.start [1/16] %v6261, 128
        %6266 = vxpose.xlu0.b32.cont [2/16] %v6262, 128
        %6267 = vxpose.xlu0.b32.cont [3/16] %v6263, 128
        %6268 = vxpose.xlu0.b32.cont [4/16] %v6264, 128
        %6269 = vxpose.xlu0.b32.cont [5/16] 0.0, 128
        %6270 = vxpose.xlu0.b32.cont [6/16] 0.0, 128
        %6271 = vxpose.xlu0.b32.cont [7/16] 0.0, 128
        %6272 = vxpose.xlu0.b32.cont [8/16] 0.0, 128
        %6273 = vxpose.xlu0.b32.cont [9/16] 0.0, 128
        %6274 = vxpose.xlu0.b32.cont [10/16] 0.0, 128
        %6275 = vxpose.xlu0.b32.cont [11/16] 0.0, 128
        %6276 = vxpose.xlu0.b32.cont [12/16] 0.0, 128
        %6277 = vxpose.xlu0.b32.cont [13/16] 0.0, 128
        %6278 = vxpose.xlu0.b32.cont [14/16] 0.0, 128
        %6279 = vxpose.xlu0.b32.cont [15/16] 0.0, 128
        %6280 = vxpose.xlu0.b32.end [16/16] 0.0, 128
        %v6281 = vpop.trf.xlu0
        %v6282 = vpop.trf.xlu0
        %v6283 = vpop.trf.xlu0
        %v6284 = vpop.trf.xlu0
        %v6285 = vpop.trf.xlu0
        %v6286 = vpop.trf.xlu0
        %v6287 = vpop.trf.xlu0
        %v6288 = vpop.trf.xlu0
        %v6289 = vpop.trf.xlu0
        %v6290 = vpop.trf.xlu0
        %v6291 = vpop.trf.xlu0
        %v6292 = vpop.trf.xlu0
        %v6293 = vpop.trf.xlu0
        %v6294 = vpop.trf.xlu0
        %v6295 = vpop.trf.xlu0
        %v6296 = vpop.trf.xlu0
        %s6297 = scalar_lea.vmem %s298, 40 [#allocation6]
        %6298 = vst.msk [vmem:[%s6297] sm:$0xff] %vm6067, %v6281
        %v6299 = vmul.f32 %v4912, 0.09677419
        %v6300 = vmul.f32 %v4917, 0.09677419
        %v6301 = vmul.f32 %v4922, 0.09677419
        %v6302 = vmul.f32 %v4927, 0.09677419
        %v6303 = vmul.f32 %v4997, 0.9032258
        %v6304 = vmul.f32 %v5002, 0.9032258
        %v6305 = vmul.f32 %v5007, 0.9032258
        %v6306 = vmul.f32 %v5012, 0.9032258
        %v6307 = vadd.f32 %v6299, %v6303
        %v6308 = vadd.f32 %v6300, %v6304
        %v6309 = vadd.f32 %v6301, %v6305
        %v6310 = vadd.f32 %v6302, %v6306
        %6311 = vxpose.xlu0.b32.start [1/16] %v6307, 128
        %6312 = vxpose.xlu0.b32.cont [2/16] %v6308, 128
        %6313 = vxpose.xlu0.b32.cont [3/16] %v6309, 128
        %6314 = vxpose.xlu0.b32.cont [4/16] %v6310, 128
        %6315 = vxpose.xlu0.b32.cont [5/16] 0.0, 128
        %6316 = vxpose.xlu0.b32.cont [6/16] 0.0, 128
        %6317 = vxpose.xlu0.b32.cont [7/16] 0.0, 128
        %6318 = vxpose.xlu0.b32.cont [8/16] 0.0, 128
        %6319 = vxpose.xlu0.b32.cont [9/16] 0.0, 128
        %6320 = vxpose.xlu0.b32.cont [10/16] 0.0, 128
        %6321 = vxpose.xlu0.b32.cont [11/16] 0.0, 128
        %6322 = vxpose.xlu0.b32.cont [12/16] 0.0, 128
        %6323 = vxpose.xlu0.b32.cont [13/16] 0.0, 128
        %6324 = vxpose.xlu0.b32.cont [14/16] 0.0, 128
        %6325 = vxpose.xlu0.b32.cont [15/16] 0.0, 128
        %6326 = vxpose.xlu0.b32.end [16/16] 0.0, 128
        %v6327 = vpop.trf.xlu0
        %v6328 = vpop.trf.xlu0
        %v6329 = vpop.trf.xlu0
        %v6330 = vpop.trf.xlu0
        %v6331 = vpop.trf.xlu0
        %v6332 = vpop.trf.xlu0
        %v6333 = vpop.trf.xlu0
        %v6334 = vpop.trf.xlu0
        %v6335 = vpop.trf.xlu0
        %v6336 = vpop.trf.xlu0
        %v6337 = vpop.trf.xlu0
        %v6338 = vpop.trf.xlu0
        %v6339 = vpop.trf.xlu0
        %v6340 = vpop.trf.xlu0
        %v6341 = vpop.trf.xlu0
        %v6342 = vpop.trf.xlu0
        %s6343 = scalar_lea.vmem %s298, 48 [#allocation6]
        %6344 = vst.msk [vmem:[%s6343] sm:$0xff] %vm6067, %v6327
        %v6345 = vmul.f32 %v4997, 0.61290324
        %v6346 = vmul.f32 %v5002, 0.61290324
        %v6347 = vmul.f32 %v5007, 0.61290324
        %v6348 = vmul.f32 %v5012, 0.61290324
        %v6349 = vmul.f32 %v5082, 0.38709676
        %v6350 = vmul.f32 %v5087, 0.38709676
        %v6351 = vmul.f32 %v5092, 0.38709676
        %v6352 = vmul.f32 %v5097, 0.38709676
        %v6353 = vadd.f32 %v6345, %v6349
        %v6354 = vadd.f32 %v6346, %v6350
        %v6355 = vadd.f32 %v6347, %v6351
        %v6356 = vadd.f32 %v6348, %v6352
        %6357 = vxpose.xlu0.b32.start [1/16] %v6353, 128
        %6358 = vxpose.xlu0.b32.cont [2/16] %v6354, 128
        %6359 = vxpose.xlu0.b32.cont [3/16] %v6355, 128
        %6360 = vxpose.xlu0.b32.cont [4/16] %v6356, 128
        %6361 = vxpose.xlu0.b32.cont [5/16] 0.0, 128
        %6362 = vxpose.xlu0.b32.cont [6/16] 0.0, 128
        %6363 = vxpose.xlu0.b32.cont [7/16] 0.0, 128
        %6364 = vxpose.xlu0.b32.cont [8/16] 0.0, 128
        %6365 = vxpose.xlu0.b32.cont [9/16] 0.0, 128
        %6366 = vxpose.xlu0.b32.cont [10/16] 0.0, 128
        %6367 = vxpose.xlu0.b32.cont [11/16] 0.0, 128
        %6368 = vxpose.xlu0.b32.cont [12/16] 0.0, 128
        %6369 = vxpose.xlu0.b32.cont [13/16] 0.0, 128
        %6370 = vxpose.xlu0.b32.cont [14/16] 0.0, 128
        %6371 = vxpose.xlu0.b32.cont [15/16] 0.0, 128
        %6372 = vxpose.xlu0.b32.end [16/16] 0.0, 128
        %v6373 = vpop.trf.xlu0
        %v6374 = vpop.trf.xlu0
        %v6375 = vpop.trf.xlu0
        %v6376 = vpop.trf.xlu0
        %v6377 = vpop.trf.xlu0
        %v6378 = vpop.trf.xlu0
        %v6379 = vpop.trf.xlu0
        %v6380 = vpop.trf.xlu0
        %v6381 = vpop.trf.xlu0
        %v6382 = vpop.trf.xlu0
        %v6383 = vpop.trf.xlu0
        %v6384 = vpop.trf.xlu0
        %v6385 = vpop.trf.xlu0
        %v6386 = vpop.trf.xlu0
        %v6387 = vpop.trf.xlu0
        %v6388 = vpop.trf.xlu0
        %s6389 = scalar_lea.vmem %s298, 56 [#allocation6]
        %6390 = vst.msk [vmem:[%s6389] sm:$0xff] %vm6067, %v6373
        %v6391 = vmul.f32 %v4997, 0.12903225
        %v6392 = vmul.f32 %v5002, 0.12903225
        %v6393 = vmul.f32 %v5007, 0.12903225
        %v6394 = vmul.f32 %v5012, 0.12903225
        %v6395 = vmul.f32 %v5082, 0.87096775
        %v6396 = vmul.f32 %v5087, 0.87096775
        %v6397 = vmul.f32 %v5092, 0.87096775
        %v6398 = vmul.f32 %v5097, 0.87096775
        %v6399 = vadd.f32 %v6391, %v6395
        %v6400 = vadd.f32 %v6392, %v6396
        %v6401 = vadd.f32 %v6393, %v6397
        %v6402 = vadd.f32 %v6394, %v6398
        %6403 = vxpose.xlu0.b32.start [1/16] %v6399, 128
        %6404 = vxpose.xlu0.b32.cont [2/16] %v6400, 128
        %6405 = vxpose.xlu0.b32.cont [3/16] %v6401, 128
        %6406 = vxpose.xlu0.b32.cont [4/16] %v6402, 128
        %6407 = vxpose.xlu0.b32.cont [5/16] 0.0, 128
        %6408 = vxpose.xlu0.b32.cont [6/16] 0.0, 128
        %6409 = vxpose.xlu0.b32.cont [7/16] 0.0, 128
        %6410 = vxpose.xlu0.b32.cont [8/16] 0.0, 128
        %6411 = vxpose.xlu0.b32.cont [9/16] 0.0, 128
        %6412 = vxpose.xlu0.b32.cont [10/16] 0.0, 128
        %6413 = vxpose.xlu0.b32.cont [11/16] 0.0, 128
        %6414 = vxpose.xlu0.b32.cont [12/16] 0.0, 128
        %6415 = vxpose.xlu0.b32.cont [13/16] 0.0, 128
        %6416 = vxpose.xlu0.b32.cont [14/16] 0.0, 128
        %6417 = vxpose.xlu0.b32.cont [15/16] 0.0, 128
        %6418 = vxpose.xlu0.b32.end [16/16] 0.0, 128
        %v6419 = vpop.trf.xlu0
        %v6420 = vpop.trf.xlu0
        %v6421 = vpop.trf.xlu0
        %v6422 = vpop.trf.xlu0
        %v6423 = vpop.trf.xlu0
        %v6424 = vpop.trf.xlu0
        %v6425 = vpop.trf.xlu0
        %v6426 = vpop.trf.xlu0
        %v6427 = vpop.trf.xlu0
        %v6428 = vpop.trf.xlu0
        %v6429 = vpop.trf.xlu0
        %v6430 = vpop.trf.xlu0
        %v6431 = vpop.trf.xlu0
        %v6432 = vpop.trf.xlu0
        %v6433 = vpop.trf.xlu0
        %v6434 = vpop.trf.xlu0
        %s6435 = scalar_lea.vmem %s298, 64 [#allocation6]
        %6436 = vst.msk [vmem:[%s6435] sm:$0xff] %vm6067, %v6419
        %v6437 = vmul.f32 %v5082, 0.6451613
        %v6438 = vmul.f32 %v5087, 0.6451613
        %v6439 = vmul.f32 %v5092, 0.6451613
        %v6440 = vmul.f32 %v5097, 0.6451613
        %v6441 = vmul.f32 %v5167, 0.3548387
        %v6442 = vmul.f32 %v5172, 0.3548387
        %v6443 = vmul.f32 %v5177, 0.3548387
        %v6444 = vmul.f32 %v5182, 0.3548387
        %v6445 = vadd.f32 %v6437, %v6441
        %v6446 = vadd.f32 %v6438, %v6442
        %v6447 = vadd.f32 %v6439, %v6443
        %v6448 = vadd.f32 %v6440, %v6444
        %6449 = vxpose.xlu0.b32.start [1/16] %v6445, 128
        %6450 = vxpose.xlu0.b32.cont [2/16] %v6446, 128
        %6451 = vxpose.xlu0.b32.cont [3/16] %v6447, 128
        %6452 = vxpose.xlu0.b32.cont [4/16] %v6448, 128
        %6453 = vxpose.xlu0.b32.cont [5/16] 0.0, 128
        %6454 = vxpose.xlu0.b32.cont [6/16] 0.0, 128
        %6455 = vxpose.xlu0.b32.cont [7/16] 0.0, 128
        %6456 = vxpose.xlu0.b32.cont [8/16] 0.0, 128
        %6457 = vxpose.xlu0.b32.cont [9/16] 0.0, 128
        %6458 = vxpose.xlu0.b32.cont [10/16] 0.0, 128
        %6459 = vxpose.xlu0.b32.cont [11/16] 0.0, 128
        %6460 = vxpose.xlu0.b32.cont [12/16] 0.0, 128
        %6461 = vxpose.xlu0.b32.cont [13/16] 0.0, 128
        %6462 = vxpose.xlu0.b32.cont [14/16] 0.0, 128
        %6463 = vxpose.xlu0.b32.cont [15/16] 0.0, 128
        %6464 = vxpose.xlu0.b32.end [16/16] 0.0, 128
        %v6465 = vpop.trf.xlu0
        %v6466 = vpop.trf.xlu0
        %v6467 = vpop.trf.xlu0
        %v6468 = vpop.trf.xlu0
        %v6469 = vpop.trf.xlu0
        %v6470 = vpop.trf.xlu0
        %v6471 = vpop.trf.xlu0
        %v6472 = vpop.trf.xlu0
        %v6473 = vpop.trf.xlu0
        %v6474 = vpop.trf.xlu0
        %v6475 = vpop.trf.xlu0
        %v6476 = vpop.trf.xlu0
        %v6477 = vpop.trf.xlu0
        %v6478 = vpop.trf.xlu0
        %v6479 = vpop.trf.xlu0
        %v6480 = vpop.trf.xlu0
        %s6481 = scalar_lea.vmem %s298, 72 [#allocation6]
        %6482 = vst.msk [vmem:[%s6481] sm:$0xff] %vm6067, %v6465
        %v6483 = vmul.f32 %v5082, 0.16129032
        %v6484 = vmul.f32 %v5087, 0.16129032
        %v6485 = vmul.f32 %v5092, 0.16129032
        %v6486 = vmul.f32 %v5097, 0.16129032
        %v6487 = vmul.f32 %v5167, 0.83870965
        %v6488 = vmul.f32 %v5172, 0.83870965
        %v6489 = vmul.f32 %v5177, 0.83870965
        %v6490 = vmul.f32 %v5182, 0.83870965
        %v6491 = vadd.f32 %v6483, %v6487
        %v6492 = vadd.f32 %v6484, %v6488
        %v6493 = vadd.f32 %v6485, %v6489
        %v6494 = vadd.f32 %v6486, %v6490
        %6495 = vxpose.xlu0.b32.start [1/16] %v6491, 128
        %6496 = vxpose.xlu0.b32.cont [2/16] %v6492, 128
        %6497 = vxpose.xlu0.b32.cont [3/16] %v6493, 128
        %6498 = vxpose.xlu0.b32.cont [4/16] %v6494, 128
        %6499 = vxpose.xlu0.b32.cont [5/16] 0.0, 128
        %6500 = vxpose.xlu0.b32.cont [6/16] 0.0, 128
        %6501 = vxpose.xlu0.b32.cont [7/16] 0.0, 128
        %6502 = vxpose.xlu0.b32.cont [8/16] 0.0, 128
        %6503 = vxpose.xlu0.b32.cont [9/16] 0.0, 128
        %6504 = vxpose.xlu0.b32.cont [10/16] 0.0, 128
        %6505 = vxpose.xlu0.b32.cont [11/16] 0.0, 128
        %6506 = vxpose.xlu0.b32.cont [12/16] 0.0, 128
        %6507 = vxpose.xlu0.b32.cont [13/16] 0.0, 128
        %6508 = vxpose.xlu0.b32.cont [14/16] 0.0, 128
        %6509 = vxpose.xlu0.b32.cont [15/16] 0.0, 128
        %6510 = vxpose.xlu0.b32.end [16/16] 0.0, 128
        %v6511 = vpop.trf.xlu0
        %v6512 = vpop.trf.xlu0
        %v6513 = vpop.trf.xlu0
        %v6514 = vpop.trf.xlu0
        %v6515 = vpop.trf.xlu0
        %v6516 = vpop.trf.xlu0
        %v6517 = vpop.trf.xlu0
        %v6518 = vpop.trf.xlu0
        %v6519 = vpop.trf.xlu0
        %v6520 = vpop.trf.xlu0
        %v6521 = vpop.trf.xlu0
        %v6522 = vpop.trf.xlu0
        %v6523 = vpop.trf.xlu0
        %v6524 = vpop.trf.xlu0
        %v6525 = vpop.trf.xlu0
        %v6526 = vpop.trf.xlu0
        %s6527 = scalar_lea.vmem %s298, 80 [#allocation6]
        %6528 = vst.msk [vmem:[%s6527] sm:$0xff] %vm6067, %v6511
        %v6529 = vmul.f32 %v5167, 0.67741936
        %v6530 = vmul.f32 %v5172, 0.67741936
        %v6531 = vmul.f32 %v5177, 0.67741936
        %v6532 = vmul.f32 %v5182, 0.67741936
        %v6533 = vmul.f32 %v5252, 0.32258064
        %v6534 = vmul.f32 %v5257, 0.32258064
        %v6535 = vmul.f32 %v5262, 0.32258064
        %v6536 = vmul.f32 %v5267, 0.32258064
        %v6537 = vadd.f32 %v6529, %v6533
        %v6538 = vadd.f32 %v6530, %v6534
        %v6539 = vadd.f32 %v6531, %v6535
        %v6540 = vadd.f32 %v6532, %v6536
        %6541 = vxpose.xlu0.b32.start [1/16] %v6537, 128
        %6542 = vxpose.xlu0.b32.cont [2/16] %v6538, 128
        %6543 = vxpose.xlu0.b32.cont [3/16] %v6539, 128
        %6544 = vxpose.xlu0.b32.cont [4/16] %v6540, 128
        %6545 = vxpose.xlu0.b32.cont [5/16] 0.0, 128
        %6546 = vxpose.xlu0.b32.cont [6/16] 0.0, 128
        %6547 = vxpose.xlu0.b32.cont [7/16] 0.0, 128
        %6548 = vxpose.xlu0.b32.cont [8/16] 0.0, 128
        %6549 = vxpose.xlu0.b32.cont [9/16] 0.0, 128
        %6550 = vxpose.xlu0.b32.cont [10/16] 0.0, 128
        %6551 = vxpose.xlu0.b32.cont [11/16] 0.0, 128
        %6552 = vxpose.xlu0.b32.cont [12/16] 0.0, 128
        %6553 = vxpose.xlu0.b32.cont [13/16] 0.0, 128
        %6554 = vxpose.xlu0.b32.cont [14/16] 0.0, 128
        %6555 = vxpose.xlu0.b32.cont [15/16] 0.0, 128
        %6556 = vxpose.xlu0.b32.end [16/16] 0.0, 128
        %v6557 = vpop.trf.xlu0
        %v6558 = vpop.trf.xlu0
        %v6559 = vpop.trf.xlu0
        %v6560 = vpop.trf.xlu0
        %v6561 = vpop.trf.xlu0
        %v6562 = vpop.trf.xlu0
        %v6563 = vpop.trf.xlu0
        %v6564 = vpop.trf.xlu0
        %v6565 = vpop.trf.xlu0
        %v6566 = vpop.trf.xlu0
        %v6567 = vpop.trf.xlu0
        %v6568 = vpop.trf.xlu0
        %v6569 = vpop.trf.xlu0
        %v6570 = vpop.trf.xlu0
        %v6571 = vpop.trf.xlu0
        %v6572 = vpop.trf.xlu0
        %s6573 = scalar_lea.vmem %s298, 88 [#allocation6]
        %6574 = vst.msk [vmem:[%s6573] sm:$0xff] %vm6067, %v6557
        %v6575 = vmul.f32 %v5167, 0.19354838
        %v6576 = vmul.f32 %v5172, 0.19354838
        %v6577 = vmul.f32 %v5177, 0.19354838
        %v6578 = vmul.f32 %v5182, 0.19354838
        %v6579 = vmul.f32 %v5252, 0.8064516
        %v6580 = vmul.f32 %v5257, 0.8064516
        %v6581 = vmul.f32 %v5262, 0.8064516
        %v6582 = vmul.f32 %v5267, 0.8064516
        %v6583 = vadd.f32 %v6575, %v6579
        %v6584 = vadd.f32 %v6576, %v6580
        %v6585 = vadd.f32 %v6577, %v6581
        %v6586 = vadd.f32 %v6578, %v6582
        %6587 = vxpose.xlu0.b32.start [1/16] %v6583, 128
        %6588 = vxpose.xlu0.b32.cont [2/16] %v6584, 128
        %6589 = vxpose.xlu0.b32.cont [3/16] %v6585, 128
        %6590 = vxpose.xlu0.b32.cont [4/16] %v6586, 128
        %6591 = vxpose.xlu0.b32.cont [5/16] 0.0, 128
        %6592 = vxpose.xlu0.b32.cont [6/16] 0.0, 128
        %6593 = vxpose.xlu0.b32.cont [7/16] 0.0, 128
        %6594 = vxpose.xlu0.b32.cont [8/16] 0.0, 128
        %6595 = vxpose.xlu0.b32.cont [9/16] 0.0, 128
        %6596 = vxpose.xlu0.b32.cont [10/16] 0.0, 128
        %6597 = vxpose.xlu0.b32.cont [11/16] 0.0, 128
        %6598 = vxpose.xlu0.b32.cont [12/16] 0.0, 128
        %6599 = vxpose.xlu0.b32.cont [13/16] 0.0, 128
        %6600 = vxpose.xlu0.b32.cont [14/16] 0.0, 128
        %6601 = vxpose.xlu0.b32.cont [15/16] 0.0, 128
        %6602 = vxpose.xlu0.b32.end [16/16] 0.0, 128
        %v6603 = vpop.trf.xlu0
        %v6604 = vpop.trf.xlu0
        %v6605 = vpop.trf.xlu0
        %v6606 = vpop.trf.xlu0
        %v6607 = vpop.trf.xlu0
        %v6608 = vpop.trf.xlu0
        %v6609 = vpop.trf.xlu0
        %v6610 = vpop.trf.xlu0
        %v6611 = vpop.trf.xlu0
        %v6612 = vpop.trf.xlu0
        %v6613 = vpop.trf.xlu0
        %v6614 = vpop.trf.xlu0
        %v6615 = vpop.trf.xlu0
        %v6616 = vpop.trf.xlu0
        %v6617 = vpop.trf.xlu0
        %v6618 = vpop.trf.xlu0
        %s6619 = scalar_lea.vmem %s298, 96 [#allocation6]
        %6620 = vst.msk [vmem:[%s6619] sm:$0xff] %vm6067, %v6603
        %v6621 = vmul.f32 %v5252, 0.7096774
        %v6622 = vmul.f32 %v5257, 0.7096774
        %v6623 = vmul.f32 %v5262, 0.7096774
        %v6624 = vmul.f32 %v5267, 0.7096774
        %v6625 = vmul.f32 %v5337, 0.29032257
        %v6626 = vmul.f32 %v5342, 0.29032257
        %v6627 = vmul.f32 %v5347, 0.29032257
        %v6628 = vmul.f32 %v5352, 0.29032257
        %v6629 = vadd.f32 %v6621, %v6625
        %v6630 = vadd.f32 %v6622, %v6626
        %v6631 = vadd.f32 %v6623, %v6627
        %v6632 = vadd.f32 %v6624, %v6628
        %6633 = vxpose.xlu0.b32.start [1/16] %v6629, 128
        %6634 = vxpose.xlu0.b32.cont [2/16] %v6630, 128
        %6635 = vxpose.xlu0.b32.cont [3/16] %v6631, 128
        %6636 = vxpose.xlu0.b32.cont [4/16] %v6632, 128
        %6637 = vxpose.xlu0.b32.cont [5/16] 0.0, 128
        %6638 = vxpose.xlu0.b32.cont [6/16] 0.0, 128
        %6639 = vxpose.xlu0.b32.cont [7/16] 0.0, 128
        %6640 = vxpose.xlu0.b32.cont [8/16] 0.0, 128
        %6641 = vxpose.xlu0.b32.cont [9/16] 0.0, 128
        %6642 = vxpose.xlu0.b32.cont [10/16] 0.0, 128
        %6643 = vxpose.xlu0.b32.cont [11/16] 0.0, 128
        %6644 = vxpose.xlu0.b32.cont [12/16] 0.0, 128
        %6645 = vxpose.xlu0.b32.cont [13/16] 0.0, 128
        %6646 = vxpose.xlu0.b32.cont [14/16] 0.0, 128
        %6647 = vxpose.xlu0.b32.cont [15/16] 0.0, 128
        %6648 = vxpose.xlu0.b32.end [16/16] 0.0, 128
        %v6649 = vpop.trf.xlu0
        %v6650 = vpop.trf.xlu0
        %v6651 = vpop.trf.xlu0
        %v6652 = vpop.trf.xlu0
        %v6653 = vpop.trf.xlu0
        %v6654 = vpop.trf.xlu0
        %v6655 = vpop.trf.xlu0
        %v6656 = vpop.trf.xlu0
        %v6657 = vpop.trf.xlu0
        %v6658 = vpop.trf.xlu0
        %v6659 = vpop.trf.xlu0
        %v6660 = vpop.trf.xlu0
        %v6661 = vpop.trf.xlu0
        %v6662 = vpop.trf.xlu0
        %v6663 = vpop.trf.xlu0
        %v6664 = vpop.trf.xlu0
        %s6665 = scalar_lea.vmem %s298, 104 [#allocation6]
        %6666 = vst.msk [vmem:[%s6665] sm:$0xff] %vm6067, %v6649
        %v6667 = vmul.f32 %v5252, 0.22580644
        %v6668 = vmul.f32 %v5257, 0.22580644
        %v6669 = vmul.f32 %v5262, 0.22580644
        %v6670 = vmul.f32 %v5267, 0.22580644
        %v6671 = vmul.f32 %v5337, 0.7741935
        %v6672 = vmul.f32 %v5342, 0.7741935
        %v6673 = vmul.f32 %v5347, 0.7741935
        %v6674 = vmul.f32 %v5352, 0.7741935
        %v6675 = vadd.f32 %v6667, %v6671
        %v6676 = vadd.f32 %v6668, %v6672
        %v6677 = vadd.f32 %v6669, %v6673
        %v6678 = vadd.f32 %v6670, %v6674
        %6679 = vxpose.xlu0.b32.start [1/16] %v6675, 128
        %6680 = vxpose.xlu0.b32.cont [2/16] %v6676, 128
        %6681 = vxpose.xlu0.b32.cont [3/16] %v6677, 128
        %6682 = vxpose.xlu0.b32.cont [4/16] %v6678, 128
        %6683 = vxpose.xlu0.b32.cont [5/16] 0.0, 128
        %6684 = vxpose.xlu0.b32.cont [6/16] 0.0, 128
        %6685 = vxpose.xlu0.b32.cont [7/16] 0.0, 128
        %6686 = vxpose.xlu0.b32.cont [8/16] 0.0, 128
        %6687 = vxpose.xlu0.b32.cont [9/16] 0.0, 128
        %6688 = vxpose.xlu0.b32.cont [10/16] 0.0, 128
        %6689 = vxpose.xlu0.b32.cont [11/16] 0.0, 128
        %6690 = vxpose.xlu0.b32.cont [12/16] 0.0, 128
        %6691 = vxpose.xlu0.b32.cont [13/16] 0.0, 128
        %6692 = vxpose.xlu0.b32.cont [14/16] 0.0, 128
        %6693 = vxpose.xlu0.b32.cont [15/16] 0.0, 128
        %6694 = vxpose.xlu0.b32.end [16/16] 0.0, 128
        %v6695 = vpop.trf.xlu0
        %v6696 = vpop.trf.xlu0
        %v6697 = vpop.trf.xlu0
        %v6698 = vpop.trf.xlu0
        %v6699 = vpop.trf.xlu0
        %v6700 = vpop.trf.xlu0
        %v6701 = vpop.trf.xlu0
        %v6702 = vpop.trf.xlu0
        %v6703 = vpop.trf.xlu0
        %v6704 = vpop.trf.xlu0
        %v6705 = vpop.trf.xlu0
        %v6706 = vpop.trf.xlu0
        %v6707 = vpop.trf.xlu0
        %v6708 = vpop.trf.xlu0
        %v6709 = vpop.trf.xlu0
        %v6710 = vpop.trf.xlu0
        %s6711 = scalar_lea.vmem %s298, 112 [#allocation6]
        %6712 = vst.msk [vmem:[%s6711] sm:$0xff] %vm6067, %v6695
        %v6713 = vmul.f32 %v5337, 0.7419355
        %v6714 = vmul.f32 %v5342, 0.7419355
        %v6715 = vmul.f32 %v5347, 0.7419355
        %v6716 = vmul.f32 %v5352, 0.7419355
        %v6717 = vmul.f32 %v5422, 0.2580645
        %v6718 = vmul.f32 %v5427, 0.2580645
        %v6719 = vmul.f32 %v5432, 0.2580645
        %v6720 = vmul.f32 %v5437, 0.2580645
        %v6721 = vadd.f32 %v6713, %v6717
        %v6722 = vadd.f32 %v6714, %v6718
        %v6723 = vadd.f32 %v6715, %v6719
        %v6724 = vadd.f32 %v6716, %v6720
        %6725 = vxpose.xlu0.b32.start [1/16] %v6721, 128
        %6726 = vxpose.xlu0.b32.cont [2/16] %v6722, 128
        %6727 = vxpose.xlu0.b32.cont [3/16] %v6723, 128
        %6728 = vxpose.xlu0.b32.cont [4/16] %v6724, 128
        %6729 = vxpose.xlu0.b32.cont [5/16] 0.0, 128
        %6730 = vxpose.xlu0.b32.cont [6/16] 0.0, 128
        %6731 = vxpose.xlu0.b32.cont [7/16] 0.0, 128
        %6732 = vxpose.xlu0.b32.cont [8/16] 0.0, 128
        %6733 = vxpose.xlu0.b32.cont [9/16] 0.0, 128
        %6734 = vxpose.xlu0.b32.cont [10/16] 0.0, 128
        %6735 = vxpose.xlu0.b32.cont [11/16] 0.0, 128
        %6736 = vxpose.xlu0.b32.cont [12/16] 0.0, 128
        %6737 = vxpose.xlu0.b32.cont [13/16] 0.0, 128
        %6738 = vxpose.xlu0.b32.cont [14/16] 0.0, 128
        %6739 = vxpose.xlu0.b32.cont [15/16] 0.0, 128
        %6740 = vxpose.xlu0.b32.end [16/16] 0.0, 128
        %v6741 = vpop.trf.xlu0
        %v6742 = vpop.trf.xlu0
        %v6743 = vpop.trf.xlu0
        %v6744 = vpop.trf.xlu0
        %v6745 = vpop.trf.xlu0
        %v6746 = vpop.trf.xlu0
        %v6747 = vpop.trf.xlu0
        %v6748 = vpop.trf.xlu0
        %v6749 = vpop.trf.xlu0
        %v6750 = vpop.trf.xlu0
        %v6751 = vpop.trf.xlu0
        %v6752 = vpop.trf.xlu0
        %v6753 = vpop.trf.xlu0
        %v6754 = vpop.trf.xlu0
        %v6755 = vpop.trf.xlu0
        %v6756 = vpop.trf.xlu0
        %s6757 = scalar_lea.vmem %s298, 120 [#allocation6]
        %6758 = vst.msk [vmem:[%s6757] sm:$0xff] %vm6067, %v6741
        %v6759 = vmul.f32 %v5337, 0.2580645
        %v6760 = vmul.f32 %v5342, 0.2580645
        %v6761 = vmul.f32 %v5347, 0.2580645
        %v6762 = vmul.f32 %v5352, 0.2580645
        %v6763 = vmul.f32 %v5422, 0.7419355
        %v6764 = vmul.f32 %v5427, 0.7419355
        %v6765 = vmul.f32 %v5432, 0.7419355
        %v6766 = vmul.f32 %v5437, 0.7419355
        %v6767 = vadd.f32 %v6759, %v6763
        %v6768 = vadd.f32 %v6760, %v6764
        %v6769 = vadd.f32 %v6761, %v6765
        %v6770 = vadd.f32 %v6762, %v6766
        %6771 = vxpose.xlu0.b32.start [1/16] %v6767, 128
        %6772 = vxpose.xlu0.b32.cont [2/16] %v6768, 128
        %6773 = vxpose.xlu0.b32.cont [3/16] %v6769, 128
        %6774 = vxpose.xlu0.b32.cont [4/16] %v6770, 128
        %6775 = vxpose.xlu0.b32.cont [5/16] 0.0, 128
        %6776 = vxpose.xlu0.b32.cont [6/16] 0.0, 128
        %6777 = vxpose.xlu0.b32.cont [7/16] 0.0, 128
        %6778 = vxpose.xlu0.b32.cont [8/16] 0.0, 128
        %6779 = vxpose.xlu0.b32.cont [9/16] 0.0, 128
        %6780 = vxpose.xlu0.b32.cont [10/16] 0.0, 128
        %6781 = vxpose.xlu0.b32.cont [11/16] 0.0, 128
        %6782 = vxpose.xlu0.b32.cont [12/16] 0.0, 128
        %6783 = vxpose.xlu0.b32.cont [13/16] 0.0, 128
        %6784 = vxpose.xlu0.b32.cont [14/16] 0.0, 128
        %6785 = vxpose.xlu0.b32.cont [15/16] 0.0, 128
        %6786 = vxpose.xlu0.b32.end [16/16] 0.0, 128
        %v6787 = vpop.trf.xlu0
        %v6788 = vpop.trf.xlu0
        %v6789 = vpop.trf.xlu0
        %v6790 = vpop.trf.xlu0
        %v6791 = vpop.trf.xlu0
        %v6792 = vpop.trf.xlu0
        %v6793 = vpop.trf.xlu0
        %v6794 = vpop.trf.xlu0
        %v6795 = vpop.trf.xlu0
        %v6796 = vpop.trf.xlu0
        %v6797 = vpop.trf.xlu0
        %v6798 = vpop.trf.xlu0
        %v6799 = vpop.trf.xlu0
        %v6800 = vpop.trf.xlu0
        %v6801 = vpop.trf.xlu0
        %v6802 = vpop.trf.xlu0
        %s6803 = scalar_lea.vmem %s298, 128 [#allocation6]
        %6804 = vst.msk [vmem:[%s6803] sm:$0xff] %vm6067, %v6787
        %v6805 = vmul.f32 %v5422, 0.7741935
        %v6806 = vmul.f32 %v5427, 0.7741935
        %v6807 = vmul.f32 %v5432, 0.7741935
        %v6808 = vmul.f32 %v5437, 0.7741935
        %v6809 = vmul.f32 %v5507, 0.22580644
        %v6810 = vmul.f32 %v5512, 0.22580644
        %v6811 = vmul.f32 %v5517, 0.22580644
        %v6812 = vmul.f32 %v5522, 0.22580644
        %v6813 = vadd.f32 %v6805, %v6809
        %v6814 = vadd.f32 %v6806, %v6810
        %v6815 = vadd.f32 %v6807, %v6811
        %v6816 = vadd.f32 %v6808, %v6812
        %6817 = vxpose.xlu0.b32.start [1/16] %v6813, 128
        %6818 = vxpose.xlu0.b32.cont [2/16] %v6814, 128
        %6819 = vxpose.xlu0.b32.cont [3/16] %v6815, 128
        %6820 = vxpose.xlu0.b32.cont [4/16] %v6816, 128
        %6821 = vxpose.xlu0.b32.cont [5/16] 0.0, 128
        %6822 = vxpose.xlu0.b32.cont [6/16] 0.0, 128
        %6823 = vxpose.xlu0.b32.cont [7/16] 0.0, 128
        %6824 = vxpose.xlu0.b32.cont [8/16] 0.0, 128
        %6825 = vxpose.xlu0.b32.cont [9/16] 0.0, 128
        %6826 = vxpose.xlu0.b32.cont [10/16] 0.0, 128
        %6827 = vxpose.xlu0.b32.cont [11/16] 0.0, 128
        %6828 = vxpose.xlu0.b32.cont [12/16] 0.0, 128
        %6829 = vxpose.xlu0.b32.cont [13/16] 0.0, 128
        %6830 = vxpose.xlu0.b32.cont [14/16] 0.0, 128
        %6831 = vxpose.xlu0.b32.cont [15/16] 0.0, 128
        %6832 = vxpose.xlu0.b32.end [16/16] 0.0, 128
        %v6833 = vpop.trf.xlu0
        %v6834 = vpop.trf.xlu0
        %v6835 = vpop.trf.xlu0
        %v6836 = vpop.trf.xlu0
        %v6837 = vpop.trf.xlu0
        %v6838 = vpop.trf.xlu0
        %v6839 = vpop.trf.xlu0
        %v6840 = vpop.trf.xlu0
        %v6841 = vpop.trf.xlu0
        %v6842 = vpop.trf.xlu0
        %v6843 = vpop.trf.xlu0
        %v6844 = vpop.trf.xlu0
        %v6845 = vpop.trf.xlu0
        %v6846 = vpop.trf.xlu0
        %v6847 = vpop.trf.xlu0
        %v6848 = vpop.trf.xlu0
        %s6849 = scalar_lea.vmem %s298, 136 [#allocation6]
        %6850 = vst.msk [vmem:[%s6849] sm:$0xff] %vm6067, %v6833
        %v6851 = vmul.f32 %v5422, 0.29032257
        %v6852 = vmul.f32 %v5427, 0.29032257
        %v6853 = vmul.f32 %v5432, 0.29032257
        %v6854 = vmul.f32 %v5437, 0.29032257
        %v6855 = vmul.f32 %v5507, 0.7096774
        %v6856 = vmul.f32 %v5512, 0.7096774
        %v6857 = vmul.f32 %v5517, 0.7096774
        %v6858 = vmul.f32 %v5522, 0.7096774
        %v6859 = vadd.f32 %v6851, %v6855
        %v6860 = vadd.f32 %v6852, %v6856
        %v6861 = vadd.f32 %v6853, %v6857
        %v6862 = vadd.f32 %v6854, %v6858
        %6863 = vxpose.xlu0.b32.start [1/16] %v6859, 128
        %6864 = vxpose.xlu0.b32.cont [2/16] %v6860, 128
        %6865 = vxpose.xlu0.b32.cont [3/16] %v6861, 128
        %6866 = vxpose.xlu0.b32.cont [4/16] %v6862, 128
        %6867 = vxpose.xlu0.b32.cont [5/16] 0.0, 128
        %6868 = vxpose.xlu0.b32.cont [6/16] 0.0, 128
        %6869 = vxpose.xlu0.b32.cont [7/16] 0.0, 128
        %6870 = vxpose.xlu0.b32.cont [8/16] 0.0, 128
        %6871 = vxpose.xlu0.b32.cont [9/16] 0.0, 128
        %6872 = vxpose.xlu0.b32.cont [10/16] 0.0, 128
        %6873 = vxpose.xlu0.b32.cont [11/16] 0.0, 128
        %6874 = vxpose.xlu0.b32.cont [12/16] 0.0, 128
        %6875 = vxpose.xlu0.b32.cont [13/16] 0.0, 128
        %6876 = vxpose.xlu0.b32.cont [14/16] 0.0, 128
        %6877 = vxpose.xlu0.b32.cont [15/16] 0.0, 128
        %6878 = vxpose.xlu0.b32.end [16/16] 0.0, 128
        %v6879 = vpop.trf.xlu0
        %v6880 = vpop.trf.xlu0
        %v6881 = vpop.trf.xlu0
        %v6882 = vpop.trf.xlu0
        %v6883 = vpop.trf.xlu0
        %v6884 = vpop.trf.xlu0
        %v6885 = vpop.trf.xlu0
        %v6886 = vpop.trf.xlu0
        %v6887 = vpop.trf.xlu0
        %v6888 = vpop.trf.xlu0
        %v6889 = vpop.trf.xlu0
        %v6890 = vpop.trf.xlu0
        %v6891 = vpop.trf.xlu0
        %v6892 = vpop.trf.xlu0
        %v6893 = vpop.trf.xlu0
        %v6894 = vpop.trf.xlu0
        %s6895 = scalar_lea.vmem %s298, 144 [#allocation6]
        %6896 = vst.msk [vmem:[%s6895] sm:$0xff] %vm6067, %v6879
        %v6897 = vmul.f32 %v5507, 0.8064516
        %v6898 = vmul.f32 %v5512, 0.8064516
        %v6899 = vmul.f32 %v5517, 0.8064516
        %v6900 = vmul.f32 %v5522, 0.8064516
        %v6901 = vmul.f32 %v5592, 0.19354838
        %v6902 = vmul.f32 %v5597, 0.19354838
        %v6903 = vmul.f32 %v5602, 0.19354838
        %v6904 = vmul.f32 %v5607, 0.19354838
        %v6905 = vadd.f32 %v6897, %v6901
        %v6906 = vadd.f32 %v6898, %v6902
        %v6907 = vadd.f32 %v6899, %v6903
        %v6908 = vadd.f32 %v6900, %v6904
        %6909 = vxpose.xlu0.b32.start [1/16] %v6905, 128
        %6910 = vxpose.xlu0.b32.cont [2/16] %v6906, 128
        %6911 = vxpose.xlu0.b32.cont [3/16] %v6907, 128
        %6912 = vxpose.xlu0.b32.cont [4/16] %v6908, 128
        %6913 = vxpose.xlu0.b32.cont [5/16] 0.0, 128
        %6914 = vxpose.xlu0.b32.cont [6/16] 0.0, 128
        %6915 = vxpose.xlu0.b32.cont [7/16] 0.0, 128
        %6916 = vxpose.xlu0.b32.cont [8/16] 0.0, 128
        %6917 = vxpose.xlu0.b32.cont [9/16] 0.0, 128
        %6918 = vxpose.xlu0.b32.cont [10/16] 0.0, 128
        %6919 = vxpose.xlu0.b32.cont [11/16] 0.0, 128
        %6920 = vxpose.xlu0.b32.cont [12/16] 0.0, 128
        %6921 = vxpose.xlu0.b32.cont [13/16] 0.0, 128
        %6922 = vxpose.xlu0.b32.cont [14/16] 0.0, 128
        %6923 = vxpose.xlu0.b32.cont [15/16] 0.0, 128
        %6924 = vxpose.xlu0.b32.end [16/16] 0.0, 128
        %v6925 = vpop.trf.xlu0
        %v6926 = vpop.trf.xlu0
        %v6927 = vpop.trf.xlu0
        %v6928 = vpop.trf.xlu0
        %v6929 = vpop.trf.xlu0
        %v6930 = vpop.trf.xlu0
        %v6931 = vpop.trf.xlu0
        %v6932 = vpop.trf.xlu0
        %v6933 = vpop.trf.xlu0
        %v6934 = vpop.trf.xlu0
        %v6935 = vpop.trf.xlu0
        %v6936 = vpop.trf.xlu0
        %v6937 = vpop.trf.xlu0
        %v6938 = vpop.trf.xlu0
        %v6939 = vpop.trf.xlu0
        %v6940 = vpop.trf.xlu0
        %s6941 = scalar_lea.vmem %s298, 152 [#allocation6]
        %6942 = vst.msk [vmem:[%s6941] sm:$0xff] %vm6067, %v6925
        %v6943 = vmul.f32 %v5507, 0.32258064
        %v6944 = vmul.f32 %v5512, 0.32258064
        %v6945 = vmul.f32 %v5517, 0.32258064
        %v6946 = vmul.f32 %v5522, 0.32258064
        %v6947 = vmul.f32 %v5592, 0.67741936
        %v6948 = vmul.f32 %v5597, 0.67741936
        %v6949 = vmul.f32 %v5602, 0.67741936
        %v6950 = vmul.f32 %v5607, 0.67741936
        %v6951 = vadd.f32 %v6943, %v6947
        %v6952 = vadd.f32 %v6944, %v6948
        %v6953 = vadd.f32 %v6945, %v6949
        %v6954 = vadd.f32 %v6946, %v6950
        %6955 = vxpose.xlu0.b32.start [1/16] %v6951, 128
        %6956 = vxpose.xlu0.b32.cont [2/16] %v6952, 128
        %6957 = vxpose.xlu0.b32.cont [3/16] %v6953, 128
        %6958 = vxpose.xlu0.b32.cont [4/16] %v6954, 128
        %6959 = vxpose.xlu0.b32.cont [5/16] 0.0, 128
        %6960 = vxpose.xlu0.b32.cont [6/16] 0.0, 128
        %6961 = vxpose.xlu0.b32.cont [7/16] 0.0, 128
        %6962 = vxpose.xlu0.b32.cont [8/16] 0.0, 128
        %6963 = vxpose.xlu0.b32.cont [9/16] 0.0, 128
        %6964 = vxpose.xlu0.b32.cont [10/16] 0.0, 128
        %6965 = vxpose.xlu0.b32.cont [11/16] 0.0, 128
        %6966 = vxpose.xlu0.b32.cont [12/16] 0.0, 128
        %6967 = vxpose.xlu0.b32.cont [13/16] 0.0, 128
        %6968 = vxpose.xlu0.b32.cont [14/16] 0.0, 128
        %6969 = vxpose.xlu0.b32.cont [15/16] 0.0, 128
        %6970 = vxpose.xlu0.b32.end [16/16] 0.0, 128
        %v6971 = vpop.trf.xlu0
        %v6972 = vpop.trf.xlu0
        %v6973 = vpop.trf.xlu0
        %v6974 = vpop.trf.xlu0
        %v6975 = vpop.trf.xlu0
        %v6976 = vpop.trf.xlu0
        %v6977 = vpop.trf.xlu0
        %v6978 = vpop.trf.xlu0
        %v6979 = vpop.trf.xlu0
        %v6980 = vpop.trf.xlu0
        %v6981 = vpop.trf.xlu0
        %v6982 = vpop.trf.xlu0
        %v6983 = vpop.trf.xlu0
        %v6984 = vpop.trf.xlu0
        %v6985 = vpop.trf.xlu0
        %v6986 = vpop.trf.xlu0
        %s6987 = scalar_lea.vmem %s298, 160 [#allocation6]
        %6988 = vst.msk [vmem:[%s6987] sm:$0xff] %vm6067, %v6971
        %v6989 = vmul.f32 %v5592, 0.83870965
        %v6990 = vmul.f32 %v5597, 0.83870965
        %v6991 = vmul.f32 %v5602, 0.83870965
        %v6992 = vmul.f32 %v5607, 0.83870965
        %v6993 = vmul.f32 %v5677, 0.16129032
        %v6994 = vmul.f32 %v5682, 0.16129032
        %v6995 = vmul.f32 %v5687, 0.16129032
        %v6996 = vmul.f32 %v5692, 0.16129032
        %v6997 = vadd.f32 %v6989, %v6993
        %v6998 = vadd.f32 %v6990, %v6994
        %v6999 = vadd.f32 %v6991, %v6995
        %v7000 = vadd.f32 %v6992, %v6996
        %7001 = vxpose.xlu0.b32.start [1/16] %v6997, 128
        %7002 = vxpose.xlu0.b32.cont [2/16] %v6998, 128
        %7003 = vxpose.xlu0.b32.cont [3/16] %v6999, 128
        %7004 = vxpose.xlu0.b32.cont [4/16] %v7000, 128
        %7005 = vxpose.xlu0.b32.cont [5/16] 0.0, 128
        %7006 = vxpose.xlu0.b32.cont [6/16] 0.0, 128
        %7007 = vxpose.xlu0.b32.cont [7/16] 0.0, 128
        %7008 = vxpose.xlu0.b32.cont [8/16] 0.0, 128
        %7009 = vxpose.xlu0.b32.cont [9/16] 0.0, 128
        %7010 = vxpose.xlu0.b32.cont [10/16] 0.0, 128
        %7011 = vxpose.xlu0.b32.cont [11/16] 0.0, 128
        %7012 = vxpose.xlu0.b32.cont [12/16] 0.0, 128
        %7013 = vxpose.xlu0.b32.cont [13/16] 0.0, 128
        %7014 = vxpose.xlu0.b32.cont [14/16] 0.0, 128
        %7015 = vxpose.xlu0.b32.cont [15/16] 0.0, 128
        %7016 = vxpose.xlu0.b32.end [16/16] 0.0, 128
        %v7017 = vpop.trf.xlu0
        %v7018 = vpop.trf.xlu0
        %v7019 = vpop.trf.xlu0
        %v7020 = vpop.trf.xlu0
        %v7021 = vpop.trf.xlu0
        %v7022 = vpop.trf.xlu0
        %v7023 = vpop.trf.xlu0
        %v7024 = vpop.trf.xlu0
        %v7025 = vpop.trf.xlu0
        %v7026 = vpop.trf.xlu0
        %v7027 = vpop.trf.xlu0
        %v7028 = vpop.trf.xlu0
        %v7029 = vpop.trf.xlu0
        %v7030 = vpop.trf.xlu0
        %v7031 = vpop.trf.xlu0
        %v7032 = vpop.trf.xlu0
        %s7033 = scalar_lea.vmem %s298, 168 [#allocation6]
        %7034 = vst.msk [vmem:[%s7033] sm:$0xff] %vm6067, %v7017
        %v7035 = vmul.f32 %v5592, 0.3548387
        %v7036 = vmul.f32 %v5597, 0.3548387
        %v7037 = vmul.f32 %v5602, 0.3548387
        %v7038 = vmul.f32 %v5607, 0.3548387
        %v7039 = vmul.f32 %v5677, 0.6451613
        %v7040 = vmul.f32 %v5682, 0.6451613
        %v7041 = vmul.f32 %v5687, 0.6451613
        %v7042 = vmul.f32 %v5692, 0.6451613
        %v7043 = vadd.f32 %v7035, %v7039
        %v7044 = vadd.f32 %v7036, %v7040
        %v7045 = vadd.f32 %v7037, %v7041
        %v7046 = vadd.f32 %v7038, %v7042
        %7047 = vxpose.xlu0.b32.start [1/16] %v7043, 128
        %7048 = vxpose.xlu0.b32.cont [2/16] %v7044, 128
        %7049 = vxpose.xlu0.b32.cont [3/16] %v7045, 128
        %7050 = vxpose.xlu0.b32.cont [4/16] %v7046, 128
        %7051 = vxpose.xlu0.b32.cont [5/16] 0.0, 128
        %7052 = vxpose.xlu0.b32.cont [6/16] 0.0, 128
        %7053 = vxpose.xlu0.b32.cont [7/16] 0.0, 128
        %7054 = vxpose.xlu0.b32.cont [8/16] 0.0, 128
        %7055 = vxpose.xlu0.b32.cont [9/16] 0.0, 128
        %7056 = vxpose.xlu0.b32.cont [10/16] 0.0, 128
        %7057 = vxpose.xlu0.b32.cont [11/16] 0.0, 128
        %7058 = vxpose.xlu0.b32.cont [12/16] 0.0, 128
        %7059 = vxpose.xlu0.b32.cont [13/16] 0.0, 128
        %7060 = vxpose.xlu0.b32.cont [14/16] 0.0, 128
        %7061 = vxpose.xlu0.b32.cont [15/16] 0.0, 128
        %7062 = vxpose.xlu0.b32.end [16/16] 0.0, 128
        %v7063 = vpop.trf.xlu0
        %v7064 = vpop.trf.xlu0
        %v7065 = vpop.trf.xlu0
        %v7066 = vpop.trf.xlu0
        %v7067 = vpop.trf.xlu0
        %v7068 = vpop.trf.xlu0
        %v7069 = vpop.trf.xlu0
        %v7070 = vpop.trf.xlu0
        %v7071 = vpop.trf.xlu0
        %v7072 = vpop.trf.xlu0
        %v7073 = vpop.trf.xlu0
        %v7074 = vpop.trf.xlu0
        %v7075 = vpop.trf.xlu0
        %v7076 = vpop.trf.xlu0
        %v7077 = vpop.trf.xlu0
        %v7078 = vpop.trf.xlu0
        %s7079 = scalar_lea.vmem %s298, 176 [#allocation6]
        %7080 = vst.msk [vmem:[%s7079] sm:$0xff] %vm6067, %v7063
        %v7081 = vmul.f32 %v5677, 0.87096775
        %v7082 = vmul.f32 %v5682, 0.87096775
        %v7083 = vmul.f32 %v5687, 0.87096775
        %v7084 = vmul.f32 %v5692, 0.87096775
        %v7085 = vmul.f32 %v5762, 0.12903225
        %v7086 = vmul.f32 %v5767, 0.12903225
        %v7087 = vmul.f32 %v5772, 0.12903225
        %v7088 = vmul.f32 %v5777, 0.12903225
        %v7089 = vadd.f32 %v7081, %v7085
        %v7090 = vadd.f32 %v7082, %v7086
        %v7091 = vadd.f32 %v7083, %v7087
        %v7092 = vadd.f32 %v7084, %v7088
        %7093 = vxpose.xlu0.b32.start [1/16] %v7089, 128
        %7094 = vxpose.xlu0.b32.cont [2/16] %v7090, 128
        %7095 = vxpose.xlu0.b32.cont [3/16] %v7091, 128
        %7096 = vxpose.xlu0.b32.cont [4/16] %v7092, 128
        %7097 = vxpose.xlu0.b32.cont [5/16] 0.0, 128
        %7098 = vxpose.xlu0.b32.cont [6/16] 0.0, 128
        %7099 = vxpose.xlu0.b32.cont [7/16] 0.0, 128
        %7100 = vxpose.xlu0.b32.cont [8/16] 0.0, 128
        %7101 = vxpose.xlu0.b32.cont [9/16] 0.0, 128
        %7102 = vxpose.xlu0.b32.cont [10/16] 0.0, 128
        %7103 = vxpose.xlu0.b32.cont [11/16] 0.0, 128
        %7104 = vxpose.xlu0.b32.cont [12/16] 0.0, 128
        %7105 = vxpose.xlu0.b32.cont [13/16] 0.0, 128
        %7106 = vxpose.xlu0.b32.cont [14/16] 0.0, 128
        %7107 = vxpose.xlu0.b32.cont [15/16] 0.0, 128
        %7108 = vxpose.xlu0.b32.end [16/16] 0.0, 128
        %v7109 = vpop.trf.xlu0
        %v7110 = vpop.trf.xlu0
        %v7111 = vpop.trf.xlu0
        %v7112 = vpop.trf.xlu0
        %v7113 = vpop.trf.xlu0
        %v7114 = vpop.trf.xlu0
        %v7115 = vpop.trf.xlu0
        %v7116 = vpop.trf.xlu0
        %v7117 = vpop.trf.xlu0
        %v7118 = vpop.trf.xlu0
        %v7119 = vpop.trf.xlu0
        %v7120 = vpop.trf.xlu0
        %v7121 = vpop.trf.xlu0
        %v7122 = vpop.trf.xlu0
        %v7123 = vpop.trf.xlu0
        %v7124 = vpop.trf.xlu0
        %s7125 = scalar_lea.vmem %s298, 184 [#allocation6]
        %7126 = vst.msk [vmem:[%s7125] sm:$0xff] %vm6067, %v7109
        %v7127 = vmul.f32 %v5677, 0.38709676
        %v7128 = vmul.f32 %v5682, 0.38709676
        %v7129 = vmul.f32 %v5687, 0.38709676
        %v7130 = vmul.f32 %v5692, 0.38709676
        %v7131 = vmul.f32 %v5762, 0.61290324
        %v7132 = vmul.f32 %v5767, 0.61290324
        %v7133 = vmul.f32 %v5772, 0.61290324
        %v7134 = vmul.f32 %v5777, 0.61290324
        %v7135 = vadd.f32 %v7127, %v7131
        %v7136 = vadd.f32 %v7128, %v7132
        %v7137 = vadd.f32 %v7129, %v7133
        %v7138 = vadd.f32 %v7130, %v7134
        %7139 = vxpose.xlu0.b32.start [1/16] %v7135, 128
        %7140 = vxpose.xlu0.b32.cont [2/16] %v7136, 128
        %7141 = vxpose.xlu0.b32.cont [3/16] %v7137, 128
        %7142 = vxpose.xlu0.b32.cont [4/16] %v7138, 128
        %7143 = vxpose.xlu0.b32.cont [5/16] 0.0, 128
        %7144 = vxpose.xlu0.b32.cont [6/16] 0.0, 128
        %7145 = vxpose.xlu0.b32.cont [7/16] 0.0, 128
        %7146 = vxpose.xlu0.b32.cont [8/16] 0.0, 128
        %7147 = vxpose.xlu0.b32.cont [9/16] 0.0, 128
        %7148 = vxpose.xlu0.b32.cont [10/16] 0.0, 128
        %7149 = vxpose.xlu0.b32.cont [11/16] 0.0, 128
        %7150 = vxpose.xlu0.b32.cont [12/16] 0.0, 128
        %7151 = vxpose.xlu0.b32.cont [13/16] 0.0, 128
        %7152 = vxpose.xlu0.b32.cont [14/16] 0.0, 128
        %7153 = vxpose.xlu0.b32.cont [15/16] 0.0, 128
        %7154 = vxpose.xlu0.b32.end [16/16] 0.0, 128
        %v7155 = vpop.trf.xlu0
        %v7156 = vpop.trf.xlu0
        %v7157 = vpop.trf.xlu0
        %v7158 = vpop.trf.xlu0
        %v7159 = vpop.trf.xlu0
        %v7160 = vpop.trf.xlu0
        %v7161 = vpop.trf.xlu0
        %v7162 = vpop.trf.xlu0
        %v7163 = vpop.trf.xlu0
        %v7164 = vpop.trf.xlu0
        %v7165 = vpop.trf.xlu0
        %v7166 = vpop.trf.xlu0
        %v7167 = vpop.trf.xlu0
        %v7168 = vpop.trf.xlu0
        %v7169 = vpop.trf.xlu0
        %v7170 = vpop.trf.xlu0
        %s7171 = scalar_lea.vmem %s298, 192 [#allocation6]
        %7172 = vst.msk [vmem:[%s7171] sm:$0xff] %vm6067, %v7155
        %v7173 = vmul.f32 %v5762, 0.9032258
        %v7174 = vmul.f32 %v5767, 0.9032258
        %v7175 = vmul.f32 %v5772, 0.9032258
        %v7176 = vmul.f32 %v5777, 0.9032258
        %v7177 = vmul.f32 %v5847, 0.09677419
        %v7178 = vmul.f32 %v5852, 0.09677419
        %v7179 = vmul.f32 %v5857, 0.09677419
        %v7180 = vmul.f32 %v5862, 0.09677419
        %v7181 = vadd.f32 %v7173, %v7177
        %v7182 = vadd.f32 %v7174, %v7178
        %v7183 = vadd.f32 %v7175, %v7179
        %v7184 = vadd.f32 %v7176, %v7180
        %7185 = vxpose.xlu0.b32.start [1/16] %v7181, 128
        %7186 = vxpose.xlu0.b32.cont [2/16] %v7182, 128
        %7187 = vxpose.xlu0.b32.cont [3/16] %v7183, 128
        %7188 = vxpose.xlu0.b32.cont [4/16] %v7184, 128
        %7189 = vxpose.xlu0.b32.cont [5/16] 0.0, 128
        %7190 = vxpose.xlu0.b32.cont [6/16] 0.0, 128
        %7191 = vxpose.xlu0.b32.cont [7/16] 0.0, 128
        %7192 = vxpose.xlu0.b32.cont [8/16] 0.0, 128
        %7193 = vxpose.xlu0.b32.cont [9/16] 0.0, 128
        %7194 = vxpose.xlu0.b32.cont [10/16] 0.0, 128
        %7195 = vxpose.xlu0.b32.cont [11/16] 0.0, 128
        %7196 = vxpose.xlu0.b32.cont [12/16] 0.0, 128
        %7197 = vxpose.xlu0.b32.cont [13/16] 0.0, 128
        %7198 = vxpose.xlu0.b32.cont [14/16] 0.0, 128
        %7199 = vxpose.xlu0.b32.cont [15/16] 0.0, 128
        %7200 = vxpose.xlu0.b32.end [16/16] 0.0, 128
        %v7201 = vpop.trf.xlu0
        %v7202 = vpop.trf.xlu0
        %v7203 = vpop.trf.xlu0
        %v7204 = vpop.trf.xlu0
        %v7205 = vpop.trf.xlu0
        %v7206 = vpop.trf.xlu0
        %v7207 = vpop.trf.xlu0
        %v7208 = vpop.trf.xlu0
        %v7209 = vpop.trf.xlu0
        %v7210 = vpop.trf.xlu0
        %v7211 = vpop.trf.xlu0
        %v7212 = vpop.trf.xlu0
        %v7213 = vpop.trf.xlu0
        %v7214 = vpop.trf.xlu0
        %v7215 = vpop.trf.xlu0
        %v7216 = vpop.trf.xlu0
        %s7217 = scalar_lea.vmem %s298, 200 [#allocation6]
        %7218 = vst.msk [vmem:[%s7217] sm:$0xff] %vm6067, %v7201
        %v7219 = vmul.f32 %v5762, 0.41935483
        %v7220 = vmul.f32 %v5767, 0.41935483
        %v7221 = vmul.f32 %v5772, 0.41935483
        %v7222 = vmul.f32 %v5777, 0.41935483
        %v7223 = vmul.f32 %v5847, 0.58064514
        %v7224 = vmul.f32 %v5852, 0.58064514
        %v7225 = vmul.f32 %v5857, 0.58064514
        %v7226 = vmul.f32 %v5862, 0.58064514
        %v7227 = vadd.f32 %v7219, %v7223
        %v7228 = vadd.f32 %v7220, %v7224
        %v7229 = vadd.f32 %v7221, %v7225
        %v7230 = vadd.f32 %v7222, %v7226
        %7231 = vxpose.xlu0.b32.start [1/16] %v7227, 128
        %7232 = vxpose.xlu0.b32.cont [2/16] %v7228, 128
        %7233 = vxpose.xlu0.b32.cont [3/16] %v7229, 128
        %7234 = vxpose.xlu0.b32.cont [4/16] %v7230, 128
        %7235 = vxpose.xlu0.b32.cont [5/16] 0.0, 128
        %7236 = vxpose.xlu0.b32.cont [6/16] 0.0, 128
        %7237 = vxpose.xlu0.b32.cont [7/16] 0.0, 128
        %7238 = vxpose.xlu0.b32.cont [8/16] 0.0, 128
        %7239 = vxpose.xlu0.b32.cont [9/16] 0.0, 128
        %7240 = vxpose.xlu0.b32.cont [10/16] 0.0, 128
        %7241 = vxpose.xlu0.b32.cont [11/16] 0.0, 128
        %7242 = vxpose.xlu0.b32.cont [12/16] 0.0, 128
        %7243 = vxpose.xlu0.b32.cont [13/16] 0.0, 128
        %7244 = vxpose.xlu0.b32.cont [14/16] 0.0, 128
        %7245 = vxpose.xlu0.b32.cont [15/16] 0.0, 128
        %7246 = vxpose.xlu0.b32.end [16/16] 0.0, 128
        %v7247 = vpop.trf.xlu0
        %v7248 = vpop.trf.xlu0
        %v7249 = vpop.trf.xlu0
        %v7250 = vpop.trf.xlu0
        %v7251 = vpop.trf.xlu0
        %v7252 = vpop.trf.xlu0
        %v7253 = vpop.trf.xlu0
        %v7254 = vpop.trf.xlu0
        %v7255 = vpop.trf.xlu0
        %v7256 = vpop.trf.xlu0
        %v7257 = vpop.trf.xlu0
        %v7258 = vpop.trf.xlu0
        %v7259 = vpop.trf.xlu0
        %v7260 = vpop.trf.xlu0
        %v7261 = vpop.trf.xlu0
        %v7262 = vpop.trf.xlu0
        %s7263 = scalar_lea.vmem %s298, 208 [#allocation6]
        %7264 = vst.msk [vmem:[%s7263] sm:$0xff] %vm6067, %v7247
        %v7265 = vmul.f32 %v5847, 0.9354839
        %v7266 = vmul.f32 %v5852, 0.9354839
        %v7267 = vmul.f32 %v5857, 0.9354839
        %v7268 = vmul.f32 %v5862, 0.9354839
        %v7269 = vmul.f32 %v5932, 0.06451613
        %v7270 = vmul.f32 %v5937, 0.06451613
        %v7271 = vmul.f32 %v5942, 0.06451613
        %v7272 = vmul.f32 %v5947, 0.06451613
        %v7273 = vadd.f32 %v7265, %v7269
        %v7274 = vadd.f32 %v7266, %v7270
        %v7275 = vadd.f32 %v7267, %v7271
        %v7276 = vadd.f32 %v7268, %v7272
        %7277 = vxpose.xlu0.b32.start [1/16] %v7273, 128
        %7278 = vxpose.xlu0.b32.cont [2/16] %v7274, 128
        %7279 = vxpose.xlu0.b32.cont [3/16] %v7275, 128
        %7280 = vxpose.xlu0.b32.cont [4/16] %v7276, 128
        %7281 = vxpose.xlu0.b32.cont [5/16] 0.0, 128
        %7282 = vxpose.xlu0.b32.cont [6/16] 0.0, 128
        %7283 = vxpose.xlu0.b32.cont [7/16] 0.0, 128
        %7284 = vxpose.xlu0.b32.cont [8/16] 0.0, 128
        %7285 = vxpose.xlu0.b32.cont [9/16] 0.0, 128
        %7286 = vxpose.xlu0.b32.cont [10/16] 0.0, 128
        %7287 = vxpose.xlu0.b32.cont [11/16] 0.0, 128
        %7288 = vxpose.xlu0.b32.cont [12/16] 0.0, 128
        %7289 = vxpose.xlu0.b32.cont [13/16] 0.0, 128
        %7290 = vxpose.xlu0.b32.cont [14/16] 0.0, 128
        %7291 = vxpose.xlu0.b32.cont [15/16] 0.0, 128
        %7292 = vxpose.xlu0.b32.end [16/16] 0.0, 128
        %v7293 = vpop.trf.xlu0
        %v7294 = vpop.trf.xlu0
        %v7295 = vpop.trf.xlu0
        %v7296 = vpop.trf.xlu0
        %v7297 = vpop.trf.xlu0
        %v7298 = vpop.trf.xlu0
        %v7299 = vpop.trf.xlu0
        %v7300 = vpop.trf.xlu0
        %v7301 = vpop.trf.xlu0
        %v7302 = vpop.trf.xlu0
        %v7303 = vpop.trf.xlu0
        %v7304 = vpop.trf.xlu0
        %v7305 = vpop.trf.xlu0
        %v7306 = vpop.trf.xlu0
        %v7307 = vpop.trf.xlu0
        %v7308 = vpop.trf.xlu0
        %s7309 = scalar_lea.vmem %s298, 216 [#allocation6]
        %7310 = vst.msk [vmem:[%s7309] sm:$0xff] %vm6067, %v7293
        %v7311 = vmul.f32 %v5847, 0.4516129
        %v7312 = vmul.f32 %v5852, 0.4516129
        %v7313 = vmul.f32 %v5857, 0.4516129
        %v7314 = vmul.f32 %v5862, 0.4516129
        %v7315 = vmul.f32 %v5932, 0.5483871
        %v7316 = vmul.f32 %v5937, 0.5483871
        %v7317 = vmul.f32 %v5942, 0.5483871
        %v7318 = vmul.f32 %v5947, 0.5483871
        %v7319 = vadd.f32 %v7311, %v7315
        %v7320 = vadd.f32 %v7312, %v7316
        %v7321 = vadd.f32 %v7313, %v7317
        %v7322 = vadd.f32 %v7314, %v7318
        %7323 = vxpose.xlu0.b32.start [1/16] %v7319, 128
        %7324 = vxpose.xlu0.b32.cont [2/16] %v7320, 128
        %7325 = vxpose.xlu0.b32.cont [3/16] %v7321, 128
        %7326 = vxpose.xlu0.b32.cont [4/16] %v7322, 128
        %7327 = vxpose.xlu0.b32.cont [5/16] 0.0, 128
        %7328 = vxpose.xlu0.b32.cont [6/16] 0.0, 128
        %7329 = vxpose.xlu0.b32.cont [7/16] 0.0, 128
        %7330 = vxpose.xlu0.b32.cont [8/16] 0.0, 128
        %7331 = vxpose.xlu0.b32.cont [9/16] 0.0, 128
        %7332 = vxpose.xlu0.b32.cont [10/16] 0.0, 128
        %7333 = vxpose.xlu0.b32.cont [11/16] 0.0, 128
        %7334 = vxpose.xlu0.b32.cont [12/16] 0.0, 128
        %7335 = vxpose.xlu0.b32.cont [13/16] 0.0, 128
        %7336 = vxpose.xlu0.b32.cont [14/16] 0.0, 128
        %7337 = vxpose.xlu0.b32.cont [15/16] 0.0, 128
        %7338 = vxpose.xlu0.b32.end [16/16] 0.0, 128
        %v7339 = vpop.trf.xlu0
        %v7340 = vpop.trf.xlu0
        %v7341 = vpop.trf.xlu0
        %v7342 = vpop.trf.xlu0
        %v7343 = vpop.trf.xlu0
        %v7344 = vpop.trf.xlu0
        %v7345 = vpop.trf.xlu0
        %v7346 = vpop.trf.xlu0
        %v7347 = vpop.trf.xlu0
        %v7348 = vpop.trf.xlu0
        %v7349 = vpop.trf.xlu0
        %v7350 = vpop.trf.xlu0
        %v7351 = vpop.trf.xlu0
        %v7352 = vpop.trf.xlu0
        %v7353 = vpop.trf.xlu0
        %v7354 = vpop.trf.xlu0
        %s7355 = scalar_lea.vmem %s298, 224 [#allocation6]
        %7356 = vst.msk [vmem:[%s7355] sm:$0xff] %vm6067, %v7339
        %v7357 = vmul.f32 %v5932, 0.9677419
        %v7358 = vmul.f32 %v5937, 0.9677419
        %v7359 = vmul.f32 %v5942, 0.9677419
        %v7360 = vmul.f32 %v5947, 0.9677419
        %v7361 = vmul.f32 %v6017, 0.032258064
        %v7362 = vmul.f32 %v6022, 0.032258064
        %v7363 = vmul.f32 %v6027, 0.032258064
        %v7364 = vmul.f32 %v6032, 0.032258064
        %v7365 = vadd.f32 %v7357, %v7361
        %v7366 = vadd.f32 %v7358, %v7362
        %v7367 = vadd.f32 %v7359, %v7363
        %v7368 = vadd.f32 %v7360, %v7364
        %7369 = vxpose.xlu0.b32.start [1/16] %v7365, 128
        %7370 = vxpose.xlu0.b32.cont [2/16] %v7366, 128
        %7371 = vxpose.xlu0.b32.cont [3/16] %v7367, 128
        %7372 = vxpose.xlu0.b32.cont [4/16] %v7368, 128
        %7373 = vxpose.xlu0.b32.cont [5/16] 0.0, 128
        %7374 = vxpose.xlu0.b32.cont [6/16] 0.0, 128
        %7375 = vxpose.xlu0.b32.cont [7/16] 0.0, 128
        %7376 = vxpose.xlu0.b32.cont [8/16] 0.0, 128
        %7377 = vxpose.xlu0.b32.cont [9/16] 0.0, 128
        %7378 = vxpose.xlu0.b32.cont [10/16] 0.0, 128
        %7379 = vxpose.xlu0.b32.cont [11/16] 0.0, 128
        %7380 = vxpose.xlu0.b32.cont [12/16] 0.0, 128
        %7381 = vxpose.xlu0.b32.cont [13/16] 0.0, 128
        %7382 = vxpose.xlu0.b32.cont [14/16] 0.0, 128
        %7383 = vxpose.xlu0.b32.cont [15/16] 0.0, 128
        %7384 = vxpose.xlu0.b32.end [16/16] 0.0, 128
        %v7385 = vpop.trf.xlu0
        %v7386 = vpop.trf.xlu0
        %v7387 = vpop.trf.xlu0
        %v7388 = vpop.trf.xlu0
        %v7389 = vpop.trf.xlu0
        %v7390 = vpop.trf.xlu0
        %v7391 = vpop.trf.xlu0
        %v7392 = vpop.trf.xlu0
        %v7393 = vpop.trf.xlu0
        %v7394 = vpop.trf.xlu0
        %v7395 = vpop.trf.xlu0
        %v7396 = vpop.trf.xlu0
        %v7397 = vpop.trf.xlu0
        %v7398 = vpop.trf.xlu0
        %v7399 = vpop.trf.xlu0
        %v7400 = vpop.trf.xlu0
        %s7401 = scalar_lea.vmem %s298, 232 [#allocation6]
        %7402 = vst.msk [vmem:[%s7401] sm:$0xff] %vm6067, %v7385
        %v7403 = vmul.f32 %v5932, 0.48387095
        %v7404 = vmul.f32 %v5937, 0.48387095
        %v7405 = vmul.f32 %v5942, 0.48387095
        %v7406 = vmul.f32 %v5947, 0.48387095
        %v7407 = vmul.f32 %v6017, 0.516129
        %v7408 = vmul.f32 %v6022, 0.516129
        %v7409 = vmul.f32 %v6027, 0.516129
        %v7410 = vmul.f32 %v6032, 0.516129
        %v7411 = vadd.f32 %v7403, %v7407
        %v7412 = vadd.f32 %v7404, %v7408
        %v7413 = vadd.f32 %v7405, %v7409
        %v7414 = vadd.f32 %v7406, %v7410
        %7415 = vxpose.xlu0.b32.start [1/16] %v7411, 128
        %7416 = vxpose.xlu0.b32.cont [2/16] %v7412, 128
        %7417 = vxpose.xlu0.b32.cont [3/16] %v7413, 128
        %7418 = vxpose.xlu0.b32.cont [4/16] %v7414, 128
        %7419 = vxpose.xlu0.b32.cont [5/16] 0.0, 128
        %7420 = vxpose.xlu0.b32.cont [6/16] 0.0, 128
        %7421 = vxpose.xlu0.b32.cont [7/16] 0.0, 128
        %7422 = vxpose.xlu0.b32.cont [8/16] 0.0, 128
        %7423 = vxpose.xlu0.b32.cont [9/16] 0.0, 128
        %7424 = vxpose.xlu0.b32.cont [10/16] 0.0, 128
        %7425 = vxpose.xlu0.b32.cont [11/16] 0.0, 128
        %7426 = vxpose.xlu0.b32.cont [12/16] 0.0, 128
        %7427 = vxpose.xlu0.b32.cont [13/16] 0.0, 128
        %7428 = vxpose.xlu0.b32.cont [14/16] 0.0, 128
        %7429 = vxpose.xlu0.b32.cont [15/16] 0.0, 128
        %7430 = vxpose.xlu0.b32.end [16/16] 0.0, 128
        %v7431 = vpop.trf.xlu0
        %v7432 = vpop.trf.xlu0
        %v7433 = vpop.trf.xlu0
        %v7434 = vpop.trf.xlu0
        %v7435 = vpop.trf.xlu0
        %v7436 = vpop.trf.xlu0
        %v7437 = vpop.trf.xlu0
        %v7438 = vpop.trf.xlu0
        %v7439 = vpop.trf.xlu0
        %v7440 = vpop.trf.xlu0
        %v7441 = vpop.trf.xlu0
        %v7442 = vpop.trf.xlu0
        %v7443 = vpop.trf.xlu0
        %v7444 = vpop.trf.xlu0
        %v7445 = vpop.trf.xlu0
        %v7446 = vpop.trf.xlu0
        %s7447 = scalar_lea.vmem %s298, 240 [#allocation6]
        %7448 = vst.msk [vmem:[%s7447] sm:$0xff] %vm6067, %v7431
        %7449 = vxpose.xlu0.b32.start [1/16] %v6017, 128
        %7450 = vxpose.xlu0.b32.cont [2/16] %v6022, 128
        %7451 = vxpose.xlu0.b32.cont [3/16] %v6027, 128
        %7452 = vxpose.xlu0.b32.cont [4/16] %v6032, 128
        %7453 = vxpose.xlu0.b32.cont [5/16] 0.0, 128
        %7454 = vxpose.xlu0.b32.cont [6/16] 0.0, 128
        %7455 = vxpose.xlu0.b32.cont [7/16] 0.0, 128
        %7456 = vxpose.xlu0.b32.cont [8/16] 0.0, 128
        %7457 = vxpose.xlu0.b32.cont [9/16] 0.0, 128
        %7458 = vxpose.xlu0.b32.cont [10/16] 0.0, 128
        %7459 = vxpose.xlu0.b32.cont [11/16] 0.0, 128
        %7460 = vxpose.xlu0.b32.cont [12/16] 0.0, 128
        %7461 = vxpose.xlu0.b32.cont [13/16] 0.0, 128
        %7462 = vxpose.xlu0.b32.cont [14/16] 0.0, 128
        %7463 = vxpose.xlu0.b32.cont [15/16] 0.0, 128
        %7464 = vxpose.xlu0.b32.end [16/16] 0.0, 128
        %v7465 = vpop.trf.xlu0
        %v7466 = vpop.trf.xlu0
        %v7467 = vpop.trf.xlu0
        %v7468 = vpop.trf.xlu0
        %v7469 = vpop.trf.xlu0
        %v7470 = vpop.trf.xlu0
        %v7471 = vpop.trf.xlu0
        %v7472 = vpop.trf.xlu0
        %v7473 = vpop.trf.xlu0
        %v7474 = vpop.trf.xlu0
        %v7475 = vpop.trf.xlu0
        %v7476 = vpop.trf.xlu0
        %v7477 = vpop.trf.xlu0
        %v7478 = vpop.trf.xlu0
        %v7479 = vpop.trf.xlu0
        %v7480 = vpop.trf.xlu0
        %s7481 = scalar_lea.vmem %s298, 248 [#allocation6]
        %7482 = vst.msk [vmem:[%s7481] sm:$0xff] %vm6067, %v7465
        %s7483 = sand.u32 %s203, 1
        %s7484 = scalar_lea.sflag [#allocation7], %s7483
        %s7485 = sand.u32 %s203, 1
        %s7486 = smul.addr %s7485, 256
        %s7487 = scalar_lea.vmem [#allocation6], %s7486
        // Predicated region
        $region53: #{tpu_custom_call.1} parent=51 // pred_check
          %p7488 = pneg %p213
        $region54: #{tpu_custom_call.1} parent=51 // pred_check_branch
          %7490 = sbr.rel (%p7488) target = $region56
        $region55: #{tpu_custom_call.1} parent=51 // pred_region
          %s7492 = ssub.s32 4096, 4096
          %7493 = vsyncadd %s7484, %s7492
          %s7494 = smul.addr %s22, 32
          %s7495 = smul.addr %s7494, 128
          %s7496 = scalar_lea.hbm %s8, %s7495
          %s7497 = sshll.u32 %s7487, 4
          %s7498 = int_to_ptr.vmem [resolvable:$true] %s7497
          %7503 = dma.vmem_to_hbm [thread:$0]  %s7498, 4096, %s7496, %s7484, 128, 128, 8
        $region56: #{tpu_custom_call.1} parent=51 // pred_fallthru
          _
      $region52: #{tpu_custom_call.1} parent=5 // pred_fallthru
        _
      %p7504 = scmp.le.s32.totalorder 2, %s17
      // Predicated region
      $region57: #{tpu_custom_call.1} parent=5 // pred_check
        %p7505 = pneg %p7504
      $region58: #{tpu_custom_call.1} parent=5 // pred_check_branch
        %7507 = sbr.rel (%p7505) target = $region60
      $region59: #{tpu_custom_call.1} parent=5 // pred_region
        %s7508 = ssub.s32 %s17, 2
        // Predicated region
        $region61: #{tpu_custom_call.1} parent=59 // pred_check
          %p7509 = pneg %p219
        $region62: #{tpu_custom_call.1} parent=59 // pred_check_branch
          %7511 = sbr.rel (%p7509) target = $region64
        $region63: #{tpu_custom_call.1} parent=59 // pred_region
          %s7512 = sand.u32 %s204, 1
          %s7513 = scalar_lea.sflag [#allocation7], %s7512
          %s7514 = sand.u32 %s204, 1
          %s7515 = smul.addr %s7514, 256
          %s7516 = scalar_lea.vmem [#allocation6], %s7515
          %7517 = dma.done %s7513, 4096
        $region64: #{tpu_custom_call.1} parent=59 // pred_fallthru
          _
      $region60: #{tpu_custom_call.1} parent=5 // pred_fallthru
        _
    $region6: #{tpu_custom_call.1} parent=1 // loop_footer
      %s21 = sadd.s32 1, %s17
    $region7: #{tpu_custom_call.1} parent=1 // loop_footer_branch
      %16 = sbr.rel target = $region3
    $region8: #{tpu_custom_call.1} parent=1 // loop_exit
      _
    %7518 = vsyncpa [#allocation7], 1
    %s7519 = scalar_lea.sflag [#allocation7], 1
    %7520 = vsyncpa %s7519, 1

</llo_original>
